<compile_context>
chip_gen: v6e
topology: v6e:2x2x1
jax: 0.10.0
libtpu: 0.0.40
codegen_flags: <defaults>
</compile_context>

<pallas_src>
import functools
import math

import jax
import jax.numpy as jnp
from jax import lax
from jax.experimental import pallas as pl
from jax.experimental.pallas import tpu as pltpu

# ----------------------------------------------------------------------------
# Model configuration (small demo sizes; real PM2S: hidden=512, ibiVocab=401).
# ----------------------------------------------------------------------------
PITCH_CLASSES = 128
IN_FEATURES = PITCH_CLASSES + 3          # pitch 1-hot + ioi + duration + velocity
IN_FEATURES_PAD = 256                    # lane-friendly padding of the 131 features
CONV_KERNEL = 9
_GROUP_ROWS = 16                         # recurrence inner group = one bf16 sublane tile


# ----------------------------------------------------------------------------
# Per-generation tuning helpers
# ----------------------------------------------------------------------------
@functools.lru_cache(maxsize=1)
def _vmem_capacity_bytes():
    try:
        return int(pltpu.get_tpu_info().vmem_capacity_bytes)
    except Exception:
        return 64 << 20                  # conservative (v7x physical VMEM)


def _vmem_limit_bytes():
    cap = _vmem_capacity_bytes()
    return int(min(cap - (16 << 20), 100 << 20))


def _mosaic_params(dimension_semantics):
    return pltpu.CompilerParams(dimension_semantics=dimension_semantics,
                                vmem_limit_bytes=_vmem_limit_bytes())


def _pick_chunk_steps(T):
    """Recurrence time-chunk size (multiple of 8), sized per generation."""
    if T <= 256:
        return max(8, ((T + 7) // 8) * 8)
    return 512 if _vmem_capacity_bytes() >= (96 << 20) else 256


def _row_tile(rows, target=512):
    assert rows % 8 == 0, rows
    tile = min(rows, (target // 8) * 8)
    while rows % tile:
        tile -= 8
    return tile


# ----------------------------------------------------------------------------
# Pallas kernels
# ----------------------------------------------------------------------------
def conv1d_bn_relu_kernel(xp_ref, w_ref, b_ref, o_ref):
    """'same' Conv1d + folded eval-BatchNorm + ReLU for one batch element.

    xp_ref: (1, T + K - 1, Cin) bf16 zero-padded input
    w_ref : (K, Cin, Cout)      bf16 weights (BN scale folded in)
    b_ref : (1, Cout)           f32 bias (BN shift folded in)

    Per-tap accumulate: K small MXU dots into an f32 accumulator -- no
    (T, K*Cin) im2col intermediate in VMEM.
    """
    T = o_ref.shape[1]
    K = w_ref.shape[0]
    acc = jnp.dot(xp_ref[0, 0:T, :], w_ref[0],
                  preferred_element_type=jnp.float32)
    for k in range(1, K):
        acc = acc + jnp.dot(xp_ref[0, k:k + T, :], w_ref[k],
                            preferred_element_type=jnp.float32)
    acc = acc + b_ref[...]
    o_ref[0] = jnp.maximum(acc, 0.0).astype(o_ref.dtype)


def _make_rows_kernel(n_in, activation, n_out):
    """Row-tiled matmul: act(sum_k xs[k] @ ws[k] + b), lane-split into n_out."""
    def kernel(*refs):
        x_refs = refs[:n_in]
        w_refs = refs[n_in:2 * n_in]
        b_ref = refs[2 * n_in]
        out_refs = refs[2 * n_in + 1:]
        y = jnp.dot(x_refs[0][...], w_refs[0][...],
                    preferred_element_type=jnp.float32)
        for k in range(1, n_in):
            y = y + jnp.dot(x_refs[k][...], w_refs[k][...],
                            preferred_element_type=jnp.float32)
        y = y + b_ref[...]
        if activation == "relu":
            y = jnp.maximum(y, 0.0)
        elif activation == "softmax":
            y = y - jnp.max(y, axis=-1, keepdims=True)
            e = jnp.exp(y)
            y = e * pl.reciprocal(jnp.sum(e, axis=-1, keepdims=True), approx=True)
        d = y.shape[-1] // n_out
        for s in range(n_out):
            out_refs[s][...] = y[:, s * d:(s + 1) * d].astype(out_refs[s].dtype)
    return kernel


def bigru_kernel(gf_ref, gb_ref, whhf_ref, whhb_ref, bhhf_ref, bhhb_ref,
                 yf_ref, yb_ref, hf_scr, hb_scr):
    """Fused bidirectional GRU recurrence over one time chunk.

    gf_ref: (CT*B, 3H) bf16 forward-direction pre-activations, chunk i
            (rows flattened time-major, batch innermost).
    gb_ref: (CT*B, 3H) bf16 backward-direction pre-activations, chunk nc-1-i.
    yf_ref/yb_ref: (CT*B, H) bf16 outputs for the matching chunks.
    hf_scr/hb_scr: (B, H) f32 hidden state persistent across grid steps; the
    in-chunk recurrence carries it in vregs (fori_loop carry).
    Gate order matches PyTorch: [r, z, n]; h' = (1 - z) * n + z * h.
    """
    ctb = gf_ref.shape[0]
    B, H = hf_scr.shape
    group = _GROUP_ROWS
    spg = group // B                       # time steps per 16-row group
    ngroups = ctb // group

    @pl.when(pl.program_id(0) == 0)
    def _():
        hf_scr[...] = jnp.zeros_like(hf_scr)
        hb_scr[...] = jnp.zeros_like(hb_scr)

    whh_f = whhf_ref[...]
    whh_b = whhb_ref[...]
    bhh_f = bhhf_ref[...]
    bhh_b = bhhb_ref[...]

    def cell(gi, h, whh, bhh):
        gh = jnp.dot(h.astype(whh.dtype), whh,
                     preferred_element_type=jnp.float32) + bhh
        gi = gi.astype(jnp.float32)
        rz = jax.nn.sigmoid(gi[:, :2 * H] + gh[:, :2 * H])   # fused r|z sigmoid
        r, z = rz[:, :H], rz[:, H:]
        n = jnp.tanh(gi[:, 2 * H:] + r * gh[:, 2 * H:])
        return (1.0 - z) * n + z * h

    def group_step(g, carry):
        h_f, h_b = carry
        off_f = pl.multiple_of(g * group, group)
        off_b = pl.multiple_of((ngroups - 1 - g) * group, group)
        gf_g = gf_ref[pl.ds(off_f, group), :]                 # (16, 3H)
        gb_g = gb_ref[pl.ds(off_b, group), :]
        yf_rows = []
        yb_rows = [None] * spg
        for s in range(spg):                                  # forward time order
            h_f = cell(gf_g[s * B:(s + 1) * B, :], h_f, whh_f, bhh_f)
            yf_rows.append(h_f)
        for s in range(spg - 1, -1, -1):                      # backward time order
            h_b = cell(gb_g[s * B:(s + 1) * B, :], h_b, whh_b, bhh_b)
            yb_rows[s] = h_b
        yf_ref[pl.ds(off_f, group), :] = (
            jnp.concatenate(yf_rows, axis=0).astype(yf_ref.dtype))
        yb_ref[pl.ds(off_b, group), :] = (
            jnp.concatenate(yb_rows, axis=0).astype(yb_ref.dtype))
        return h_f, h_b

    h_f, h_b = lax.fori_loop(0, ngroups, group_step,
                             (hf_scr[...], hb_scr[...]))
    hf_scr[...] = h_f
    hb_scr[...] = h_b


# ----------------------------------------------------------------------------
# pallas_call wrappers
# ----------------------------------------------------------------------------
def conv1d_bn_relu(x, w, b):
    B, T, Cin = x.shape
    K, _, Cout = w.shape
    pad = K // 2
    xp = jnp.pad(x, ((0, 0), (pad, pad), (0, 0)))
    Tp = T + 2 * pad
    return pl.pallas_call(
        conv1d_bn_relu_kernel,
        out_shape=jax.ShapeDtypeStruct((B, T, Cout), jnp.bfloat16),
        grid_spec=pltpu.PrefetchScalarGridSpec(
            num_scalar_prefetch=0,
            grid=(B,),
            in_specs=[
                pl.BlockSpec((1, Tp, Cin), lambda i: (i, 0, 0)),
                pl.BlockSpec((K, Cin, Cout), lambda i: (0, 0, 0)),
                pl.BlockSpec((1, Cout), lambda i: (0, 0)),
            ],
            out_specs=pl.BlockSpec((1, T, Cout), lambda i: (i, 0, 0)),
        ),
        compiler_params=_mosaic_params(("parallel",)),
    )(xp, w, b)


def rows_matmul(xs, ws, b, *, activation="none", out_dtypes=(jnp.bfloat16,)):
    """act(sum_k xs[k] @ ws[k] + b) over flattened rows, row-tiled for the MXU.

    Multiple inputs let the fwd/bwd GRU halves be consumed without a host
    concat; multiple out_dtypes split the result along lanes (gi_fwd / gi_bwd
    in one pass) so each half is written -- and later DMA'd -- exactly once.
    """
    xs, ws = tuple(xs), tuple(ws)
    R = xs[0].shape[0]
    Dout = ws[0].shape[1]
    n_out = len(out_dtypes)
    d_sub = Dout // n_out
    RT = _row_tile(R)
    n_in = len(xs)

    in_specs = []
    for x in xs:
        din = x.shape[1]
        in_specs.append(pl.BlockSpec((RT, din), lambda i: (i, 0)))
    for w in ws:
        in_specs.append(pl.BlockSpec(w.shape, lambda i: (0, 0)))
    in_specs.append(pl.BlockSpec((1, Dout), lambda i: (0, 0)))

    out_shape = tuple(jax.ShapeDtypeStruct((R, d_sub), dt) for dt in out_dtypes)
    out_specs = [pl.BlockSpec((RT, d_sub), lambda i: (i, 0)) for _ in out_dtypes]
    if n_out == 1:
        out_shape, out_specs = out_shape[0], out_specs[0]

    out = pl.pallas_call(
        _make_rows_kernel(n_in, activation, n_out),
        out_shape=out_shape,
        grid_spec=pltpu.PrefetchScalarGridSpec(
            num_scalar_prefetch=0,
            grid=(R // RT,),
            in_specs=in_specs,
            out_specs=out_specs,
        ),
        compiler_params=_mosaic_params(("parallel",)),
    )(*xs, *ws, b)
    return (out,) if n_out == 1 else tuple(out)


def bigru_recurrence(gi_f, gi_b, whh_f, whh_b, bhh_f, bhh_b, batch, chunk_steps):
    Rp, G3 = gi_f.shape
    H = G3 // 3
    ctb = chunk_steps * batch
    assert ctb % _GROUP_ROWS == 0 and Rp % ctb == 0
    nc = Rp // ctb
    yf, yb = pl.pallas_call(
        bigru_kernel,
        out_shape=(jax.ShapeDtypeStruct((Rp, H), jnp.bfloat16),
                   jax.ShapeDtypeStruct((Rp, H), jnp.bfloat16)),
        grid_spec=pltpu.PrefetchScalarGridSpec(
            num_scalar_prefetch=0,
            grid=(nc,),
            in_specs=[
                pl.BlockSpec((ctb, G3), lambda i: (i, 0)),            # fwd chunk i
                pl.BlockSpec((ctb, G3), lambda i: (nc - 1 - i, 0)),   # bwd chunk
                pl.BlockSpec((H, G3), lambda i: (0, 0)),
                pl.BlockSpec((H, G3), lambda i: (0, 0)),
                pl.BlockSpec((1, G3), lambda i: (0, 0)),
                pl.BlockSpec((1, G3), lambda i: (0, 0)),
            ],
            out_specs=[
                pl.BlockSpec((ctb, H), lambda i: (i, 0)),
                pl.BlockSpec((ctb, H), lambda i: (nc - 1 - i, 0)),
            ],
            scratch_shapes=[pltpu.VMEM((batch, H), jnp.float32),
                            pltpu.VMEM((batch, H), jnp.float32)],
        ),
        compiler_params=_mosaic_params(("arbitrary",)),
    )(gi_f, gi_b, whh_f, whh_b, bhh_f, bhh_b)
    return yf, yb


# ----------------------------------------------------------------------------
# Plain-JAX glue: note-sequence encoding (cheap, non-hot-path)
# ----------------------------------------------------------------------------
def encode_note_sequence(x):
    # x: (B, T, 4) = (pitch, onset, duration, velocity)
    pitch = x[..., 0].astype(jnp.int32)
    onset = x[..., 1]
    duration = x[..., 2]
    velocity = x[..., 3]
    pitch_oh = jax.nn.one_hot(pitch, PITCH_CLASSES, dtype=jnp.float32)
    ioi = jnp.concatenate(
        [jnp.zeros_like(onset[:, :1]), onset[:, 1:] - onset[:, :-1]], axis=1)
    feats = jnp.concatenate(
        [pitch_oh, ioi[..., None], duration[..., None],
         (velocity / 127.0)[..., None]], axis=-1)            # (B, T, 131)
    pad = IN_FEATURES_PAD - feats.shape[-1]
    feats = jnp.pad(feats, ((0, 0), (0, 0), (0, pad)))       # lane-friendly 256
    return feats.astype(jnp.bfloat16)


# ----------------------------------------------------------------------------
# Full forward pass
# ----------------------------------------------------------------------------
def rnn_tempo_forward(x, params):
    B, T, _ = x.shape
    assert _GROUP_ROWS % B == 0, "recurrence grouping assumes B divides 16"

    h = encode_note_sequence(x)                              # (B, T, 256) bf16

    # ConvBlock: 3 x [Conv1d k=9 'same' + BN(eval, folded) + ReLU]; Dropout=id.
    for (w, b) in params["convs"]:
        h = conv1d_bn_relu(h, w, b)                          # (B, T, C) bf16

    # Single layout change to time-major interleaved rows (t, b) -> t*B + b.
    h = jnp.transpose(h, (1, 0, 2))                          # (T, B, C)

    CT = _pick_chunk_steps(T)
    Tpad = ((T + CT - 1) // CT) * CT
    if Tpad != T:
        h = jnp.pad(h, ((0, Tpad - T), (0, 0), (0, 0)))
    Rp = Tpad * B
    xs = (h.reshape(Rp, h.shape[-1]),)

    # GRUBlock: 2-layer bidirectional GRU.
    H = params["gru_layers"][0]["whh_f"].shape[0]
    for layer in params["gru_layers"]:
        # Input projection for both directions in one row-tiled matmul; the
        # fwd/bwd halves come out as two bf16 arrays so the recurrence DMA's
        # each exactly once (fwd chunks ascending, bwd chunks descending).
        gf, gb = rows_matmul(xs, layer["wih_list"], layer["bih"],
                             activation="none",
                             out_dtypes=(jnp.bfloat16, jnp.bfloat16))
        if Tpad != T:
            # Padded tail steps: force the backward state to (re)start from ~0
            # before it reaches the real sequence (r,z = sigmoid(-30), n = 0).
            npad = (Tpad - T) * B
            reset = jnp.concatenate(
                [jnp.full((npad, 2 * H), -30.0, gb.dtype),
                 jnp.zeros((npad, H), gb.dtype)], axis=-1)
            gb = lax.dynamic_update_slice(gb, reset, (T * B, 0))
        yf, yb = bigru_recurrence(gf, gb, layer["whh_f"], layer["whh_b"],
                                  layer["bhh_f"], layer["bhh_b"], B, CT)
        xs = (yf, yb)                                        # no host concat

    # ... followed by Linear + ReLU (consumes the fwd/bwd halves directly).
    h2, = rows_matmul(xs, params["gru_lin_w_list"], params["gru_lin_b"],
                      activation="relu", out_dtypes=(jnp.bfloat16,))

    # LinearOutput: Linear + softmax (vocab padded to 128 lanes, pad bias -1e9
    # so the softmax over the real vocab is exact).
    y, = rows_matmul((h2,), (params["out_w"],), params["out_b"],
                     activation="softmax", out_dtypes=(jnp.float32,))
    v = params["ibi_vocab"]
    y = y.reshape(Tpad, B, -1)[:T, :, :v]                    # drop time/lane pad

    # y_tempo.transpose(1, 2)  ==>  (B, ibiVocab, T)
    return jnp.transpose(y, (1, 2, 0))


# ----------------------------------------------------------------------------
# Deterministic synthetic parameters (bf16 weights, f32 biases)
# ----------------------------------------------------------------------------
def init_params(key, hidden_size, ibi_vocab, conv_kernel=CONV_KERNEL):
    keys = iter(jax.random.split(key, 64))

    def nrm(shape, scale=0.05):
        return scale * jax.random.normal(next(keys), shape, dtype=jnp.float32)

    # eval-mode BatchNorm1d with default running stats: y = x / sqrt(1 + eps)
    # TODO(synk): for real checkpoints fold per-channel running mean/var and
    #             permute the PyTorch (Cout, Cin, K) / (3H, Din) weight layouts.
    bn_scale = 1.0 / math.sqrt(1.0 + 1e-5)
    conv_dims = [hidden_size // 4, hidden_size // 2, hidden_size]
    convs = []
    cin = IN_FEATURES_PAD
    for cout in conv_dims:
        w = nrm((conv_kernel, cin, cout)) * bn_scale         # (K, Cin, Cout)
        b = nrm((1, cout)) * bn_scale                        # BN shift == 0
        convs.append((w.astype(jnp.bfloat16), b))
        cin = cout

    H = hidden_size // 2
    gru_layers = []
    din = hidden_size
    for layer_idx in range(2):
        wih_f, wih_b = nrm((din, 3 * H)), nrm((din, 3 * H))  # W_ih^T, order [r,z,n]
        wih = jnp.concatenate([wih_f, wih_b], axis=1)        # (din, 6H)
        bih = jnp.concatenate([nrm((1, 3 * H)), nrm((1, 3 * H))], axis=1)
        if layer_idx == 0:
            wih_list = (wih.astype(jnp.bfloat16),)
        else:
            # layer-2 input arrives as (y_fwd, y_bwd): split W_ih input rows
            wih_list = (wih[:H].astype(jnp.bfloat16), wih[H:].astype(jnp.bfloat16))
        gru_layers.append({
            "wih_list": wih_list,
            "bih": bih,
            "whh_f": nrm((H, 3 * H)).astype(jnp.bfloat16),   # W_hh^T
            "whh_b": nrm((H, 3 * H)).astype(jnp.bfloat16),
            "bhh_f": nrm((1, 3 * H)),
            "bhh_b": nrm((1, 3 * H)),
        })
        din = 2 * H

    lin_w = nrm((hidden_size, hidden_size))
    v_pad = ((ibi_vocab + 127) // 128) * 128
    out_w = jnp.zeros((hidden_size, v_pad), jnp.float32)
    out_w = out_w.at[:, :ibi_vocab].set(nrm((hidden_size, ibi_vocab)))
    out_b = jnp.full((1, v_pad), -1e9, jnp.float32)
    out_b = out_b.at[:, :ibi_vocab].set(nrm((1, ibi_vocab)))

    return {
        "convs": convs,
        "gru_layers": gru_layers,
        "gru_lin_w_list": (lin_w[:H].astype(jnp.bfloat16),
                           lin_w[H:].astype(jnp.bfloat16)),
        "gru_lin_b": nrm((1, hidden_size)),
        "out_w": out_w.astype(jnp.bfloat16),
        "out_b": out_b,
        "ibi_vocab": ibi_vocab,
    }


# ----------------------------------------------------------------------------
# Demo
# ----------------------------------------------------------------------------
if __name__ == "__main__":
    B, T = 2, 8
    hidden_size = 32        # real PM2S default: 512
    ibi_vocab = 64          # real PM2S ibiVocab: 401

    key = jax.random.PRNGKey(0)
    k1, k2, k3, k4, kp = jax.random.split(key, 5)
    pitch = jax.random.randint(k1, (B, T), 0, 128).astype(jnp.float32)
    ioi = jax.random.uniform(k2, (B, T), minval=0.05, maxval=0.5)
    onset = jnp.cumsum(ioi, axis=1)
    duration = jax.random.uniform(k3, (B, T), minval=0.05, maxval=1.0)
    velocity = jax.random.randint(k4, (B, T), 1, 128).astype(jnp.float32)
    x = jnp.stack([pitch, onset, duration, velocity], axis=-1)   # (B, T, 4)

    params = init_params(kp, hidden_size, ibi_vocab)

    forward = jax.jit(lambda inp: rnn_tempo_forward(inp, params))
    y = jax.block_until_ready(forward(x))

    assert y.shape == (B, ibi_vocab, T), y.shape
    # softmax over the vocab axis (axis=1 after the final transpose) sums to 1
    assert jnp.allclose(jnp.sum(y, axis=1), 1.0, atol=1e-2)
    print("KERNEL_OK")
</pallas_src>

<mosaic_0001>
module attributes {stable_mosaic.version = 11 : i64} {
  func.func @conv1d_bn_relu_kernel(%arg0: i32, %arg1: memref<1x16x16xbf16, #tpu.memory_space<vmem>>, %arg2: memref<9x16x32xbf16, #tpu.memory_space<vmem>>, %arg3: memref<1x32xf32, #tpu.memory_space<vmem>>, %arg4: memref<1x8x32xbf16, #tpu.memory_space<vmem>>) attributes {dimension_semantics = [#tpu.dimension_semantics<parallel>], iteration_bounds = array<i64: 2>, scalar_prefetch = 0 : i64, scratch_operands = 0 : i64, tpu.core_type = #tpu.core_type<tc>, window_params = [{transform_indices = @transform_0, window_bounds = array<i64: 1, 16, 16>}, {pipeline_mode = #tpu.pipeline_mode<synchronous>, transform_indices = @transform_1, window_bounds = array<i64: 9, 16, 32>}, {pipeline_mode = #tpu.pipeline_mode<synchronous>, transform_indices = @transform_2, window_bounds = array<i64: 1, 32>}, {transform_indices = @transform_3, window_bounds = array<i64: 1, 8, 32>}]} {
    %c0 = arith.constant 0 : index
    %c0_0 = arith.constant 0 : index
    %c0_1 = arith.constant 0 : index
    %0 = vector.load %arg1[%c0, %c0_0, %c0_1] : memref<1x16x16xbf16, #tpu.memory_space<vmem>>, vector<1x8x16xbf16>
    %1 = vector.shape_cast %0 : vector<1x8x16xbf16> to vector<8x16xbf16>
    %c0_2 = arith.constant 0 : index
    %c0_3 = arith.constant 0 : index
    %c0_4 = arith.constant 0 : index
    %2 = vector.load %arg2[%c0_2, %c0_3, %c0_4] : memref<9x16x32xbf16, #tpu.memory_space<vmem>>, vector<1x16x32xbf16>
    %3 = vector.shape_cast %2 : vector<1x16x32xbf16> to vector<16x32xbf16>
    %cst = arith.constant dense<0.000000e+00> : vector<8x32xf32>
    %4 = tpu.matmul %1, %3, %cst {dimension_numbers = #tpu.dot_dimension_numbers<[1], [0], [0], [1], [0, 0, 1, 1], [], []>} : vector<8x16xbf16>, vector<16x32xbf16>, vector<8x32xf32> -> vector<8x32xf32>
    %c0_5 = arith.constant 0 : index
    %c1 = arith.constant 1 : index
    %c0_6 = arith.constant 0 : index
    %5 = vector.load %arg1[%c0_5, %c1, %c0_6] : memref<1x16x16xbf16, #tpu.memory_space<vmem>>, vector<1x8x16xbf16>
    %6 = vector.shape_cast %5 : vector<1x8x16xbf16> to vector<8x16xbf16>
    %c1_7 = arith.constant 1 : index
    %c0_8 = arith.constant 0 : index
    %c0_9 = arith.constant 0 : index
    %7 = vector.load %arg2[%c1_7, %c0_8, %c0_9] : memref<9x16x32xbf16, #tpu.memory_space<vmem>>, vector<1x16x32xbf16>
    %8 = vector.shape_cast %7 : vector<1x16x32xbf16> to vector<16x32xbf16>
    %cst_10 = arith.constant dense<0.000000e+00> : vector<8x32xf32>
    %9 = tpu.matmul %6, %8, %cst_10 {dimension_numbers = #tpu.dot_dimension_numbers<[1], [0], [0], [1], [0, 0, 1, 1], [], []>} : vector<8x16xbf16>, vector<16x32xbf16>, vector<8x32xf32> -> vector<8x32xf32>
    %10 = arith.addf %4, %9 : vector<8x32xf32>
    %c0_11 = arith.constant 0 : index
    %c2 = arith.constant 2 : index
    %c0_12 = arith.constant 0 : index
    %11 = vector.load %arg1[%c0_11, %c2, %c0_12] : memref<1x16x16xbf16, #tpu.memory_space<vmem>>, vector<1x8x16xbf16>
    %12 = vector.shape_cast %11 : vector<1x8x16xbf16> to vector<8x16xbf16>
    %c2_13 = arith.constant 2 : index
    %c0_14 = arith.constant 0 : index
    %c0_15 = arith.constant 0 : index
    %13 = vector.load %arg2[%c2_13, %c0_14, %c0_15] : memref<9x16x32xbf16, #tpu.memory_space<vmem>>, vector<1x16x32xbf16>
    %14 = vector.shape_cast %13 : vector<1x16x32xbf16> to vector<16x32xbf16>
    %cst_16 = arith.constant dense<0.000000e+00> : vector<8x32xf32>
    %15 = tpu.matmul %12, %14, %cst_16 {dimension_numbers = #tpu.dot_dimension_numbers<[1], [0], [0], [1], [0, 0, 1, 1], [], []>} : vector<8x16xbf16>, vector<16x32xbf16>, vector<8x32xf32> -> vector<8x32xf32>
    %16 = arith.addf %10, %15 : vector<8x32xf32>
    %c0_17 = arith.constant 0 : index
    %c3 = arith.constant 3 : index
    %c0_18 = arith.constant 0 : index
    %17 = vector.load %arg1[%c0_17, %c3, %c0_18] : memref<1x16x16xbf16, #tpu.memory_space<vmem>>, vector<1x8x16xbf16>
    %18 = vector.shape_cast %17 : vector<1x8x16xbf16> to vector<8x16xbf16>
    %c3_19 = arith.constant 3 : index
    %c0_20 = arith.constant 0 : index
    %c0_21 = arith.constant 0 : index
    %19 = vector.load %arg2[%c3_19, %c0_20, %c0_21] : memref<9x16x32xbf16, #tpu.memory_space<vmem>>, vector<1x16x32xbf16>
    %20 = vector.shape_cast %19 : vector<1x16x32xbf16> to vector<16x32xbf16>
    %cst_22 = arith.constant dense<0.000000e+00> : vector<8x32xf32>
    %21 = tpu.matmul %18, %20, %cst_22 {dimension_numbers = #tpu.dot_dimension_numbers<[1], [0], [0], [1], [0, 0, 1, 1], [], []>} : vector<8x16xbf16>, vector<16x32xbf16>, vector<8x32xf32> -> vector<8x32xf32>
    %22 = arith.addf %16, %21 : vector<8x32xf32>
    %c0_23 = arith.constant 0 : index
    %c4 = arith.constant 4 : index
    %c0_24 = arith.constant 0 : index
    %23 = vector.load %arg1[%c0_23, %c4, %c0_24] : memref<1x16x16xbf16, #tpu.memory_space<vmem>>, vector<1x8x16xbf16>
    %24 = vector.shape_cast %23 : vector<1x8x16xbf16> to vector<8x16xbf16>
    %c4_25 = arith.constant 4 : index
    %c0_26 = arith.constant 0 : index
    %c0_27 = arith.constant 0 : index
    %25 = vector.load %arg2[%c4_25, %c0_26, %c0_27] : memref<9x16x32xbf16, #tpu.memory_space<vmem>>, vector<1x16x32xbf16>
    %26 = vector.shape_cast %25 : vector<1x16x32xbf16> to vector<16x32xbf16>
    %cst_28 = arith.constant dense<0.000000e+00> : vector<8x32xf32>
    %27 = tpu.matmul %24, %26, %cst_28 {dimension_numbers = #tpu.dot_dimension_numbers<[1], [0], [0], [1], [0, 0, 1, 1], [], []>} : vector<8x16xbf16>, vector<16x32xbf16>, vector<8x32xf32> -> vector<8x32xf32>
    %28 = arith.addf %22, %27 : vector<8x32xf32>
    %c0_29 = arith.constant 0 : index
    %c5 = arith.constant 5 : index
    %c0_30 = arith.constant 0 : index
    %29 = vector.load %arg1[%c0_29, %c5, %c0_30] : memref<1x16x16xbf16, #tpu.memory_space<vmem>>, vector<1x8x16xbf16>
    %30 = vector.shape_cast %29 : vector<1x8x16xbf16> to vector<8x16xbf16>
    %c5_31 = arith.constant 5 : index
    %c0_32 = arith.constant 0 : index
    %c0_33 = arith.constant 0 : index
    %31 = vector.load %arg2[%c5_31, %c0_32, %c0_33] : memref<9x16x32xbf16, #tpu.memory_space<vmem>>, vector<1x16x32xbf16>
    %32 = vector.shape_cast %31 : vector<1x16x32xbf16> to vector<16x32xbf16>
    %cst_34 = arith.constant dense<0.000000e+00> : vector<8x32xf32>
    %33 = tpu.matmul %30, %32, %cst_34 {dimension_numbers = #tpu.dot_dimension_numbers<[1], [0], [0], [1], [0, 0, 1, 1], [], []>} : vector<8x16xbf16>, vector<16x32xbf16>, vector<8x32xf32> -> vector<8x32xf32>
    %34 = arith.addf %28, %33 : vector<8x32xf32>
    %c0_35 = arith.constant 0 : index
    %c6 = arith.constant 6 : index
    %c0_36 = arith.constant 0 : index
    %35 = vector.load %arg1[%c0_35, %c6, %c0_36] : memref<1x16x16xbf16, #tpu.memory_space<vmem>>, vector<1x8x16xbf16>
    %36 = vector.shape_cast %35 : vector<1x8x16xbf16> to vector<8x16xbf16>
    %c6_37 = arith.constant 6 : index
    %c0_38 = arith.constant 0 : index
    %c0_39 = arith.constant 0 : index
    %37 = vector.load %arg2[%c6_37, %c0_38, %c0_39] : memref<9x16x32xbf16, #tpu.memory_space<vmem>>, vector<1x16x32xbf16>
    %38 = vector.shape_cast %37 : vector<1x16x32xbf16> to vector<16x32xbf16>
    %cst_40 = arith.constant dense<0.000000e+00> : vector<8x32xf32>
    %39 = tpu.matmul %36, %38, %cst_40 {dimension_numbers = #tpu.dot_dimension_numbers<[1], [0], [0], [1], [0, 0, 1, 1], [], []>} : vector<8x16xbf16>, vector<16x32xbf16>, vector<8x32xf32> -> vector<8x32xf32>
    %40 = arith.addf %34, %39 : vector<8x32xf32>
    %c0_41 = arith.constant 0 : index
    %c7 = arith.constant 7 : index
    %c0_42 = arith.constant 0 : index
    %41 = vector.load %arg1[%c0_41, %c7, %c0_42] : memref<1x16x16xbf16, #tpu.memory_space<vmem>>, vector<1x8x16xbf16>
    %42 = vector.shape_cast %41 : vector<1x8x16xbf16> to vector<8x16xbf16>
    %c7_43 = arith.constant 7 : index
    %c0_44 = arith.constant 0 : index
    %c0_45 = arith.constant 0 : index
    %43 = vector.load %arg2[%c7_43, %c0_44, %c0_45] : memref<9x16x32xbf16, #tpu.memory_space<vmem>>, vector<1x16x32xbf16>
    %44 = vector.shape_cast %43 : vector<1x16x32xbf16> to vector<16x32xbf16>
    %cst_46 = arith.constant dense<0.000000e+00> : vector<8x32xf32>
    %45 = tpu.matmul %42, %44, %cst_46 {dimension_numbers = #tpu.dot_dimension_numbers<[1], [0], [0], [1], [0, 0, 1, 1], [], []>} : vector<8x16xbf16>, vector<16x32xbf16>, vector<8x32xf32> -> vector<8x32xf32>
    %46 = arith.addf %40, %45 : vector<8x32xf32>
    %c0_47 = arith.constant 0 : index
    %c8 = arith.constant 8 : index
    %c0_48 = arith.constant 0 : index
    %47 = vector.load %arg1[%c0_47, %c8, %c0_48] : memref<1x16x16xbf16, #tpu.memory_space<vmem>>, vector<1x8x16xbf16>
    %48 = vector.shape_cast %47 : vector<1x8x16xbf16> to vector<8x16xbf16>
    %c8_49 = arith.constant 8 : index
    %c0_50 = arith.constant 0 : index
    %c0_51 = arith.constant 0 : index
    %49 = vector.load %arg2[%c8_49, %c0_50, %c0_51] : memref<9x16x32xbf16, #tpu.memory_space<vmem>>, vector<1x16x32xbf16>
    %50 = vector.shape_cast %49 : vector<1x16x32xbf16> to vector<16x32xbf16>
    %cst_52 = arith.constant dense<0.000000e+00> : vector<8x32xf32>
    %51 = tpu.matmul %48, %50, %cst_52 {dimension_numbers = #tpu.dot_dimension_numbers<[1], [0], [0], [1], [0, 0, 1, 1], [], []>} : vector<8x16xbf16>, vector<16x32xbf16>, vector<8x32xf32> -> vector<8x32xf32>
    %52 = arith.addf %46, %51 : vector<8x32xf32>
    %c0_53 = arith.constant 0 : index
    %c0_54 = arith.constant 0 : index
    %53 = vector.load %arg3[%c0_53, %c0_54] : memref<1x32xf32, #tpu.memory_space<vmem>>, vector<1x32xf32>
    %54 = vector.broadcast %53 : vector<1x32xf32> to vector<8x32xf32>
    %55 = arith.addf %52, %54 : vector<8x32xf32>
    %cst_55 = arith.constant 0.000000e+00 : f32
    %56 = vector.broadcast %cst_55 : f32 to vector<8x32xf32>
    %57 = arith.maximumf %55, %56 : vector<8x32xf32>
    %58 = arith.truncf %57 : vector<8x32xf32> to vector<8x32xbf16>
    %c0_56 = arith.constant 0 : index
    %c0_57 = arith.constant 0 : index
    %c0_58 = arith.constant 0 : index
    %59 = vector.load %arg4[%c0_56, %c0_57, %c0_58] : memref<1x8x32xbf16, #tpu.memory_space<vmem>>, vector<1x8x32xbf16>
    %60 = vector.shape_cast %59 : vector<1x8x32xbf16> to vector<8x32xbf16>
    %61 = vector.shape_cast %58 : vector<8x32xbf16> to vector<1x8x32xbf16>
    tpu.vector_store %arg4[%c0_56, %c0_57, %c0_58], %61 {strides = array<i32>} : memref<1x8x32xbf16, #tpu.memory_space<vmem>>, vector<1x8x32xbf16>,
    return
  }
  func.func @transform_0(%arg0: i32) -> (i32, i32, i32) {
    %c0_i32 = arith.constant 0 : i32
    %c0_i32_0 = arith.constant 0 : i32
    %c0_i32_1 = arith.constant 0 : i32
    return %arg0, %c0_i32, %c0_i32_0 : i32, i32, i32
  }
  func.func @transform_1(%arg0: i32) -> (i32, i32, i32) {
    %c0_i32 = arith.constant 0 : i32
    %c0_i32_0 = arith.constant 0 : i32
    %c0_i32_1 = arith.constant 0 : i32
    %c0_i32_2 = arith.constant 0 : i32
    return %c0_i32, %c0_i32_0, %c0_i32_1 : i32, i32, i32
  }
  func.func @transform_2(%arg0: i32) -> (i32, i32) {
    %c0_i32 = arith.constant 0 : i32
    %c0_i32_0 = arith.constant 0 : i32
    %c0_i32_1 = arith.constant 0 : i32
    return %c0_i32, %c0_i32_0 : i32, i32
  }
  func.func @transform_3(%arg0: i32) -> (i32, i32, i32) {
    %c0_i32 = arith.constant 0 : i32
    %c0_i32_0 = arith.constant 0 : i32
    %c0_i32_1 = arith.constant 0 : i32
    return %arg0, %c0_i32, %c0_i32_0 : i32, i32, i32
  }
}

module attributes {stable_mosaic.version = 11 : i64} {
  func.func @kernel(%arg0: i32, %arg1: memref<16x32xbf16, #tpu.memory_space<vmem>>, %arg2: memref<32x96xbf16, #tpu.memory_space<vmem>>, %arg3: memref<1x96xf32, #tpu.memory_space<vmem>>, %arg4: memref<16x48xbf16, #tpu.memory_space<vmem>>, %arg5: memref<16x48xbf16, #tpu.memory_space<vmem>>) attributes {dimension_semantics = [#tpu.dimension_semantics<parallel>], iteration_bounds = array<i64: 1>, scalar_prefetch = 0 : i64, scratch_operands = 0 : i64, tpu.core_type = #tpu.core_type<tc>, window_params = [{transform_indices = @transform_0, window_bounds = array<i64: 16, 32>}, {pipeline_mode = #tpu.pipeline_mode<synchronous>, transform_indices = @transform_1, window_bounds = array<i64: 32, 96>}, {pipeline_mode = #tpu.pipeline_mode<synchronous>, transform_indices = @transform_2, window_bounds = array<i64: 1, 96>}, {transform_indices = @transform_3, window_bounds = array<i64: 16, 48>}, {transform_indices = @transform_4, window_bounds = array<i64: 16, 48>}]} {
    %c0 = arith.constant 0 : index
    %c0_0 = arith.constant 0 : index
    %0 = vector.load %arg1[%c0, %c0_0] : memref<16x32xbf16, #tpu.memory_space<vmem>>, vector<16x32xbf16>
    %c0_1 = arith.constant 0 : index
    %c0_2 = arith.constant 0 : index
    %1 = vector.load %arg2[%c0_1, %c0_2] : memref<32x96xbf16, #tpu.memory_space<vmem>>, vector<32x96xbf16>
    %cst = arith.constant dense<0.000000e+00> : vector<16x96xf32>
    %2 = tpu.matmul %0, %1, %cst {dimension_numbers = #tpu.dot_dimension_numbers<[1], [0], [0], [1], [0, 0, 1, 1], [], []>} : vector<16x32xbf16>, vector<32x96xbf16>, vector<16x96xf32> -> vector<16x96xf32>
    %c0_3 = arith.constant 0 : index
    %c0_4 = arith.constant 0 : index
    %3 = vector.load %arg3[%c0_3, %c0_4] : memref<1x96xf32, #tpu.memory_space<vmem>>, vector<1x96xf32>
    %4 = vector.broadcast %3 : vector<1x96xf32> to vector<16x96xf32>
    %5 = arith.addf %2, %4 : vector<16x96xf32>
    %6 = vector.extract_strided_slice %5 {offsets = [0, 0], sizes = [16, 48], strides = [1, 1]} : vector<16x96xf32> to vector<16x48xf32>
    %7 = arith.truncf %6 : vector<16x48xf32> to vector<16x48xbf16>
    %c0_5 = arith.constant 0 : index
    %c0_6 = arith.constant 0 : index
    %8 = vector.load %arg4[%c0_5, %c0_6] : memref<16x48xbf16, #tpu.memory_space<vmem>>, vector<16x48xbf16>
    tpu.vector_store %arg4[%c0_5, %c0_6], %7 {strides = array<i32>} : memref<16x48xbf16, #tpu.memory_space<vmem>>, vector<16x48xbf16>,
    %9 = vector.extract_strided_slice %5 {offsets = [0, 48], sizes = [16, 48], strides = [1, 1]} : vector<16x96xf32> to vector<16x48xf32>
    %10 = arith.truncf %9 : vector<16x48xf32> to vector<16x48xbf16>
    %c0_7 = arith.constant 0 : index
    %c0_8 = arith.constant 0 : index
    %11 = vector.load %arg5[%c0_7, %c0_8] : memref<16x48xbf16, #tpu.memory_space<vmem>>, vector<16x48xbf16>
    tpu.vector_store %arg5[%c0_7, %c0_8], %10 {strides = array<i32>} : memref<16x48xbf16, #tpu.memory_space<vmem>>, vector<16x48xbf16>,
    return
  }
  func.func @transform_0(%arg0: i32) -> (i32, i32) {
    %c0_i32 = arith.constant 0 : i32
    %c0_i32_0 = arith.constant 0 : i32
    return %arg0, %c0_i32 : i32, i32
  }
  func.func @transform_1(%arg0: i32) -> (i32, i32) {
    %c0_i32 = arith.constant 0 : i32
    %c0_i32_0 = arith.constant 0 : i32
    %c0_i32_1 = arith.constant 0 : i32
    return %c0_i32, %c0_i32_0 : i32, i32
  }
  func.func @transform_2(%arg0: i32) -> (i32, i32) {
    %c0_i32 = arith.constant 0 : i32
    %c0_i32_0 = arith.constant 0 : i32
    %c0_i32_1 = arith.constant 0 : i32
    return %c0_i32, %c0_i32_0 : i32, i32
  }
  func.func @transform_3(%arg0: i32) -> (i32, i32) {
    %c0_i32 = arith.constant 0 : i32
    %c0_i32_0 = arith.constant 0 : i32
    return %arg0, %c0_i32 : i32, i32
  }
  func.func @transform_4(%arg0: i32) -> (i32, i32) {
    %c0_i32 = arith.constant 0 : i32
    %c0_i32_0 = arith.constant 0 : i32
    return %arg0, %c0_i32 : i32, i32
  }
}

module attributes {stable_mosaic.version = 11 : i64} {
  func.func @conv1d_bn_relu_kernel(%arg0: i32, %arg1: memref<1x16x8xbf16, #tpu.memory_space<vmem>>, %arg2: memref<9x8x16xbf16, #tpu.memory_space<vmem>>, %arg3: memref<1x16xf32, #tpu.memory_space<vmem>>, %arg4: memref<1x8x16xbf16, #tpu.memory_space<vmem>>) attributes {dimension_semantics = [#tpu.dimension_semantics<parallel>], iteration_bounds = array<i64: 2>, scalar_prefetch = 0 : i64, scratch_operands = 0 : i64, tpu.core_type = #tpu.core_type<tc>, window_params = [{transform_indices = @transform_0, window_bounds = array<i64: 1, 16, 8>}, {pipeline_mode = #tpu.pipeline_mode<synchronous>, transform_indices = @transform_1, window_bounds = array<i64: 9, 8, 16>}, {pipeline_mode = #tpu.pipeline_mode<synchronous>, transform_indices = @transform_2, window_bounds = array<i64: 1, 16>}, {transform_indices = @transform_3, window_bounds = array<i64: 1, 8, 16>}]} {
    %c0 = arith.constant 0 : index
    %c0_0 = arith.constant 0 : index
    %c0_1 = arith.constant 0 : index
    %0 = vector.load %arg1[%c0, %c0_0, %c0_1] : memref<1x16x8xbf16, #tpu.memory_space<vmem>>, vector<1x8x8xbf16>
    %1 = vector.shape_cast %0 : vector<1x8x8xbf16> to vector<8x8xbf16>
    %c0_2 = arith.constant 0 : index
    %c0_3 = arith.constant 0 : index
    %c0_4 = arith.constant 0 : index
    %2 = vector.load %arg2[%c0_2, %c0_3, %c0_4] : memref<9x8x16xbf16, #tpu.memory_space<vmem>>, vector<1x8x16xbf16>
    %3 = vector.shape_cast %2 : vector<1x8x16xbf16> to vector<8x16xbf16>
    %cst = arith.constant dense<0.000000e+00> : vector<8x16xf32>
    %4 = tpu.matmul %1, %3, %cst {dimension_numbers = #tpu.dot_dimension_numbers<[1], [0], [0], [1], [0, 0, 1, 1], [], []>} : vector<8x8xbf16>, vector<8x16xbf16>, vector<8x16xf32> -> vector<8x16xf32>
    %c0_5 = arith.constant 0 : index
    %c1 = arith.constant 1 : index
    %c0_6 = arith.constant 0 : index
    %5 = vector.load %arg1[%c0_5, %c1, %c0_6] : memref<1x16x8xbf16, #tpu.memory_space<vmem>>, vector<1x8x8xbf16>
    %6 = vector.shape_cast %5 : vector<1x8x8xbf16> to vector<8x8xbf16>
    %c1_7 = arith.constant 1 : index
    %c0_8 = arith.constant 0 : index
    %c0_9 = arith.constant 0 : index
    %7 = vector.load %arg2[%c1_7, %c0_8, %c0_9] : memref<9x8x16xbf16, #tpu.memory_space<vmem>>, vector<1x8x16xbf16>
    %8 = vector.shape_cast %7 : vector<1x8x16xbf16> to vector<8x16xbf16>
    %cst_10 = arith.constant dense<0.000000e+00> : vector<8x16xf32>
    %9 = tpu.matmul %6, %8, %cst_10 {dimension_numbers = #tpu.dot_dimension_numbers<[1], [0], [0], [1], [0, 0, 1, 1], [], []>} : vector<8x8xbf16>, vector<8x16xbf16>, vector<8x16xf32> -> vector<8x16xf32>
    %10 = arith.addf %4, %9 : vector<8x16xf32>
    %c0_11 = arith.constant 0 : index
    %c2 = arith.constant 2 : index
    %c0_12 = arith.constant 0 : index
    %11 = vector.load %arg1[%c0_11, %c2, %c0_12] : memref<1x16x8xbf16, #tpu.memory_space<vmem>>, vector<1x8x8xbf16>
    %12 = vector.shape_cast %11 : vector<1x8x8xbf16> to vector<8x8xbf16>
    %c2_13 = arith.constant 2 : index
    %c0_14 = arith.constant 0 : index
    %c0_15 = arith.constant 0 : index
    %13 = vector.load %arg2[%c2_13, %c0_14, %c0_15] : memref<9x8x16xbf16, #tpu.memory_space<vmem>>, vector<1x8x16xbf16>
    %14 = vector.shape_cast %13 : vector<1x8x16xbf16> to vector<8x16xbf16>
    %cst_16 = arith.constant dense<0.000000e+00> : vector<8x16xf32>
    %15 = tpu.matmul %12, %14, %cst_16 {dimension_numbers = #tpu.dot_dimension_numbers<[1], [0], [0], [1], [0, 0, 1, 1], [], []>} : vector<8x8xbf16>, vector<8x16xbf16>, vector<8x16xf32> -> vector<8x16xf32>
    %16 = arith.addf %10, %15 : vector<8x16xf32>
    %c0_17 = arith.constant 0 : index
    %c3 = arith.constant 3 : index
    %c0_18 = arith.constant 0 : index
    %17 = vector.load %arg1[%c0_17, %c3, %c0_18] : memref<1x16x8xbf16, #tpu.memory_space<vmem>>, vector<1x8x8xbf16>
    %18 = vector.shape_cast %17 : vector<1x8x8xbf16> to vector<8x8xbf16>
    %c3_19 = arith.constant 3 : index
    %c0_20 = arith.constant 0 : index
    %c0_21 = arith.constant 0 : index
    %19 = vector.load %arg2[%c3_19, %c0_20, %c0_21] : memref<9x8x16xbf16, #tpu.memory_space<vmem>>, vector<1x8x16xbf16>
    %20 = vector.shape_cast %19 : vector<1x8x16xbf16> to vector<8x16xbf16>
    %cst_22 = arith.constant dense<0.000000e+00> : vector<8x16xf32>
    %21 = tpu.matmul %18, %20, %cst_22 {dimension_numbers = #tpu.dot_dimension_numbers<[1], [0], [0], [1], [0, 0, 1, 1], [], []>} : vector<8x8xbf16>, vector<8x16xbf16>, vector<8x16xf32> -> vector<8x16xf32>
    %22 = arith.addf %16, %21 : vector<8x16xf32>
    %c0_23 = arith.constant 0 : index
    %c4 = arith.constant 4 : index
    %c0_24 = arith.constant 0 : index
    %23 = vector.load %arg1[%c0_23, %c4, %c0_24] : memref<1x16x8xbf16, #tpu.memory_space<vmem>>, vector<1x8x8xbf16>
    %24 = vector.shape_cast %23 : vector<1x8x8xbf16> to vector<8x8xbf16>
    %c4_25 = arith.constant 4 : index
    %c0_26 = arith.constant 0 : index
    %c0_27 = arith.constant 0 : index
    %25 = vector.load %arg2[%c4_25, %c0_26, %c0_27] : memref<9x8x16xbf16, #tpu.memory_space<vmem>>, vector<1x8x16xbf16>
    %26 = vector.shape_cast %25 : vector<1x8x16xbf16> to vector<8x16xbf16>
    %cst_28 = arith.constant dense<0.000000e+00> : vector<8x16xf32>
    %27 = tpu.matmul %24, %26, %cst_28 {dimension_numbers = #tpu.dot_dimension_numbers<[1], [0], [0], [1], [0, 0, 1, 1], [], []>} : vector<8x8xbf16>, vector<8x16xbf16>, vector<8x16xf32> -> vector<8x16xf32>
    %28 = arith.addf %22, %27 : vector<8x16xf32>
    %c0_29 = arith.constant 0 : index
    %c5 = arith.constant 5 : index
    %c0_30 = arith.constant 0 : index
    %29 = vector.load %arg1[%c0_29, %c5, %c0_30] : memref<1x16x8xbf16, #tpu.memory_space<vmem>>, vector<1x8x8xbf16>
    %30 = vector.shape_cast %29 : vector<1x8x8xbf16> to vector<8x8xbf16>
    %c5_31 = arith.constant 5 : index
    %c0_32 = arith.constant 0 : index
    %c0_33 = arith.constant 0 : index
    %31 = vector.load %arg2[%c5_31, %c0_32, %c0_33] : memref<9x8x16xbf16, #tpu.memory_space<vmem>>, vector<1x8x16xbf16>
    %32 = vector.shape_cast %31 : vector<1x8x16xbf16> to vector<8x16xbf16>
    %cst_34 = arith.constant dense<0.000000e+00> : vector<8x16xf32>
    %33 = tpu.matmul %30, %32, %cst_34 {dimension_numbers = #tpu.dot_dimension_numbers<[1], [0], [0], [1], [0, 0, 1, 1], [], []>} : vector<8x8xbf16>, vector<8x16xbf16>, vector<8x16xf32> -> vector<8x16xf32>
    %34 = arith.addf %28, %33 : vector<8x16xf32>
    %c0_35 = arith.constant 0 : index
    %c6 = arith.constant 6 : index
    %c0_36 = arith.constant 0 : index
    %35 = vector.load %arg1[%c0_35, %c6, %c0_36] : memref<1x16x8xbf16, #tpu.memory_space<vmem>>, vector<1x8x8xbf16>
    %36 = vector.shape_cast %35 : vector<1x8x8xbf16> to vector<8x8xbf16>
    %c6_37 = arith.constant 6 : index
    %c0_38 = arith.constant 0 : index
    %c0_39 = arith.constant 0 : index
    %37 = vector.load %arg2[%c6_37, %c0_38, %c0_39] : memref<9x8x16xbf16, #tpu.memory_space<vmem>>, vector<1x8x16xbf16>
    %38 = vector.shape_cast %37 : vector<1x8x16xbf16> to vector<8x16xbf16>
    %cst_40 = arith.constant dense<0.000000e+00> : vector<8x16xf32>
    %39 = tpu.matmul %36, %38, %cst_40 {dimension_numbers = #tpu.dot_dimension_numbers<[1], [0], [0], [1], [0, 0, 1, 1], [], []>} : vector<8x8xbf16>, vector<8x16xbf16>, vector<8x16xf32> -> vector<8x16xf32>
    %40 = arith.addf %34, %39 : vector<8x16xf32>
    %c0_41 = arith.constant 0 : index
    %c7 = arith.constant 7 : index
    %c0_42 = arith.constant 0 : index
    %41 = vector.load %arg1[%c0_41, %c7, %c0_42] : memref<1x16x8xbf16, #tpu.memory_space<vmem>>, vector<1x8x8xbf16>
    %42 = vector.shape_cast %41 : vector<1x8x8xbf16> to vector<8x8xbf16>
    %c7_43 = arith.constant 7 : index
    %c0_44 = arith.constant 0 : index
    %c0_45 = arith.constant 0 : index
    %43 = vector.load %arg2[%c7_43, %c0_44, %c0_45] : memref<9x8x16xbf16, #tpu.memory_space<vmem>>, vector<1x8x16xbf16>
    %44 = vector.shape_cast %43 : vector<1x8x16xbf16> to vector<8x16xbf16>
    %cst_46 = arith.constant dense<0.000000e+00> : vector<8x16xf32>
    %45 = tpu.matmul %42, %44, %cst_46 {dimension_numbers = #tpu.dot_dimension_numbers<[1], [0], [0], [1], [0, 0, 1, 1], [], []>} : vector<8x8xbf16>, vector<8x16xbf16>, vector<8x16xf32> -> vector<8x16xf32>
    %46 = arith.addf %40, %45 : vector<8x16xf32>
    %c0_47 = arith.constant 0 : index
    %c8 = arith.constant 8 : index
    %c0_48 = arith.constant 0 : index
    %47 = vector.load %arg1[%c0_47, %c8, %c0_48] : memref<1x16x8xbf16, #tpu.memory_space<vmem>>, vector<1x8x8xbf16>
    %48 = vector.shape_cast %47 : vector<1x8x8xbf16> to vector<8x8xbf16>
    %c8_49 = arith.constant 8 : index
    %c0_50 = arith.constant 0 : index
    %c0_51 = arith.constant 0 : index
    %49 = vector.load %arg2[%c8_49, %c0_50, %c0_51] : memref<9x8x16xbf16, #tpu.memory_space<vmem>>, vector<1x8x16xbf16>
    %50 = vector.shape_cast %49 : vector<1x8x16xbf16> to vector<8x16xbf16>
    %cst_52 = arith.constant dense<0.000000e+00> : vector<8x16xf32>
    %51 = tpu.matmul %48, %50, %cst_52 {dimension_numbers = #tpu.dot_dimension_numbers<[1], [0], [0], [1], [0, 0, 1, 1], [], []>} : vector<8x8xbf16>, vector<8x16xbf16>, vector<8x16xf32> -> vector<8x16xf32>
    %52 = arith.addf %46, %51 : vector<8x16xf32>
    %c0_53 = arith.constant 0 : index
    %c0_54 = arith.constant 0 : index
    %53 = vector.load %arg3[%c0_53, %c0_54] : memref<1x16xf32, #tpu.memory_space<vmem>>, vector<1x16xf32>
    %54 = vector.broadcast %53 : vector<1x16xf32> to vector<8x16xf32>
    %55 = arith.addf %52, %54 : vector<8x16xf32>
    %cst_55 = arith.constant 0.000000e+00 : f32
    %56 = vector.broadcast %cst_55 : f32 to vector<8x16xf32>
    %57 = arith.maximumf %55, %56 : vector<8x16xf32>
    %58 = arith.truncf %57 : vector<8x16xf32> to vector<8x16xbf16>
    %c0_56 = arith.constant 0 : index
    %c0_57 = arith.constant 0 : index
    %c0_58 = arith.constant 0 : index
    %59 = vector.load %arg4[%c0_56, %c0_57, %c0_58] : memref<1x8x16xbf16, #tpu.memory_space<vmem>>, vector<1x8x16xbf16>
    %60 = vector.shape_cast %59 : vector<1x8x16xbf16> to vector<8x16xbf16>
    %61 = vector.shape_cast %58 : vector<8x16xbf16> to vector<1x8x16xbf16>
    tpu.vector_store %arg4[%c0_56, %c0_57, %c0_58], %61 {strides = array<i32>} : memref<1x8x16xbf16, #tpu.memory_space<vmem>>, vector<1x8x16xbf16>,
    return
  }
  func.func @transform_0(%arg0: i32) -> (i32, i32, i32) {
    %c0_i32 = arith.constant 0 : i32
    %c0_i32_0 = arith.constant 0 : i32
    %c0_i32_1 = arith.constant 0 : i32
    return %arg0, %c0_i32, %c0_i32_0 : i32, i32, i32
  }
  func.func @transform_1(%arg0: i32) -> (i32, i32, i32) {
    %c0_i32 = arith.constant 0 : i32
    %c0_i32_0 = arith.constant 0 : i32
    %c0_i32_1 = arith.constant 0 : i32
    %c0_i32_2 = arith.constant 0 : i32
    return %c0_i32, %c0_i32_0, %c0_i32_1 : i32, i32, i32
  }
  func.func @transform_2(%arg0: i32) -> (i32, i32) {
    %c0_i32 = arith.constant 0 : i32
    %c0_i32_0 = arith.constant 0 : i32
    %c0_i32_1 = arith.constant 0 : i32
    return %c0_i32, %c0_i32_0 : i32, i32
  }
  func.func @transform_3(%arg0: i32) -> (i32, i32, i32) {
    %c0_i32 = arith.constant 0 : i32
    %c0_i32_0 = arith.constant 0 : i32
    %c0_i32_1 = arith.constant 0 : i32
    return %arg0, %c0_i32, %c0_i32_0 : i32, i32, i32
  }
}

module attributes {stable_mosaic.version = 11 : i64} {
  func.func @conv1d_bn_relu_kernel(%arg0: i32, %arg1: memref<1x16x256xbf16, #tpu.memory_space<vmem>>, %arg2: memref<9x256x8xbf16, #tpu.memory_space<vmem>>, %arg3: memref<1x8xf32, #tpu.memory_space<vmem>>, %arg4: memref<1x8x8xbf16, #tpu.memory_space<vmem>>) attributes {dimension_semantics = [#tpu.dimension_semantics<parallel>], iteration_bounds = array<i64: 2>, scalar_prefetch = 0 : i64, scratch_operands = 0 : i64, tpu.core_type = #tpu.core_type<tc>, window_params = [{transform_indices = @transform_0, window_bounds = array<i64: 1, 16, 256>}, {pipeline_mode = #tpu.pipeline_mode<synchronous>, transform_indices = @transform_1, window_bounds = array<i64: 9, 256, 8>}, {pipeline_mode = #tpu.pipeline_mode<synchronous>, transform_indices = @transform_2, window_bounds = array<i64: 1, 8>}, {transform_indices = @transform_3, window_bounds = array<i64: 1, 8, 8>}]} {
    %c0 = arith.constant 0 : index
    %c0_0 = arith.constant 0 : index
    %c0_1 = arith.constant 0 : index
    %0 = vector.load %arg1[%c0, %c0_0, %c0_1] : memref<1x16x256xbf16, #tpu.memory_space<vmem>>, vector<1x8x256xbf16>
    %1 = vector.shape_cast %0 : vector<1x8x256xbf16> to vector<8x256xbf16>
    %c0_2 = arith.constant 0 : index
    %c0_3 = arith.constant 0 : index
    %c0_4 = arith.constant 0 : index
    %2 = vector.load %arg2[%c0_2, %c0_3, %c0_4] : memref<9x256x8xbf16, #tpu.memory_space<vmem>>, vector<1x256x8xbf16>
    %3 = vector.shape_cast %2 : vector<1x256x8xbf16> to vector<256x8xbf16>
    %cst = arith.constant dense<0.000000e+00> : vector<8x8xf32>
    %4 = tpu.matmul %1, %3, %cst {dimension_numbers = #tpu.dot_dimension_numbers<[1], [0], [0], [1], [0, 0, 1, 1], [], []>} : vector<8x256xbf16>, vector<256x8xbf16>, vector<8x8xf32> -> vector<8x8xf32>
    %c0_5 = arith.constant 0 : index
    %c1 = arith.constant 1 : index
    %c0_6 = arith.constant 0 : index
    %5 = vector.load %arg1[%c0_5, %c1, %c0_6] : memref<1x16x256xbf16, #tpu.memory_space<vmem>>, vector<1x8x256xbf16>
    %6 = vector.shape_cast %5 : vector<1x8x256xbf16> to vector<8x256xbf16>
    %c1_7 = arith.constant 1 : index
    %c0_8 = arith.constant 0 : index
    %c0_9 = arith.constant 0 : index
    %7 = vector.load %arg2[%c1_7, %c0_8, %c0_9] : memref<9x256x8xbf16, #tpu.memory_space<vmem>>, vector<1x256x8xbf16>
    %8 = vector.shape_cast %7 : vector<1x256x8xbf16> to vector<256x8xbf16>
    %cst_10 = arith.constant dense<0.000000e+00> : vector<8x8xf32>
    %9 = tpu.matmul %6, %8, %cst_10 {dimension_numbers = #tpu.dot_dimension_numbers<[1], [0], [0], [1], [0, 0, 1, 1], [], []>} : vector<8x256xbf16>, vector<256x8xbf16>, vector<8x8xf32> -> vector<8x8xf32>
    %10 = arith.addf %4, %9 : vector<8x8xf32>
    %c0_11 = arith.constant 0 : index
    %c2 = arith.constant 2 : index
    %c0_12 = arith.constant 0 : index
    %11 = vector.load %arg1[%c0_11, %c2, %c0_12] : memref<1x16x256xbf16, #tpu.memory_space<vmem>>, vector<1x8x256xbf16>
    %12 = vector.shape_cast %11 : vector<1x8x256xbf16> to vector<8x256xbf16>
    %c2_13 = arith.constant 2 : index
    %c0_14 = arith.constant 0 : index
    %c0_15 = arith.constant 0 : index
    %13 = vector.load %arg2[%c2_13, %c0_14, %c0_15] : memref<9x256x8xbf16, #tpu.memory_space<vmem>>, vector<1x256x8xbf16>
    %14 = vector.shape_cast %13 : vector<1x256x8xbf16> to vector<256x8xbf16>
    %cst_16 = arith.constant dense<0.000000e+00> : vector<8x8xf32>
    %15 = tpu.matmul %12, %14, %cst_16 {dimension_numbers = #tpu.dot_dimension_numbers<[1], [0], [0], [1], [0, 0, 1, 1], [], []>} : vector<8x256xbf16>, vector<256x8xbf16>, vector<8x8xf32> -> vector<8x8xf32>
    %16 = arith.addf %10, %15 : vector<8x8xf32>
    %c0_17 = arith.constant 0 : index
    %c3 = arith.constant 3 : index
    %c0_18 = arith.constant 0 : index
    %17 = vector.load %arg1[%c0_17, %c3, %c0_18] : memref<1x16x256xbf16, #tpu.memory_space<vmem>>, vector<1x8x256xbf16>
    %18 = vector.shape_cast %17 : vector<1x8x256xbf16> to vector<8x256xbf16>
    %c3_19 = arith.constant 3 : index
    %c0_20 = arith.constant 0 : index
    %c0_21 = arith.constant 0 : index
    %19 = vector.load %arg2[%c3_19, %c0_20, %c0_21] : memref<9x256x8xbf16, #tpu.memory_space<vmem>>, vector<1x256x8xbf16>
    %20 = vector.shape_cast %19 : vector<1x256x8xbf16> to vector<256x8xbf16>
    %cst_22 = arith.constant dense<0.000000e+00> : vector<8x8xf32>
    %21 = tpu.matmul %18, %20, %cst_22 {dimension_numbers = #tpu.dot_dimension_numbers<[1], [0], [0], [1], [0, 0, 1, 1], [], []>} : vector<8x256xbf16>, vector<256x8xbf16>, vector<8x8xf32> -> vector<8x8xf32>
    %22 = arith.addf %16, %21 : vector<8x8xf32>
    %c0_23 = arith.constant 0 : index
    %c4 = arith.constant 4 : index
    %c0_24 = arith.constant 0 : index
    %23 = vector.load %arg1[%c0_23, %c4, %c0_24] : memref<1x16x256xbf16, #tpu.memory_space<vmem>>, vector<1x8x256xbf16>
    %24 = vector.shape_cast %23 : vector<1x8x256xbf16> to vector<8x256xbf16>
    %c4_25 = arith.constant 4 : index
    %c0_26 = arith.constant 0 : index
    %c0_27 = arith.constant 0 : index
    %25 = vector.load %arg2[%c4_25, %c0_26, %c0_27] : memref<9x256x8xbf16, #tpu.memory_space<vmem>>, vector<1x256x8xbf16>
    %26 = vector.shape_cast %25 : vector<1x256x8xbf16> to vector<256x8xbf16>
    %cst_28 = arith.constant dense<0.000000e+00> : vector<8x8xf32>
    %27 = tpu.matmul %24, %26, %cst_28 {dimension_numbers = #tpu.dot_dimension_numbers<[1], [0], [0], [1], [0, 0, 1, 1], [], []>} : vector<8x256xbf16>, vector<256x8xbf16>, vector<8x8xf32> -> vector<8x8xf32>
    %28 = arith.addf %22, %27 : vector<8x8xf32>
    %c0_29 = arith.constant 0 : index
    %c5 = arith.constant 5 : index
    %c0_30 = arith.constant 0 : index
    %29 = vector.load %arg1[%c0_29, %c5, %c0_30] : memref<1x16x256xbf16, #tpu.memory_space<vmem>>, vector<1x8x256xbf16>
    %30 = vector.shape_cast %29 : vector<1x8x256xbf16> to vector<8x256xbf16>
    %c5_31 = arith.constant 5 : index
    %c0_32 = arith.constant 0 : index
    %c0_33 = arith.constant 0 : index
    %31 = vector.load %arg2[%c5_31, %c0_32, %c0_33] : memref<9x256x8xbf16, #tpu.memory_space<vmem>>, vector<1x256x8xbf16>
    %32 = vector.shape_cast %31 : vector<1x256x8xbf16> to vector<256x8xbf16>
    %cst_34 = arith.constant dense<0.000000e+00> : vector<8x8xf32>
    %33 = tpu.matmul %30, %32, %cst_34 {dimension_numbers = #tpu.dot_dimension_numbers<[1], [0], [0], [1], [0, 0, 1, 1], [], []>} : vector<8x256xbf16>, vector<256x8xbf16>, vector<8x8xf32> -> vector<8x8xf32>
    %34 = arith.addf %28, %33 : vector<8x8xf32>
    %c0_35 = arith.constant 0 : index
    %c6 = arith.constant 6 : index
    %c0_36 = arith.constant 0 : index
    %35 = vector.load %arg1[%c0_35, %c6, %c0_36] : memref<1x16x256xbf16, #tpu.memory_space<vmem>>, vector<1x8x256xbf16>
    %36 = vector.shape_cast %35 : vector<1x8x256xbf16> to vector<8x256xbf16>
    %c6_37 = arith.constant 6 : index
    %c0_38 = arith.constant 0 : index
    %c0_39 = arith.constant 0 : index
    %37 = vector.load %arg2[%c6_37, %c0_38, %c0_39] : memref<9x256x8xbf16, #tpu.memory_space<vmem>>, vector<1x256x8xbf16>
    %38 = vector.shape_cast %37 : vector<1x256x8xbf16> to vector<256x8xbf16>
    %cst_40 = arith.constant dense<0.000000e+00> : vector<8x8xf32>
    %39 = tpu.matmul %36, %38, %cst_40 {dimension_numbers = #tpu.dot_dimension_numbers<[1], [0], [0], [1], [0, 0, 1, 1], [], []>} : vector<8x256xbf16>, vector<256x8xbf16>, vector<8x8xf32> -> vector<8x8xf32>
    %40 = arith.addf %34, %39 : vector<8x8xf32>
    %c0_41 = arith.constant 0 : index
    %c7 = arith.constant 7 : index
    %c0_42 = arith.constant 0 : index
    %41 = vector.load %arg1[%c0_41, %c7, %c0_42] : memref<1x16x256xbf16, #tpu.memory_space<vmem>>, vector<1x8x256xbf16>
    %42 = vector.shape_cast %41 : vector<1x8x256xbf16> to vector<8x256xbf16>
    %c7_43 = arith.constant 7 : index
    %c0_44 = arith.constant 0 : index
    %c0_45 = arith.constant 0 : index
    %43 = vector.load %arg2[%c7_43, %c0_44, %c0_45] : memref<9x256x8xbf16, #tpu.memory_space<vmem>>, vector<1x256x8xbf16>
    %44 = vector.shape_cast %43 : vector<1x256x8xbf16> to vector<256x8xbf16>
    %cst_46 = arith.constant dense<0.000000e+00> : vector<8x8xf32>
    %45 = tpu.matmul %42, %44, %cst_46 {dimension_numbers = #tpu.dot_dimension_numbers<[1], [0], [0], [1], [0, 0, 1, 1], [], []>} : vector<8x256xbf16>, vector<256x8xbf16>, vector<8x8xf32> -> vector<8x8xf32>
    %46 = arith.addf %40, %45 : vector<8x8xf32>
    %c0_47 = arith.constant 0 : index
    %c8 = arith.constant 8 : index
    %c0_48 = arith.constant 0 : index
    %47 = vector.load %arg1[%c0_47, %c8, %c0_48] : memref<1x16x256xbf16, #tpu.memory_space<vmem>>, vector<1x8x256xbf16>
    %48 = vector.shape_cast %47 : vector<1x8x256xbf16> to vector<8x256xbf16>
    %c8_49 = arith.constant 8 : index
    %c0_50 = arith.constant 0 : index
    %c0_51 = arith.constant 0 : index
    %49 = vector.load %arg2[%c8_49, %c0_50, %c0_51] : memref<9x256x8xbf16, #tpu.memory_space<vmem>>, vector<1x256x8xbf16>
    %50 = vector.shape_cast %49 : vector<1x256x8xbf16> to vector<256x8xbf16>
    %cst_52 = arith.constant dense<0.000000e+00> : vector<8x8xf32>
    %51 = tpu.matmul %48, %50, %cst_52 {dimension_numbers = #tpu.dot_dimension_numbers<[1], [0], [0], [1], [0, 0, 1, 1], [], []>} : vector<8x256xbf16>, vector<256x8xbf16>, vector<8x8xf32> -> vector<8x8xf32>
    %52 = arith.addf %46, %51 : vector<8x8xf32>
    %c0_53 = arith.constant 0 : index
    %c0_54 = arith.constant 0 : index
    %53 = vector.load %arg3[%c0_53, %c0_54] : memref<1x8xf32, #tpu.memory_space<vmem>>, vector<1x8xf32>
    %54 = vector.broadcast %53 : vector<1x8xf32> to vector<8x8xf32>
    %55 = arith.addf %52, %54 : vector<8x8xf32>
    %cst_55 = arith.constant 0.000000e+00 : f32
    %56 = vector.broadcast %cst_55 : f32 to vector<8x8xf32>
    %57 = arith.maximumf %55, %56 : vector<8x8xf32>
    %58 = arith.truncf %57 : vector<8x8xf32> to vector<8x8xbf16>
    %c0_56 = arith.constant 0 : index
    %c0_57 = arith.constant 0 : index
    %c0_58 = arith.constant 0 : index
    %59 = vector.load %arg4[%c0_56, %c0_57, %c0_58] : memref<1x8x8xbf16, #tpu.memory_space<vmem>>, vector<1x8x8xbf16>
    %60 = vector.shape_cast %59 : vector<1x8x8xbf16> to vector<8x8xbf16>
    %61 = vector.shape_cast %58 : vector<8x8xbf16> to vector<1x8x8xbf16>
    tpu.vector_store %arg4[%c0_56, %c0_57, %c0_58], %61 {strides = array<i32>} : memref<1x8x8xbf16, #tpu.memory_space<vmem>>, vector<1x8x8xbf16>,
    return
  }
  func.func @transform_0(%arg0: i32) -> (i32, i32, i32) {
    %c0_i32 = arith.constant 0 : i32
    %c0_i32_0 = arith.constant 0 : i32
    %c0_i32_1 = arith.constant 0 : i32
    return %arg0, %c0_i32, %c0_i32_0 : i32, i32, i32
  }
  func.func @transform_1(%arg0: i32) -> (i32, i32, i32) {
    %c0_i32 = arith.constant 0 : i32
    %c0_i32_0 = arith.constant 0 : i32
    %c0_i32_1 = arith.constant 0 : i32
    %c0_i32_2 = arith.constant 0 : i32
    return %c0_i32, %c0_i32_0, %c0_i32_1 : i32, i32, i32
  }
  func.func @transform_2(%arg0: i32) -> (i32, i32) {
    %c0_i32 = arith.constant 0 : i32
    %c0_i32_0 = arith.constant 0 : i32
    %c0_i32_1 = arith.constant 0 : i32
    return %c0_i32, %c0_i32_0 : i32, i32
  }
  func.func @transform_3(%arg0: i32) -> (i32, i32, i32) {
    %c0_i32 = arith.constant 0 : i32
    %c0_i32_0 = arith.constant 0 : i32
    %c0_i32_1 = arith.constant 0 : i32
    return %arg0, %c0_i32, %c0_i32_0 : i32, i32, i32
  }
}

module attributes {stable_mosaic.version = 11 : i64} {
  func.func @bigru_kernel(%arg0: i32, %arg1: memref<16x48xbf16, #tpu.memory_space<vmem>>, %arg2: memref<16x48xbf16, #tpu.memory_space<vmem>>, %arg3: memref<16x48xbf16, #tpu.memory_space<vmem>>, %arg4: memref<16x48xbf16, #tpu.memory_space<vmem>>, %arg5: memref<1x48xf32, #tpu.memory_space<vmem>>, %arg6: memref<1x48xf32, #tpu.memory_space<vmem>>, %arg7: memref<16x16xbf16, #tpu.memory_space<vmem>>, %arg8: memref<16x16xbf16, #tpu.memory_space<vmem>>, %arg9: memref<2x16xf32, #tpu.memory_space<vmem>>, %arg10: memref<2x16xf32, #tpu.memory_space<vmem>>) attributes {dimension_semantics = [#tpu.dimension_semantics<arbitrary>], iteration_bounds = array<i64: 1>, scalar_prefetch = 0 : i64, scratch_operands = 2 : i64, tpu.core_type = #tpu.core_type<tc>, window_params = [{transform_indices = @transform_0, window_bounds = array<i64: 16, 48>}, {transform_indices = @transform_1, window_bounds = array<i64: 16, 48>}, {pipeline_mode = #tpu.pipeline_mode<synchronous>, transform_indices = @transform_2, window_bounds = array<i64: 16, 48>}, {pipeline_mode = #tpu.pipeline_mode<synchronous>, transform_indices = @transform_3, window_bounds = array<i64: 16, 48>}, {pipeline_mode = #tpu.pipeline_mode<synchronous>, transform_indices = @transform_4, window_bounds = array<i64: 1, 48>}, {pipeline_mode = #tpu.pipeline_mode<synchronous>, transform_indices = @transform_5, window_bounds = array<i64: 1, 48>}, {transform_indices = @transform_6, window_bounds = array<i64: 16, 16>}, {transform_indices = @transform_7, window_bounds = array<i64: 16, 16>}]} {
    %c0_i32 = arith.constant 0 : i32
    %0 = arith.cmpi eq, %arg0, %c0_i32 : i32
    %1 = arith.extui %0 : i1 to i32
    %c0_i32_0 = arith.constant 0 : i32
    %2 = arith.cmpi ne, %1, %c0_i32_0 : i32
    scf.if %2 {
      %cst_70 = arith.constant 0.000000e+00 : f32
      %444 = vector.broadcast %cst_70 : f32 to vector<2x16xf32>
      %c0_71 = arith.constant 0 : index
      %c0_72 = arith.constant 0 : index
      %445 = vector.load %arg9[%c0_71, %c0_72] : memref<2x16xf32, #tpu.memory_space<vmem>>, vector<2x16xf32>
      tpu.vector_store %arg9[%c0_71, %c0_72], %444 {strides = array<i32>} : memref<2x16xf32, #tpu.memory_space<vmem>>, vector<2x16xf32>,
      %cst_73 = arith.constant 0.000000e+00 : f32
      %446 = vector.broadcast %cst_73 : f32 to vector<2x16xf32>
      %c0_74 = arith.constant 0 : index
      %c0_75 = arith.constant 0 : index
      %447 = vector.load %arg10[%c0_74, %c0_75] : memref<2x16xf32, #tpu.memory_space<vmem>>, vector<2x16xf32>
      tpu.vector_store %arg10[%c0_74, %c0_75], %446 {strides = array<i32>} : memref<2x16xf32, #tpu.memory_space<vmem>>, vector<2x16xf32>,
    } else {
    }
    %c0 = arith.constant 0 : index
    %c0_1 = arith.constant 0 : index
    %3 = vector.load %arg3[%c0, %c0_1] : memref<16x48xbf16, #tpu.memory_space<vmem>>, vector<16x48xbf16>
    %c0_2 = arith.constant 0 : index
    %c0_3 = arith.constant 0 : index
    %4 = vector.load %arg4[%c0_2, %c0_3] : memref<16x48xbf16, #tpu.memory_space<vmem>>, vector<16x48xbf16>
    %c0_4 = arith.constant 0 : index
    %c0_5 = arith.constant 0 : index
    %5 = vector.load %arg5[%c0_4, %c0_5] : memref<1x48xf32, #tpu.memory_space<vmem>>, vector<1x48xf32>
    %c0_6 = arith.constant 0 : index
    %c0_7 = arith.constant 0 : index
    %6 = vector.load %arg6[%c0_6, %c0_7] : memref<1x48xf32, #tpu.memory_space<vmem>>, vector<1x48xf32>
    %c0_8 = arith.constant 0 : index
    %c0_9 = arith.constant 0 : index
    %7 = vector.load %arg9[%c0_8, %c0_9] : memref<2x16xf32, #tpu.memory_space<vmem>>, vector<2x16xf32>
    %c0_10 = arith.constant 0 : index
    %c0_11 = arith.constant 0 : index
    %8 = vector.load %arg10[%c0_10, %c0_11] : memref<2x16xf32, #tpu.memory_space<vmem>>, vector<2x16xf32>
    %c0_i32_12 = arith.constant 0 : i32
    %c16_i32 = arith.constant 16 : i32
    %9 = arith.muli %c0_i32_12, %c16_i32 : i32
    %10 = tpu.assume_multiple %9, 16 : i32
    %c0_i32_13 = arith.constant 0 : i32
    %11 = arith.subi %c0_i32_13, %c0_i32_12 : i32
    %c16_i32_14 = arith.constant 16 : i32
    %12 = arith.muli %11, %c16_i32_14 : i32
    %13 = tpu.assume_multiple %12, 16 : i32
    %14 = arith.index_cast %10 : i32 to index
    %c0_15 = arith.constant 0 : index
    %15 = vector.load %arg1[%14, %c0_15] : memref<16x48xbf16, #tpu.memory_space<vmem>>, vector<16x48xbf16>
    %16 = arith.index_cast %13 : i32 to index
    %c0_16 = arith.constant 0 : index
    %17 = vector.load %arg2[%16, %c0_16] : memref<16x48xbf16, #tpu.memory_space<vmem>>, vector<16x48xbf16>
    %18 = vector.extract_strided_slice %15 {offsets = [0, 0], sizes = [2, 48], strides = [1, 1]} : vector<16x48xbf16> to vector<2x48xbf16>
    %19 = arith.truncf %7 : vector<2x16xf32> to vector<2x16xbf16>
    %cst = arith.constant dense<0.000000e+00> : vector<2x48xf32>
    %20 = tpu.matmul %19, %3, %cst {dimension_numbers = #tpu.dot_dimension_numbers<[1], [0], [0], [1], [0, 0, 1, 1], [], []>} : vector<2x16xbf16>, vector<16x48xbf16>, vector<2x48xf32> -> vector<2x48xf32>
    %21 = vector.broadcast %5 : vector<1x48xf32> to vector<2x48xf32>
    %22 = arith.addf %20, %21 : vector<2x48xf32>
    %23 = arith.extf %18 : vector<2x48xbf16> to vector<2x48xf32>
    %24 = vector.extract_strided_slice %23 {offsets = [0, 0], sizes = [2, 32], strides = [1, 1]} : vector<2x48xf32> to vector<2x32xf32>
    %25 = vector.extract_strided_slice %22 {offsets = [0, 0], sizes = [2, 32], strides = [1, 1]} : vector<2x48xf32> to vector<2x32xf32>
    %26 = arith.addf %24, %25 : vector<2x32xf32>
    %27 = arith.negf %26 : vector<2x32xf32>
    %28 = math.exp %27 : vector<2x32xf32>
    %cst_17 = arith.constant 1.000000e+00 : f32
    %29 = vector.broadcast %cst_17 : f32 to vector<2x32xf32>
    %30 = arith.addf %29, %28 : vector<2x32xf32>
    %31 = arith.divf %29, %30 : vector<2x32xf32>
    %32 = vector.extract_strided_slice %31 {offsets = [0, 0], sizes = [2, 16], strides = [1, 1]} : vector<2x32xf32> to vector<2x16xf32>
    %33 = vector.extract_strided_slice %31 {offsets = [0, 16], sizes = [2, 16], strides = [1, 1]} : vector<2x32xf32> to vector<2x16xf32>
    %34 = vector.extract_strided_slice %23 {offsets = [0, 32], sizes = [2, 16], strides = [1, 1]} : vector<2x48xf32> to vector<2x16xf32>
    %35 = vector.extract_strided_slice %22 {offsets = [0, 32], sizes = [2, 16], strides = [1, 1]} : vector<2x48xf32> to vector<2x16xf32>
    %36 = arith.mulf %32, %35 : vector<2x16xf32>
    %37 = arith.addf %34, %36 : vector<2x16xf32>
    %38 = math.tanh %37 : vector<2x16xf32>
    %cst_18 = arith.constant 1.000000e+00 : f32
    %39 = vector.broadcast %cst_18 : f32 to vector<2x16xf32>
    %40 = arith.subf %39, %33 : vector<2x16xf32>
    %41 = arith.mulf %40, %38 : vector<2x16xf32>
    %42 = arith.mulf %33, %7 : vector<2x16xf32>
    %43 = arith.addf %41, %42 : vector<2x16xf32>
    %44 = vector.extract_strided_slice %15 {offsets = [2, 0], sizes = [2, 48], strides = [1, 1]} : vector<16x48xbf16> to vector<2x48xbf16>
    %45 = arith.truncf %43 : vector<2x16xf32> to vector<2x16xbf16>
    %cst_19 = arith.constant dense<0.000000e+00> : vector<2x48xf32>
    %46 = tpu.matmul %45, %3, %cst_19 {dimension_numbers = #tpu.dot_dimension_numbers<[1], [0], [0], [1], [0, 0, 1, 1], [], []>} : vector<2x16xbf16>, vector<16x48xbf16>, vector<2x48xf32> -> vector<2x48xf32>
    %47 = vector.broadcast %5 : vector<1x48xf32> to vector<2x48xf32>
    %48 = arith.addf %46, %47 : vector<2x48xf32>
    %49 = arith.extf %44 : vector<2x48xbf16> to vector<2x48xf32>
    %50 = vector.extract_strided_slice %49 {offsets = [0, 0], sizes = [2, 32], strides = [1, 1]} : vector<2x48xf32> to vector<2x32xf32>
    %51 = vector.extract_strided_slice %48 {offsets = [0, 0], sizes = [2, 32], strides = [1, 1]} : vector<2x48xf32> to vector<2x32xf32>
    %52 = arith.addf %50, %51 : vector<2x32xf32>
    %53 = arith.negf %52 : vector<2x32xf32>
    %54 = math.exp %53 : vector<2x32xf32>
    %cst_20 = arith.constant 1.000000e+00 : f32
    %55 = vector.broadcast %cst_20 : f32 to vector<2x32xf32>
    %56 = arith.addf %55, %54 : vector<2x32xf32>
    %57 = arith.divf %55, %56 : vector<2x32xf32>
    %58 = vector.extract_strided_slice %57 {offsets = [0, 0], sizes = [2, 16], strides = [1, 1]} : vector<2x32xf32> to vector<2x16xf32>
    %59 = vector.extract_strided_slice %57 {offsets = [0, 16], sizes = [2, 16], strides = [1, 1]} : vector<2x32xf32> to vector<2x16xf32>
    %60 = vector.extract_strided_slice %49 {offsets = [0, 32], sizes = [2, 16], strides = [1, 1]} : vector<2x48xf32> to vector<2x16xf32>
    %61 = vector.extract_strided_slice %48 {offsets = [0, 32], sizes = [2, 16], strides = [1, 1]} : vector<2x48xf32> to vector<2x16xf32>
    %62 = arith.mulf %58, %61 : vector<2x16xf32>
    %63 = arith.addf %60, %62 : vector<2x16xf32>
    %64 = math.tanh %63 : vector<2x16xf32>
    %cst_21 = arith.constant 1.000000e+00 : f32
    %65 = vector.broadcast %cst_21 : f32 to vector<2x16xf32>
    %66 = arith.subf %65, %59 : vector<2x16xf32>
    %67 = arith.mulf %66, %64 : vector<2x16xf32>
    %68 = arith.mulf %59, %43 : vector<2x16xf32>
    %69 = arith.addf %67, %68 : vector<2x16xf32>
    %70 = vector.extract_strided_slice %15 {offsets = [4, 0], sizes = [2, 48], strides = [1, 1]} : vector<16x48xbf16> to vector<2x48xbf16>
    %71 = arith.truncf %69 : vector<2x16xf32> to vector<2x16xbf16>
    %cst_22 = arith.constant dense<0.000000e+00> : vector<2x48xf32>
    %72 = tpu.matmul %71, %3, %cst_22 {dimension_numbers = #tpu.dot_dimension_numbers<[1], [0], [0], [1], [0, 0, 1, 1], [], []>} : vector<2x16xbf16>, vector<16x48xbf16>, vector<2x48xf32> -> vector<2x48xf32>
    %73 = vector.broadcast %5 : vector<1x48xf32> to vector<2x48xf32>
    %74 = arith.addf %72, %73 : vector<2x48xf32>
    %75 = arith.extf %70 : vector<2x48xbf16> to vector<2x48xf32>
    %76 = vector.extract_strided_slice %75 {offsets = [0, 0], sizes = [2, 32], strides = [1, 1]} : vector<2x48xf32> to vector<2x32xf32>
    %77 = vector.extract_strided_slice %74 {offsets = [0, 0], sizes = [2, 32], strides = [1, 1]} : vector<2x48xf32> to vector<2x32xf32>
    %78 = arith.addf %76, %77 : vector<2x32xf32>
    %79 = arith.negf %78 : vector<2x32xf32>
    %80 = math.exp %79 : vector<2x32xf32>
    %cst_23 = arith.constant 1.000000e+00 : f32
    %81 = vector.broadcast %cst_23 : f32 to vector<2x32xf32>
    %82 = arith.addf %81, %80 : vector<2x32xf32>
    %83 = arith.divf %81, %82 : vector<2x32xf32>
    %84 = vector.extract_strided_slice %83 {offsets = [0, 0], sizes = [2, 16], strides = [1, 1]} : vector<2x32xf32> to vector<2x16xf32>
    %85 = vector.extract_strided_slice %83 {offsets = [0, 16], sizes = [2, 16], strides = [1, 1]} : vector<2x32xf32> to vector<2x16xf32>
    %86 = vector.extract_strided_slice %75 {offsets = [0, 32], sizes = [2, 16], strides = [1, 1]} : vector<2x48xf32> to vector<2x16xf32>
    %87 = vector.extract_strided_slice %74 {offsets = [0, 32], sizes = [2, 16], strides = [1, 1]} : vector<2x48xf32> to vector<2x16xf32>
    %88 = arith.mulf %84, %87 : vector<2x16xf32>
    %89 = arith.addf %86, %88 : vector<2x16xf32>
    %90 = math.tanh %89 : vector<2x16xf32>
    %cst_24 = arith.constant 1.000000e+00 : f32
    %91 = vector.broadcast %cst_24 : f32 to vector<2x16xf32>
    %92 = arith.subf %91, %85 : vector<2x16xf32>
    %93 = arith.mulf %92, %90 : vector<2x16xf32>
    %94 = arith.mulf %85, %69 : vector<2x16xf32>
    %95 = arith.addf %93, %94 : vector<2x16xf32>
    %96 = vector.extract_strided_slice %15 {offsets = [6, 0], sizes = [2, 48], strides = [1, 1]} : vector<16x48xbf16> to vector<2x48xbf16>
    %97 = arith.truncf %95 : vector<2x16xf32> to vector<2x16xbf16>
    %cst_25 = arith.constant dense<0.000000e+00> : vector<2x48xf32>
    %98 = tpu.matmul %97, %3, %cst_25 {dimension_numbers = #tpu.dot_dimension_numbers<[1], [0], [0], [1], [0, 0, 1, 1], [], []>} : vector<2x16xbf16>, vector<16x48xbf16>, vector<2x48xf32> -> vector<2x48xf32>
    %99 = vector.broadcast %5 : vector<1x48xf32> to vector<2x48xf32>
    %100 = arith.addf %98, %99 : vector<2x48xf32>
    %101 = arith.extf %96 : vector<2x48xbf16> to vector<2x48xf32>
    %102 = vector.extract_strided_slice %101 {offsets = [0, 0], sizes = [2, 32], strides = [1, 1]} : vector<2x48xf32> to vector<2x32xf32>
    %103 = vector.extract_strided_slice %100 {offsets = [0, 0], sizes = [2, 32], strides = [1, 1]} : vector<2x48xf32> to vector<2x32xf32>
    %104 = arith.addf %102, %103 : vector<2x32xf32>
    %105 = arith.negf %104 : vector<2x32xf32>
    %106 = math.exp %105 : vector<2x32xf32>
    %cst_26 = arith.constant 1.000000e+00 : f32
    %107 = vector.broadcast %cst_26 : f32 to vector<2x32xf32>
    %108 = arith.addf %107, %106 : vector<2x32xf32>
    %109 = arith.divf %107, %108 : vector<2x32xf32>
    %110 = vector.extract_strided_slice %109 {offsets = [0, 0], sizes = [2, 16], strides = [1, 1]} : vector<2x32xf32> to vector<2x16xf32>
    %111 = vector.extract_strided_slice %109 {offsets = [0, 16], sizes = [2, 16], strides = [1, 1]} : vector<2x32xf32> to vector<2x16xf32>
    %112 = vector.extract_strided_slice %101 {offsets = [0, 32], sizes = [2, 16], strides = [1, 1]} : vector<2x48xf32> to vector<2x16xf32>
    %113 = vector.extract_strided_slice %100 {offsets = [0, 32], sizes = [2, 16], strides = [1, 1]} : vector<2x48xf32> to vector<2x16xf32>
    %114 = arith.mulf %110, %113 : vector<2x16xf32>
    %115 = arith.addf %112, %114 : vector<2x16xf32>
    %116 = math.tanh %115 : vector<2x16xf32>
    %cst_27 = arith.constant 1.000000e+00 : f32
    %117 = vector.broadcast %cst_27 : f32 to vector<2x16xf32>
    %118 = arith.subf %117, %111 : vector<2x16xf32>
    %119 = arith.mulf %118, %116 : vector<2x16xf32>
    %120 = arith.mulf %111, %95 : vector<2x16xf32>
    %121 = arith.addf %119, %120 : vector<2x16xf32>
    %122 = vector.extract_strided_slice %15 {offsets = [8, 0], sizes = [2, 48], strides = [1, 1]} : vector<16x48xbf16> to vector<2x48xbf16>
    %123 = arith.truncf %121 : vector<2x16xf32> to vector<2x16xbf16>
    %cst_28 = arith.constant dense<0.000000e+00> : vector<2x48xf32>
    %124 = tpu.matmul %123, %3, %cst_28 {dimension_numbers = #tpu.dot_dimension_numbers<[1], [0], [0], [1], [0, 0, 1, 1], [], []>} : vector<2x16xbf16>, vector<16x48xbf16>, vector<2x48xf32> -> vector<2x48xf32>
    %125 = vector.broadcast %5 : vector<1x48xf32> to vector<2x48xf32>
    %126 = arith.addf %124, %125 : vector<2x48xf32>
    %127 = arith.extf %122 : vector<2x48xbf16> to vector<2x48xf32>
    %128 = vector.extract_strided_slice %127 {offsets = [0, 0], sizes = [2, 32], strides = [1, 1]} : vector<2x48xf32> to vector<2x32xf32>
    %129 = vector.extract_strided_slice %126 {offsets = [0, 0], sizes = [2, 32], strides = [1, 1]} : vector<2x48xf32> to vector<2x32xf32>
    %130 = arith.addf %128, %129 : vector<2x32xf32>
    %131 = arith.negf %130 : vector<2x32xf32>
    %132 = math.exp %131 : vector<2x32xf32>
    %cst_29 = arith.constant 1.000000e+00 : f32
    %133 = vector.broadcast %cst_29 : f32 to vector<2x32xf32>
    %134 = arith.addf %133, %132 : vector<2x32xf32>
    %135 = arith.divf %133, %134 : vector<2x32xf32>
    %136 = vector.extract_strided_slice %135 {offsets = [0, 0], sizes = [2, 16], strides = [1, 1]} : vector<2x32xf32> to vector<2x16xf32>
    %137 = vector.extract_strided_slice %135 {offsets = [0, 16], sizes = [2, 16], strides = [1, 1]} : vector<2x32xf32> to vector<2x16xf32>
    %138 = vector.extract_strided_slice %127 {offsets = [0, 32], sizes = [2, 16], strides = [1, 1]} : vector<2x48xf32> to vector<2x16xf32>
    %139 = vector.extract_strided_slice %126 {offsets = [0, 32], sizes = [2, 16], strides = [1, 1]} : vector<2x48xf32> to vector<2x16xf32>
    %140 = arith.mulf %136, %139 : vector<2x16xf32>
    %141 = arith.addf %138, %140 : vector<2x16xf32>
    %142 = math.tanh %141 : vector<2x16xf32>
    %cst_30 = arith.constant 1.000000e+00 : f32
    %143 = vector.broadcast %cst_30 : f32 to vector<2x16xf32>
    %144 = arith.subf %143, %137 : vector<2x16xf32>
    %145 = arith.mulf %144, %142 : vector<2x16xf32>
    %146 = arith.mulf %137, %121 : vector<2x16xf32>
    %147 = arith.addf %145, %146 : vector<2x16xf32>
    %148 = vector.extract_strided_slice %15 {offsets = [10, 0], sizes = [2, 48], strides = [1, 1]} : vector<16x48xbf16> to vector<2x48xbf16>
    %149 = arith.truncf %147 : vector<2x16xf32> to vector<2x16xbf16>
    %cst_31 = arith.constant dense<0.000000e+00> : vector<2x48xf32>
    %150 = tpu.matmul %149, %3, %cst_31 {dimension_numbers = #tpu.dot_dimension_numbers<[1], [0], [0], [1], [0, 0, 1, 1], [], []>} : vector<2x16xbf16>, vector<16x48xbf16>, vector<2x48xf32> -> vector<2x48xf32>
    %151 = vector.broadcast %5 : vector<1x48xf32> to vector<2x48xf32>
    %152 = arith.addf %150, %151 : vector<2x48xf32>
    %153 = arith.extf %148 : vector<2x48xbf16> to vector<2x48xf32>
    %154 = vector.extract_strided_slice %153 {offsets = [0, 0], sizes = [2, 32], strides = [1, 1]} : vector<2x48xf32> to vector<2x32xf32>
    %155 = vector.extract_strided_slice %152 {offsets = [0, 0], sizes = [2, 32], strides = [1, 1]} : vector<2x48xf32> to vector<2x32xf32>
    %156 = arith.addf %154, %155 : vector<2x32xf32>
    %157 = arith.negf %156 : vector<2x32xf32>
    %158 = math.exp %157 : vector<2x32xf32>
    %cst_32 = arith.constant 1.000000e+00 : f32
    %159 = vector.broadcast %cst_32 : f32 to vector<2x32xf32>
    %160 = arith.addf %159, %158 : vector<2x32xf32>
    %161 = arith.divf %159, %160 : vector<2x32xf32>
    %162 = vector.extract_strided_slice %161 {offsets = [0, 0], sizes = [2, 16], strides = [1, 1]} : vector<2x32xf32> to vector<2x16xf32>
    %163 = vector.extract_strided_slice %161 {offsets = [0, 16], sizes = [2, 16], strides = [1, 1]} : vector<2x32xf32> to vector<2x16xf32>
    %164 = vector.extract_strided_slice %153 {offsets = [0, 32], sizes = [2, 16], strides = [1, 1]} : vector<2x48xf32> to vector<2x16xf32>
    %165 = vector.extract_strided_slice %152 {offsets = [0, 32], sizes = [2, 16], strides = [1, 1]} : vector<2x48xf32> to vector<2x16xf32>
    %166 = arith.mulf %162, %165 : vector<2x16xf32>
    %167 = arith.addf %164, %166 : vector<2x16xf32>
    %168 = math.tanh %167 : vector<2x16xf32>
    %cst_33 = arith.constant 1.000000e+00 : f32
    %169 = vector.broadcast %cst_33 : f32 to vector<2x16xf32>
    %170 = arith.subf %169, %163 : vector<2x16xf32>
    %171 = arith.mulf %170, %168 : vector<2x16xf32>
    %172 = arith.mulf %163, %147 : vector<2x16xf32>
    %173 = arith.addf %171, %172 : vector<2x16xf32>
    %174 = vector.extract_strided_slice %15 {offsets = [12, 0], sizes = [2, 48], strides = [1, 1]} : vector<16x48xbf16> to vector<2x48xbf16>
    %175 = arith.truncf %173 : vector<2x16xf32> to vector<2x16xbf16>
    %cst_34 = arith.constant dense<0.000000e+00> : vector<2x48xf32>
    %176 = tpu.matmul %175, %3, %cst_34 {dimension_numbers = #tpu.dot_dimension_numbers<[1], [0], [0], [1], [0, 0, 1, 1], [], []>} : vector<2x16xbf16>, vector<16x48xbf16>, vector<2x48xf32> -> vector<2x48xf32>
    %177 = vector.broadcast %5 : vector<1x48xf32> to vector<2x48xf32>
    %178 = arith.addf %176, %177 : vector<2x48xf32>
    %179 = arith.extf %174 : vector<2x48xbf16> to vector<2x48xf32>
    %180 = vector.extract_strided_slice %179 {offsets = [0, 0], sizes = [2, 32], strides = [1, 1]} : vector<2x48xf32> to vector<2x32xf32>
    %181 = vector.extract_strided_slice %178 {offsets = [0, 0], sizes = [2, 32], strides = [1, 1]} : vector<2x48xf32> to vector<2x32xf32>
    %182 = arith.addf %180, %181 : vector<2x32xf32>
    %183 = arith.negf %182 : vector<2x32xf32>
    %184 = math.exp %183 : vector<2x32xf32>
    %cst_35 = arith.constant 1.000000e+00 : f32
    %185 = vector.broadcast %cst_35 : f32 to vector<2x32xf32>
    %186 = arith.addf %185, %184 : vector<2x32xf32>
    %187 = arith.divf %185, %186 : vector<2x32xf32>
    %188 = vector.extract_strided_slice %187 {offsets = [0, 0], sizes = [2, 16], strides = [1, 1]} : vector<2x32xf32> to vector<2x16xf32>
    %189 = vector.extract_strided_slice %187 {offsets = [0, 16], sizes = [2, 16], strides = [1, 1]} : vector<2x32xf32> to vector<2x16xf32>
    %190 = vector.extract_strided_slice %179 {offsets = [0, 32], sizes = [2, 16], strides = [1, 1]} : vector<2x48xf32> to vector<2x16xf32>
    %191 = vector.extract_strided_slice %178 {offsets = [0, 32], sizes = [2, 16], strides = [1, 1]} : vector<2x48xf32> to vector<2x16xf32>
    %192 = arith.mulf %188, %191 : vector<2x16xf32>
    %193 = arith.addf %190, %192 : vector<2x16xf32>
    %194 = math.tanh %193 : vector<2x16xf32>
    %cst_36 = arith.constant 1.000000e+00 : f32
    %195 = vector.broadcast %cst_36 : f32 to vector<2x16xf32>
    %196 = arith.subf %195, %189 : vector<2x16xf32>
    %197 = arith.mulf %196, %194 : vector<2x16xf32>
    %198 = arith.mulf %189, %173 : vector<2x16xf32>
    %199 = arith.addf %197, %198 : vector<2x16xf32>
    %200 = vector.extract_strided_slice %15 {offsets = [14, 0], sizes = [2, 48], strides = [1, 1]} : vector<16x48xbf16> to vector<2x48xbf16>
    %201 = arith.truncf %199 : vector<2x16xf32> to vector<2x16xbf16>
    %cst_37 = arith.constant dense<0.000000e+00> : vector<2x48xf32>
    %202 = tpu.matmul %201, %3, %cst_37 {dimension_numbers = #tpu.dot_dimension_numbers<[1], [0], [0], [1], [0, 0, 1, 1], [], []>} : vector<2x16xbf16>, vector<16x48xbf16>, vector<2x48xf32> -> vector<2x48xf32>
    %203 = vector.broadcast %5 : vector<1x48xf32> to vector<2x48xf32>
    %204 = arith.addf %202, %203 : vector<2x48xf32>
    %205 = arith.extf %200 : vector<2x48xbf16> to vector<2x48xf32>
    %206 = vector.extract_strided_slice %205 {offsets = [0, 0], sizes = [2, 32], strides = [1, 1]} : vector<2x48xf32> to vector<2x32xf32>
    %207 = vector.extract_strided_slice %204 {offsets = [0, 0], sizes = [2, 32], strides = [1, 1]} : vector<2x48xf32> to vector<2x32xf32>
    %208 = arith.addf %206, %207 : vector<2x32xf32>
    %209 = arith.negf %208 : vector<2x32xf32>
    %210 = math.exp %209 : vector<2x32xf32>
    %cst_38 = arith.constant 1.000000e+00 : f32
    %211 = vector.broadcast %cst_38 : f32 to vector<2x32xf32>
    %212 = arith.addf %211, %210 : vector<2x32xf32>
    %213 = arith.divf %211, %212 : vector<2x32xf32>
    %214 = vector.extract_strided_slice %213 {offsets = [0, 0], sizes = [2, 16], strides = [1, 1]} : vector<2x32xf32> to vector<2x16xf32>
    %215 = vector.extract_strided_slice %213 {offsets = [0, 16], sizes = [2, 16], strides = [1, 1]} : vector<2x32xf32> to vector<2x16xf32>
    %216 = vector.extract_strided_slice %205 {offsets = [0, 32], sizes = [2, 16], strides = [1, 1]} : vector<2x48xf32> to vector<2x16xf32>
    %217 = vector.extract_strided_slice %204 {offsets = [0, 32], sizes = [2, 16], strides = [1, 1]} : vector<2x48xf32> to vector<2x16xf32>
    %218 = arith.mulf %214, %217 : vector<2x16xf32>
    %219 = arith.addf %216, %218 : vector<2x16xf32>
    %220 = math.tanh %219 : vector<2x16xf32>
    %cst_39 = arith.constant 1.000000e+00 : f32
    %221 = vector.broadcast %cst_39 : f32 to vector<2x16xf32>
    %222 = arith.subf %221, %215 : vector<2x16xf32>
    %223 = arith.mulf %222, %220 : vector<2x16xf32>
    %224 = arith.mulf %215, %199 : vector<2x16xf32>
    %225 = arith.addf %223, %224 : vector<2x16xf32>
    %226 = vector.extract_strided_slice %17 {offsets = [14, 0], sizes = [2, 48], strides = [1, 1]} : vector<16x48xbf16> to vector<2x48xbf16>
    %227 = arith.truncf %8 : vector<2x16xf32> to vector<2x16xbf16>
    %cst_40 = arith.constant dense<0.000000e+00> : vector<2x48xf32>
    %228 = tpu.matmul %227, %4, %cst_40 {dimension_numbers = #tpu.dot_dimension_numbers<[1], [0], [0], [1], [0, 0, 1, 1], [], []>} : vector<2x16xbf16>, vector<16x48xbf16>, vector<2x48xf32> -> vector<2x48xf32>
    %229 = vector.broadcast %6 : vector<1x48xf32> to vector<2x48xf32>
    %230 = arith.addf %228, %229 : vector<2x48xf32>
    %231 = arith.extf %226 : vector<2x48xbf16> to vector<2x48xf32>
    %232 = vector.extract_strided_slice %231 {offsets = [0, 0], sizes = [2, 32], strides = [1, 1]} : vector<2x48xf32> to vector<2x32xf32>
    %233 = vector.extract_strided_slice %230 {offsets = [0, 0], sizes = [2, 32], strides = [1, 1]} : vector<2x48xf32> to vector<2x32xf32>
    %234 = arith.addf %232, %233 : vector<2x32xf32>
    %235 = arith.negf %234 : vector<2x32xf32>
    %236 = math.exp %235 : vector<2x32xf32>
    %cst_41 = arith.constant 1.000000e+00 : f32
    %237 = vector.broadcast %cst_41 : f32 to vector<2x32xf32>
    %238 = arith.addf %237, %236 : vector<2x32xf32>
    %239 = arith.divf %237, %238 : vector<2x32xf32>
    %240 = vector.extract_strided_slice %239 {offsets = [0, 0], sizes = [2, 16], strides = [1, 1]} : vector<2x32xf32> to vector<2x16xf32>
    %241 = vector.extract_strided_slice %239 {offsets = [0, 16], sizes = [2, 16], strides = [1, 1]} : vector<2x32xf32> to vector<2x16xf32>
    %242 = vector.extract_strided_slice %231 {offsets = [0, 32], sizes = [2, 16], strides = [1, 1]} : vector<2x48xf32> to vector<2x16xf32>
    %243 = vector.extract_strided_slice %230 {offsets = [0, 32], sizes = [2, 16], strides = [1, 1]} : vector<2x48xf32> to vector<2x16xf32>
    %244 = arith.mulf %240, %243 : vector<2x16xf32>
    %245 = arith.addf %242, %244 : vector<2x16xf32>
    %246 = math.tanh %245 : vector<2x16xf32>
    %cst_42 = arith.constant 1.000000e+00 : f32
    %247 = vector.broadcast %cst_42 : f32 to vector<2x16xf32>
    %248 = arith.subf %247, %241 : vector<2x16xf32>
    %249 = arith.mulf %248, %246 : vector<2x16xf32>
    %250 = arith.mulf %241, %8 : vector<2x16xf32>
    %251 = arith.addf %249, %250 : vector<2x16xf32>
    %252 = vector.extract_strided_slice %17 {offsets = [12, 0], sizes = [2, 48], strides = [1, 1]} : vector<16x48xbf16> to vector<2x48xbf16>
    %253 = arith.truncf %251 : vector<2x16xf32> to vector<2x16xbf16>
    %cst_43 = arith.constant dense<0.000000e+00> : vector<2x48xf32>
    %254 = tpu.matmul %253, %4, %cst_43 {dimension_numbers = #tpu.dot_dimension_numbers<[1], [0], [0], [1], [0, 0, 1, 1], [], []>} : vector<2x16xbf16>, vector<16x48xbf16>, vector<2x48xf32> -> vector<2x48xf32>
    %255 = vector.broadcast %6 : vector<1x48xf32> to vector<2x48xf32>
    %256 = arith.addf %254, %255 : vector<2x48xf32>
    %257 = arith.extf %252 : vector<2x48xbf16> to vector<2x48xf32>
    %258 = vector.extract_strided_slice %257 {offsets = [0, 0], sizes = [2, 32], strides = [1, 1]} : vector<2x48xf32> to vector<2x32xf32>
    %259 = vector.extract_strided_slice %256 {offsets = [0, 0], sizes = [2, 32], strides = [1, 1]} : vector<2x48xf32> to vector<2x32xf32>
    %260 = arith.addf %258, %259 : vector<2x32xf32>
    %261 = arith.negf %260 : vector<2x32xf32>
    %262 = math.exp %261 : vector<2x32xf32>
    %cst_44 = arith.constant 1.000000e+00 : f32
    %263 = vector.broadcast %cst_44 : f32 to vector<2x32xf32>
    %264 = arith.addf %263, %262 : vector<2x32xf32>
    %265 = arith.divf %263, %264 : vector<2x32xf32>
    %266 = vector.extract_strided_slice %265 {offsets = [0, 0], sizes = [2, 16], strides = [1, 1]} : vector<2x32xf32> to vector<2x16xf32>
    %267 = vector.extract_strided_slice %265 {offsets = [0, 16], sizes = [2, 16], strides = [1, 1]} : vector<2x32xf32> to vector<2x16xf32>
    %268 = vector.extract_strided_slice %257 {offsets = [0, 32], sizes = [2, 16], strides = [1, 1]} : vector<2x48xf32> to vector<2x16xf32>
    %269 = vector.extract_strided_slice %256 {offsets = [0, 32], sizes = [2, 16], strides = [1, 1]} : vector<2x48xf32> to vector<2x16xf32>
    %270 = arith.mulf %266, %269 : vector<2x16xf32>
    %271 = arith.addf %268, %270 : vector<2x16xf32>
    %272 = math.tanh %271 : vector<2x16xf32>
    %cst_45 = arith.constant 1.000000e+00 : f32
    %273 = vector.broadcast %cst_45 : f32 to vector<2x16xf32>
    %274 = arith.subf %273, %267 : vector<2x16xf32>
    %275 = arith.mulf %274, %272 : vector<2x16xf32>
    %276 = arith.mulf %267, %251 : vector<2x16xf32>
    %277 = arith.addf %275, %276 : vector<2x16xf32>
    %278 = vector.extract_strided_slice %17 {offsets = [10, 0], sizes = [2, 48], strides = [1, 1]} : vector<16x48xbf16> to vector<2x48xbf16>
    %279 = arith.truncf %277 : vector<2x16xf32> to vector<2x16xbf16>
    %cst_46 = arith.constant dense<0.000000e+00> : vector<2x48xf32>
    %280 = tpu.matmul %279, %4, %cst_46 {dimension_numbers = #tpu.dot_dimension_numbers<[1], [0], [0], [1], [0, 0, 1, 1], [], []>} : vector<2x16xbf16>, vector<16x48xbf16>, vector<2x48xf32> -> vector<2x48xf32>
    %281 = vector.broadcast %6 : vector<1x48xf32> to vector<2x48xf32>
    %282 = arith.addf %280, %281 : vector<2x48xf32>
    %283 = arith.extf %278 : vector<2x48xbf16> to vector<2x48xf32>
    %284 = vector.extract_strided_slice %283 {offsets = [0, 0], sizes = [2, 32], strides = [1, 1]} : vector<2x48xf32> to vector<2x32xf32>
    %285 = vector.extract_strided_slice %282 {offsets = [0, 0], sizes = [2, 32], strides = [1, 1]} : vector<2x48xf32> to vector<2x32xf32>
    %286 = arith.addf %284, %285 : vector<2x32xf32>
    %287 = arith.negf %286 : vector<2x32xf32>
    %288 = math.exp %287 : vector<2x32xf32>
    %cst_47 = arith.constant 1.000000e+00 : f32
    %289 = vector.broadcast %cst_47 : f32 to vector<2x32xf32>
    %290 = arith.addf %289, %288 : vector<2x32xf32>
    %291 = arith.divf %289, %290 : vector<2x32xf32>
    %292 = vector.extract_strided_slice %291 {offsets = [0, 0], sizes = [2, 16], strides = [1, 1]} : vector<2x32xf32> to vector<2x16xf32>
    %293 = vector.extract_strided_slice %291 {offsets = [0, 16], sizes = [2, 16], strides = [1, 1]} : vector<2x32xf32> to vector<2x16xf32>
    %294 = vector.extract_strided_slice %283 {offsets = [0, 32], sizes = [2, 16], strides = [1, 1]} : vector<2x48xf32> to vector<2x16xf32>
    %295 = vector.extract_strided_slice %282 {offsets = [0, 32], sizes = [2, 16], strides = [1, 1]} : vector<2x48xf32> to vector<2x16xf32>
    %296 = arith.mulf %292, %295 : vector<2x16xf32>
    %297 = arith.addf %294, %296 : vector<2x16xf32>
    %298 = math.tanh %297 : vector<2x16xf32>
    %cst_48 = arith.constant 1.000000e+00 : f32
    %299 = vector.broadcast %cst_48 : f32 to vector<2x16xf32>
    %300 = arith.subf %299, %293 : vector<2x16xf32>
    %301 = arith.mulf %300, %298 : vector<2x16xf32>
    %302 = arith.mulf %293, %277 : vector<2x16xf32>
    %303 = arith.addf %301, %302 : vector<2x16xf32>
    %304 = vector.extract_strided_slice %17 {offsets = [8, 0], sizes = [2, 48], strides = [1, 1]} : vector<16x48xbf16> to vector<2x48xbf16>
    %305 = arith.truncf %303 : vector<2x16xf32> to vector<2x16xbf16>
    %cst_49 = arith.constant dense<0.000000e+00> : vector<2x48xf32>
    %306 = tpu.matmul %305, %4, %cst_49 {dimension_numbers = #tpu.dot_dimension_numbers<[1], [0], [0], [1], [0, 0, 1, 1], [], []>} : vector<2x16xbf16>, vector<16x48xbf16>, vector<2x48xf32> -> vector<2x48xf32>
    %307 = vector.broadcast %6 : vector<1x48xf32> to vector<2x48xf32>
    %308 = arith.addf %306, %307 : vector<2x48xf32>
    %309 = arith.extf %304 : vector<2x48xbf16> to vector<2x48xf32>
    %310 = vector.extract_strided_slice %309 {offsets = [0, 0], sizes = [2, 32], strides = [1, 1]} : vector<2x48xf32> to vector<2x32xf32>
    %311 = vector.extract_strided_slice %308 {offsets = [0, 0], sizes = [2, 32], strides = [1, 1]} : vector<2x48xf32> to vector<2x32xf32>
    %312 = arith.addf %310, %311 : vector<2x32xf32>
    %313 = arith.negf %312 : vector<2x32xf32>
    %314 = math.exp %313 : vector<2x32xf32>
    %cst_50 = arith.constant 1.000000e+00 : f32
    %315 = vector.broadcast %cst_50 : f32 to vector<2x32xf32>
    %316 = arith.addf %315, %314 : vector<2x32xf32>
    %317 = arith.divf %315, %316 : vector<2x32xf32>
    %318 = vector.extract_strided_slice %317 {offsets = [0, 0], sizes = [2, 16], strides = [1, 1]} : vector<2x32xf32> to vector<2x16xf32>
    %319 = vector.extract_strided_slice %317 {offsets = [0, 16], sizes = [2, 16], strides = [1, 1]} : vector<2x32xf32> to vector<2x16xf32>
    %320 = vector.extract_strided_slice %309 {offsets = [0, 32], sizes = [2, 16], strides = [1, 1]} : vector<2x48xf32> to vector<2x16xf32>
    %321 = vector.extract_strided_slice %308 {offsets = [0, 32], sizes = [2, 16], strides = [1, 1]} : vector<2x48xf32> to vector<2x16xf32>
    %322 = arith.mulf %318, %321 : vector<2x16xf32>
    %323 = arith.addf %320, %322 : vector<2x16xf32>
    %324 = math.tanh %323 : vector<2x16xf32>
    %cst_51 = arith.constant 1.000000e+00 : f32
    %325 = vector.broadcast %cst_51 : f32 to vector<2x16xf32>
    %326 = arith.subf %325, %319 : vector<2x16xf32>
    %327 = arith.mulf %326, %324 : vector<2x16xf32>
    %328 = arith.mulf %319, %303 : vector<2x16xf32>
    %329 = arith.addf %327, %328 : vector<2x16xf32>
    %330 = vector.extract_strided_slice %17 {offsets = [6, 0], sizes = [2, 48], strides = [1, 1]} : vector<16x48xbf16> to vector<2x48xbf16>
    %331 = arith.truncf %329 : vector<2x16xf32> to vector<2x16xbf16>
    %cst_52 = arith.constant dense<0.000000e+00> : vector<2x48xf32>
    %332 = tpu.matmul %331, %4, %cst_52 {dimension_numbers = #tpu.dot_dimension_numbers<[1], [0], [0], [1], [0, 0, 1, 1], [], []>} : vector<2x16xbf16>, vector<16x48xbf16>, vector<2x48xf32> -> vector<2x48xf32>
    %333 = vector.broadcast %6 : vector<1x48xf32> to vector<2x48xf32>
    %334 = arith.addf %332, %333 : vector<2x48xf32>
    %335 = arith.extf %330 : vector<2x48xbf16> to vector<2x48xf32>
    %336 = vector.extract_strided_slice %335 {offsets = [0, 0], sizes = [2, 32], strides = [1, 1]} : vector<2x48xf32> to vector<2x32xf32>
    %337 = vector.extract_strided_slice %334 {offsets = [0, 0], sizes = [2, 32], strides = [1, 1]} : vector<2x48xf32> to vector<2x32xf32>
    %338 = arith.addf %336, %337 : vector<2x32xf32>
    %339 = arith.negf %338 : vector<2x32xf32>
    %340 = math.exp %339 : vector<2x32xf32>
    %cst_53 = arith.constant 1.000000e+00 : f32
    %341 = vector.broadcast %cst_53 : f32 to vector<2x32xf32>
    %342 = arith.addf %341, %340 : vector<2x32xf32>
    %343 = arith.divf %341, %342 : vector<2x32xf32>
    %344 = vector.extract_strided_slice %343 {offsets = [0, 0], sizes = [2, 16], strides = [1, 1]} : vector<2x32xf32> to vector<2x16xf32>
    %345 = vector.extract_strided_slice %343 {offsets = [0, 16], sizes = [2, 16], strides = [1, 1]} : vector<2x32xf32> to vector<2x16xf32>
    %346 = vector.extract_strided_slice %335 {offsets = [0, 32], sizes = [2, 16], strides = [1, 1]} : vector<2x48xf32> to vector<2x16xf32>
    %347 = vector.extract_strided_slice %334 {offsets = [0, 32], sizes = [2, 16], strides = [1, 1]} : vector<2x48xf32> to vector<2x16xf32>
    %348 = arith.mulf %344, %347 : vector<2x16xf32>
    %349 = arith.addf %346, %348 : vector<2x16xf32>
    %350 = math.tanh %349 : vector<2x16xf32>
    %cst_54 = arith.constant 1.000000e+00 : f32
    %351 = vector.broadcast %cst_54 : f32 to vector<2x16xf32>
    %352 = arith.subf %351, %345 : vector<2x16xf32>
    %353 = arith.mulf %352, %350 : vector<2x16xf32>
    %354 = arith.mulf %345, %329 : vector<2x16xf32>
    %355 = arith.addf %353, %354 : vector<2x16xf32>
    %356 = vector.extract_strided_slice %17 {offsets = [4, 0], sizes = [2, 48], strides = [1, 1]} : vector<16x48xbf16> to vector<2x48xbf16>
    %357 = arith.truncf %355 : vector<2x16xf32> to vector<2x16xbf16>
    %cst_55 = arith.constant dense<0.000000e+00> : vector<2x48xf32>
    %358 = tpu.matmul %357, %4, %cst_55 {dimension_numbers = #tpu.dot_dimension_numbers<[1], [0], [0], [1], [0, 0, 1, 1], [], []>} : vector<2x16xbf16>, vector<16x48xbf16>, vector<2x48xf32> -> vector<2x48xf32>
    %359 = vector.broadcast %6 : vector<1x48xf32> to vector<2x48xf32>
    %360 = arith.addf %358, %359 : vector<2x48xf32>
    %361 = arith.extf %356 : vector<2x48xbf16> to vector<2x48xf32>
    %362 = vector.extract_strided_slice %361 {offsets = [0, 0], sizes = [2, 32], strides = [1, 1]} : vector<2x48xf32> to vector<2x32xf32>
    %363 = vector.extract_strided_slice %360 {offsets = [0, 0], sizes = [2, 32], strides = [1, 1]} : vector<2x48xf32> to vector<2x32xf32>
    %364 = arith.addf %362, %363 : vector<2x32xf32>
    %365 = arith.negf %364 : vector<2x32xf32>
    %366 = math.exp %365 : vector<2x32xf32>
    %cst_56 = arith.constant 1.000000e+00 : f32
    %367 = vector.broadcast %cst_56 : f32 to vector<2x32xf32>
    %368 = arith.addf %367, %366 : vector<2x32xf32>
    %369 = arith.divf %367, %368 : vector<2x32xf32>
    %370 = vector.extract_strided_slice %369 {offsets = [0, 0], sizes = [2, 16], strides = [1, 1]} : vector<2x32xf32> to vector<2x16xf32>
    %371 = vector.extract_strided_slice %369 {offsets = [0, 16], sizes = [2, 16], strides = [1, 1]} : vector<2x32xf32> to vector<2x16xf32>
    %372 = vector.extract_strided_slice %361 {offsets = [0, 32], sizes = [2, 16], strides = [1, 1]} : vector<2x48xf32> to vector<2x16xf32>
    %373 = vector.extract_strided_slice %360 {offsets = [0, 32], sizes = [2, 16], strides = [1, 1]} : vector<2x48xf32> to vector<2x16xf32>
    %374 = arith.mulf %370, %373 : vector<2x16xf32>
    %375 = arith.addf %372, %374 : vector<2x16xf32>
    %376 = math.tanh %375 : vector<2x16xf32>
    %cst_57 = arith.constant 1.000000e+00 : f32
    %377 = vector.broadcast %cst_57 : f32 to vector<2x16xf32>
    %378 = arith.subf %377, %371 : vector<2x16xf32>
    %379 = arith.mulf %378, %376 : vector<2x16xf32>
    %380 = arith.mulf %371, %355 : vector<2x16xf32>
    %381 = arith.addf %379, %380 : vector<2x16xf32>
    %382 = vector.extract_strided_slice %17 {offsets = [2, 0], sizes = [2, 48], strides = [1, 1]} : vector<16x48xbf16> to vector<2x48xbf16>
    %383 = arith.truncf %381 : vector<2x16xf32> to vector<2x16xbf16>
    %cst_58 = arith.constant dense<0.000000e+00> : vector<2x48xf32>
    %384 = tpu.matmul %383, %4, %cst_58 {dimension_numbers = #tpu.dot_dimension_numbers<[1], [0], [0], [1], [0, 0, 1, 1], [], []>} : vector<2x16xbf16>, vector<16x48xbf16>, vector<2x48xf32> -> vector<2x48xf32>
    %385 = vector.broadcast %6 : vector<1x48xf32> to vector<2x48xf32>
    %386 = arith.addf %384, %385 : vector<2x48xf32>
    %387 = arith.extf %382 : vector<2x48xbf16> to vector<2x48xf32>
    %388 = vector.extract_strided_slice %387 {offsets = [0, 0], sizes = [2, 32], strides = [1, 1]} : vector<2x48xf32> to vector<2x32xf32>
    %389 = vector.extract_strided_slice %386 {offsets = [0, 0], sizes = [2, 32], strides = [1, 1]} : vector<2x48xf32> to vector<2x32xf32>
    %390 = arith.addf %388, %389 : vector<2x32xf32>
    %391 = arith.negf %390 : vector<2x32xf32>
    %392 = math.exp %391 : vector<2x32xf32>
    %cst_59 = arith.constant 1.000000e+00 : f32
    %393 = vector.broadcast %cst_59 : f32 to vector<2x32xf32>
    %394 = arith.addf %393, %392 : vector<2x32xf32>
    %395 = arith.divf %393, %394 : vector<2x32xf32>
    %396 = vector.extract_strided_slice %395 {offsets = [0, 0], sizes = [2, 16], strides = [1, 1]} : vector<2x32xf32> to vector<2x16xf32>
    %397 = vector.extract_strided_slice %395 {offsets = [0, 16], sizes = [2, 16], strides = [1, 1]} : vector<2x32xf32> to vector<2x16xf32>
    %398 = vector.extract_strided_slice %387 {offsets = [0, 32], sizes = [2, 16], strides = [1, 1]} : vector<2x48xf32> to vector<2x16xf32>
    %399 = vector.extract_strided_slice %386 {offsets = [0, 32], sizes = [2, 16], strides = [1, 1]} : vector<2x48xf32> to vector<2x16xf32>
    %400 = arith.mulf %396, %399 : vector<2x16xf32>
    %401 = arith.addf %398, %400 : vector<2x16xf32>
    %402 = math.tanh %401 : vector<2x16xf32>
    %cst_60 = arith.constant 1.000000e+00 : f32
    %403 = vector.broadcast %cst_60 : f32 to vector<2x16xf32>
    %404 = arith.subf %403, %397 : vector<2x16xf32>
    %405 = arith.mulf %404, %402 : vector<2x16xf32>
    %406 = arith.mulf %397, %381 : vector<2x16xf32>
    %407 = arith.addf %405, %406 : vector<2x16xf32>
    %408 = vector.extract_strided_slice %17 {offsets = [0, 0], sizes = [2, 48], strides = [1, 1]} : vector<16x48xbf16> to vector<2x48xbf16>
    %409 = arith.truncf %407 : vector<2x16xf32> to vector<2x16xbf16>
    %cst_61 = arith.constant dense<0.000000e+00> : vector<2x48xf32>
    %410 = tpu.matmul %409, %4, %cst_61 {dimension_numbers = #tpu.dot_dimension_numbers<[1], [0], [0], [1], [0, 0, 1, 1], [], []>} : vector<2x16xbf16>, vector<16x48xbf16>, vector<2x48xf32> -> vector<2x48xf32>
    %411 = vector.broadcast %6 : vector<1x48xf32> to vector<2x48xf32>
    %412 = arith.addf %410, %411 : vector<2x48xf32>
    %413 = arith.extf %408 : vector<2x48xbf16> to vector<2x48xf32>
    %414 = vector.extract_strided_slice %413 {offsets = [0, 0], sizes = [2, 32], strides = [1, 1]} : vector<2x48xf32> to vector<2x32xf32>
    %415 = vector.extract_strided_slice %412 {offsets = [0, 0], sizes = [2, 32], strides = [1, 1]} : vector<2x48xf32> to vector<2x32xf32>
    %416 = arith.addf %414, %415 : vector<2x32xf32>
    %417 = arith.negf %416 : vector<2x32xf32>
    %418 = math.exp %417 : vector<2x32xf32>
    %cst_62 = arith.constant 1.000000e+00 : f32
    %419 = vector.broadcast %cst_62 : f32 to vector<2x32xf32>
    %420 = arith.addf %419, %418 : vector<2x32xf32>
    %421 = arith.divf %419, %420 : vector<2x32xf32>
    %422 = vector.extract_strided_slice %421 {offsets = [0, 0], sizes = [2, 16], strides = [1, 1]} : vector<2x32xf32> to vector<2x16xf32>
    %423 = vector.extract_strided_slice %421 {offsets = [0, 16], sizes = [2, 16], strides = [1, 1]} : vector<2x32xf32> to vector<2x16xf32>
    %424 = vector.extract_strided_slice %413 {offsets = [0, 32], sizes = [2, 16], strides = [1, 1]} : vector<2x48xf32> to vector<2x16xf32>
    %425 = vector.extract_strided_slice %412 {offsets = [0, 32], sizes = [2, 16], strides = [1, 1]} : vector<2x48xf32> to vector<2x16xf32>
    %426 = arith.mulf %422, %425 : vector<2x16xf32>
    %427 = arith.addf %424, %426 : vector<2x16xf32>
    %428 = math.tanh %427 : vector<2x16xf32>
    %cst_63 = arith.constant 1.000000e+00 : f32
    %429 = vector.broadcast %cst_63 : f32 to vector<2x16xf32>
    %430 = arith.subf %429, %423 : vector<2x16xf32>
    %431 = arith.mulf %430, %428 : vector<2x16xf32>
    %432 = arith.mulf %423, %407 : vector<2x16xf32>
    %433 = arith.addf %431, %432 : vector<2x16xf32>
    %434 = tpu.concatenate %43, %69, %95, %121, %147, %173, %199, %225 in 0 : vector<2x16xf32>, vector<2x16xf32>, vector<2x16xf32>, vector<2x16xf32>, vector<2x16xf32>, vector<2x16xf32>, vector<2x16xf32>, vector<2x16xf32> -> vector<16x16xf32>
    %435 = arith.truncf %434 : vector<16x16xf32> to vector<16x16xbf16>
    %436 = arith.index_cast %10 : i32 to index
    %c0_64 = arith.constant 0 : index
    %437 = vector.load %arg7[%436, %c0_64] : memref<16x16xbf16, #tpu.memory_space<vmem>>, vector<16x16xbf16>
    tpu.vector_store %arg7[%436, %c0_64], %435 {strides = array<i32>} : memref<16x16xbf16, #tpu.memory_space<vmem>>, vector<16x16xbf16>,
    %438 = tpu.concatenate %433, %407, %381, %355, %329, %303, %277, %251 in 0 : vector<2x16xf32>, vector<2x16xf32>, vector<2x16xf32>, vector<2x16xf32>, vector<2x16xf32>, vector<2x16xf32>, vector<2x16xf32>, vector<2x16xf32> -> vector<16x16xf32>
    %439 = arith.truncf %438 : vector<16x16xf32> to vector<16x16xbf16>
    %440 = arith.index_cast %13 : i32 to index
    %c0_65 = arith.constant 0 : index
    %441 = vector.load %arg8[%440, %c0_65] : memref<16x16xbf16, #tpu.memory_space<vmem>>, vector<16x16xbf16>
    tpu.vector_store %arg8[%440, %c0_65], %439 {strides = array<i32>} : memref<16x16xbf16, #tpu.memory_space<vmem>>, vector<16x16xbf16>,
    %c1_i32 = arith.constant 1 : i32
    %c0_66 = arith.constant 0 : index
    %c0_67 = arith.constant 0 : index
    %442 = vector.load %arg9[%c0_66, %c0_67] : memref<2x16xf32, #tpu.memory_space<vmem>>, vector<2x16xf32>
    tpu.vector_store %arg9[%c0_66, %c0_67], %225 {strides = array<i32>} : memref<2x16xf32, #tpu.memory_space<vmem>>, vector<2x16xf32>,
    %c0_68 = arith.constant 0 : index
    %c0_69 = arith.constant 0 : index
    %443 = vector.load %arg10[%c0_68, %c0_69] : memref<2x16xf32, #tpu.memory_space<vmem>>, vector<2x16xf32>
    tpu.vector_store %arg10[%c0_68, %c0_69], %433 {strides = array<i32>} : memref<2x16xf32, #tpu.memory_space<vmem>>, vector<2x16xf32>,
    return
  }
  func.func @transform_0(%arg0: i32) -> (i32, i32) {
    %c0_i32 = arith.constant 0 : i32
    %c0_i32_0 = arith.constant 0 : i32
    return %arg0, %c0_i32 : i32, i32
  }
  func.func @transform_1(%arg0: i32) -> (i32, i32) {
    %c0_i32 = arith.constant 0 : i32
    %0 = arith.subi %c0_i32, %arg0 : i32
    %c0_i32_0 = arith.constant 0 : i32
    %c0_i32_1 = arith.constant 0 : i32
    return %0, %c0_i32_0 : i32, i32
  }
  func.func @transform_2(%arg0: i32) -> (i32, i32) {
    %c0_i32 = arith.constant 0 : i32
    %c0_i32_0 = arith.constant 0 : i32
    %c0_i32_1 = arith.constant 0 : i32
    return %c0_i32, %c0_i32_0 : i32, i32
  }
  func.func @transform_3(%arg0: i32) -> (i32, i32) {
    %c0_i32 = arith.constant 0 : i32
    %c0_i32_0 = arith.constant 0 : i32
    %c0_i32_1 = arith.constant 0 : i32
    return %c0_i32, %c0_i32_0 : i32, i32
  }
  func.func @transform_4(%arg0: i32) -> (i32, i32) {
    %c0_i32 = arith.constant 0 : i32
    %c0_i32_0 = arith.constant 0 : i32
    %c0_i32_1 = arith.constant 0 : i32
    return %c0_i32, %c0_i32_0 : i32, i32
  }
  func.func @transform_5(%arg0: i32) -> (i32, i32) {
    %c0_i32 = arith.constant 0 : i32
    %c0_i32_0 = arith.constant 0 : i32
    %c0_i32_1 = arith.constant 0 : i32
    return %c0_i32, %c0_i32_0 : i32, i32
  }
  func.func @transform_6(%arg0: i32) -> (i32, i32) {
    %c0_i32 = arith.constant 0 : i32
    %c0_i32_0 = arith.constant 0 : i32
    return %arg0, %c0_i32 : i32, i32
  }
  func.func @transform_7(%arg0: i32) -> (i32, i32) {
    %c0_i32 = arith.constant 0 : i32
    %0 = arith.subi %c0_i32, %arg0 : i32
    %c0_i32_0 = arith.constant 0 : i32
    %c0_i32_1 = arith.constant 0 : i32
    return %0, %c0_i32_0 : i32, i32
  }
}

module attributes {stable_mosaic.version = 11 : i64} {
  func.func @kernel(%arg0: i32, %arg1: memref<16x16xbf16, #tpu.memory_space<vmem>>, %arg2: memref<16x16xbf16, #tpu.memory_space<vmem>>, %arg3: memref<16x96xbf16, #tpu.memory_space<vmem>>, %arg4: memref<16x96xbf16, #tpu.memory_space<vmem>>, %arg5: memref<1x96xf32, #tpu.memory_space<vmem>>, %arg6: memref<16x48xbf16, #tpu.memory_space<vmem>>, %arg7: memref<16x48xbf16, #tpu.memory_space<vmem>>) attributes {dimension_semantics = [#tpu.dimension_semantics<parallel>], iteration_bounds = array<i64: 1>, scalar_prefetch = 0 : i64, scratch_operands = 0 : i64, tpu.core_type = #tpu.core_type<tc>, window_params = [{transform_indices = @transform_0, window_bounds = array<i64: 16, 16>}, {transform_indices = @transform_1, window_bounds = array<i64: 16, 16>}, {pipeline_mode = #tpu.pipeline_mode<synchronous>, transform_indices = @transform_2, window_bounds = array<i64: 16, 96>}, {pipeline_mode = #tpu.pipeline_mode<synchronous>, transform_indices = @transform_3, window_bounds = array<i64: 16, 96>}, {pipeline_mode = #tpu.pipeline_mode<synchronous>, transform_indices = @transform_4, window_bounds = array<i64: 1, 96>}, {transform_indices = @transform_5, window_bounds = array<i64: 16, 48>}, {transform_indices = @transform_6, window_bounds = array<i64: 16, 48>}]} {
    %c0 = arith.constant 0 : index
    %c0_0 = arith.constant 0 : index
    %0 = vector.load %arg1[%c0, %c0_0] : memref<16x16xbf16, #tpu.memory_space<vmem>>, vector<16x16xbf16>
    %c0_1 = arith.constant 0 : index
    %c0_2 = arith.constant 0 : index
    %1 = vector.load %arg3[%c0_1, %c0_2] : memref<16x96xbf16, #tpu.memory_space<vmem>>, vector<16x96xbf16>
    %cst = arith.constant dense<0.000000e+00> : vector<16x96xf32>
    %2 = tpu.matmul %0, %1, %cst {dimension_numbers = #tpu.dot_dimension_numbers<[1], [0], [0], [1], [0, 0, 1, 1], [], []>} : vector<16x16xbf16>, vector<16x96xbf16>, vector<16x96xf32> -> vector<16x96xf32>
    %c0_3 = arith.constant 0 : index
    %c0_4 = arith.constant 0 : index
    %3 = vector.load %arg2[%c0_3, %c0_4] : memref<16x16xbf16, #tpu.memory_space<vmem>>, vector<16x16xbf16>
    %c0_5 = arith.constant 0 : index
    %c0_6 = arith.constant 0 : index
    %4 = vector.load %arg4[%c0_5, %c0_6] : memref<16x96xbf16, #tpu.memory_space<vmem>>, vector<16x96xbf16>
    %cst_7 = arith.constant dense<0.000000e+00> : vector<16x96xf32>
    %5 = tpu.matmul %3, %4, %cst_7 {dimension_numbers = #tpu.dot_dimension_numbers<[1], [0], [0], [1], [0, 0, 1, 1], [], []>} : vector<16x16xbf16>, vector<16x96xbf16>, vector<16x96xf32> -> vector<16x96xf32>
    %6 = arith.addf %2, %5 : vector<16x96xf32>
    %c0_8 = arith.constant 0 : index
    %c0_9 = arith.constant 0 : index
    %7 = vector.load %arg5[%c0_8, %c0_9] : memref<1x96xf32, #tpu.memory_space<vmem>>, vector<1x96xf32>
    %8 = vector.broadcast %7 : vector<1x96xf32> to vector<16x96xf32>
    %9 = arith.addf %6, %8 : vector<16x96xf32>
    %10 = vector.extract_strided_slice %9 {offsets = [0, 0], sizes = [16, 48], strides = [1, 1]} : vector<16x96xf32> to vector<16x48xf32>
    %11 = arith.truncf %10 : vector<16x48xf32> to vector<16x48xbf16>
    %c0_10 = arith.constant 0 : index
    %c0_11 = arith.constant 0 : index
    %12 = vector.load %arg6[%c0_10, %c0_11] : memref<16x48xbf16, #tpu.memory_space<vmem>>, vector<16x48xbf16>
    tpu.vector_store %arg6[%c0_10, %c0_11], %11 {strides = array<i32>} : memref<16x48xbf16, #tpu.memory_space<vmem>>, vector<16x48xbf16>,
    %13 = vector.extract_strided_slice %9 {offsets = [0, 48], sizes = [16, 48], strides = [1, 1]} : vector<16x96xf32> to vector<16x48xf32>
    %14 = arith.truncf %13 : vector<16x48xf32> to vector<16x48xbf16>
    %c0_12 = arith.constant 0 : index
    %c0_13 = arith.constant 0 : index
    %15 = vector.load %arg7[%c0_12, %c0_13] : memref<16x48xbf16, #tpu.memory_space<vmem>>, vector<16x48xbf16>
    tpu.vector_store %arg7[%c0_12, %c0_13], %14 {strides = array<i32>} : memref<16x48xbf16, #tpu.memory_space<vmem>>, vector<16x48xbf16>,
    return
  }
  func.func @transform_0(%arg0: i32) -> (i32, i32) {
    %c0_i32 = arith.constant 0 : i32
    %c0_i32_0 = arith.constant 0 : i32
    return %arg0, %c0_i32 : i32, i32
  }
  func.func @transform_1(%arg0: i32) -> (i32, i32) {
    %c0_i32 = arith.constant 0 : i32
    %c0_i32_0 = arith.constant 0 : i32
    return %arg0, %c0_i32 : i32, i32
  }
  func.func @transform_2(%arg0: i32) -> (i32, i32) {
    %c0_i32 = arith.constant 0 : i32
    %c0_i32_0 = arith.constant 0 : i32
    %c0_i32_1 = arith.constant 0 : i32
    return %c0_i32, %c0_i32_0 : i32, i32
  }
  func.func @transform_3(%arg0: i32) -> (i32, i32) {
    %c0_i32 = arith.constant 0 : i32
    %c0_i32_0 = arith.constant 0 : i32
    %c0_i32_1 = arith.constant 0 : i32
    return %c0_i32, %c0_i32_0 : i32, i32
  }
  func.func @transform_4(%arg0: i32) -> (i32, i32) {
    %c0_i32 = arith.constant 0 : i32
    %c0_i32_0 = arith.constant 0 : i32
    %c0_i32_1 = arith.constant 0 : i32
    return %c0_i32, %c0_i32_0 : i32, i32
  }
  func.func @transform_5(%arg0: i32) -> (i32, i32) {
    %c0_i32 = arith.constant 0 : i32
    %c0_i32_0 = arith.constant 0 : i32
    return %arg0, %c0_i32 : i32, i32
  }
  func.func @transform_6(%arg0: i32) -> (i32, i32) {
    %c0_i32 = arith.constant 0 : i32
    %c0_i32_0 = arith.constant 0 : i32
    return %arg0, %c0_i32 : i32, i32
  }
}

module attributes {stable_mosaic.version = 11 : i64} {
  func.func @kernel(%arg0: i32, %arg1: memref<16x16xbf16, #tpu.memory_space<vmem>>, %arg2: memref<16x16xbf16, #tpu.memory_space<vmem>>, %arg3: memref<16x32xbf16, #tpu.memory_space<vmem>>, %arg4: memref<16x32xbf16, #tpu.memory_space<vmem>>, %arg5: memref<1x32xf32, #tpu.memory_space<vmem>>, %arg6: memref<16x32xbf16, #tpu.memory_space<vmem>>) attributes {dimension_semantics = [#tpu.dimension_semantics<parallel>], iteration_bounds = array<i64: 1>, scalar_prefetch = 0 : i64, scratch_operands = 0 : i64, tpu.core_type = #tpu.core_type<tc>, window_params = [{transform_indices = @transform_0, window_bounds = array<i64: 16, 16>}, {transform_indices = @transform_1, window_bounds = array<i64: 16, 16>}, {pipeline_mode = #tpu.pipeline_mode<synchronous>, transform_indices = @transform_2, window_bounds = array<i64: 16, 32>}, {pipeline_mode = #tpu.pipeline_mode<synchronous>, transform_indices = @transform_3, window_bounds = array<i64: 16, 32>}, {pipeline_mode = #tpu.pipeline_mode<synchronous>, transform_indices = @transform_4, window_bounds = array<i64: 1, 32>}, {transform_indices = @transform_5, window_bounds = array<i64: 16, 32>}]} {
    %c0 = arith.constant 0 : index
    %c0_0 = arith.constant 0 : index
    %0 = vector.load %arg1[%c0, %c0_0] : memref<16x16xbf16, #tpu.memory_space<vmem>>, vector<16x16xbf16>
    %c0_1 = arith.constant 0 : index
    %c0_2 = arith.constant 0 : index
    %1 = vector.load %arg3[%c0_1, %c0_2] : memref<16x32xbf16, #tpu.memory_space<vmem>>, vector<16x32xbf16>
    %cst = arith.constant dense<0.000000e+00> : vector<16x32xf32>
    %2 = tpu.matmul %0, %1, %cst {dimension_numbers = #tpu.dot_dimension_numbers<[1], [0], [0], [1], [0, 0, 1, 1], [], []>} : vector<16x16xbf16>, vector<16x32xbf16>, vector<16x32xf32> -> vector<16x32xf32>
    %c0_3 = arith.constant 0 : index
    %c0_4 = arith.constant 0 : index
    %3 = vector.load %arg2[%c0_3, %c0_4] : memref<16x16xbf16, #tpu.memory_space<vmem>>, vector<16x16xbf16>
    %c0_5 = arith.constant 0 : index
    %c0_6 = arith.constant 0 : index
    %4 = vector.load %arg4[%c0_5, %c0_6] : memref<16x32xbf16, #tpu.memory_space<vmem>>, vector<16x32xbf16>
    %cst_7 = arith.constant dense<0.000000e+00> : vector<16x32xf32>
    %5 = tpu.matmul %3, %4, %cst_7 {dimension_numbers = #tpu.dot_dimension_numbers<[1], [0], [0], [1], [0, 0, 1, 1], [], []>} : vector<16x16xbf16>, vector<16x32xbf16>, vector<16x32xf32> -> vector<16x32xf32>
    %6 = arith.addf %2, %5 : vector<16x32xf32>
    %c0_8 = arith.constant 0 : index
    %c0_9 = arith.constant 0 : index
    %7 = vector.load %arg5[%c0_8, %c0_9] : memref<1x32xf32, #tpu.memory_space<vmem>>, vector<1x32xf32>
    %8 = vector.broadcast %7 : vector<1x32xf32> to vector<16x32xf32>
    %9 = arith.addf %6, %8 : vector<16x32xf32>
    %cst_10 = arith.constant 0.000000e+00 : f32
    %10 = vector.broadcast %cst_10 : f32 to vector<16x32xf32>
    %11 = arith.maximumf %9, %10 : vector<16x32xf32>
    %12 = arith.truncf %11 : vector<16x32xf32> to vector<16x32xbf16>
    %c0_11 = arith.constant 0 : index
    %c0_12 = arith.constant 0 : index
    %13 = vector.load %arg6[%c0_11, %c0_12] : memref<16x32xbf16, #tpu.memory_space<vmem>>, vector<16x32xbf16>
    tpu.vector_store %arg6[%c0_11, %c0_12], %12 {strides = array<i32>} : memref<16x32xbf16, #tpu.memory_space<vmem>>, vector<16x32xbf16>,
    return
  }
  func.func @transform_0(%arg0: i32) -> (i32, i32) {
    %c0_i32 = arith.constant 0 : i32
    %c0_i32_0 = arith.constant 0 : i32
    return %arg0, %c0_i32 : i32, i32
  }
  func.func @transform_1(%arg0: i32) -> (i32, i32) {
    %c0_i32 = arith.constant 0 : i32
    %c0_i32_0 = arith.constant 0 : i32
    return %arg0, %c0_i32 : i32, i32
  }
  func.func @transform_2(%arg0: i32) -> (i32, i32) {
    %c0_i32 = arith.constant 0 : i32
    %c0_i32_0 = arith.constant 0 : i32
    %c0_i32_1 = arith.constant 0 : i32
    return %c0_i32, %c0_i32_0 : i32, i32
  }
  func.func @transform_3(%arg0: i32) -> (i32, i32) {
    %c0_i32 = arith.constant 0 : i32
    %c0_i32_0 = arith.constant 0 : i32
    %c0_i32_1 = arith.constant 0 : i32
    return %c0_i32, %c0_i32_0 : i32, i32
  }
  func.func @transform_4(%arg0: i32) -> (i32, i32) {
    %c0_i32 = arith.constant 0 : i32
    %c0_i32_0 = arith.constant 0 : i32
    %c0_i32_1 = arith.constant 0 : i32
    return %c0_i32, %c0_i32_0 : i32, i32
  }
  func.func @transform_5(%arg0: i32) -> (i32, i32) {
    %c0_i32 = arith.constant 0 : i32
    %c0_i32_0 = arith.constant 0 : i32
    return %arg0, %c0_i32 : i32, i32
  }
}

module attributes {stable_mosaic.version = 11 : i64} {
  func.func @kernel(%arg0: i32, %arg1: memref<16x32xbf16, #tpu.memory_space<vmem>>, %arg2: memref<32x128xbf16, #tpu.memory_space<vmem>>, %arg3: memref<1x128xf32, #tpu.memory_space<vmem>>, %arg4: memref<16x128xf32, #tpu.memory_space<vmem>>) attributes {dimension_semantics = [#tpu.dimension_semantics<parallel>], iteration_bounds = array<i64: 1>, scalar_prefetch = 0 : i64, scratch_operands = 0 : i64, tpu.core_type = #tpu.core_type<tc>, window_params = [{transform_indices = @transform_0, window_bounds = array<i64: 16, 32>}, {pipeline_mode = #tpu.pipeline_mode<synchronous>, transform_indices = @transform_1, window_bounds = array<i64: 32, 128>}, {pipeline_mode = #tpu.pipeline_mode<synchronous>, transform_indices = @transform_2, window_bounds = array<i64: 1, 128>}, {transform_indices = @transform_3, window_bounds = array<i64: 16, 128>}]} {
    %c0 = arith.constant 0 : index
    %c0_0 = arith.constant 0 : index
    %0 = vector.load %arg1[%c0, %c0_0] : memref<16x32xbf16, #tpu.memory_space<vmem>>, vector<16x32xbf16>
    %c0_1 = arith.constant 0 : index
    %c0_2 = arith.constant 0 : index
    %1 = vector.load %arg2[%c0_1, %c0_2] : memref<32x128xbf16, #tpu.memory_space<vmem>>, vector<32x128xbf16>
    %cst = arith.constant dense<0.000000e+00> : vector<16x128xf32>
    %2 = tpu.matmul %0, %1, %cst {dimension_numbers = #tpu.dot_dimension_numbers<[1], [0], [0], [1], [0, 0, 1, 1], [], []>} : vector<16x32xbf16>, vector<32x128xbf16>, vector<16x128xf32> -> vector<16x128xf32>
    %c0_3 = arith.constant 0 : index
    %c0_4 = arith.constant 0 : index
    %3 = vector.load %arg3[%c0_3, %c0_4] : memref<1x128xf32, #tpu.memory_space<vmem>>, vector<1x128xf32>
    %4 = vector.broadcast %3 : vector<1x128xf32> to vector<16x128xf32>
    %5 = arith.addf %2, %4 : vector<16x128xf32>
    %cst_5 = arith.constant dense<0xFF800000> : vector<16xf32>
    %6 = vector.multi_reduction <maximumf>, %5, %cst_5 [1] : vector<16x128xf32> to vector<16xf32>
    %7 = vector.shape_cast %6 : vector<16xf32> to vector<16x1xf32>
    %8 = vector.broadcast %7 : vector<16x1xf32> to vector<16x128xf32>
    %9 = arith.subf %5, %8 : vector<16x128xf32>
    %10 = math.exp %9 : vector<16x128xf32>
    %cst_6 = arith.constant dense<0.000000e+00> : vector<16xf32>
    %11 = vector.multi_reduction <add>, %10, %cst_6 [1] : vector<16x128xf32> to vector<16xf32>
    %12 = vector.shape_cast %11 : vector<16xf32> to vector<16x1xf32>
    %13 = tpu.reciprocal %12 {approx = true} : vector<16x1xf32> -> vector<16x1xf32>
    %14 = vector.broadcast %13 : vector<16x1xf32> to vector<16x128xf32>
    %15 = arith.mulf %10, %14 : vector<16x128xf32>
    %c0_7 = arith.constant 0 : index
    %c0_8 = arith.constant 0 : index
    %16 = vector.load %arg4[%c0_7, %c0_8] : memref<16x128xf32, #tpu.memory_space<vmem>>, vector<16x128xf32>
    tpu.vector_store %arg4[%c0_7, %c0_8], %15 {strides = array<i32>} : memref<16x128xf32, #tpu.memory_space<vmem>>, vector<16x128xf32>,
    return
  }
  func.func @transform_0(%arg0: i32) -> (i32, i32) {
    %c0_i32 = arith.constant 0 : i32
    %c0_i32_0 = arith.constant 0 : i32
    return %arg0, %c0_i32 : i32, i32
  }
  func.func @transform_1(%arg0: i32) -> (i32, i32) {
    %c0_i32 = arith.constant 0 : i32
    %c0_i32_0 = arith.constant 0 : i32
    %c0_i32_1 = arith.constant 0 : i32
    return %c0_i32, %c0_i32_0 : i32, i32
  }
  func.func @transform_2(%arg0: i32) -> (i32, i32) {
    %c0_i32 = arith.constant 0 : i32
    %c0_i32_0 = arith.constant 0 : i32
    %c0_i32_1 = arith.constant 0 : i32
    return %c0_i32, %c0_i32_0 : i32, i32
  }
  func.func @transform_3(%arg0: i32) -> (i32, i32) {
    %c0_i32 = arith.constant 0 : i32
    %c0_i32_0 = arith.constant 0 : i32
    return %arg0, %c0_i32 : i32, i32
  }
}

</mosaic_0001>

<llo_original>
// kernel: _lambda_.12
$region0: #{_lambda_.12}
  #allocation0 [shape = 'u32[]', space=smem, size = 0x4, offset = 0x4, fixed_abs, tag = 'smem constant byte address 0x4 - core index']
  #allocation1 [shape = 'u32[144,128]{1,0:T(1,128)}', space=vmem, size = 0x12000, scoped, tag = 'internal scratch']
  %s0 = inlined_call_operand.vmem [shape: bf16[16,32], index: 0, kind: input, shape index: {}]
  %s1 = inlined_call_operand.vmem [shape: bf16[32,96], index: 1, kind: input, shape index: {}]
  %s2 = inlined_call_operand.vmem [shape: f32[1,96], index: 2, kind: input, shape index: {}]
  %s3 = inlined_call_operand.vmem [shape: bf16[16,48], index: 3, kind: output, shape index: {0}]
  %s4 = inlined_call_operand.vmem [shape: bf16[16,48], index: 4, kind: output, shape index: {1}]
  %5 = xla_tuple %s3, %s4
  %s6 = sld [smem:[#allocation0]]
  $region30: #{_lambda_.12} parent=0
    _
  %s8 = ssub.s32 1, %s6
  %s9 = scalar_select 0, %s8, %s6
  // Predicated region
  $region2: #{_lambda_.12} parent=0 // pred_check
    _
  $region3: #{_lambda_.12} parent=0 // pred_check_branch
    %11 = sbr.rel (0) target = $region5
  $region4: #{_lambda_.12} parent=0 // pred_region
    _
  $region5: #{_lambda_.12} parent=0 // pred_fallthru
    _
  // Predicated region
  $region6: #{_lambda_.12} parent=0 // pred_check
    _
  $region7: #{_lambda_.12} parent=0 // pred_check_branch
    %13 = sbr.rel (0) target = $region9
  $region8: #{_lambda_.12} parent=0 // pred_region
    _
  $region9: #{_lambda_.12} parent=0 // pred_fallthru
    _
  // Predicated region
  $region10: #{_lambda_.12} parent=0 // pred_check
    _
  $region11: #{_lambda_.12} parent=0 // pred_check_branch
    %15 = sbr.rel (0) target = $region13
  $region12: #{_lambda_.12} parent=0 // pred_region
    _
  $region13: #{_lambda_.12} parent=0 // pred_fallthru
    _
  %v17 = vld [vmem:[%s0] sm:$0xf]
  %v18 = vld [vmem:[%s0 + $0x4] sm:$0xf]
  %v19 = vld [vmem:[%s1] sm:$0xf]
  %v20 = vld [vmem:[%s1 + $0x4] sm:$0xf]
  %v21 = vld [vmem:[%s1 + $0x8] sm:$0xf]
  %v22 = vld [vmem:[%s1 + $0xc] sm:$0xf]
  %v23 = vld [vmem:[%s2] sm:$0x1]
  %v25 = vlaneseq
  %v26 = vshrl.u32 %v25, 7
  %v27 = vsub.s32 0, %v26
  %v28 = vrot.slane %v23, %v27
  %v32 = vunpack.c.l.b16 %v17
  %v33 = vunpack.c.l.b16 %v18
  %v34 = vpack.c.b16 %v33, %v32
  %v39 = vunpack.c.l.b16 %v19
  %v40 = vunpack.c.l.b16 %v20
  %v41 = vunpack.c.l.b16 %v21
  %v42 = vunpack.c.l.b16 %v22
  %v43 = vpack.c.b16 %v40, %v39
  %v44 = vpack.c.b16 %v42, %v41
  %vm47 = vcmask 261120
  %v49 = vsel %vm47, %v34, 0
  %51 = vmatprep.subr.bf16.mxu0 0
  %52 = vmatpush1.bf16.msra.mxu0 0
  %53 = vmatprep.subr.bf16.mxu0 0
  %54 = vmatpush1.bf16.msra.mxu0 0
  %55 = vmatprep.subr.bf16.mxu0 0
  %56 = vmatpush1.bf16.msra.mxu0 0
  %57 = vmatprep.subr.bf16.mxu0 0
  %58 = vmatpush1.bf16.msra.mxu0 0
  %59 = vmatprep.subr.bf16.mxu0 0
  %60 = vmatpush1.bf16.msra.mxu0 0
  %61 = vmatprep.subr.bf16.mxu0 0
  %62 = vmatpush1.bf16.msra.mxu0 0
  %63 = vmatprep.subr.bf16.mxu0 0
  %64 = vmatpush1.bf16.msra.mxu0 %v44
  %65 = vmatprep.subr.bf16.mxu0 0
  %66 = vmatpush1.bf16.msra.mxu0 %v43
  %67 = vmatprep.subr.bf16.mxu0 0
  %68 = vmatpush2.bf16.msra.mxu0 0
  %69 = vmatprep.subr.bf16.mxu0 0
  %70 = vmatpush2.bf16.msra.mxu0 0
  %71 = vmatprep.subr.bf16.mxu0 0
  %72 = vmatpush2.bf16.msra.mxu0 0
  %73 = vmatprep.subr.bf16.mxu0 0
  %74 = vmatpush2.bf16.msra.mxu0 0
  %75 = vmatprep.subr.bf16.mxu0 0
  %76 = vmatpush2.bf16.msra.mxu0 0
  %77 = vmatprep.subr.bf16.mxu0 0
  %78 = vmatpush2.bf16.msra.mxu0 0
  %79 = vmatprep.subr.bf16.mxu0 0
  %80 = vmatpush2.bf16.msra.mxu0 0
  %81 = vmatprep.subr.bf16.mxu0 0
  %82 = vmatpush2.bf16.msra.mxu0 0
  %83 = vmatprep.mubr.bf16.mxu0 0
  %84 = vmatmul.mubr.bf16.gmra.mxu0 %v49
  %v85 = vpop.f32.mrf.mxu0
  %v86 = vadd.f32 %v28, %v85
  %v87 = vpop.f32.mrf.mxu0
  %v88 = vpop.f32.mrf.mxu0
  %v89 = vadd.f32 %v28, %v88
  %v90 = vpop.f32.mrf.mxu0
  %91 = vdwg.mxu0
  %v92 = vpack.c.bf16 %v89, %v86
  %v94 = vunpack.c.l.b16 %v92
  %v95 = vunpack.c.h.b16 %v92
  %v96 = vpack.c.b16 %v94, %v94
  %v97 = vpack.c.b16 %v95, %v95
  %vm100 = vcmask 388096
  %101 = vst.msk [vmem:[%s3] sm:$0xf] %vm100, %v96
  %102 = vst.msk [vmem:[%s3 + $0x4] sm:$0xf] %vm100, %v97
  %103 = vrot.lane.b32.xlu0 %v96, 80
  %v104 = vpop.permute.xlu0 %103
  %105 = vrot.lane.b32.xlu0 %v97, 80
  %v106 = vpop.permute.xlu0 %105
  %109 = vst.msk [vmem:[%s4] sm:$0xf] %vm100, %v104
  %110 = vst.msk [vmem:[%s4 + $0x4] sm:$0xf] %vm100, %v106
  // Predicated region
  $region14: #{_lambda_.12} parent=0 // pred_check
    _
  $region15: #{_lambda_.12} parent=0 // pred_check_branch
    %112 = sbr.rel (0) target = $region17
  $region16: #{_lambda_.12} parent=0 // pred_region
    _
  $region17: #{_lambda_.12} parent=0 // pred_fallthru
    _
  // Predicated region
  $region18: #{_lambda_.12} parent=0 // pred_check
    _
  $region19: #{_lambda_.12} parent=0 // pred_check_branch
    %114 = sbr.rel (0) target = $region21
  $region20: #{_lambda_.12} parent=0 // pred_region
    _
  $region21: #{_lambda_.12} parent=0 // pred_fallthru
    _
  // Predicated region
  $region22: #{_lambda_.12} parent=0 // pred_check
    _
  $region23: #{_lambda_.12} parent=0 // pred_check_branch
    %116 = sbr.rel (0) target = $region25
  $region24: #{_lambda_.12} parent=0 // pred_region
    _
  $region25: #{_lambda_.12} parent=0 // pred_fallthru
    _
  // Predicated region
  $region26: #{_lambda_.12} parent=0 // pred_check
    _
  $region27: #{_lambda_.12} parent=0 // pred_check_branch
    %118 = sbr.rel (0) target = $region29
  $region28: #{_lambda_.12} parent=0 // pred_region
    _
  $region29: #{_lambda_.12} parent=0 // pred_fallthru
    _

// kernel: _lambda_.10
$region0: #{_lambda_.10}
  #allocation0 [shape = 'u32[]', space=smem, size = 0x4, offset = 0x4, fixed_abs, tag = 'smem constant byte address 0x4 - core index']
  #allocation1 [shape = 'u32[144,128]{1,0:T(1,128)}', space=vmem, size = 0x12000, scoped, tag = 'internal scratch']
  %s0 = inlined_call_operand.vmem [shape: bf16[2,16,8], index: 0, kind: input, shape index: {}]
  %s1 = inlined_call_operand.vmem [shape: bf16[9,8,16], index: 1, kind: input, shape index: {}]
  %s2 = inlined_call_operand.vmem [shape: f32[1,16], index: 2, kind: input, shape index: {}]
  %s3 = inlined_call_operand.vmem [shape: bf16[2,8,16], index: 3, kind: output, shape index: {}]
  %s4 = sld [smem:[#allocation0]]
  $region45: #{_lambda_.10} parent=0
    _
  %s6 = ssub.s32 1, %s4
  %s7 = scalar_select 0, %s6, %s4
  loop: start=0, step=1, limit=4
  $region2: #{_lambda_.10} parent=0 // loop_pre_header
    _
  $region3: #{_lambda_.10} parent=0 // loop_header
    %s9 = sphi 0, %s13
    %p10 = scmp.ge.s32.totalorder %s9, 4
    %s19 = sphi 0, %s21
    %s22 = sphi 0, %s19
    %s23 = sphi 0, %s22
    %s39 = sphi 0, %s23
    %s43 = sphi 0, %s43
    %s45 = sphi 0, %s43
    %s46 = sphi 0, %s45
    %s60 = sphi 0, %s46
    %s64 = sphi 0, %s64
    %s66 = sphi 0, %s64
    %s67 = sphi 0, %s66
    %s81 = sphi 0, %s67
    %s87 = sphi 0, %s89
    %s90 = sphi 0, %s87
    %s91 = sphi 0, %s90
    %s107 = sphi 0, %s91
  $region4: #{_lambda_.10} parent=0 // loop_header_branch
    %12 = sbr.rel (%p10) target = $region8
  $region5: #{_lambda_.10} parent=0 // loop_body
    %s14 = ssub.s32 %s9, 1
    %s15 = ssub.s32 %s9, 2
    %s16 = sadd.s32 %s9, 1
    %s17 = ssub.s32 %s9, %s16
    %p18 = scmp.eq.s32.totalorder %s17, 0
    %s20 = sadd.s32 %s19, 1
    %s21 = scalar_select %p18, %s19, %s20
    %p24 = pneg %p18
    %p25 = scmp.eq.s32.totalorder %s9, 1
    %p26 = por %p24, %p25
    %p27 = scmp.ne.s32.totalorder %s19, %s22
    %p28 = scmp.eq.s32.totalorder %s9, 0
    %p29 = por %p27, %p28
    %p30 = scmp.ne.s32.totalorder %s19, %s22
    %p31 = scmp.eq.s32.totalorder %s14, 1
    %p32 = por %p30, %p31
    %p33 = scmp.ne.s32.totalorder %s22, %s23
    %p34 = scmp.eq.s32.totalorder %s14, 0
    %p35 = por %p33, %p34
    %p36 = scmp.ne.s32.totalorder %s22, %s23
    %p37 = scmp.eq.s32.totalorder %s15, 1
    %p38 = por %p36, %p37
    %p40 = scmp.ne.s32.totalorder %s23, %s39
    %p41 = scmp.eq.s32.totalorder %s15, 0
    %p42 = por %p40, %p41
    %s44 = sadd.s32 %s43, 1
    %p47 = scmp.eq.s32.totalorder %s9, 1
    %p48 = scmp.ne.s32.totalorder %s43, %s45
    %p49 = scmp.eq.s32.totalorder %s9, 0
    %p50 = por %p48, %p49
    %p51 = scmp.ne.s32.totalorder %s43, %s45
    %p52 = scmp.eq.s32.totalorder %s14, 1
    %p53 = por %p51, %p52
    %p54 = scmp.ne.s32.totalorder %s45, %s46
    %p55 = scmp.eq.s32.totalorder %s14, 0
    %p56 = por %p54, %p55
    %p57 = scmp.ne.s32.totalorder %s45, %s46
    %p58 = scmp.eq.s32.totalorder %s15, 1
    %p59 = por %p57, %p58
    %p61 = scmp.ne.s32.totalorder %s46, %s60
    %p62 = scmp.eq.s32.totalorder %s15, 0
    %p63 = por %p61, %p62
    %s65 = sadd.s32 %s64, 1
    %p68 = scmp.eq.s32.totalorder %s9, 1
    %p69 = scmp.ne.s32.totalorder %s64, %s66
    %p70 = scmp.eq.s32.totalorder %s9, 0
    %p71 = por %p69, %p70
    %p72 = scmp.ne.s32.totalorder %s64, %s66
    %p73 = scmp.eq.s32.totalorder %s14, 1
    %p74 = por %p72, %p73
    %p75 = scmp.ne.s32.totalorder %s66, %s67
    %p76 = scmp.eq.s32.totalorder %s14, 0
    %p77 = por %p75, %p76
    %p78 = scmp.ne.s32.totalorder %s66, %s67
    %p79 = scmp.eq.s32.totalorder %s15, 1
    %p80 = por %p78, %p79
    %p82 = scmp.ne.s32.totalorder %s67, %s81
    %p83 = scmp.eq.s32.totalorder %s15, 0
    %p84 = por %p82, %p83
    %s85 = ssub.s32 %s9, %s16
    %p86 = scmp.eq.s32.totalorder %s85, 0
    %s88 = sadd.s32 %s87, 1
    %s89 = scalar_select %p86, %s87, %s88
    %p92 = pneg %p86
    %p93 = scmp.eq.s32.totalorder %s9, 1
    %p94 = por %p92, %p93
    %p95 = scmp.ne.s32.totalorder %s87, %s90
    %p96 = scmp.eq.s32.totalorder %s9, 0
    %p97 = por %p95, %p96
    %p98 = scmp.ne.s32.totalorder %s87, %s90
    %p99 = scmp.eq.s32.totalorder %s14, 1
    %p100 = por %p98, %p99
    %p101 = scmp.ne.s32.totalorder %s90, %s91
    %p102 = scmp.eq.s32.totalorder %s14, 0
    %p103 = por %p101, %p102
    %p104 = scmp.ne.s32.totalorder %s90, %s91
    %p105 = scmp.eq.s32.totalorder %s15, 1
    %p106 = por %p104, %p105
    %p108 = scmp.ne.s32.totalorder %s91, %s107
    %p109 = scmp.eq.s32.totalorder %s15, 0
    %p110 = por %p108, %p109
    %p111 = scmp.le.s32.totalorder 1, %s9
    %p112 = scmp.lt.s32.totalorder %s9, 3
    %p113 = pnand %p111, %p112
    %p114 = pneg %p113
    // Predicated region
    $region9: #{_lambda_.10} parent=5 // pred_check
      _
    $region10: #{_lambda_.10} parent=5 // pred_check_branch
      %116 = sbr.rel (%p113) target = $region12
    $region11: #{_lambda_.10} parent=5 // pred_region
      %s117 = ssub.s32 %s9, 1
      // Predicated region
      $region13: #{_lambda_.10} parent=11 // pred_check
        %p118 = pneg %p56
      $region14: #{_lambda_.10} parent=11 // pred_check_branch
        %120 = sbr.rel (%p118) target = $region16
      $region15: #{_lambda_.10} parent=11 // pred_region
        _
      $region16: #{_lambda_.10} parent=11 // pred_fallthru
        _
      // Predicated region
      $region17: #{_lambda_.10} parent=11 // pred_check
        %p121 = pneg %p77
      $region18: #{_lambda_.10} parent=11 // pred_check_branch
        %123 = sbr.rel (%p121) target = $region20
      $region19: #{_lambda_.10} parent=11 // pred_region
        _
      $region20: #{_lambda_.10} parent=11 // pred_fallthru
        _
    $region12: #{_lambda_.10} parent=5 // pred_fallthru
      _
    %p124 = scmp.lt.s32.totalorder %s9, 2
    // Predicated region
    $region21: #{_lambda_.10} parent=5 // pred_check
      %p125 = pneg %p124
    $region22: #{_lambda_.10} parent=5 // pred_check_branch
      %127 = sbr.rel (%p125) target = $region24
    $region23: #{_lambda_.10} parent=5 // pred_region
      // Predicated region
      $region25: #{_lambda_.10} parent=23 // pred_check
        %p128 = pneg %p29
      $region26: #{_lambda_.10} parent=23 // pred_check_branch
        %130 = sbr.rel (%p128) target = $region28
      $region27: #{_lambda_.10} parent=23 // pred_region
        %p131 = scmp.lt.s32.totalorder %s9, 1
        %s132 = scalar_select %p131, %s9, 1
        %s133 = smul.addr %s132, 2
        %s134 = smul.addr %s133, 4
        %s135 = scalar_lea.vmem %s0, %s134
      $region28: #{_lambda_.10} parent=23 // pred_fallthru
        _
    $region24: #{_lambda_.10} parent=5 // pred_fallthru
      _
    %p136 = scmp.le.s32.totalorder 1, %s9
    %p137 = scmp.lt.s32.totalorder %s9, 3
    %p138 = pnand %p136, %p137
    %p139 = pneg %p138
    // Predicated region
    $region29: #{_lambda_.10} parent=5 // pred_check
      _
    $region30: #{_lambda_.10} parent=5 // pred_check_branch
      %141 = sbr.rel (%p138) target = $region32
    $region31: #{_lambda_.10} parent=5 // pred_region
      %s142 = ssub.s32 %s9, 1
      %p143 = scmp.lt.s32.totalorder %s14, 1
      %s144 = scalar_select %p143, %s14, 1
      %s145 = smul.addr %s144, 2
      %s146 = smul.addr %s145, 4
      %s147 = scalar_lea.vmem %s0, %s146
      %p148 = pneg %p35
      %p149 = pneg %p32
      %p150 = pneg %p56
      %p151 = pneg %p53
      %p152 = pneg %p77
      %p153 = pneg %p74
      %p154 = pneg %p103
      %p155 = pneg %p100
      %p156 = scmp.lt.s32.totalorder %s14, 1
      %s157 = scalar_select %p156, %s14, 1
      %s158 = smul.addr %s157, 4
      %s159 = scalar_lea.vmem %s3, %s158
      %p160 = scmp.lt.s32.totalorder %s14, 1
      %s161 = scalar_select %p160, %s14, 1
      %s162 = smul.addr %s161, 2
      %s163 = smul.addr %s162, 4
      %s164 = scalar_lea.vmem %s0, %s163
      %p165 = scmp.lt.s32.totalorder %s14, 1
      %s166 = scalar_select %p165, %s14, 1
      %s167 = smul.addr %s166, 4
      %s168 = scalar_lea.vmem %s3, %s167
      %v170 = vld [vmem:[%s164] sm:$0xf]
      %v171 = vld [vmem:[%s1] sm:$0xf]
      %v172 = vld [vmem:[%s164 + $0x4] sm:$0x1]
      %s173 = scalar_lea.vmem %s1, 4
      %v174 = vld [vmem:[%s173] sm:$0xf]
      %v177 = vunpack.c.l.b16 %v170
      %v178 = vunpack.c.l.b16 %v172
      %v179 = vpack.c.b16 %v178, %v177
      %v181 = vshrl.u32 %v179, 16
      %v183 = vshll.u32 %v179, 16
      %v185 = vrot.slane %v183, 1
      %v186 = vor.u32 %v181, %v185
      %vm187 = vcmask 64512
      %v189 = vsel %vm187, %v186, 0
      %vm191 = vcmask 1043456
      %v193 = vsel %vm191, %v174, 0
      %195 = vmatprep.subr.bf16.mxu0 0
      %196 = vmatpush1.bf16.msra.mxu0 0
      %197 = vmatprep.subr.bf16.mxu0 0
      %198 = vmatpush1.bf16.msra.mxu0 0
      %199 = vmatprep.subr.bf16.mxu0 0
      %200 = vmatpush1.bf16.msra.mxu0 0
      %201 = vmatprep.subr.bf16.mxu0 0
      %202 = vmatpush1.bf16.msra.mxu0 0
      %203 = vmatprep.subr.bf16.mxu0 0
      %204 = vmatpush1.bf16.msra.mxu0 0
      %205 = vmatprep.subr.bf16.mxu0 0
      %206 = vmatpush1.bf16.msra.mxu0 0
      %207 = vmatprep.subr.bf16.mxu0 0
      %208 = vmatpush1.bf16.msra.mxu0 0
      %209 = vmatprep.subr.bf16.mxu0 0
      %210 = vmatpush1.bf16.msra.mxu0 %v193
      %211 = vmatprep.subr.bf16.mxu0 0
      %212 = vmatpush2.bf16.msra.mxu0 0
      %213 = vmatprep.subr.bf16.mxu0 0
      %214 = vmatpush2.bf16.msra.mxu0 0
      %215 = vmatprep.subr.bf16.mxu0 0
      %216 = vmatpush2.bf16.msra.mxu0 0
      %217 = vmatprep.subr.bf16.mxu0 0
      %218 = vmatpush2.bf16.msra.mxu0 0
      %219 = vmatprep.subr.bf16.mxu0 0
      %220 = vmatpush2.bf16.msra.mxu0 0
      %221 = vmatprep.subr.bf16.mxu0 0
      %222 = vmatpush2.bf16.msra.mxu0 0
      %223 = vmatprep.subr.bf16.mxu0 0
      %224 = vmatpush2.bf16.msra.mxu0 0
      %225 = vmatprep.subr.bf16.mxu0 0
      %226 = vmatpush2.bf16.msra.mxu0 0
      %227 = vmatprep.mubr.bf16.mxu0 0
      %228 = vmatmul.mubr.bf16.gmra.mxu0 %v189
      %v229 = vpop.f32.mrf.mxu0
      %v230 = vadd.f32 0.0, %v229
      %v231 = vpop.f32.mrf.mxu0
      %v232 = vpop.f32.mrf.mxu0
      %v233 = vpop.f32.mrf.mxu0
      %234 = vdwg.mxu0
      %v236 = vsel %vm187, %v170, 0
      %v239 = vsel %vm191, %v171, 0
      %241 = vmatprep.subr.bf16.mxu0 0
      %242 = vmatpush1.bf16.msra.mxu0 0
      %243 = vmatprep.subr.bf16.mxu0 0
      %244 = vmatpush1.bf16.msra.mxu0 0
      %245 = vmatprep.subr.bf16.mxu0 0
      %246 = vmatpush1.bf16.msra.mxu0 0
      %247 = vmatprep.subr.bf16.mxu0 0
      %248 = vmatpush1.bf16.msra.mxu0 0
      %249 = vmatprep.subr.bf16.mxu0 0
      %250 = vmatpush1.bf16.msra.mxu0 0
      %251 = vmatprep.subr.bf16.mxu0 0
      %252 = vmatpush1.bf16.msra.mxu0 0
      %253 = vmatprep.subr.bf16.mxu0 0
      %254 = vmatpush1.bf16.msra.mxu0 0
      %255 = vmatprep.subr.bf16.mxu0 0
      %256 = vmatpush1.bf16.msra.mxu0 %v239
      %257 = vmatprep.subr.bf16.mxu0 0
      %258 = vmatpush2.bf16.msra.mxu0 0
      %259 = vmatprep.subr.bf16.mxu0 0
      %260 = vmatpush2.bf16.msra.mxu0 0
      %261 = vmatprep.subr.bf16.mxu0 0
      %262 = vmatpush2.bf16.msra.mxu0 0
      %263 = vmatprep.subr.bf16.mxu0 0
      %264 = vmatpush2.bf16.msra.mxu0 0
      %265 = vmatprep.subr.bf16.mxu0 0
      %266 = vmatpush2.bf16.msra.mxu0 0
      %267 = vmatprep.subr.bf16.mxu0 0
      %268 = vmatpush2.bf16.msra.mxu0 0
      %269 = vmatprep.subr.bf16.mxu0 0
      %270 = vmatpush2.bf16.msra.mxu0 0
      %271 = vmatprep.subr.bf16.mxu0 0
      %272 = vmatpush2.bf16.msra.mxu0 0
      %273 = vmatprep.mubr.bf16.mxu0 0
      %274 = vmatmul.mubr.bf16.gmra.mxu0 %v236
      %v275 = vpop.f32.mrf.mxu0
      %v276 = vadd.f32 %v230, %v275
      %v277 = vpop.f32.mrf.mxu0
      %v278 = vpop.f32.mrf.mxu0
      %v279 = vpop.f32.mrf.mxu0
      %280 = vdwg.mxu0
      %v281 = vld [vmem:[%s164] sm:$0xe]
      %s282 = scalar_lea.vmem %s1, 8
      %v283 = vld [vmem:[%s282] sm:$0xf]
      %v285 = vunpack.c.l.b16 %v281
      %v286 = vpack.c.b16 %v178, %v285
      %v287 = vrot.slane %v286, 1
      %v289 = vsel %vm187, %v287, 0
      %v292 = vsel %vm191, %v283, 0
      %294 = vmatprep.subr.bf16.mxu0 0
      %295 = vmatpush1.bf16.msra.mxu0 0
      %296 = vmatprep.subr.bf16.mxu0 0
      %297 = vmatpush1.bf16.msra.mxu0 0
      %298 = vmatprep.subr.bf16.mxu0 0
      %299 = vmatpush1.bf16.msra.mxu0 0
      %300 = vmatprep.subr.bf16.mxu0 0
      %301 = vmatpush1.bf16.msra.mxu0 0
      %302 = vmatprep.subr.bf16.mxu0 0
      %303 = vmatpush1.bf16.msra.mxu0 0
      %304 = vmatprep.subr.bf16.mxu0 0
      %305 = vmatpush1.bf16.msra.mxu0 0
      %306 = vmatprep.subr.bf16.mxu0 0
      %307 = vmatpush1.bf16.msra.mxu0 0
      %308 = vmatprep.subr.bf16.mxu0 0
      %309 = vmatpush1.bf16.msra.mxu0 %v292
      %310 = vmatprep.subr.bf16.mxu0 0
      %311 = vmatpush2.bf16.msra.mxu0 0
      %312 = vmatprep.subr.bf16.mxu0 0
      %313 = vmatpush2.bf16.msra.mxu0 0
      %314 = vmatprep.subr.bf16.mxu0 0
      %315 = vmatpush2.bf16.msra.mxu0 0
      %316 = vmatprep.subr.bf16.mxu0 0
      %317 = vmatpush2.bf16.msra.mxu0 0
      %318 = vmatprep.subr.bf16.mxu0 0
      %319 = vmatpush2.bf16.msra.mxu0 0
      %320 = vmatprep.subr.bf16.mxu0 0
      %321 = vmatpush2.bf16.msra.mxu0 0
      %322 = vmatprep.subr.bf16.mxu0 0
      %323 = vmatpush2.bf16.msra.mxu0 0
      %324 = vmatprep.subr.bf16.mxu0 0
      %325 = vmatpush2.bf16.msra.mxu0 0
      %326 = vmatprep.mubr.bf16.mxu0 0
      %327 = vmatmul.mubr.bf16.gmra.mxu0 %v289
      %v328 = vpop.f32.mrf.mxu0
      %v329 = vadd.f32 0.0, %v328
      %v330 = vpop.f32.mrf.mxu0
      %v331 = vpop.f32.mrf.mxu0
      %v332 = vpop.f32.mrf.mxu0
      %333 = vdwg.mxu0
      %v334 = vadd.f32 %v276, %v329
      %v335 = vld [vmem:[%s164 + $0x4] sm:$0x3]
      %s336 = scalar_lea.vmem %s1, 12
      %v337 = vld [vmem:[%s336] sm:$0xf]
      %v339 = vunpack.c.l.b16 %v335
      %v340 = vpack.c.b16 %v339, %v285
      %v342 = vshrl.u32 %v340, 16
      %v344 = vrot.slane %v342, 1
      %v345 = vshll.u32 %v340, 16
      %v347 = vrot.slane %v345, 2
      %v348 = vor.u32 %v344, %v347
      %v350 = vsel %vm187, %v348, 0
      %v353 = vsel %vm191, %v337, 0
      %355 = vmatprep.subr.bf16.mxu0 0
      %356 = vmatpush1.bf16.msra.mxu0 0
      %357 = vmatprep.subr.bf16.mxu0 0
      %358 = vmatpush1.bf16.msra.mxu0 0
      %359 = vmatprep.subr.bf16.mxu0 0
      %360 = vmatpush1.bf16.msra.mxu0 0
      %361 = vmatprep.subr.bf16.mxu0 0
      %362 = vmatpush1.bf16.msra.mxu0 0
      %363 = vmatprep.subr.bf16.mxu0 0
      %364 = vmatpush1.bf16.msra.mxu0 0
      %365 = vmatprep.subr.bf16.mxu0 0
      %366 = vmatpush1.bf16.msra.mxu0 0
      %367 = vmatprep.subr.bf16.mxu0 0
      %368 = vmatpush1.bf16.msra.mxu0 0
      %369 = vmatprep.subr.bf16.mxu0 0
      %370 = vmatpush1.bf16.msra.mxu0 %v353
      %371 = vmatprep.subr.bf16.mxu0 0
      %372 = vmatpush2.bf16.msra.mxu0 0
      %373 = vmatprep.subr.bf16.mxu0 0
      %374 = vmatpush2.bf16.msra.mxu0 0
      %375 = vmatprep.subr.bf16.mxu0 0
      %376 = vmatpush2.bf16.msra.mxu0 0
      %377 = vmatprep.subr.bf16.mxu0 0
      %378 = vmatpush2.bf16.msra.mxu0 0
      %379 = vmatprep.subr.bf16.mxu0 0
      %380 = vmatpush2.bf16.msra.mxu0 0
      %381 = vmatprep.subr.bf16.mxu0 0
      %382 = vmatpush2.bf16.msra.mxu0 0
      %383 = vmatprep.subr.bf16.mxu0 0
      %384 = vmatpush2.bf16.msra.mxu0 0
      %385 = vmatprep.subr.bf16.mxu0 0
      %386 = vmatpush2.bf16.msra.mxu0 0
      %387 = vmatprep.mubr.bf16.mxu0 0
      %388 = vmatmul.mubr.bf16.gmra.mxu0 %v350
      %v389 = vpop.f32.mrf.mxu0
      %v390 = vadd.f32 0.0, %v389
      %v391 = vpop.f32.mrf.mxu0
      %v392 = vpop.f32.mrf.mxu0
      %v393 = vpop.f32.mrf.mxu0
      %394 = vdwg.mxu0
      %v395 = vadd.f32 %v334, %v390
      %v396 = vld [vmem:[%s164] sm:$0xc]
      %s397 = scalar_lea.vmem %s1, 16
      %v398 = vld [vmem:[%s397] sm:$0xf]
      %v400 = vunpack.c.l.b16 %v396
      %v401 = vpack.c.b16 %v339, %v400
      %v402 = vrot.slane %v401, 2
      %v404 = vsel %vm187, %v402, 0
      %v407 = vsel %vm191, %v398, 0
      %409 = vmatprep.subr.bf16.mxu0 0
      %410 = vmatpush1.bf16.msra.mxu0 0
      %411 = vmatprep.subr.bf16.mxu0 0
      %412 = vmatpush1.bf16.msra.mxu0 0
      %413 = vmatprep.subr.bf16.mxu0 0
      %414 = vmatpush1.bf16.msra.mxu0 0
      %415 = vmatprep.subr.bf16.mxu0 0
      %416 = vmatpush1.bf16.msra.mxu0 0
      %417 = vmatprep.subr.bf16.mxu0 0
      %418 = vmatpush1.bf16.msra.mxu0 0
      %419 = vmatprep.subr.bf16.mxu0 0
      %420 = vmatpush1.bf16.msra.mxu0 0
      %421 = vmatprep.subr.bf16.mxu0 0
      %422 = vmatpush1.bf16.msra.mxu0 0
      %423 = vmatprep.subr.bf16.mxu0 0
      %424 = vmatpush1.bf16.msra.mxu0 %v407
      %425 = vmatprep.subr.bf16.mxu0 0
      %426 = vmatpush2.bf16.msra.mxu0 0
      %427 = vmatprep.subr.bf16.mxu0 0
      %428 = vmatpush2.bf16.msra.mxu0 0
      %429 = vmatprep.subr.bf16.mxu0 0
      %430 = vmatpush2.bf16.msra.mxu0 0
      %431 = vmatprep.subr.bf16.mxu0 0
      %432 = vmatpush2.bf16.msra.mxu0 0
      %433 = vmatprep.subr.bf16.mxu0 0
      %434 = vmatpush2.bf16.msra.mxu0 0
      %435 = vmatprep.subr.bf16.mxu0 0
      %436 = vmatpush2.bf16.msra.mxu0 0
      %437 = vmatprep.subr.bf16.mxu0 0
      %438 = vmatpush2.bf16.msra.mxu0 0
      %439 = vmatprep.subr.bf16.mxu0 0
      %440 = vmatpush2.bf16.msra.mxu0 0
      %441 = vmatprep.mubr.bf16.mxu0 0
      %442 = vmatmul.mubr.bf16.gmra.mxu0 %v404
      %v443 = vpop.f32.mrf.mxu0
      %v444 = vadd.f32 0.0, %v443
      %v445 = vpop.f32.mrf.mxu0
      %v446 = vpop.f32.mrf.mxu0
      %v447 = vpop.f32.mrf.mxu0
      %448 = vdwg.mxu0
      %v449 = vadd.f32 %v395, %v444
      %v450 = vld [vmem:[%s164 + $0x4] sm:$0x7]
      %s451 = scalar_lea.vmem %s1, 20
      %v452 = vld [vmem:[%s451] sm:$0xf]
      %v454 = vunpack.c.l.b16 %v450
      %v455 = vpack.c.b16 %v454, %v400
      %v457 = vshrl.u32 %v455, 16
      %v459 = vrot.slane %v457, 2
      %v460 = vshll.u32 %v455, 16
      %v462 = vrot.slane %v460, 3
      %v463 = vor.u32 %v459, %v462
      %v465 = vsel %vm187, %v463, 0
      %v468 = vsel %vm191, %v452, 0
      %470 = vmatprep.subr.bf16.mxu0 0
      %471 = vmatpush1.bf16.msra.mxu0 0
      %472 = vmatprep.subr.bf16.mxu0 0
      %473 = vmatpush1.bf16.msra.mxu0 0
      %474 = vmatprep.subr.bf16.mxu0 0
      %475 = vmatpush1.bf16.msra.mxu0 0
      %476 = vmatprep.subr.bf16.mxu0 0
      %477 = vmatpush1.bf16.msra.mxu0 0
      %478 = vmatprep.subr.bf16.mxu0 0
      %479 = vmatpush1.bf16.msra.mxu0 0
      %480 = vmatprep.subr.bf16.mxu0 0
      %481 = vmatpush1.bf16.msra.mxu0 0
      %482 = vmatprep.subr.bf16.mxu0 0
      %483 = vmatpush1.bf16.msra.mxu0 0
      %484 = vmatprep.subr.bf16.mxu0 0
      %485 = vmatpush1.bf16.msra.mxu0 %v468
      %486 = vmatprep.subr.bf16.mxu0 0
      %487 = vmatpush2.bf16.msra.mxu0 0
      %488 = vmatprep.subr.bf16.mxu0 0
      %489 = vmatpush2.bf16.msra.mxu0 0
      %490 = vmatprep.subr.bf16.mxu0 0
      %491 = vmatpush2.bf16.msra.mxu0 0
      %492 = vmatprep.subr.bf16.mxu0 0
      %493 = vmatpush2.bf16.msra.mxu0 0
      %494 = vmatprep.subr.bf16.mxu0 0
      %495 = vmatpush2.bf16.msra.mxu0 0
      %496 = vmatprep.subr.bf16.mxu0 0
      %497 = vmatpush2.bf16.msra.mxu0 0
      %498 = vmatprep.subr.bf16.mxu0 0
      %499 = vmatpush2.bf16.msra.mxu0 0
      %500 = vmatprep.subr.bf16.mxu0 0
      %501 = vmatpush2.bf16.msra.mxu0 0
      %502 = vmatprep.mubr.bf16.mxu0 0
      %503 = vmatmul.mubr.bf16.gmra.mxu0 %v465
      %v504 = vpop.f32.mrf.mxu0
      %v505 = vadd.f32 0.0, %v504
      %v506 = vpop.f32.mrf.mxu0
      %v507 = vpop.f32.mrf.mxu0
      %v508 = vpop.f32.mrf.mxu0
      %509 = vdwg.mxu0
      %v510 = vadd.f32 %v449, %v505
      %v511 = vld [vmem:[%s164] sm:$0x8]
      %s512 = scalar_lea.vmem %s1, 24
      %v513 = vld [vmem:[%s512] sm:$0xf]
      %v515 = vunpack.c.l.b16 %v511
      %v516 = vpack.c.b16 %v454, %v515
      %v517 = vrot.slane %v516, 3
      %v519 = vsel %vm187, %v517, 0
      %v522 = vsel %vm191, %v513, 0
      %524 = vmatprep.subr.bf16.mxu0 0
      %525 = vmatpush1.bf16.msra.mxu0 0
      %526 = vmatprep.subr.bf16.mxu0 0
      %527 = vmatpush1.bf16.msra.mxu0 0
      %528 = vmatprep.subr.bf16.mxu0 0
      %529 = vmatpush1.bf16.msra.mxu0 0
      %530 = vmatprep.subr.bf16.mxu0 0
      %531 = vmatpush1.bf16.msra.mxu0 0
      %532 = vmatprep.subr.bf16.mxu0 0
      %533 = vmatpush1.bf16.msra.mxu0 0
      %534 = vmatprep.subr.bf16.mxu0 0
      %535 = vmatpush1.bf16.msra.mxu0 0
      %536 = vmatprep.subr.bf16.mxu0 0
      %537 = vmatpush1.bf16.msra.mxu0 0
      %538 = vmatprep.subr.bf16.mxu0 0
      %539 = vmatpush1.bf16.msra.mxu0 %v522
      %540 = vmatprep.subr.bf16.mxu0 0
      %541 = vmatpush2.bf16.msra.mxu0 0
      %542 = vmatprep.subr.bf16.mxu0 0
      %543 = vmatpush2.bf16.msra.mxu0 0
      %544 = vmatprep.subr.bf16.mxu0 0
      %545 = vmatpush2.bf16.msra.mxu0 0
      %546 = vmatprep.subr.bf16.mxu0 0
      %547 = vmatpush2.bf16.msra.mxu0 0
      %548 = vmatprep.subr.bf16.mxu0 0
      %549 = vmatpush2.bf16.msra.mxu0 0
      %550 = vmatprep.subr.bf16.mxu0 0
      %551 = vmatpush2.bf16.msra.mxu0 0
      %552 = vmatprep.subr.bf16.mxu0 0
      %553 = vmatpush2.bf16.msra.mxu0 0
      %554 = vmatprep.subr.bf16.mxu0 0
      %555 = vmatpush2.bf16.msra.mxu0 0
      %556 = vmatprep.mubr.bf16.mxu0 0
      %557 = vmatmul.mubr.bf16.gmra.mxu0 %v519
      %v558 = vpop.f32.mrf.mxu0
      %v559 = vadd.f32 0.0, %v558
      %v560 = vpop.f32.mrf.mxu0
      %v561 = vpop.f32.mrf.mxu0
      %v562 = vpop.f32.mrf.mxu0
      %563 = vdwg.mxu0
      %v564 = vadd.f32 %v510, %v559
      %v565 = vld [vmem:[%s164 + $0x4] sm:$0xf]
      %s566 = scalar_lea.vmem %s1, 28
      %v567 = vld [vmem:[%s566] sm:$0xf]
      %v569 = vunpack.c.l.b16 %v565
      %v570 = vpack.c.b16 %v569, %v515
      %v572 = vshrl.u32 %v570, 16
      %v574 = vrot.slane %v572, 3
      %v575 = vshll.u32 %v570, 16
      %v577 = vrot.slane %v575, 4
      %v578 = vor.u32 %v574, %v577
      %v580 = vsel %vm187, %v578, 0
      %v583 = vsel %vm191, %v567, 0
      %585 = vmatprep.subr.bf16.mxu0 0
      %586 = vmatpush1.bf16.msra.mxu0 0
      %587 = vmatprep.subr.bf16.mxu0 0
      %588 = vmatpush1.bf16.msra.mxu0 0
      %589 = vmatprep.subr.bf16.mxu0 0
      %590 = vmatpush1.bf16.msra.mxu0 0
      %591 = vmatprep.subr.bf16.mxu0 0
      %592 = vmatpush1.bf16.msra.mxu0 0
      %593 = vmatprep.subr.bf16.mxu0 0
      %594 = vmatpush1.bf16.msra.mxu0 0
      %595 = vmatprep.subr.bf16.mxu0 0
      %596 = vmatpush1.bf16.msra.mxu0 0
      %597 = vmatprep.subr.bf16.mxu0 0
      %598 = vmatpush1.bf16.msra.mxu0 0
      %599 = vmatprep.subr.bf16.mxu0 0
      %600 = vmatpush1.bf16.msra.mxu0 %v583
      %601 = vmatprep.subr.bf16.mxu0 0
      %602 = vmatpush2.bf16.msra.mxu0 0
      %603 = vmatprep.subr.bf16.mxu0 0
      %604 = vmatpush2.bf16.msra.mxu0 0
      %605 = vmatprep.subr.bf16.mxu0 0
      %606 = vmatpush2.bf16.msra.mxu0 0
      %607 = vmatprep.subr.bf16.mxu0 0
      %608 = vmatpush2.bf16.msra.mxu0 0
      %609 = vmatprep.subr.bf16.mxu0 0
      %610 = vmatpush2.bf16.msra.mxu0 0
      %611 = vmatprep.subr.bf16.mxu0 0
      %612 = vmatpush2.bf16.msra.mxu0 0
      %613 = vmatprep.subr.bf16.mxu0 0
      %614 = vmatpush2.bf16.msra.mxu0 0
      %615 = vmatprep.subr.bf16.mxu0 0
      %616 = vmatpush2.bf16.msra.mxu0 0
      %617 = vmatprep.mubr.bf16.mxu0 0
      %618 = vmatmul.mubr.bf16.gmra.mxu0 %v580
      %v619 = vpop.f32.mrf.mxu0
      %v620 = vadd.f32 0.0, %v619
      %v621 = vpop.f32.mrf.mxu0
      %v622 = vpop.f32.mrf.mxu0
      %v623 = vpop.f32.mrf.mxu0
      %624 = vdwg.mxu0
      %v625 = vadd.f32 %v564, %v620
      %s626 = scalar_lea.vmem %s1, 32
      %v627 = vld [vmem:[%s626] sm:$0xf]
      %v629 = vsel %vm187, %v565, 0
      %v632 = vsel %vm191, %v627, 0
      %634 = vmatprep.subr.bf16.mxu0 0
      %635 = vmatpush1.bf16.msra.mxu0 0
      %636 = vmatprep.subr.bf16.mxu0 0
      %637 = vmatpush1.bf16.msra.mxu0 0
      %638 = vmatprep.subr.bf16.mxu0 0
      %639 = vmatpush1.bf16.msra.mxu0 0
      %640 = vmatprep.subr.bf16.mxu0 0
      %641 = vmatpush1.bf16.msra.mxu0 0
      %642 = vmatprep.subr.bf16.mxu0 0
      %643 = vmatpush1.bf16.msra.mxu0 0
      %644 = vmatprep.subr.bf16.mxu0 0
      %645 = vmatpush1.bf16.msra.mxu0 0
      %646 = vmatprep.subr.bf16.mxu0 0
      %647 = vmatpush1.bf16.msra.mxu0 0
      %648 = vmatprep.subr.bf16.mxu0 0
      %649 = vmatpush1.bf16.msra.mxu0 %v632
      %650 = vmatprep.subr.bf16.mxu0 0
      %651 = vmatpush2.bf16.msra.mxu0 0
      %652 = vmatprep.subr.bf16.mxu0 0
      %653 = vmatpush2.bf16.msra.mxu0 0
      %654 = vmatprep.subr.bf16.mxu0 0
      %655 = vmatpush2.bf16.msra.mxu0 0
      %656 = vmatprep.subr.bf16.mxu0 0
      %657 = vmatpush2.bf16.msra.mxu0 0
      %658 = vmatprep.subr.bf16.mxu0 0
      %659 = vmatpush2.bf16.msra.mxu0 0
      %660 = vmatprep.subr.bf16.mxu0 0
      %661 = vmatpush2.bf16.msra.mxu0 0
      %662 = vmatprep.subr.bf16.mxu0 0
      %663 = vmatpush2.bf16.msra.mxu0 0
      %664 = vmatprep.subr.bf16.mxu0 0
      %665 = vmatpush2.bf16.msra.mxu0 0
      %666 = vmatprep.mubr.bf16.mxu0 0
      %667 = vmatmul.mubr.bf16.gmra.mxu0 %v629
      %v668 = vpop.f32.mrf.mxu0
      %v669 = vadd.f32 0.0, %v668
      %v670 = vpop.f32.mrf.mxu0
      %v671 = vpop.f32.mrf.mxu0
      %v672 = vpop.f32.mrf.mxu0
      %673 = vdwg.mxu0
      %v674 = vadd.f32 %v625, %v669
      %v675 = vld [vmem:[%s2] sm:$0x1]
      %v677 = vlaneseq
      %v678 = vshrl.u32 %v677, 7
      %v679 = vsub.s32 0, %v678
      %v680 = vrot.slane %v675, %v679
      %v682 = vadd.f32 %v674, %v680
      %v683 = vmax.f32 %v682, 0.0
      %v684 = vpack.c.bf16 %v683, %v683
      %vm685 = vcmask 125952
      %686 = vst.msk [vmem:[%s168] sm:$0xf] %vm685, %v684
      %p687 = scmp.lt.s32.totalorder %s14, 1
      %s688 = scalar_select %p687, %s14, 1
      %s689 = smul.addr %s688, 4
      %s690 = scalar_lea.vmem %s3, %s689
      // Predicated region
      $region33: #{_lambda_.10} parent=31 // pred_check
        %p691 = pneg %p100
      $region34: #{_lambda_.10} parent=31 // pred_check_branch
        %693 = sbr.rel (%p691) target = $region36
      $region35: #{_lambda_.10} parent=31 // pred_region
        _
      $region36: #{_lambda_.10} parent=31 // pred_fallthru
        _
    $region32: #{_lambda_.10} parent=5 // pred_fallthru
      _
    %p694 = scmp.le.s32.totalorder 2, %s9
    // Predicated region
    $region37: #{_lambda_.10} parent=5 // pred_check
      %p695 = pneg %p694
    $region38: #{_lambda_.10} parent=5 // pred_check_branch
      %697 = sbr.rel (%p695) target = $region40
    $region39: #{_lambda_.10} parent=5 // pred_region
      %s698 = ssub.s32 %s9, 2
      // Predicated region
      $region41: #{_lambda_.10} parent=39 // pred_check
        %p699 = pneg %p106
      $region42: #{_lambda_.10} parent=39 // pred_check_branch
        %701 = sbr.rel (%p699) target = $region44
      $region43: #{_lambda_.10} parent=39 // pred_region
        %p702 = scmp.lt.s32.totalorder %s15, 1
        %s703 = scalar_select %p702, %s15, 1
        %s704 = smul.addr %s703, 4
        %s705 = scalar_lea.vmem %s3, %s704
      $region44: #{_lambda_.10} parent=39 // pred_fallthru
        _
    $region40: #{_lambda_.10} parent=5 // pred_fallthru
      _
  $region6: #{_lambda_.10} parent=0 // loop_footer
    %s13 = sadd.s32 1, %s9
  $region7: #{_lambda_.10} parent=0 // loop_footer_branch
    %8 = sbr.rel target = $region3
  $region8: #{_lambda_.10} parent=0 // loop_exit
    _

// kernel: _lambda_.11
$region0: #{_lambda_.11}
  #allocation0 [shape = 'u32[]', space=smem, size = 0x4, offset = 0x4, fixed_abs, tag = 'smem constant byte address 0x4 - core index']
  #allocation1 [shape = 'u32[144,128]{1,0:T(1,128)}', space=vmem, size = 0x12000, scoped, tag = 'internal scratch']
  %s0 = inlined_call_operand.vmem [shape: bf16[2,16,16], index: 0, kind: input, shape index: {}]
  %s1 = inlined_call_operand.vmem [shape: bf16[9,16,32], index: 1, kind: input, shape index: {}]
  %s2 = inlined_call_operand.vmem [shape: f32[1,32], index: 2, kind: input, shape index: {}]
  %s3 = inlined_call_operand.vmem [shape: bf16[2,8,32], index: 3, kind: output, shape index: {}]
  %s4 = sld [smem:[#allocation0]]
  $region45: #{_lambda_.11} parent=0
    _
  %s6 = ssub.s32 1, %s4
  %s7 = scalar_select 0, %s6, %s4
  loop: start=0, step=1, limit=4
  $region2: #{_lambda_.11} parent=0 // loop_pre_header
    _
  $region3: #{_lambda_.11} parent=0 // loop_header
    %s9 = sphi 0, %s13
    %p10 = scmp.ge.s32.totalorder %s9, 4
    %s19 = sphi 0, %s21
    %s22 = sphi 0, %s19
    %s23 = sphi 0, %s22
    %s39 = sphi 0, %s23
    %s43 = sphi 0, %s43
    %s45 = sphi 0, %s43
    %s46 = sphi 0, %s45
    %s60 = sphi 0, %s46
    %s64 = sphi 0, %s64
    %s66 = sphi 0, %s64
    %s67 = sphi 0, %s66
    %s81 = sphi 0, %s67
    %s87 = sphi 0, %s89
    %s90 = sphi 0, %s87
    %s91 = sphi 0, %s90
    %s107 = sphi 0, %s91
  $region4: #{_lambda_.11} parent=0 // loop_header_branch
    %12 = sbr.rel (%p10) target = $region8
  $region5: #{_lambda_.11} parent=0 // loop_body
    %s14 = ssub.s32 %s9, 1
    %s15 = ssub.s32 %s9, 2
    %s16 = sadd.s32 %s9, 1
    %s17 = ssub.s32 %s9, %s16
    %p18 = scmp.eq.s32.totalorder %s17, 0
    %s20 = sadd.s32 %s19, 1
    %s21 = scalar_select %p18, %s19, %s20
    %p24 = pneg %p18
    %p25 = scmp.eq.s32.totalorder %s9, 1
    %p26 = por %p24, %p25
    %p27 = scmp.ne.s32.totalorder %s19, %s22
    %p28 = scmp.eq.s32.totalorder %s9, 0
    %p29 = por %p27, %p28
    %p30 = scmp.ne.s32.totalorder %s19, %s22
    %p31 = scmp.eq.s32.totalorder %s14, 1
    %p32 = por %p30, %p31
    %p33 = scmp.ne.s32.totalorder %s22, %s23
    %p34 = scmp.eq.s32.totalorder %s14, 0
    %p35 = por %p33, %p34
    %p36 = scmp.ne.s32.totalorder %s22, %s23
    %p37 = scmp.eq.s32.totalorder %s15, 1
    %p38 = por %p36, %p37
    %p40 = scmp.ne.s32.totalorder %s23, %s39
    %p41 = scmp.eq.s32.totalorder %s15, 0
    %p42 = por %p40, %p41
    %s44 = sadd.s32 %s43, 1
    %p47 = scmp.eq.s32.totalorder %s9, 1
    %p48 = scmp.ne.s32.totalorder %s43, %s45
    %p49 = scmp.eq.s32.totalorder %s9, 0
    %p50 = por %p48, %p49
    %p51 = scmp.ne.s32.totalorder %s43, %s45
    %p52 = scmp.eq.s32.totalorder %s14, 1
    %p53 = por %p51, %p52
    %p54 = scmp.ne.s32.totalorder %s45, %s46
    %p55 = scmp.eq.s32.totalorder %s14, 0
    %p56 = por %p54, %p55
    %p57 = scmp.ne.s32.totalorder %s45, %s46
    %p58 = scmp.eq.s32.totalorder %s15, 1
    %p59 = por %p57, %p58
    %p61 = scmp.ne.s32.totalorder %s46, %s60
    %p62 = scmp.eq.s32.totalorder %s15, 0
    %p63 = por %p61, %p62
    %s65 = sadd.s32 %s64, 1
    %p68 = scmp.eq.s32.totalorder %s9, 1
    %p69 = scmp.ne.s32.totalorder %s64, %s66
    %p70 = scmp.eq.s32.totalorder %s9, 0
    %p71 = por %p69, %p70
    %p72 = scmp.ne.s32.totalorder %s64, %s66
    %p73 = scmp.eq.s32.totalorder %s14, 1
    %p74 = por %p72, %p73
    %p75 = scmp.ne.s32.totalorder %s66, %s67
    %p76 = scmp.eq.s32.totalorder %s14, 0
    %p77 = por %p75, %p76
    %p78 = scmp.ne.s32.totalorder %s66, %s67
    %p79 = scmp.eq.s32.totalorder %s15, 1
    %p80 = por %p78, %p79
    %p82 = scmp.ne.s32.totalorder %s67, %s81
    %p83 = scmp.eq.s32.totalorder %s15, 0
    %p84 = por %p82, %p83
    %s85 = ssub.s32 %s9, %s16
    %p86 = scmp.eq.s32.totalorder %s85, 0
    %s88 = sadd.s32 %s87, 1
    %s89 = scalar_select %p86, %s87, %s88
    %p92 = pneg %p86
    %p93 = scmp.eq.s32.totalorder %s9, 1
    %p94 = por %p92, %p93
    %p95 = scmp.ne.s32.totalorder %s87, %s90
    %p96 = scmp.eq.s32.totalorder %s9, 0
    %p97 = por %p95, %p96
    %p98 = scmp.ne.s32.totalorder %s87, %s90
    %p99 = scmp.eq.s32.totalorder %s14, 1
    %p100 = por %p98, %p99
    %p101 = scmp.ne.s32.totalorder %s90, %s91
    %p102 = scmp.eq.s32.totalorder %s14, 0
    %p103 = por %p101, %p102
    %p104 = scmp.ne.s32.totalorder %s90, %s91
    %p105 = scmp.eq.s32.totalorder %s15, 1
    %p106 = por %p104, %p105
    %p108 = scmp.ne.s32.totalorder %s91, %s107
    %p109 = scmp.eq.s32.totalorder %s15, 0
    %p110 = por %p108, %p109
    %p111 = scmp.le.s32.totalorder 1, %s9
    %p112 = scmp.lt.s32.totalorder %s9, 3
    %p113 = pnand %p111, %p112
    %p114 = pneg %p113
    // Predicated region
    $region9: #{_lambda_.11} parent=5 // pred_check
      _
    $region10: #{_lambda_.11} parent=5 // pred_check_branch
      %116 = sbr.rel (%p113) target = $region12
    $region11: #{_lambda_.11} parent=5 // pred_region
      %s117 = ssub.s32 %s9, 1
      // Predicated region
      $region13: #{_lambda_.11} parent=11 // pred_check
        %p118 = pneg %p56
      $region14: #{_lambda_.11} parent=11 // pred_check_branch
        %120 = sbr.rel (%p118) target = $region16
      $region15: #{_lambda_.11} parent=11 // pred_region
        _
      $region16: #{_lambda_.11} parent=11 // pred_fallthru
        _
      // Predicated region
      $region17: #{_lambda_.11} parent=11 // pred_check
        %p121 = pneg %p77
      $region18: #{_lambda_.11} parent=11 // pred_check_branch
        %123 = sbr.rel (%p121) target = $region20
      $region19: #{_lambda_.11} parent=11 // pred_region
        _
      $region20: #{_lambda_.11} parent=11 // pred_fallthru
        _
    $region12: #{_lambda_.11} parent=5 // pred_fallthru
      _
    %p124 = scmp.lt.s32.totalorder %s9, 2
    // Predicated region
    $region21: #{_lambda_.11} parent=5 // pred_check
      %p125 = pneg %p124
    $region22: #{_lambda_.11} parent=5 // pred_check_branch
      %127 = sbr.rel (%p125) target = $region24
    $region23: #{_lambda_.11} parent=5 // pred_region
      // Predicated region
      $region25: #{_lambda_.11} parent=23 // pred_check
        %p128 = pneg %p29
      $region26: #{_lambda_.11} parent=23 // pred_check_branch
        %130 = sbr.rel (%p128) target = $region28
      $region27: #{_lambda_.11} parent=23 // pred_region
        %p131 = scmp.lt.s32.totalorder %s9, 1
        %s132 = scalar_select %p131, %s9, 1
        %s133 = smul.addr %s132, 2
        %s134 = smul.addr %s133, 4
        %s135 = scalar_lea.vmem %s0, %s134
      $region28: #{_lambda_.11} parent=23 // pred_fallthru
        _
    $region24: #{_lambda_.11} parent=5 // pred_fallthru
      _
    %p136 = scmp.le.s32.totalorder 1, %s9
    %p137 = scmp.lt.s32.totalorder %s9, 3
    %p138 = pnand %p136, %p137
    %p139 = pneg %p138
    // Predicated region
    $region29: #{_lambda_.11} parent=5 // pred_check
      _
    $region30: #{_lambda_.11} parent=5 // pred_check_branch
      %141 = sbr.rel (%p138) target = $region32
    $region31: #{_lambda_.11} parent=5 // pred_region
      %s142 = ssub.s32 %s9, 1
      %p143 = scmp.lt.s32.totalorder %s14, 1
      %s144 = scalar_select %p143, %s14, 1
      %s145 = smul.addr %s144, 2
      %s146 = smul.addr %s145, 4
      %s147 = scalar_lea.vmem %s0, %s146
      %p148 = pneg %p35
      %p149 = pneg %p32
      %p150 = pneg %p56
      %p151 = pneg %p53
      %p152 = pneg %p77
      %p153 = pneg %p74
      %p154 = pneg %p103
      %p155 = pneg %p100
      %p156 = scmp.lt.s32.totalorder %s14, 1
      %s157 = scalar_select %p156, %s14, 1
      %s158 = smul.addr %s157, 4
      %s159 = scalar_lea.vmem %s3, %s158
      %p160 = scmp.lt.s32.totalorder %s14, 1
      %s161 = scalar_select %p160, %s14, 1
      %s162 = smul.addr %s161, 2
      %s163 = smul.addr %s162, 4
      %s164 = scalar_lea.vmem %s0, %s163
      %p165 = scmp.lt.s32.totalorder %s14, 1
      %s166 = scalar_select %p165, %s14, 1
      %s167 = smul.addr %s166, 4
      %s168 = scalar_lea.vmem %s3, %s167
      %v170 = vld [vmem:[%s164] sm:$0xf]
      %v171 = vld [vmem:[%s1] sm:$0xf]
      %v172 = vld [vmem:[%s1 + $0x4] sm:$0xf]
      %v173 = vld [vmem:[%s164 + $0x4] sm:$0x1]
      %s174 = scalar_lea.vmem %s1, 8
      %v175 = vld [vmem:[%s174] sm:$0xf]
      %v176 = vld [vmem:[%s174 + $0x4] sm:$0xf]
      %v179 = vunpack.c.l.b16 %v170
      %v180 = vunpack.c.l.b16 %v173
      %v181 = vpack.c.b16 %v180, %v179
      %v183 = vshrl.u32 %v181, 16
      %v185 = vshll.u32 %v181, 16
      %v187 = vrot.slane %v185, 1
      %v188 = vor.u32 %v183, %v187
      %v191 = vunpack.c.l.b16 %v175
      %v192 = vunpack.c.l.b16 %v176
      %v193 = vpack.c.b16 %v192, %v191
      %vm195 = vcmask 130048
      %v197 = vsel %vm195, %v188, 0
      %199 = vmatprep.subr.bf16.mxu0 0
      %200 = vmatpush1.bf16.msra.mxu0 0
      %201 = vmatprep.subr.bf16.mxu0 0
      %202 = vmatpush1.bf16.msra.mxu0 0
      %203 = vmatprep.subr.bf16.mxu0 0
      %204 = vmatpush1.bf16.msra.mxu0 0
      %205 = vmatprep.subr.bf16.mxu0 0
      %206 = vmatpush1.bf16.msra.mxu0 0
      %207 = vmatprep.subr.bf16.mxu0 0
      %208 = vmatpush1.bf16.msra.mxu0 0
      %209 = vmatprep.subr.bf16.mxu0 0
      %210 = vmatpush1.bf16.msra.mxu0 0
      %211 = vmatprep.subr.bf16.mxu0 0
      %212 = vmatpush1.bf16.msra.mxu0 0
      %213 = vmatprep.subr.bf16.mxu0 0
      %214 = vmatpush1.bf16.msra.mxu0 %v193
      %215 = vmatprep.subr.bf16.mxu0 0
      %216 = vmatpush2.bf16.msra.mxu0 0
      %217 = vmatprep.subr.bf16.mxu0 0
      %218 = vmatpush2.bf16.msra.mxu0 0
      %219 = vmatprep.subr.bf16.mxu0 0
      %220 = vmatpush2.bf16.msra.mxu0 0
      %221 = vmatprep.subr.bf16.mxu0 0
      %222 = vmatpush2.bf16.msra.mxu0 0
      %223 = vmatprep.subr.bf16.mxu0 0
      %224 = vmatpush2.bf16.msra.mxu0 0
      %225 = vmatprep.subr.bf16.mxu0 0
      %226 = vmatpush2.bf16.msra.mxu0 0
      %227 = vmatprep.subr.bf16.mxu0 0
      %228 = vmatpush2.bf16.msra.mxu0 0
      %229 = vmatprep.subr.bf16.mxu0 0
      %230 = vmatpush2.bf16.msra.mxu0 0
      %231 = vmatprep.mubr.bf16.mxu0 0
      %232 = vmatmul.mubr.bf16.gmra.mxu0 %v197
      %v233 = vpop.f32.mrf.mxu0
      %v234 = vadd.f32 0.0, %v233
      %v235 = vpop.f32.mrf.mxu0
      %v236 = vpop.f32.mrf.mxu0
      %v237 = vpop.f32.mrf.mxu0
      %238 = vdwg.mxu0
      %v241 = vunpack.c.l.b16 %v171
      %v242 = vunpack.c.l.b16 %v172
      %v243 = vpack.c.b16 %v242, %v241
      %v246 = vsel %vm195, %v170, 0
      %248 = vmatprep.subr.bf16.mxu0 0
      %249 = vmatpush1.bf16.msra.mxu0 0
      %250 = vmatprep.subr.bf16.mxu0 0
      %251 = vmatpush1.bf16.msra.mxu0 0
      %252 = vmatprep.subr.bf16.mxu0 0
      %253 = vmatpush1.bf16.msra.mxu0 0
      %254 = vmatprep.subr.bf16.mxu0 0
      %255 = vmatpush1.bf16.msra.mxu0 0
      %256 = vmatprep.subr.bf16.mxu0 0
      %257 = vmatpush1.bf16.msra.mxu0 0
      %258 = vmatprep.subr.bf16.mxu0 0
      %259 = vmatpush1.bf16.msra.mxu0 0
      %260 = vmatprep.subr.bf16.mxu0 0
      %261 = vmatpush1.bf16.msra.mxu0 0
      %262 = vmatprep.subr.bf16.mxu0 0
      %263 = vmatpush1.bf16.msra.mxu0 %v243
      %264 = vmatprep.subr.bf16.mxu0 0
      %265 = vmatpush2.bf16.msra.mxu0 0
      %266 = vmatprep.subr.bf16.mxu0 0
      %267 = vmatpush2.bf16.msra.mxu0 0
      %268 = vmatprep.subr.bf16.mxu0 0
      %269 = vmatpush2.bf16.msra.mxu0 0
      %270 = vmatprep.subr.bf16.mxu0 0
      %271 = vmatpush2.bf16.msra.mxu0 0
      %272 = vmatprep.subr.bf16.mxu0 0
      %273 = vmatpush2.bf16.msra.mxu0 0
      %274 = vmatprep.subr.bf16.mxu0 0
      %275 = vmatpush2.bf16.msra.mxu0 0
      %276 = vmatprep.subr.bf16.mxu0 0
      %277 = vmatpush2.bf16.msra.mxu0 0
      %278 = vmatprep.subr.bf16.mxu0 0
      %279 = vmatpush2.bf16.msra.mxu0 0
      %280 = vmatprep.mubr.bf16.mxu0 0
      %281 = vmatmul.mubr.bf16.gmra.mxu0 %v246
      %v282 = vpop.f32.mrf.mxu0
      %v283 = vadd.f32 %v234, %v282
      %v284 = vpop.f32.mrf.mxu0
      %v285 = vpop.f32.mrf.mxu0
      %v286 = vpop.f32.mrf.mxu0
      %287 = vdwg.mxu0
      %v288 = vld [vmem:[%s164] sm:$0xe]
      %s289 = scalar_lea.vmem %s1, 16
      %v290 = vld [vmem:[%s289] sm:$0xf]
      %v291 = vld [vmem:[%s289 + $0x4] sm:$0xf]
      %v293 = vunpack.c.l.b16 %v288
      %v294 = vpack.c.b16 %v180, %v293
      %v295 = vrot.slane %v294, 1
      %v298 = vunpack.c.l.b16 %v290
      %v299 = vunpack.c.l.b16 %v291
      %v300 = vpack.c.b16 %v299, %v298
      %v303 = vsel %vm195, %v295, 0
      %305 = vmatprep.subr.bf16.mxu0 0
      %306 = vmatpush1.bf16.msra.mxu0 0
      %307 = vmatprep.subr.bf16.mxu0 0
      %308 = vmatpush1.bf16.msra.mxu0 0
      %309 = vmatprep.subr.bf16.mxu0 0
      %310 = vmatpush1.bf16.msra.mxu0 0
      %311 = vmatprep.subr.bf16.mxu0 0
      %312 = vmatpush1.bf16.msra.mxu0 0
      %313 = vmatprep.subr.bf16.mxu0 0
      %314 = vmatpush1.bf16.msra.mxu0 0
      %315 = vmatprep.subr.bf16.mxu0 0
      %316 = vmatpush1.bf16.msra.mxu0 0
      %317 = vmatprep.subr.bf16.mxu0 0
      %318 = vmatpush1.bf16.msra.mxu0 0
      %319 = vmatprep.subr.bf16.mxu0 0
      %320 = vmatpush1.bf16.msra.mxu0 %v300
      %321 = vmatprep.subr.bf16.mxu0 0
      %322 = vmatpush2.bf16.msra.mxu0 0
      %323 = vmatprep.subr.bf16.mxu0 0
      %324 = vmatpush2.bf16.msra.mxu0 0
      %325 = vmatprep.subr.bf16.mxu0 0
      %326 = vmatpush2.bf16.msra.mxu0 0
      %327 = vmatprep.subr.bf16.mxu0 0
      %328 = vmatpush2.bf16.msra.mxu0 0
      %329 = vmatprep.subr.bf16.mxu0 0
      %330 = vmatpush2.bf16.msra.mxu0 0
      %331 = vmatprep.subr.bf16.mxu0 0
      %332 = vmatpush2.bf16.msra.mxu0 0
      %333 = vmatprep.subr.bf16.mxu0 0
      %334 = vmatpush2.bf16.msra.mxu0 0
      %335 = vmatprep.subr.bf16.mxu0 0
      %336 = vmatpush2.bf16.msra.mxu0 0
      %337 = vmatprep.mubr.bf16.mxu0 0
      %338 = vmatmul.mubr.bf16.gmra.mxu0 %v303
      %v339 = vpop.f32.mrf.mxu0
      %v340 = vadd.f32 0.0, %v339
      %v341 = vpop.f32.mrf.mxu0
      %v342 = vpop.f32.mrf.mxu0
      %v343 = vpop.f32.mrf.mxu0
      %344 = vdwg.mxu0
      %v345 = vadd.f32 %v283, %v340
      %v346 = vld [vmem:[%s164 + $0x4] sm:$0x3]
      %s347 = scalar_lea.vmem %s1, 24
      %v348 = vld [vmem:[%s347] sm:$0xf]
      %v349 = vld [vmem:[%s347 + $0x4] sm:$0xf]
      %v351 = vunpack.c.l.b16 %v346
      %v352 = vpack.c.b16 %v351, %v293
      %v354 = vshrl.u32 %v352, 16
      %v356 = vrot.slane %v354, 1
      %v357 = vshll.u32 %v352, 16
      %v359 = vrot.slane %v357, 2
      %v360 = vor.u32 %v356, %v359
      %v363 = vunpack.c.l.b16 %v348
      %v364 = vunpack.c.l.b16 %v349
      %v365 = vpack.c.b16 %v364, %v363
      %v368 = vsel %vm195, %v360, 0
      %370 = vmatprep.subr.bf16.mxu0 0
      %371 = vmatpush1.bf16.msra.mxu0 0
      %372 = vmatprep.subr.bf16.mxu0 0
      %373 = vmatpush1.bf16.msra.mxu0 0
      %374 = vmatprep.subr.bf16.mxu0 0
      %375 = vmatpush1.bf16.msra.mxu0 0
      %376 = vmatprep.subr.bf16.mxu0 0
      %377 = vmatpush1.bf16.msra.mxu0 0
      %378 = vmatprep.subr.bf16.mxu0 0
      %379 = vmatpush1.bf16.msra.mxu0 0
      %380 = vmatprep.subr.bf16.mxu0 0
      %381 = vmatpush1.bf16.msra.mxu0 0
      %382 = vmatprep.subr.bf16.mxu0 0
      %383 = vmatpush1.bf16.msra.mxu0 0
      %384 = vmatprep.subr.bf16.mxu0 0
      %385 = vmatpush1.bf16.msra.mxu0 %v365
      %386 = vmatprep.subr.bf16.mxu0 0
      %387 = vmatpush2.bf16.msra.mxu0 0
      %388 = vmatprep.subr.bf16.mxu0 0
      %389 = vmatpush2.bf16.msra.mxu0 0
      %390 = vmatprep.subr.bf16.mxu0 0
      %391 = vmatpush2.bf16.msra.mxu0 0
      %392 = vmatprep.subr.bf16.mxu0 0
      %393 = vmatpush2.bf16.msra.mxu0 0
      %394 = vmatprep.subr.bf16.mxu0 0
      %395 = vmatpush2.bf16.msra.mxu0 0
      %396 = vmatprep.subr.bf16.mxu0 0
      %397 = vmatpush2.bf16.msra.mxu0 0
      %398 = vmatprep.subr.bf16.mxu0 0
      %399 = vmatpush2.bf16.msra.mxu0 0
      %400 = vmatprep.subr.bf16.mxu0 0
      %401 = vmatpush2.bf16.msra.mxu0 0
      %402 = vmatprep.mubr.bf16.mxu0 0
      %403 = vmatmul.mubr.bf16.gmra.mxu0 %v368
      %v404 = vpop.f32.mrf.mxu0
      %v405 = vadd.f32 0.0, %v404
      %v406 = vpop.f32.mrf.mxu0
      %v407 = vpop.f32.mrf.mxu0
      %v408 = vpop.f32.mrf.mxu0
      %409 = vdwg.mxu0
      %v410 = vadd.f32 %v345, %v405
      %v411 = vld [vmem:[%s164] sm:$0xc]
      %s412 = scalar_lea.vmem %s1, 32
      %v413 = vld [vmem:[%s412] sm:$0xf]
      %v414 = vld [vmem:[%s412 + $0x4] sm:$0xf]
      %v416 = vunpack.c.l.b16 %v411
      %v417 = vpack.c.b16 %v351, %v416
      %v418 = vrot.slane %v417, 2
      %v421 = vunpack.c.l.b16 %v413
      %v422 = vunpack.c.l.b16 %v414
      %v423 = vpack.c.b16 %v422, %v421
      %v426 = vsel %vm195, %v418, 0
      %428 = vmatprep.subr.bf16.mxu0 0
      %429 = vmatpush1.bf16.msra.mxu0 0
      %430 = vmatprep.subr.bf16.mxu0 0
      %431 = vmatpush1.bf16.msra.mxu0 0
      %432 = vmatprep.subr.bf16.mxu0 0
      %433 = vmatpush1.bf16.msra.mxu0 0
      %434 = vmatprep.subr.bf16.mxu0 0
      %435 = vmatpush1.bf16.msra.mxu0 0
      %436 = vmatprep.subr.bf16.mxu0 0
      %437 = vmatpush1.bf16.msra.mxu0 0
      %438 = vmatprep.subr.bf16.mxu0 0
      %439 = vmatpush1.bf16.msra.mxu0 0
      %440 = vmatprep.subr.bf16.mxu0 0
      %441 = vmatpush1.bf16.msra.mxu0 0
      %442 = vmatprep.subr.bf16.mxu0 0
      %443 = vmatpush1.bf16.msra.mxu0 %v423
      %444 = vmatprep.subr.bf16.mxu0 0
      %445 = vmatpush2.bf16.msra.mxu0 0
      %446 = vmatprep.subr.bf16.mxu0 0
      %447 = vmatpush2.bf16.msra.mxu0 0
      %448 = vmatprep.subr.bf16.mxu0 0
      %449 = vmatpush2.bf16.msra.mxu0 0
      %450 = vmatprep.subr.bf16.mxu0 0
      %451 = vmatpush2.bf16.msra.mxu0 0
      %452 = vmatprep.subr.bf16.mxu0 0
      %453 = vmatpush2.bf16.msra.mxu0 0
      %454 = vmatprep.subr.bf16.mxu0 0
      %455 = vmatpush2.bf16.msra.mxu0 0
      %456 = vmatprep.subr.bf16.mxu0 0
      %457 = vmatpush2.bf16.msra.mxu0 0
      %458 = vmatprep.subr.bf16.mxu0 0
      %459 = vmatpush2.bf16.msra.mxu0 0
      %460 = vmatprep.mubr.bf16.mxu0 0
      %461 = vmatmul.mubr.bf16.gmra.mxu0 %v426
      %v462 = vpop.f32.mrf.mxu0
      %v463 = vadd.f32 0.0, %v462
      %v464 = vpop.f32.mrf.mxu0
      %v465 = vpop.f32.mrf.mxu0
      %v466 = vpop.f32.mrf.mxu0
      %467 = vdwg.mxu0
      %v468 = vadd.f32 %v410, %v463
      %v469 = vld [vmem:[%s164 + $0x4] sm:$0x7]
      %s470 = scalar_lea.vmem %s1, 40
      %v471 = vld [vmem:[%s470] sm:$0xf]
      %v472 = vld [vmem:[%s470 + $0x4] sm:$0xf]
      %v474 = vunpack.c.l.b16 %v469
      %v475 = vpack.c.b16 %v474, %v416
      %v477 = vshrl.u32 %v475, 16
      %v479 = vrot.slane %v477, 2
      %v480 = vshll.u32 %v475, 16
      %v482 = vrot.slane %v480, 3
      %v483 = vor.u32 %v479, %v482
      %v486 = vunpack.c.l.b16 %v471
      %v487 = vunpack.c.l.b16 %v472
      %v488 = vpack.c.b16 %v487, %v486
      %v491 = vsel %vm195, %v483, 0
      %493 = vmatprep.subr.bf16.mxu0 0
      %494 = vmatpush1.bf16.msra.mxu0 0
      %495 = vmatprep.subr.bf16.mxu0 0
      %496 = vmatpush1.bf16.msra.mxu0 0
      %497 = vmatprep.subr.bf16.mxu0 0
      %498 = vmatpush1.bf16.msra.mxu0 0
      %499 = vmatprep.subr.bf16.mxu0 0
      %500 = vmatpush1.bf16.msra.mxu0 0
      %501 = vmatprep.subr.bf16.mxu0 0
      %502 = vmatpush1.bf16.msra.mxu0 0
      %503 = vmatprep.subr.bf16.mxu0 0
      %504 = vmatpush1.bf16.msra.mxu0 0
      %505 = vmatprep.subr.bf16.mxu0 0
      %506 = vmatpush1.bf16.msra.mxu0 0
      %507 = vmatprep.subr.bf16.mxu0 0
      %508 = vmatpush1.bf16.msra.mxu0 %v488
      %509 = vmatprep.subr.bf16.mxu0 0
      %510 = vmatpush2.bf16.msra.mxu0 0
      %511 = vmatprep.subr.bf16.mxu0 0
      %512 = vmatpush2.bf16.msra.mxu0 0
      %513 = vmatprep.subr.bf16.mxu0 0
      %514 = vmatpush2.bf16.msra.mxu0 0
      %515 = vmatprep.subr.bf16.mxu0 0
      %516 = vmatpush2.bf16.msra.mxu0 0
      %517 = vmatprep.subr.bf16.mxu0 0
      %518 = vmatpush2.bf16.msra.mxu0 0
      %519 = vmatprep.subr.bf16.mxu0 0
      %520 = vmatpush2.bf16.msra.mxu0 0
      %521 = vmatprep.subr.bf16.mxu0 0
      %522 = vmatpush2.bf16.msra.mxu0 0
      %523 = vmatprep.subr.bf16.mxu0 0
      %524 = vmatpush2.bf16.msra.mxu0 0
      %525 = vmatprep.mubr.bf16.mxu0 0
      %526 = vmatmul.mubr.bf16.gmra.mxu0 %v491
      %v527 = vpop.f32.mrf.mxu0
      %v528 = vadd.f32 0.0, %v527
      %v529 = vpop.f32.mrf.mxu0
      %v530 = vpop.f32.mrf.mxu0
      %v531 = vpop.f32.mrf.mxu0
      %532 = vdwg.mxu0
      %v533 = vadd.f32 %v468, %v528
      %v534 = vld [vmem:[%s164] sm:$0x8]
      %s535 = scalar_lea.vmem %s1, 48
      %v536 = vld [vmem:[%s535] sm:$0xf]
      %v537 = vld [vmem:[%s535 + $0x4] sm:$0xf]
      %v539 = vunpack.c.l.b16 %v534
      %v540 = vpack.c.b16 %v474, %v539
      %v541 = vrot.slane %v540, 3
      %v544 = vunpack.c.l.b16 %v536
      %v545 = vunpack.c.l.b16 %v537
      %v546 = vpack.c.b16 %v545, %v544
      %v549 = vsel %vm195, %v541, 0
      %551 = vmatprep.subr.bf16.mxu0 0
      %552 = vmatpush1.bf16.msra.mxu0 0
      %553 = vmatprep.subr.bf16.mxu0 0
      %554 = vmatpush1.bf16.msra.mxu0 0
      %555 = vmatprep.subr.bf16.mxu0 0
      %556 = vmatpush1.bf16.msra.mxu0 0
      %557 = vmatprep.subr.bf16.mxu0 0
      %558 = vmatpush1.bf16.msra.mxu0 0
      %559 = vmatprep.subr.bf16.mxu0 0
      %560 = vmatpush1.bf16.msra.mxu0 0
      %561 = vmatprep.subr.bf16.mxu0 0
      %562 = vmatpush1.bf16.msra.mxu0 0
      %563 = vmatprep.subr.bf16.mxu0 0
      %564 = vmatpush1.bf16.msra.mxu0 0
      %565 = vmatprep.subr.bf16.mxu0 0
      %566 = vmatpush1.bf16.msra.mxu0 %v546
      %567 = vmatprep.subr.bf16.mxu0 0
      %568 = vmatpush2.bf16.msra.mxu0 0
      %569 = vmatprep.subr.bf16.mxu0 0
      %570 = vmatpush2.bf16.msra.mxu0 0
      %571 = vmatprep.subr.bf16.mxu0 0
      %572 = vmatpush2.bf16.msra.mxu0 0
      %573 = vmatprep.subr.bf16.mxu0 0
      %574 = vmatpush2.bf16.msra.mxu0 0
      %575 = vmatprep.subr.bf16.mxu0 0
      %576 = vmatpush2.bf16.msra.mxu0 0
      %577 = vmatprep.subr.bf16.mxu0 0
      %578 = vmatpush2.bf16.msra.mxu0 0
      %579 = vmatprep.subr.bf16.mxu0 0
      %580 = vmatpush2.bf16.msra.mxu0 0
      %581 = vmatprep.subr.bf16.mxu0 0
      %582 = vmatpush2.bf16.msra.mxu0 0
      %583 = vmatprep.mubr.bf16.mxu0 0
      %584 = vmatmul.mubr.bf16.gmra.mxu0 %v549
      %v585 = vpop.f32.mrf.mxu0
      %v586 = vadd.f32 0.0, %v585
      %v587 = vpop.f32.mrf.mxu0
      %v588 = vpop.f32.mrf.mxu0
      %v589 = vpop.f32.mrf.mxu0
      %590 = vdwg.mxu0
      %v591 = vadd.f32 %v533, %v586
      %v592 = vld [vmem:[%s164 + $0x4] sm:$0xf]
      %s593 = scalar_lea.vmem %s1, 56
      %v594 = vld [vmem:[%s593] sm:$0xf]
      %v595 = vld [vmem:[%s593 + $0x4] sm:$0xf]
      %v597 = vunpack.c.l.b16 %v592
      %v598 = vpack.c.b16 %v597, %v539
      %v600 = vshrl.u32 %v598, 16
      %v602 = vrot.slane %v600, 3
      %v603 = vshll.u32 %v598, 16
      %v605 = vrot.slane %v603, 4
      %v606 = vor.u32 %v602, %v605
      %v609 = vunpack.c.l.b16 %v594
      %v610 = vunpack.c.l.b16 %v595
      %v611 = vpack.c.b16 %v610, %v609
      %v614 = vsel %vm195, %v606, 0
      %616 = vmatprep.subr.bf16.mxu0 0
      %617 = vmatpush1.bf16.msra.mxu0 0
      %618 = vmatprep.subr.bf16.mxu0 0
      %619 = vmatpush1.bf16.msra.mxu0 0
      %620 = vmatprep.subr.bf16.mxu0 0
      %621 = vmatpush1.bf16.msra.mxu0 0
      %622 = vmatprep.subr.bf16.mxu0 0
      %623 = vmatpush1.bf16.msra.mxu0 0
      %624 = vmatprep.subr.bf16.mxu0 0
      %625 = vmatpush1.bf16.msra.mxu0 0
      %626 = vmatprep.subr.bf16.mxu0 0
      %627 = vmatpush1.bf16.msra.mxu0 0
      %628 = vmatprep.subr.bf16.mxu0 0
      %629 = vmatpush1.bf16.msra.mxu0 0
      %630 = vmatprep.subr.bf16.mxu0 0
      %631 = vmatpush1.bf16.msra.mxu0 %v611
      %632 = vmatprep.subr.bf16.mxu0 0
      %633 = vmatpush2.bf16.msra.mxu0 0
      %634 = vmatprep.subr.bf16.mxu0 0
      %635 = vmatpush2.bf16.msra.mxu0 0
      %636 = vmatprep.subr.bf16.mxu0 0
      %637 = vmatpush2.bf16.msra.mxu0 0
      %638 = vmatprep.subr.bf16.mxu0 0
      %639 = vmatpush2.bf16.msra.mxu0 0
      %640 = vmatprep.subr.bf16.mxu0 0
      %641 = vmatpush2.bf16.msra.mxu0 0
      %642 = vmatprep.subr.bf16.mxu0 0
      %643 = vmatpush2.bf16.msra.mxu0 0
      %644 = vmatprep.subr.bf16.mxu0 0
      %645 = vmatpush2.bf16.msra.mxu0 0
      %646 = vmatprep.subr.bf16.mxu0 0
      %647 = vmatpush2.bf16.msra.mxu0 0
      %648 = vmatprep.mubr.bf16.mxu0 0
      %649 = vmatmul.mubr.bf16.gmra.mxu0 %v614
      %v650 = vpop.f32.mrf.mxu0
      %v651 = vadd.f32 0.0, %v650
      %v652 = vpop.f32.mrf.mxu0
      %v653 = vpop.f32.mrf.mxu0
      %v654 = vpop.f32.mrf.mxu0
      %655 = vdwg.mxu0
      %v656 = vadd.f32 %v591, %v651
      %s657 = scalar_lea.vmem %s1, 64
      %v658 = vld [vmem:[%s657] sm:$0xf]
      %v659 = vld [vmem:[%s657 + $0x4] sm:$0xf]
      %v662 = vunpack.c.l.b16 %v658
      %v663 = vunpack.c.l.b16 %v659
      %v664 = vpack.c.b16 %v663, %v662
      %v667 = vsel %vm195, %v592, 0
      %669 = vmatprep.subr.bf16.mxu0 0
      %670 = vmatpush1.bf16.msra.mxu0 0
      %671 = vmatprep.subr.bf16.mxu0 0
      %672 = vmatpush1.bf16.msra.mxu0 0
      %673 = vmatprep.subr.bf16.mxu0 0
      %674 = vmatpush1.bf16.msra.mxu0 0
      %675 = vmatprep.subr.bf16.mxu0 0
      %676 = vmatpush1.bf16.msra.mxu0 0
      %677 = vmatprep.subr.bf16.mxu0 0
      %678 = vmatpush1.bf16.msra.mxu0 0
      %679 = vmatprep.subr.bf16.mxu0 0
      %680 = vmatpush1.bf16.msra.mxu0 0
      %681 = vmatprep.subr.bf16.mxu0 0
      %682 = vmatpush1.bf16.msra.mxu0 0
      %683 = vmatprep.subr.bf16.mxu0 0
      %684 = vmatpush1.bf16.msra.mxu0 %v664
      %685 = vmatprep.subr.bf16.mxu0 0
      %686 = vmatpush2.bf16.msra.mxu0 0
      %687 = vmatprep.subr.bf16.mxu0 0
      %688 = vmatpush2.bf16.msra.mxu0 0
      %689 = vmatprep.subr.bf16.mxu0 0
      %690 = vmatpush2.bf16.msra.mxu0 0
      %691 = vmatprep.subr.bf16.mxu0 0
      %692 = vmatpush2.bf16.msra.mxu0 0
      %693 = vmatprep.subr.bf16.mxu0 0
      %694 = vmatpush2.bf16.msra.mxu0 0
      %695 = vmatprep.subr.bf16.mxu0 0
      %696 = vmatpush2.bf16.msra.mxu0 0
      %697 = vmatprep.subr.bf16.mxu0 0
      %698 = vmatpush2.bf16.msra.mxu0 0
      %699 = vmatprep.subr.bf16.mxu0 0
      %700 = vmatpush2.bf16.msra.mxu0 0
      %701 = vmatprep.mubr.bf16.mxu0 0
      %702 = vmatmul.mubr.bf16.gmra.mxu0 %v667
      %v703 = vpop.f32.mrf.mxu0
      %v704 = vadd.f32 0.0, %v703
      %v705 = vpop.f32.mrf.mxu0
      %v706 = vpop.f32.mrf.mxu0
      %v707 = vpop.f32.mrf.mxu0
      %708 = vdwg.mxu0
      %v709 = vadd.f32 %v656, %v704
      %v710 = vld [vmem:[%s2] sm:$0x1]
      %v712 = vlaneseq
      %v713 = vshrl.u32 %v712, 7
      %v714 = vsub.s32 0, %v713
      %v715 = vrot.slane %v710, %v714
      %v717 = vadd.f32 %v709, %v715
      %v718 = vmax.f32 %v717, 0.0
      %v719 = vpack.c.bf16 %v718, %v718
      %vm720 = vcmask 257024
      %721 = vst.msk [vmem:[%s168] sm:$0xf] %vm720, %v719
      %p722 = scmp.lt.s32.totalorder %s14, 1
      %s723 = scalar_select %p722, %s14, 1
      %s724 = smul.addr %s723, 4
      %s725 = scalar_lea.vmem %s3, %s724
      // Predicated region
      $region33: #{_lambda_.11} parent=31 // pred_check
        %p726 = pneg %p100
      $region34: #{_lambda_.11} parent=31 // pred_check_branch
        %728 = sbr.rel (%p726) target = $region36
      $region35: #{_lambda_.11} parent=31 // pred_region
        _
      $region36: #{_lambda_.11} parent=31 // pred_fallthru
        _
    $region32: #{_lambda_.11} parent=5 // pred_fallthru
      _
    %p729 = scmp.le.s32.totalorder 2, %s9
    // Predicated region
    $region37: #{_lambda_.11} parent=5 // pred_check
      %p730 = pneg %p729
    $region38: #{_lambda_.11} parent=5 // pred_check_branch
      %732 = sbr.rel (%p730) target = $region40
    $region39: #{_lambda_.11} parent=5 // pred_region
      %s733 = ssub.s32 %s9, 2
      // Predicated region
      $region41: #{_lambda_.11} parent=39 // pred_check
        %p734 = pneg %p106
      $region42: #{_lambda_.11} parent=39 // pred_check_branch
        %736 = sbr.rel (%p734) target = $region44
      $region43: #{_lambda_.11} parent=39 // pred_region
        %p737 = scmp.lt.s32.totalorder %s15, 1
        %s738 = scalar_select %p737, %s15, 1
        %s739 = smul.addr %s738, 4
        %s740 = scalar_lea.vmem %s3, %s739
      $region44: #{_lambda_.11} parent=39 // pred_fallthru
        _
    $region40: #{_lambda_.11} parent=5 // pred_fallthru
      _
  $region6: #{_lambda_.11} parent=0 // loop_footer
    %s13 = sadd.s32 1, %s9
  $region7: #{_lambda_.11} parent=0 // loop_footer_branch
    %8 = sbr.rel target = $region3
  $region8: #{_lambda_.11} parent=0 // loop_exit
    _

// kernel: _lambda_.16
$region0: #{_lambda_.16}
  #allocation0 [shape = 'u32[]', space=smem, size = 0x4, offset = 0x4, fixed_abs, tag = 'smem constant byte address 0x4 - core index']
  #allocation1 [shape = 'u32[144,128]{1,0:T(1,128)}', space=vmem, size = 0x12000, scoped, tag = 'internal scratch']
  %s0 = inlined_call_operand.vmem [shape: bf16[16,16], index: 0, kind: input, shape index: {}]
  %s1 = inlined_call_operand.vmem [shape: bf16[16,16], index: 1, kind: input, shape index: {}]
  %s2 = inlined_call_operand.vmem [shape: bf16[16,32], index: 2, kind: input, shape index: {}]
  %s3 = inlined_call_operand.vmem [shape: bf16[16,32], index: 3, kind: input, shape index: {}]
  %s4 = inlined_call_operand.vmem [shape: f32[1,32], index: 4, kind: input, shape index: {}]
  %s5 = inlined_call_operand.vmem [shape: bf16[16,32], index: 5, kind: output, shape index: {}]
  %s6 = sld [smem:[#allocation0]]
  $region30: #{_lambda_.16} parent=0
    _
  %s8 = ssub.s32 1, %s6
  %s9 = scalar_select 0, %s8, %s6
  // Predicated region
  $region2: #{_lambda_.16} parent=0 // pred_check
    _
  $region3: #{_lambda_.16} parent=0 // pred_check_branch
    %11 = sbr.rel (0) target = $region5
  $region4: #{_lambda_.16} parent=0 // pred_region
    _
  $region5: #{_lambda_.16} parent=0 // pred_fallthru
    _
  // Predicated region
  $region6: #{_lambda_.16} parent=0 // pred_check
    _
  $region7: #{_lambda_.16} parent=0 // pred_check_branch
    %13 = sbr.rel (0) target = $region9
  $region8: #{_lambda_.16} parent=0 // pred_region
    _
  $region9: #{_lambda_.16} parent=0 // pred_fallthru
    _
  // Predicated region
  $region10: #{_lambda_.16} parent=0 // pred_check
    _
  $region11: #{_lambda_.16} parent=0 // pred_check_branch
    %15 = sbr.rel (0) target = $region13
  $region12: #{_lambda_.16} parent=0 // pred_region
    _
  $region13: #{_lambda_.16} parent=0 // pred_fallthru
    _
  // Predicated region
  $region14: #{_lambda_.16} parent=0 // pred_check
    _
  $region15: #{_lambda_.16} parent=0 // pred_check_branch
    %17 = sbr.rel (0) target = $region17
  $region16: #{_lambda_.16} parent=0 // pred_region
    _
  $region17: #{_lambda_.16} parent=0 // pred_fallthru
    _
  // Predicated region
  $region18: #{_lambda_.16} parent=0 // pred_check
    _
  $region19: #{_lambda_.16} parent=0 // pred_check_branch
    %19 = sbr.rel (0) target = $region21
  $region20: #{_lambda_.16} parent=0 // pred_region
    _
  $region21: #{_lambda_.16} parent=0 // pred_fallthru
    _
  %v21 = vld [vmem:[%s0] sm:$0xf]
  %v22 = vld [vmem:[%s0 + $0x4] sm:$0xf]
  %v23 = vld [vmem:[%s2] sm:$0xf]
  %v24 = vld [vmem:[%s2 + $0x4] sm:$0xf]
  %v25 = vld [vmem:[%s1] sm:$0xf]
  %v26 = vld [vmem:[%s1 + $0x4] sm:$0xf]
  %v27 = vld [vmem:[%s3] sm:$0xf]
  %v28 = vld [vmem:[%s3 + $0x4] sm:$0xf]
  %v31 = vunpack.c.l.b16 %v25
  %v32 = vunpack.c.l.b16 %v26
  %v33 = vpack.c.b16 %v32, %v31
  %v36 = vunpack.c.l.b16 %v27
  %v37 = vunpack.c.l.b16 %v28
  %v38 = vpack.c.b16 %v37, %v36
  %vm40 = vcmask 130048
  %v42 = vsel %vm40, %v33, 0
  %44 = vmatprep.subr.bf16.mxu0 0
  %45 = vmatpush1.bf16.msra.mxu0 0
  %46 = vmatprep.subr.bf16.mxu0 0
  %47 = vmatpush1.bf16.msra.mxu0 0
  %48 = vmatprep.subr.bf16.mxu0 0
  %49 = vmatpush1.bf16.msra.mxu0 0
  %50 = vmatprep.subr.bf16.mxu0 0
  %51 = vmatpush1.bf16.msra.mxu0 0
  %52 = vmatprep.subr.bf16.mxu0 0
  %53 = vmatpush1.bf16.msra.mxu0 0
  %54 = vmatprep.subr.bf16.mxu0 0
  %55 = vmatpush1.bf16.msra.mxu0 0
  %56 = vmatprep.subr.bf16.mxu0 0
  %57 = vmatpush1.bf16.msra.mxu0 0
  %58 = vmatprep.subr.bf16.mxu0 0
  %59 = vmatpush1.bf16.msra.mxu0 %v38
  %60 = vmatprep.subr.bf16.mxu0 0
  %61 = vmatpush2.bf16.msra.mxu0 0
  %62 = vmatprep.subr.bf16.mxu0 0
  %63 = vmatpush2.bf16.msra.mxu0 0
  %64 = vmatprep.subr.bf16.mxu0 0
  %65 = vmatpush2.bf16.msra.mxu0 0
  %66 = vmatprep.subr.bf16.mxu0 0
  %67 = vmatpush2.bf16.msra.mxu0 0
  %68 = vmatprep.subr.bf16.mxu0 0
  %69 = vmatpush2.bf16.msra.mxu0 0
  %70 = vmatprep.subr.bf16.mxu0 0
  %71 = vmatpush2.bf16.msra.mxu0 0
  %72 = vmatprep.subr.bf16.mxu0 0
  %73 = vmatpush2.bf16.msra.mxu0 0
  %74 = vmatprep.subr.bf16.mxu0 0
  %75 = vmatpush2.bf16.msra.mxu0 0
  %76 = vmatprep.mubr.bf16.mxu0 0
  %77 = vmatmul.mubr.bf16.gmra.mxu0 %v42
  %v78 = vpop.f32.mrf.mxu0
  %v79 = vadd.f32 0.0, %v78
  %v80 = vpop.f32.mrf.mxu0
  %v81 = vpop.f32.mrf.mxu0
  %v82 = vadd.f32 0.0, %v81
  %v83 = vpop.f32.mrf.mxu0
  %84 = vdwg.mxu0
  %v87 = vunpack.c.l.b16 %v21
  %v88 = vunpack.c.l.b16 %v22
  %v89 = vpack.c.b16 %v88, %v87
  %v92 = vunpack.c.l.b16 %v23
  %v93 = vunpack.c.l.b16 %v24
  %v94 = vpack.c.b16 %v93, %v92
  %v97 = vsel %vm40, %v89, 0
  %99 = vmatprep.subr.bf16.mxu0 0
  %100 = vmatpush1.bf16.msra.mxu0 0
  %101 = vmatprep.subr.bf16.mxu0 0
  %102 = vmatpush1.bf16.msra.mxu0 0
  %103 = vmatprep.subr.bf16.mxu0 0
  %104 = vmatpush1.bf16.msra.mxu0 0
  %105 = vmatprep.subr.bf16.mxu0 0
  %106 = vmatpush1.bf16.msra.mxu0 0
  %107 = vmatprep.subr.bf16.mxu0 0
  %108 = vmatpush1.bf16.msra.mxu0 0
  %109 = vmatprep.subr.bf16.mxu0 0
  %110 = vmatpush1.bf16.msra.mxu0 0
  %111 = vmatprep.subr.bf16.mxu0 0
  %112 = vmatpush1.bf16.msra.mxu0 0
  %113 = vmatprep.subr.bf16.mxu0 0
  %114 = vmatpush1.bf16.msra.mxu0 %v94
  %115 = vmatprep.subr.bf16.mxu0 0
  %116 = vmatpush2.bf16.msra.mxu0 0
  %117 = vmatprep.subr.bf16.mxu0 0
  %118 = vmatpush2.bf16.msra.mxu0 0
  %119 = vmatprep.subr.bf16.mxu0 0
  %120 = vmatpush2.bf16.msra.mxu0 0
  %121 = vmatprep.subr.bf16.mxu0 0
  %122 = vmatpush2.bf16.msra.mxu0 0
  %123 = vmatprep.subr.bf16.mxu0 0
  %124 = vmatpush2.bf16.msra.mxu0 0
  %125 = vmatprep.subr.bf16.mxu0 0
  %126 = vmatpush2.bf16.msra.mxu0 0
  %127 = vmatprep.subr.bf16.mxu0 0
  %128 = vmatpush2.bf16.msra.mxu0 0
  %129 = vmatprep.subr.bf16.mxu0 0
  %130 = vmatpush2.bf16.msra.mxu0 0
  %131 = vmatprep.mubr.bf16.mxu0 0
  %132 = vmatmul.mubr.bf16.gmra.mxu0 %v97
  %v133 = vpop.f32.mrf.mxu0
  %v134 = vadd.f32 %v79, %v133
  %v135 = vpop.f32.mrf.mxu0
  %v136 = vpop.f32.mrf.mxu0
  %v137 = vadd.f32 %v82, %v136
  %v138 = vpop.f32.mrf.mxu0
  %139 = vdwg.mxu0
  %v140 = vld [vmem:[%s4] sm:$0x1]
  %v142 = vlaneseq
  %v143 = vshrl.u32 %v142, 7
  %v144 = vsub.s32 0, %v143
  %v145 = vrot.slane %v140, %v144
  %v147 = vadd.f32 %v134, %v145
  %v148 = vadd.f32 %v137, %v145
  %v149 = vmax.f32 %v147, 0.0
  %v150 = vmax.f32 %v148, 0.0
  %v151 = vpack.c.bf16 %v150, %v149
  %v153 = vunpack.c.l.b16 %v151
  %v154 = vunpack.c.h.b16 %v151
  %v155 = vpack.c.b16 %v153, %v153
  %v156 = vpack.c.b16 %v154, %v154
  %vm159 = vcmask 257024
  %160 = vst.msk [vmem:[%s5] sm:$0xf] %vm159, %v155
  %161 = vst.msk [vmem:[%s5 + $0x4] sm:$0xf] %vm159, %v156
  // Predicated region
  $region22: #{_lambda_.16} parent=0 // pred_check
    _
  $region23: #{_lambda_.16} parent=0 // pred_check_branch
    %163 = sbr.rel (0) target = $region25
  $region24: #{_lambda_.16} parent=0 // pred_region
    _
  $region25: #{_lambda_.16} parent=0 // pred_fallthru
    _
  // Predicated region
  $region26: #{_lambda_.16} parent=0 // pred_check
    _
  $region27: #{_lambda_.16} parent=0 // pred_check_branch
    %165 = sbr.rel (0) target = $region29
  $region28: #{_lambda_.16} parent=0 // pred_region
    _
  $region29: #{_lambda_.16} parent=0 // pred_fallthru
    _

// kernel: _lambda_.14
$region0: #{_lambda_.14}
  #allocation0 [shape = 'u32[]', space=smem, size = 0x4, offset = 0x4, fixed_abs, tag = 'smem constant byte address 0x4 - core index']
  #allocation1 [shape = 'u32[144,128]{1,0:T(1,128)}', space=vmem, size = 0x12000, scoped, tag = 'internal scratch']
  %s0 = inlined_call_operand.vmem [shape: bf16[16,16], index: 0, kind: input, shape index: {}]
  %s1 = inlined_call_operand.vmem [shape: bf16[16,16], index: 1, kind: input, shape index: {}]
  %s2 = inlined_call_operand.vmem [shape: bf16[16,96], index: 2, kind: input, shape index: {}]
  %s3 = inlined_call_operand.vmem [shape: bf16[16,96], index: 3, kind: input, shape index: {}]
  %s4 = inlined_call_operand.vmem [shape: f32[1,96], index: 4, kind: input, shape index: {}]
  %s5 = inlined_call_operand.vmem [shape: bf16[16,48], index: 5, kind: output, shape index: {0}]
  %s6 = inlined_call_operand.vmem [shape: bf16[16,48], index: 6, kind: output, shape index: {1}]
  %7 = xla_tuple %s5, %s6
  %s8 = sld [smem:[#allocation0]]
  $region38: #{_lambda_.14} parent=0
    _
  %s10 = ssub.s32 1, %s8
  %s11 = scalar_select 0, %s10, %s8
  // Predicated region
  $region2: #{_lambda_.14} parent=0 // pred_check
    _
  $region3: #{_lambda_.14} parent=0 // pred_check_branch
    %13 = sbr.rel (0) target = $region5
  $region4: #{_lambda_.14} parent=0 // pred_region
    _
  $region5: #{_lambda_.14} parent=0 // pred_fallthru
    _
  // Predicated region
  $region6: #{_lambda_.14} parent=0 // pred_check
    _
  $region7: #{_lambda_.14} parent=0 // pred_check_branch
    %15 = sbr.rel (0) target = $region9
  $region8: #{_lambda_.14} parent=0 // pred_region
    _
  $region9: #{_lambda_.14} parent=0 // pred_fallthru
    _
  // Predicated region
  $region10: #{_lambda_.14} parent=0 // pred_check
    _
  $region11: #{_lambda_.14} parent=0 // pred_check_branch
    %17 = sbr.rel (0) target = $region13
  $region12: #{_lambda_.14} parent=0 // pred_region
    _
  $region13: #{_lambda_.14} parent=0 // pred_fallthru
    _
  // Predicated region
  $region14: #{_lambda_.14} parent=0 // pred_check
    _
  $region15: #{_lambda_.14} parent=0 // pred_check_branch
    %19 = sbr.rel (0) target = $region17
  $region16: #{_lambda_.14} parent=0 // pred_region
    _
  $region17: #{_lambda_.14} parent=0 // pred_fallthru
    _
  // Predicated region
  $region18: #{_lambda_.14} parent=0 // pred_check
    _
  $region19: #{_lambda_.14} parent=0 // pred_check_branch
    %21 = sbr.rel (0) target = $region21
  $region20: #{_lambda_.14} parent=0 // pred_region
    _
  $region21: #{_lambda_.14} parent=0 // pred_fallthru
    _
  %v23 = vld [vmem:[%s0] sm:$0xf]
  %v24 = vld [vmem:[%s0 + $0x4] sm:$0xf]
  %v25 = vld [vmem:[%s2] sm:$0xf]
  %v26 = vld [vmem:[%s2 + $0x4] sm:$0xf]
  %v27 = vld [vmem:[%s1] sm:$0xf]
  %v28 = vld [vmem:[%s1 + $0x4] sm:$0xf]
  %v29 = vld [vmem:[%s3] sm:$0xf]
  %v30 = vld [vmem:[%s3 + $0x4] sm:$0xf]
  %v33 = vunpack.c.l.b16 %v27
  %v34 = vunpack.c.l.b16 %v28
  %v35 = vpack.c.b16 %v34, %v33
  %v38 = vunpack.c.l.b16 %v29
  %v39 = vunpack.c.l.b16 %v30
  %v40 = vpack.c.b16 %v39, %v38
  %vm42 = vcmask 130048
  %v44 = vsel %vm42, %v35, 0
  %46 = vmatprep.subr.bf16.mxu0 0
  %47 = vmatpush1.bf16.msra.mxu0 0
  %48 = vmatprep.subr.bf16.mxu0 0
  %49 = vmatpush1.bf16.msra.mxu0 0
  %50 = vmatprep.subr.bf16.mxu0 0
  %51 = vmatpush1.bf16.msra.mxu0 0
  %52 = vmatprep.subr.bf16.mxu0 0
  %53 = vmatpush1.bf16.msra.mxu0 0
  %54 = vmatprep.subr.bf16.mxu0 0
  %55 = vmatpush1.bf16.msra.mxu0 0
  %56 = vmatprep.subr.bf16.mxu0 0
  %57 = vmatpush1.bf16.msra.mxu0 0
  %58 = vmatprep.subr.bf16.mxu0 0
  %59 = vmatpush1.bf16.msra.mxu0 0
  %60 = vmatprep.subr.bf16.mxu0 0
  %61 = vmatpush1.bf16.msra.mxu0 %v40
  %62 = vmatprep.subr.bf16.mxu0 0
  %63 = vmatpush2.bf16.msra.mxu0 0
  %64 = vmatprep.subr.bf16.mxu0 0
  %65 = vmatpush2.bf16.msra.mxu0 0
  %66 = vmatprep.subr.bf16.mxu0 0
  %67 = vmatpush2.bf16.msra.mxu0 0
  %68 = vmatprep.subr.bf16.mxu0 0
  %69 = vmatpush2.bf16.msra.mxu0 0
  %70 = vmatprep.subr.bf16.mxu0 0
  %71 = vmatpush2.bf16.msra.mxu0 0
  %72 = vmatprep.subr.bf16.mxu0 0
  %73 = vmatpush2.bf16.msra.mxu0 0
  %74 = vmatprep.subr.bf16.mxu0 0
  %75 = vmatpush2.bf16.msra.mxu0 0
  %76 = vmatprep.subr.bf16.mxu0 0
  %77 = vmatpush2.bf16.msra.mxu0 0
  %78 = vmatprep.mubr.bf16.mxu0 0
  %79 = vmatmul.mubr.bf16.gmra.mxu0 %v44
  %v80 = vpop.f32.mrf.mxu0
  %v81 = vadd.f32 0.0, %v80
  %v82 = vpop.f32.mrf.mxu0
  %v83 = vpop.f32.mrf.mxu0
  %v84 = vadd.f32 0.0, %v83
  %v85 = vpop.f32.mrf.mxu0
  %86 = vdwg.mxu0
  %v89 = vunpack.c.l.b16 %v23
  %v90 = vunpack.c.l.b16 %v24
  %v91 = vpack.c.b16 %v90, %v89
  %v94 = vunpack.c.l.b16 %v25
  %v95 = vunpack.c.l.b16 %v26
  %v96 = vpack.c.b16 %v95, %v94
  %v99 = vsel %vm42, %v91, 0
  %101 = vmatprep.subr.bf16.mxu0 0
  %102 = vmatpush1.bf16.msra.mxu0 0
  %103 = vmatprep.subr.bf16.mxu0 0
  %104 = vmatpush1.bf16.msra.mxu0 0
  %105 = vmatprep.subr.bf16.mxu0 0
  %106 = vmatpush1.bf16.msra.mxu0 0
  %107 = vmatprep.subr.bf16.mxu0 0
  %108 = vmatpush1.bf16.msra.mxu0 0
  %109 = vmatprep.subr.bf16.mxu0 0
  %110 = vmatpush1.bf16.msra.mxu0 0
  %111 = vmatprep.subr.bf16.mxu0 0
  %112 = vmatpush1.bf16.msra.mxu0 0
  %113 = vmatprep.subr.bf16.mxu0 0
  %114 = vmatpush1.bf16.msra.mxu0 0
  %115 = vmatprep.subr.bf16.mxu0 0
  %116 = vmatpush1.bf16.msra.mxu0 %v96
  %117 = vmatprep.subr.bf16.mxu0 0
  %118 = vmatpush2.bf16.msra.mxu0 0
  %119 = vmatprep.subr.bf16.mxu0 0
  %120 = vmatpush2.bf16.msra.mxu0 0
  %121 = vmatprep.subr.bf16.mxu0 0
  %122 = vmatpush2.bf16.msra.mxu0 0
  %123 = vmatprep.subr.bf16.mxu0 0
  %124 = vmatpush2.bf16.msra.mxu0 0
  %125 = vmatprep.subr.bf16.mxu0 0
  %126 = vmatpush2.bf16.msra.mxu0 0
  %127 = vmatprep.subr.bf16.mxu0 0
  %128 = vmatpush2.bf16.msra.mxu0 0
  %129 = vmatprep.subr.bf16.mxu0 0
  %130 = vmatpush2.bf16.msra.mxu0 0
  %131 = vmatprep.subr.bf16.mxu0 0
  %132 = vmatpush2.bf16.msra.mxu0 0
  %133 = vmatprep.mubr.bf16.mxu0 0
  %134 = vmatmul.mubr.bf16.gmra.mxu0 %v99
  %v135 = vpop.f32.mrf.mxu0
  %v136 = vadd.f32 %v81, %v135
  %v137 = vpop.f32.mrf.mxu0
  %v138 = vpop.f32.mrf.mxu0
  %v139 = vadd.f32 %v84, %v138
  %v140 = vpop.f32.mrf.mxu0
  %141 = vdwg.mxu0
  %v142 = vld [vmem:[%s4] sm:$0x1]
  %v144 = vlaneseq
  %v145 = vshrl.u32 %v144, 7
  %v146 = vsub.s32 0, %v145
  %v147 = vrot.slane %v142, %v146
  %v149 = vadd.f32 %v136, %v147
  %v150 = vadd.f32 %v139, %v147
  %v151 = vpack.c.bf16 %v150, %v149
  %v153 = vunpack.c.l.b16 %v151
  %v154 = vunpack.c.h.b16 %v151
  %v155 = vpack.c.b16 %v153, %v153
  %v156 = vpack.c.b16 %v154, %v154
  %vm159 = vcmask 388096
  %160 = vst.msk [vmem:[%s5] sm:$0xf] %vm159, %v155
  %161 = vst.msk [vmem:[%s5 + $0x4] sm:$0xf] %vm159, %v156
  %162 = vrot.lane.b32.xlu0 %v155, 80
  %v163 = vpop.permute.xlu0 %162
  %164 = vrot.lane.b32.xlu0 %v156, 80
  %v165 = vpop.permute.xlu0 %164
  %168 = vst.msk [vmem:[%s6] sm:$0xf] %vm159, %v163
  %169 = vst.msk [vmem:[%s6 + $0x4] sm:$0xf] %vm159, %v165
  // Predicated region
  $region22: #{_lambda_.14} parent=0 // pred_check
    _
  $region23: #{_lambda_.14} parent=0 // pred_check_branch
    %171 = sbr.rel (0) target = $region25
  $region24: #{_lambda_.14} parent=0 // pred_region
    _
  $region25: #{_lambda_.14} parent=0 // pred_fallthru
    _
  // Predicated region
  $region26: #{_lambda_.14} parent=0 // pred_check
    _
  $region27: #{_lambda_.14} parent=0 // pred_check_branch
    %173 = sbr.rel (0) target = $region29
  $region28: #{_lambda_.14} parent=0 // pred_region
    _
  $region29: #{_lambda_.14} parent=0 // pred_fallthru
    _
  // Predicated region
  $region30: #{_lambda_.14} parent=0 // pred_check
    _
  $region31: #{_lambda_.14} parent=0 // pred_check_branch
    %175 = sbr.rel (0) target = $region33
  $region32: #{_lambda_.14} parent=0 // pred_region
    _
  $region33: #{_lambda_.14} parent=0 // pred_fallthru
    _
  // Predicated region
  $region34: #{_lambda_.14} parent=0 // pred_check
    _
  $region35: #{_lambda_.14} parent=0 // pred_check_branch
    %177 = sbr.rel (0) target = $region37
  $region36: #{_lambda_.14} parent=0 // pred_region
    _
  $region37: #{_lambda_.14} parent=0 // pred_fallthru
    _

// kernel: _lambda_.9
$region0: #{_lambda_.9}
  #allocation0 [shape = 'u32[]', space=smem, size = 0x4, offset = 0x4, fixed_abs, tag = 'smem constant byte address 0x4 - core index']
  #allocation1 [shape = 'u32[144,128]{1,0:T(1,128)}', space=vmem, size = 0x12000, scoped, tag = 'internal scratch']
  %s0 = inlined_call_operand.vmem [shape: bf16[2,16,256], index: 0, kind: input, shape index: {}]
  %s1 = inlined_call_operand.hbm [shape: bf16[9,256,8], index: 1, kind: input, shape index: {}]
  %s2 = inlined_call_operand.vmem [shape: f32[1,8], index: 2, kind: input, shape index: {}]
  %s3 = inlined_call_operand.vmem [shape: bf16[2,8,8], index: 3, kind: output, shape index: {}]
  %s4 = sld [smem:[#allocation0]]
  $region49: #{_lambda_.9} parent=0
    _
  %s6 = ssub.s32 1, %s4
  %s7 = scalar_select 0, %s6, %s4
  $region1: #{_lambda_.9} parent=0
    #allocation2 [shape = 'u8[589824]{0}', space=vmem, size = 0x90000, scoped, tag = 'input window, operand 1, single buffered']
    #allocation3 [shape = 's32[2]{0}', space=sflag, size = 0x8, scoped, tag = 'scoped memory for _lambda_.9']
    %8 = vsyncpa [#allocation3], 0
    loop: start=0, step=1, limit=4
    $region2: #{_lambda_.9} parent=1 // loop_pre_header
      _
    $region3: #{_lambda_.9} parent=1 // loop_header
      %s10 = sphi 0, %s14
      %p11 = scmp.ge.s32.totalorder %s10, 4
      %s20 = sphi 0, %s22
      %s23 = sphi 0, %s20
      %s24 = sphi 0, %s23
      %s40 = sphi 0, %s24
      %s44 = sphi 0, %s44
      %s46 = sphi 0, %s44
      %s47 = sphi 0, %s46
      %s61 = sphi 0, %s47
      %s65 = sphi 0, %s65
      %s67 = sphi 0, %s65
      %s68 = sphi 0, %s67
      %s82 = sphi 0, %s68
      %s88 = sphi 0, %s90
      %s91 = sphi 0, %s88
      %s92 = sphi 0, %s91
      %s108 = sphi 0, %s92
    $region4: #{_lambda_.9} parent=1 // loop_header_branch
      %13 = sbr.rel (%p11) target = $region8
    $region5: #{_lambda_.9} parent=1 // loop_body
      %s15 = ssub.s32 %s10, 1
      %s16 = ssub.s32 %s10, 2
      %s17 = sadd.s32 %s10, 1
      %s18 = ssub.s32 %s10, %s17
      %p19 = scmp.eq.s32.totalorder %s18, 0
      %s21 = sadd.s32 %s20, 1
      %s22 = scalar_select %p19, %s20, %s21
      %p25 = pneg %p19
      %p26 = scmp.eq.s32.totalorder %s10, 1
      %p27 = por %p25, %p26
      %p28 = scmp.ne.s32.totalorder %s20, %s23
      %p29 = scmp.eq.s32.totalorder %s10, 0
      %p30 = por %p28, %p29
      %p31 = scmp.ne.s32.totalorder %s20, %s23
      %p32 = scmp.eq.s32.totalorder %s15, 1
      %p33 = por %p31, %p32
      %p34 = scmp.ne.s32.totalorder %s23, %s24
      %p35 = scmp.eq.s32.totalorder %s15, 0
      %p36 = por %p34, %p35
      %p37 = scmp.ne.s32.totalorder %s23, %s24
      %p38 = scmp.eq.s32.totalorder %s16, 1
      %p39 = por %p37, %p38
      %p41 = scmp.ne.s32.totalorder %s24, %s40
      %p42 = scmp.eq.s32.totalorder %s16, 0
      %p43 = por %p41, %p42
      %s45 = sadd.s32 %s44, 1
      %p48 = scmp.eq.s32.totalorder %s10, 1
      %p49 = scmp.ne.s32.totalorder %s44, %s46
      %p50 = scmp.eq.s32.totalorder %s10, 0
      %p51 = por %p49, %p50
      %p52 = scmp.ne.s32.totalorder %s44, %s46
      %p53 = scmp.eq.s32.totalorder %s15, 1
      %p54 = por %p52, %p53
      %p55 = scmp.ne.s32.totalorder %s46, %s47
      %p56 = scmp.eq.s32.totalorder %s15, 0
      %p57 = por %p55, %p56
      %p58 = scmp.ne.s32.totalorder %s46, %s47
      %p59 = scmp.eq.s32.totalorder %s16, 1
      %p60 = por %p58, %p59
      %p62 = scmp.ne.s32.totalorder %s47, %s61
      %p63 = scmp.eq.s32.totalorder %s16, 0
      %p64 = por %p62, %p63
      %s66 = sadd.s32 %s65, 1
      %p69 = scmp.eq.s32.totalorder %s10, 1
      %p70 = scmp.ne.s32.totalorder %s65, %s67
      %p71 = scmp.eq.s32.totalorder %s10, 0
      %p72 = por %p70, %p71
      %p73 = scmp.ne.s32.totalorder %s65, %s67
      %p74 = scmp.eq.s32.totalorder %s15, 1
      %p75 = por %p73, %p74
      %p76 = scmp.ne.s32.totalorder %s67, %s68
      %p77 = scmp.eq.s32.totalorder %s15, 0
      %p78 = por %p76, %p77
      %p79 = scmp.ne.s32.totalorder %s67, %s68
      %p80 = scmp.eq.s32.totalorder %s16, 1
      %p81 = por %p79, %p80
      %p83 = scmp.ne.s32.totalorder %s68, %s82
      %p84 = scmp.eq.s32.totalorder %s16, 0
      %p85 = por %p83, %p84
      %s86 = ssub.s32 %s10, %s17
      %p87 = scmp.eq.s32.totalorder %s86, 0
      %s89 = sadd.s32 %s88, 1
      %s90 = scalar_select %p87, %s88, %s89
      %p93 = pneg %p87
      %p94 = scmp.eq.s32.totalorder %s10, 1
      %p95 = por %p93, %p94
      %p96 = scmp.ne.s32.totalorder %s88, %s91
      %p97 = scmp.eq.s32.totalorder %s10, 0
      %p98 = por %p96, %p97
      %p99 = scmp.ne.s32.totalorder %s88, %s91
      %p100 = scmp.eq.s32.totalorder %s15, 1
      %p101 = por %p99, %p100
      %p102 = scmp.ne.s32.totalorder %s91, %s92
      %p103 = scmp.eq.s32.totalorder %s15, 0
      %p104 = por %p102, %p103
      %p105 = scmp.ne.s32.totalorder %s91, %s92
      %p106 = scmp.eq.s32.totalorder %s16, 1
      %p107 = por %p105, %p106
      %p109 = scmp.ne.s32.totalorder %s92, %s108
      %p110 = scmp.eq.s32.totalorder %s16, 0
      %p111 = por %p109, %p110
      %p112 = scmp.le.s32.totalorder 1, %s10
      %p113 = scmp.lt.s32.totalorder %s10, 3
      %p114 = pnand %p112, %p113
      %p115 = pneg %p114
      // Predicated region
      $region9: #{_lambda_.9} parent=5 // pred_check
        _
      $region10: #{_lambda_.9} parent=5 // pred_check_branch
        %117 = sbr.rel (%p114) target = $region12
      $region11: #{_lambda_.9} parent=5 // pred_region
        %s118 = ssub.s32 %s10, 1
        // Predicated region
        $region13: #{_lambda_.9} parent=11 // pred_check
          %p119 = pneg %p57
        $region14: #{_lambda_.9} parent=11 // pred_check_branch
          %121 = sbr.rel (%p119) target = $region16
        $region15: #{_lambda_.9} parent=11 // pred_region
          %s123 = ssub.s32 18432, 18432
          %124 = vsyncadd [#allocation3], %s123
          %s125 = sshll.u32 [#allocation2], 4
          %s126 = int_to_ptr.vmem [resolvable:$true] %s125
          %131 = dma.hbm_to_vmem [thread:$0]  %s1, 18432, %s126, [#allocation3], 64, 64, 4
        $region16: #{_lambda_.9} parent=11 // pred_fallthru
          _
        // Predicated region
        $region17: #{_lambda_.9} parent=11 // pred_check
          %p132 = pneg %p78
        $region18: #{_lambda_.9} parent=11 // pred_check_branch
          %134 = sbr.rel (%p132) target = $region20
        $region19: #{_lambda_.9} parent=11 // pred_region
          _
        $region20: #{_lambda_.9} parent=11 // pred_fallthru
          _
      $region12: #{_lambda_.9} parent=5 // pred_fallthru
        _
      %p135 = scmp.lt.s32.totalorder %s10, 2
      // Predicated region
      $region21: #{_lambda_.9} parent=5 // pred_check
        %p136 = pneg %p135
      $region22: #{_lambda_.9} parent=5 // pred_check_branch
        %138 = sbr.rel (%p136) target = $region24
      $region23: #{_lambda_.9} parent=5 // pred_region
        // Predicated region
        $region25: #{_lambda_.9} parent=23 // pred_check
          %p139 = pneg %p30
        $region26: #{_lambda_.9} parent=23 // pred_check_branch
          %141 = sbr.rel (%p139) target = $region28
        $region27: #{_lambda_.9} parent=23 // pred_region
          %p142 = scmp.lt.s32.totalorder %s10, 1
          %s143 = scalar_select %p142, %s10, 1
          %s144 = smul.addr %s143, 4
          %s145 = smul.addr %s144, 4
          %s146 = scalar_lea.vmem %s0, %s145
        $region28: #{_lambda_.9} parent=23 // pred_fallthru
          _
      $region24: #{_lambda_.9} parent=5 // pred_fallthru
        _
      %p147 = scmp.le.s32.totalorder 1, %s10
      %p148 = scmp.lt.s32.totalorder %s10, 3
      %p149 = pnand %p147, %p148
      %p150 = pneg %p149
      // Predicated region
      $region29: #{_lambda_.9} parent=5 // pred_check
        _
      $region30: #{_lambda_.9} parent=5 // pred_check_branch
        %152 = sbr.rel (%p149) target = $region32
      $region31: #{_lambda_.9} parent=5 // pred_region
        %s153 = ssub.s32 %s10, 1
        // Predicated region
        $region33: #{_lambda_.9} parent=31 // pred_check
          %p154 = pneg %p57
        $region34: #{_lambda_.9} parent=31 // pred_check_branch
          %156 = sbr.rel (%p154) target = $region36
        $region35: #{_lambda_.9} parent=31 // pred_region
          %157 = dma.done [#allocation3], 18432
        $region36: #{_lambda_.9} parent=31 // pred_fallthru
          _
        %p158 = scmp.lt.s32.totalorder %s15, 1
        %s159 = scalar_select %p158, %s15, 1
        %s160 = smul.addr %s159, 4
        %s161 = smul.addr %s160, 4
        %s162 = scalar_lea.vmem %s0, %s161
        %p163 = pneg %p36
        %p164 = pneg %p33
        %p165 = pneg %p57
        %p166 = pneg %p54
        %p167 = pneg %p78
        %p168 = pneg %p75
        %p169 = pneg %p104
        %p170 = pneg %p101
        %p171 = scmp.lt.s32.totalorder %s15, 1
        %s172 = scalar_select %p171, %s15, 1
        %s173 = smul.addr %s172, 4
        %s174 = scalar_lea.vmem %s3, %s173
        %p175 = scmp.lt.s32.totalorder %s15, 1
        %s176 = scalar_select %p175, %s15, 1
        %s177 = smul.addr %s176, 4
        %s178 = smul.addr %s177, 4
        %s179 = scalar_lea.vmem %s0, %s178
        %p180 = scmp.lt.s32.totalorder %s15, 1
        %s181 = scalar_select %p180, %s15, 1
        %s182 = smul.addr %s181, 4
        %s183 = scalar_lea.vmem %s3, %s182
        %v185 = vld [vmem:[%s179] sm:$0xff]
        %v186 = vld [vmem:[#allocation2] sm:$0xf]
        %v187 = vld [vmem:[#allocation2 + $0x4] sm:$0xf]
        %v188 = vld [vmem:[#allocation2 + $0x8] sm:$0xf]
        %v189 = vld [vmem:[#allocation2 + $0xc] sm:$0xf]
        %v190 = vld [vmem:[#allocation2 + $0x10] sm:$0xf]
        %v191 = vld [vmem:[#allocation2 + $0x14] sm:$0xf]
        %v192 = vld [vmem:[#allocation2 + $0x18] sm:$0xf]
        %v193 = vld [vmem:[#allocation2 + $0x1c] sm:$0xf]
        %v194 = vld [vmem:[#allocation2 + $0x20] sm:$0xf]
        %v195 = vld [vmem:[#allocation2 + $0x24] sm:$0xf]
        %v196 = vld [vmem:[#allocation2 + $0x28] sm:$0xf]
        %v197 = vld [vmem:[#allocation2 + $0x2c] sm:$0xf]
        %v198 = vld [vmem:[#allocation2 + $0x30] sm:$0xf]
        %v199 = vld [vmem:[#allocation2 + $0x34] sm:$0xf]
        %v200 = vld [vmem:[#allocation2 + $0x38] sm:$0xf]
        %v201 = vld [vmem:[#allocation2 + $0x3c] sm:$0xf]
        %v202 = vld [vmem:[#allocation2 + $0x40] sm:$0xf]
        %v203 = vld [vmem:[#allocation2 + $0x44] sm:$0xf]
        %v204 = vld [vmem:[#allocation2 + $0x48] sm:$0xf]
        %v205 = vld [vmem:[#allocation2 + $0x4c] sm:$0xf]
        %v206 = vld [vmem:[#allocation2 + $0x50] sm:$0xf]
        %v207 = vld [vmem:[#allocation2 + $0x54] sm:$0xf]
        %v208 = vld [vmem:[#allocation2 + $0x58] sm:$0xf]
        %v209 = vld [vmem:[#allocation2 + $0x5c] sm:$0xf]
        %v210 = vld [vmem:[#allocation2 + $0x60] sm:$0xf]
        %v211 = vld [vmem:[#allocation2 + $0x64] sm:$0xf]
        %v212 = vld [vmem:[#allocation2 + $0x68] sm:$0xf]
        %v213 = vld [vmem:[#allocation2 + $0x6c] sm:$0xf]
        %v214 = vld [vmem:[#allocation2 + $0x70] sm:$0xf]
        %v215 = vld [vmem:[#allocation2 + $0x74] sm:$0xf]
        %v216 = vld [vmem:[#allocation2 + $0x78] sm:$0xf]
        %v217 = vld [vmem:[#allocation2 + $0x7c] sm:$0xf]
        %v218 = vld [vmem:[%s179] sm:$0xff]
        %v219 = vld [vmem:[%s179 + $0x8] sm:$0x11]
        %s220 = scalar_lea.vmem [#allocation2], 128
        %v221 = vld [vmem:[%s220] sm:$0xf]
        %v222 = vld [vmem:[%s220 + $0x4] sm:$0xf]
        %v223 = vld [vmem:[%s220 + $0x8] sm:$0xf]
        %v224 = vld [vmem:[%s220 + $0xc] sm:$0xf]
        %v225 = vld [vmem:[%s220 + $0x10] sm:$0xf]
        %v226 = vld [vmem:[%s220 + $0x14] sm:$0xf]
        %v227 = vld [vmem:[%s220 + $0x18] sm:$0xf]
        %v228 = vld [vmem:[%s220 + $0x1c] sm:$0xf]
        %v229 = vld [vmem:[%s220 + $0x20] sm:$0xf]
        %v230 = vld [vmem:[%s220 + $0x24] sm:$0xf]
        %v231 = vld [vmem:[%s220 + $0x28] sm:$0xf]
        %v232 = vld [vmem:[%s220 + $0x2c] sm:$0xf]
        %v233 = vld [vmem:[%s220 + $0x30] sm:$0xf]
        %v234 = vld [vmem:[%s220 + $0x34] sm:$0xf]
        %v235 = vld [vmem:[%s220 + $0x38] sm:$0xf]
        %v236 = vld [vmem:[%s220 + $0x3c] sm:$0xf]
        %v237 = vld [vmem:[%s220 + $0x40] sm:$0xf]
        %v238 = vld [vmem:[%s220 + $0x44] sm:$0xf]
        %v239 = vld [vmem:[%s220 + $0x48] sm:$0xf]
        %v240 = vld [vmem:[%s220 + $0x4c] sm:$0xf]
        %v241 = vld [vmem:[%s220 + $0x50] sm:$0xf]
        %v242 = vld [vmem:[%s220 + $0x54] sm:$0xf]
        %v243 = vld [vmem:[%s220 + $0x58] sm:$0xf]
        %v244 = vld [vmem:[%s220 + $0x5c] sm:$0xf]
        %v245 = vld [vmem:[%s220 + $0x60] sm:$0xf]
        %v246 = vld [vmem:[%s220 + $0x64] sm:$0xf]
        %v247 = vld [vmem:[%s220 + $0x68] sm:$0xf]
        %v248 = vld [vmem:[%s220 + $0x6c] sm:$0xf]
        %v249 = vld [vmem:[%s220 + $0x70] sm:$0xf]
        %v250 = vld [vmem:[%s220 + $0x74] sm:$0xf]
        %v251 = vld [vmem:[%s220 + $0x78] sm:$0xf]
        %v252 = vld [vmem:[%s220 + $0x7c] sm:$0xf]
        %v255 = vunpack.c.l.b16 %v218
        %v256 = vunpack.c.h.b16 %v218
        %v257 = vunpack.c.l.b16 %v219
        %v258 = vunpack.c.h.b16 %v219
        %v259 = vpack.c.b16 %v257, %v255
        %v260 = vpack.c.b16 %v258, %v256
        %v262 = vshrl.u32 %v259, 16
        %v264 = vshll.u32 %v259, 16
        %v266 = vrot.slane %v264, 1
        %v267 = vor.u32 %v262, %v266
        %v269 = vshrl.u32 %v260, 16
        %v271 = vshll.u32 %v260, 16
        %v273 = vrot.slane %v271, 1
        %v274 = vor.u32 %v269, %v273
        %v309 = vunpack.c.l.b16 %v221
        %v310 = vunpack.c.l.b16 %v222
        %v311 = vunpack.c.l.b16 %v223
        %v312 = vunpack.c.l.b16 %v224
        %v313 = vunpack.c.l.b16 %v225
        %v314 = vunpack.c.l.b16 %v226
        %v315 = vunpack.c.l.b16 %v227
        %v316 = vunpack.c.l.b16 %v228
        %v317 = vunpack.c.l.b16 %v229
        %v318 = vunpack.c.l.b16 %v230
        %v319 = vunpack.c.l.b16 %v231
        %v320 = vunpack.c.l.b16 %v232
        %v321 = vunpack.c.l.b16 %v233
        %v322 = vunpack.c.l.b16 %v234
        %v323 = vunpack.c.l.b16 %v235
        %v324 = vunpack.c.l.b16 %v236
        %v325 = vunpack.c.l.b16 %v237
        %v326 = vunpack.c.l.b16 %v238
        %v327 = vunpack.c.l.b16 %v239
        %v328 = vunpack.c.l.b16 %v240
        %v329 = vunpack.c.l.b16 %v241
        %v330 = vunpack.c.l.b16 %v242
        %v331 = vunpack.c.l.b16 %v243
        %v332 = vunpack.c.l.b16 %v244
        %v333 = vunpack.c.l.b16 %v245
        %v334 = vunpack.c.l.b16 %v246
        %v335 = vunpack.c.l.b16 %v247
        %v336 = vunpack.c.l.b16 %v248
        %v337 = vunpack.c.l.b16 %v249
        %v338 = vunpack.c.l.b16 %v250
        %v339 = vunpack.c.l.b16 %v251
        %v340 = vunpack.c.l.b16 %v252
        %v341 = vpack.c.b16 %v310, %v309
        %v342 = vpack.c.b16 %v312, %v311
        %v343 = vpack.c.b16 %v314, %v313
        %v344 = vpack.c.b16 %v316, %v315
        %v345 = vpack.c.b16 %v318, %v317
        %v346 = vpack.c.b16 %v320, %v319
        %v347 = vpack.c.b16 %v322, %v321
        %v348 = vpack.c.b16 %v324, %v323
        %v349 = vpack.c.b16 %v326, %v325
        %v350 = vpack.c.b16 %v328, %v327
        %v351 = vpack.c.b16 %v330, %v329
        %v352 = vpack.c.b16 %v332, %v331
        %v353 = vpack.c.b16 %v334, %v333
        %v354 = vpack.c.b16 %v336, %v335
        %v355 = vpack.c.b16 %v338, %v337
        %v356 = vpack.c.b16 %v340, %v339
        %373 = vmatprep.subr.bf16.mxu0 0
        %374 = vmatpush1.bf16.msra.mxu0 %v348
        %375 = vmatprep.subr.bf16.mxu0 0
        %376 = vmatpush1.bf16.msra.mxu0 %v347
        %377 = vmatprep.subr.bf16.mxu0 0
        %378 = vmatpush1.bf16.msra.mxu0 %v346
        %379 = vmatprep.subr.bf16.mxu0 0
        %380 = vmatpush1.bf16.msra.mxu0 %v345
        %381 = vmatprep.subr.bf16.mxu0 0
        %382 = vmatpush1.bf16.msra.mxu0 %v344
        %383 = vmatprep.subr.bf16.mxu0 0
        %384 = vmatpush1.bf16.msra.mxu0 %v343
        %385 = vmatprep.subr.bf16.mxu0 0
        %386 = vmatpush1.bf16.msra.mxu0 %v342
        %387 = vmatprep.subr.bf16.mxu0 0
        %388 = vmatpush1.bf16.msra.mxu0 %v341
        %389 = vmatprep.subr.bf16.mxu0 0
        %390 = vmatpush2.bf16.msra.mxu0 %v356
        %391 = vmatprep.subr.bf16.mxu0 0
        %392 = vmatpush2.bf16.msra.mxu0 %v355
        %393 = vmatprep.subr.bf16.mxu0 0
        %394 = vmatpush2.bf16.msra.mxu0 %v354
        %395 = vmatprep.subr.bf16.mxu0 0
        %396 = vmatpush2.bf16.msra.mxu0 %v353
        %397 = vmatprep.subr.bf16.mxu0 0
        %398 = vmatpush2.bf16.msra.mxu0 %v352
        %399 = vmatprep.subr.bf16.mxu0 0
        %400 = vmatpush2.bf16.msra.mxu0 %v351
        %401 = vmatprep.subr.bf16.mxu0 0
        %402 = vmatpush2.bf16.msra.mxu0 %v350
        %403 = vmatprep.subr.bf16.mxu0 0
        %404 = vmatpush2.bf16.msra.mxu0 %v349
        %405 = vmatprep.mubr.bf16.mxu0 %v274
        %406 = vmatmul.mubr.bf16.gmra.mxu0 %v267
        %v407 = vpop.f32.mrf.mxu0
        %v408 = vadd.f32 0.0, %v407
        %v409 = vpop.f32.mrf.mxu0
        %v410 = vpop.f32.mrf.mxu0
        %v411 = vpop.f32.mrf.mxu0
        %412 = vdwg.mxu0
        %v414 = vunpack.c.l.b16 %v185
        %v415 = vunpack.c.h.b16 %v185
        %v416 = vpack.c.b16 %v414, %v414
        %v417 = vpack.c.b16 %v415, %v415
        %v452 = vunpack.c.l.b16 %v186
        %v453 = vunpack.c.l.b16 %v187
        %v454 = vunpack.c.l.b16 %v188
        %v455 = vunpack.c.l.b16 %v189
        %v456 = vunpack.c.l.b16 %v190
        %v457 = vunpack.c.l.b16 %v191
        %v458 = vunpack.c.l.b16 %v192
        %v459 = vunpack.c.l.b16 %v193
        %v460 = vunpack.c.l.b16 %v194
        %v461 = vunpack.c.l.b16 %v195
        %v462 = vunpack.c.l.b16 %v196
        %v463 = vunpack.c.l.b16 %v197
        %v464 = vunpack.c.l.b16 %v198
        %v465 = vunpack.c.l.b16 %v199
        %v466 = vunpack.c.l.b16 %v200
        %v467 = vunpack.c.l.b16 %v201
        %v468 = vunpack.c.l.b16 %v202
        %v469 = vunpack.c.l.b16 %v203
        %v470 = vunpack.c.l.b16 %v204
        %v471 = vunpack.c.l.b16 %v205
        %v472 = vunpack.c.l.b16 %v206
        %v473 = vunpack.c.l.b16 %v207
        %v474 = vunpack.c.l.b16 %v208
        %v475 = vunpack.c.l.b16 %v209
        %v476 = vunpack.c.l.b16 %v210
        %v477 = vunpack.c.l.b16 %v211
        %v478 = vunpack.c.l.b16 %v212
        %v479 = vunpack.c.l.b16 %v213
        %v480 = vunpack.c.l.b16 %v214
        %v481 = vunpack.c.l.b16 %v215
        %v482 = vunpack.c.l.b16 %v216
        %v483 = vunpack.c.l.b16 %v217
        %v484 = vpack.c.b16 %v453, %v452
        %v485 = vpack.c.b16 %v455, %v454
        %v486 = vpack.c.b16 %v457, %v456
        %v487 = vpack.c.b16 %v459, %v458
        %v488 = vpack.c.b16 %v461, %v460
        %v489 = vpack.c.b16 %v463, %v462
        %v490 = vpack.c.b16 %v465, %v464
        %v491 = vpack.c.b16 %v467, %v466
        %v492 = vpack.c.b16 %v469, %v468
        %v493 = vpack.c.b16 %v471, %v470
        %v494 = vpack.c.b16 %v473, %v472
        %v495 = vpack.c.b16 %v475, %v474
        %v496 = vpack.c.b16 %v477, %v476
        %v497 = vpack.c.b16 %v479, %v478
        %v498 = vpack.c.b16 %v481, %v480
        %v499 = vpack.c.b16 %v483, %v482
        %516 = vmatprep.subr.bf16.mxu0 0
        %517 = vmatpush1.bf16.msra.mxu0 %v491
        %518 = vmatprep.subr.bf16.mxu0 0
        %519 = vmatpush1.bf16.msra.mxu0 %v490
        %520 = vmatprep.subr.bf16.mxu0 0
        %521 = vmatpush1.bf16.msra.mxu0 %v489
        %522 = vmatprep.subr.bf16.mxu0 0
        %523 = vmatpush1.bf16.msra.mxu0 %v488
        %524 = vmatprep.subr.bf16.mxu0 0
        %525 = vmatpush1.bf16.msra.mxu0 %v487
        %526 = vmatprep.subr.bf16.mxu0 0
        %527 = vmatpush1.bf16.msra.mxu0 %v486
        %528 = vmatprep.subr.bf16.mxu0 0
        %529 = vmatpush1.bf16.msra.mxu0 %v485
        %530 = vmatprep.subr.bf16.mxu0 0
        %531 = vmatpush1.bf16.msra.mxu0 %v484
        %532 = vmatprep.subr.bf16.mxu0 0
        %533 = vmatpush2.bf16.msra.mxu0 %v499
        %534 = vmatprep.subr.bf16.mxu0 0
        %535 = vmatpush2.bf16.msra.mxu0 %v498
        %536 = vmatprep.subr.bf16.mxu0 0
        %537 = vmatpush2.bf16.msra.mxu0 %v497
        %538 = vmatprep.subr.bf16.mxu0 0
        %539 = vmatpush2.bf16.msra.mxu0 %v496
        %540 = vmatprep.subr.bf16.mxu0 0
        %541 = vmatpush2.bf16.msra.mxu0 %v495
        %542 = vmatprep.subr.bf16.mxu0 0
        %543 = vmatpush2.bf16.msra.mxu0 %v494
        %544 = vmatprep.subr.bf16.mxu0 0
        %545 = vmatpush2.bf16.msra.mxu0 %v493
        %546 = vmatprep.subr.bf16.mxu0 0
        %547 = vmatpush2.bf16.msra.mxu0 %v492
        %548 = vmatprep.mubr.bf16.mxu0 %v417
        %549 = vmatmul.mubr.bf16.gmra.mxu0 %v416
        %v550 = vpop.f32.mrf.mxu0
        %v551 = vadd.f32 %v408, %v550
        %v552 = vpop.f32.mrf.mxu0
        %v553 = vpop.f32.mrf.mxu0
        %v554 = vpop.f32.mrf.mxu0
        %555 = vdwg.mxu0
        %v556 = vld [vmem:[%s179] sm:$0xee]
        %s557 = scalar_lea.vmem [#allocation2], 256
        %v558 = vld [vmem:[%s557] sm:$0xf]
        %v559 = vld [vmem:[%s557 + $0x4] sm:$0xf]
        %v560 = vld [vmem:[%s557 + $0x8] sm:$0xf]
        %v561 = vld [vmem:[%s557 + $0xc] sm:$0xf]
        %v562 = vld [vmem:[%s557 + $0x10] sm:$0xf]
        %v563 = vld [vmem:[%s557 + $0x14] sm:$0xf]
        %v564 = vld [vmem:[%s557 + $0x18] sm:$0xf]
        %v565 = vld [vmem:[%s557 + $0x1c] sm:$0xf]
        %v566 = vld [vmem:[%s557 + $0x20] sm:$0xf]
        %v567 = vld [vmem:[%s557 + $0x24] sm:$0xf]
        %v568 = vld [vmem:[%s557 + $0x28] sm:$0xf]
        %v569 = vld [vmem:[%s557 + $0x2c] sm:$0xf]
        %v570 = vld [vmem:[%s557 + $0x30] sm:$0xf]
        %v571 = vld [vmem:[%s557 + $0x34] sm:$0xf]
        %v572 = vld [vmem:[%s557 + $0x38] sm:$0xf]
        %v573 = vld [vmem:[%s557 + $0x3c] sm:$0xf]
        %v574 = vld [vmem:[%s557 + $0x40] sm:$0xf]
        %v575 = vld [vmem:[%s557 + $0x44] sm:$0xf]
        %v576 = vld [vmem:[%s557 + $0x48] sm:$0xf]
        %v577 = vld [vmem:[%s557 + $0x4c] sm:$0xf]
        %v578 = vld [vmem:[%s557 + $0x50] sm:$0xf]
        %v579 = vld [vmem:[%s557 + $0x54] sm:$0xf]
        %v580 = vld [vmem:[%s557 + $0x58] sm:$0xf]
        %v581 = vld [vmem:[%s557 + $0x5c] sm:$0xf]
        %v582 = vld [vmem:[%s557 + $0x60] sm:$0xf]
        %v583 = vld [vmem:[%s557 + $0x64] sm:$0xf]
        %v584 = vld [vmem:[%s557 + $0x68] sm:$0xf]
        %v585 = vld [vmem:[%s557 + $0x6c] sm:$0xf]
        %v586 = vld [vmem:[%s557 + $0x70] sm:$0xf]
        %v587 = vld [vmem:[%s557 + $0x74] sm:$0xf]
        %v588 = vld [vmem:[%s557 + $0x78] sm:$0xf]
        %v589 = vld [vmem:[%s557 + $0x7c] sm:$0xf]
        %v591 = vunpack.c.l.b16 %v556
        %v592 = vunpack.c.h.b16 %v556
        %v593 = vpack.c.b16 %v257, %v591
        %v594 = vpack.c.b16 %v258, %v592
        %v595 = vrot.slane %v593, 1
        %v596 = vrot.slane %v594, 1
        %v631 = vunpack.c.l.b16 %v558
        %v632 = vunpack.c.l.b16 %v559
        %v633 = vunpack.c.l.b16 %v560
        %v634 = vunpack.c.l.b16 %v561
        %v635 = vunpack.c.l.b16 %v562
        %v636 = vunpack.c.l.b16 %v563
        %v637 = vunpack.c.l.b16 %v564
        %v638 = vunpack.c.l.b16 %v565
        %v639 = vunpack.c.l.b16 %v566
        %v640 = vunpack.c.l.b16 %v567
        %v641 = vunpack.c.l.b16 %v568
        %v642 = vunpack.c.l.b16 %v569
        %v643 = vunpack.c.l.b16 %v570
        %v644 = vunpack.c.l.b16 %v571
        %v645 = vunpack.c.l.b16 %v572
        %v646 = vunpack.c.l.b16 %v573
        %v647 = vunpack.c.l.b16 %v574
        %v648 = vunpack.c.l.b16 %v575
        %v649 = vunpack.c.l.b16 %v576
        %v650 = vunpack.c.l.b16 %v577
        %v651 = vunpack.c.l.b16 %v578
        %v652 = vunpack.c.l.b16 %v579
        %v653 = vunpack.c.l.b16 %v580
        %v654 = vunpack.c.l.b16 %v581
        %v655 = vunpack.c.l.b16 %v582
        %v656 = vunpack.c.l.b16 %v583
        %v657 = vunpack.c.l.b16 %v584
        %v658 = vunpack.c.l.b16 %v585
        %v659 = vunpack.c.l.b16 %v586
        %v660 = vunpack.c.l.b16 %v587
        %v661 = vunpack.c.l.b16 %v588
        %v662 = vunpack.c.l.b16 %v589
        %v663 = vpack.c.b16 %v632, %v631
        %v664 = vpack.c.b16 %v634, %v633
        %v665 = vpack.c.b16 %v636, %v635
        %v666 = vpack.c.b16 %v638, %v637
        %v667 = vpack.c.b16 %v640, %v639
        %v668 = vpack.c.b16 %v642, %v641
        %v669 = vpack.c.b16 %v644, %v643
        %v670 = vpack.c.b16 %v646, %v645
        %v671 = vpack.c.b16 %v648, %v647
        %v672 = vpack.c.b16 %v650, %v649
        %v673 = vpack.c.b16 %v652, %v651
        %v674 = vpack.c.b16 %v654, %v653
        %v675 = vpack.c.b16 %v656, %v655
        %v676 = vpack.c.b16 %v658, %v657
        %v677 = vpack.c.b16 %v660, %v659
        %v678 = vpack.c.b16 %v662, %v661
        %695 = vmatprep.subr.bf16.mxu0 0
        %696 = vmatpush1.bf16.msra.mxu0 %v670
        %697 = vmatprep.subr.bf16.mxu0 0
        %698 = vmatpush1.bf16.msra.mxu0 %v669
        %699 = vmatprep.subr.bf16.mxu0 0
        %700 = vmatpush1.bf16.msra.mxu0 %v668
        %701 = vmatprep.subr.bf16.mxu0 0
        %702 = vmatpush1.bf16.msra.mxu0 %v667
        %703 = vmatprep.subr.bf16.mxu0 0
        %704 = vmatpush1.bf16.msra.mxu0 %v666
        %705 = vmatprep.subr.bf16.mxu0 0
        %706 = vmatpush1.bf16.msra.mxu0 %v665
        %707 = vmatprep.subr.bf16.mxu0 0
        %708 = vmatpush1.bf16.msra.mxu0 %v664
        %709 = vmatprep.subr.bf16.mxu0 0
        %710 = vmatpush1.bf16.msra.mxu0 %v663
        %711 = vmatprep.subr.bf16.mxu0 0
        %712 = vmatpush2.bf16.msra.mxu0 %v678
        %713 = vmatprep.subr.bf16.mxu0 0
        %714 = vmatpush2.bf16.msra.mxu0 %v677
        %715 = vmatprep.subr.bf16.mxu0 0
        %716 = vmatpush2.bf16.msra.mxu0 %v676
        %717 = vmatprep.subr.bf16.mxu0 0
        %718 = vmatpush2.bf16.msra.mxu0 %v675
        %719 = vmatprep.subr.bf16.mxu0 0
        %720 = vmatpush2.bf16.msra.mxu0 %v674
        %721 = vmatprep.subr.bf16.mxu0 0
        %722 = vmatpush2.bf16.msra.mxu0 %v673
        %723 = vmatprep.subr.bf16.mxu0 0
        %724 = vmatpush2.bf16.msra.mxu0 %v672
        %725 = vmatprep.subr.bf16.mxu0 0
        %726 = vmatpush2.bf16.msra.mxu0 %v671
        %727 = vmatprep.mubr.bf16.mxu0 %v596
        %728 = vmatmul.mubr.bf16.gmra.mxu0 %v595
        %v729 = vpop.f32.mrf.mxu0
        %v730 = vadd.f32 0.0, %v729
        %v731 = vpop.f32.mrf.mxu0
        %v732 = vpop.f32.mrf.mxu0
        %v733 = vpop.f32.mrf.mxu0
        %734 = vdwg.mxu0
        %v735 = vadd.f32 %v551, %v730
        %v736 = vld [vmem:[%s179 + $0x8] sm:$0x33]
        %s737 = scalar_lea.vmem [#allocation2], 384
        %v738 = vld [vmem:[%s737] sm:$0xf]
        %v739 = vld [vmem:[%s737 + $0x4] sm:$0xf]
        %v740 = vld [vmem:[%s737 + $0x8] sm:$0xf]
        %v741 = vld [vmem:[%s737 + $0xc] sm:$0xf]
        %v742 = vld [vmem:[%s737 + $0x10] sm:$0xf]
        %v743 = vld [vmem:[%s737 + $0x14] sm:$0xf]
        %v744 = vld [vmem:[%s737 + $0x18] sm:$0xf]
        %v745 = vld [vmem:[%s737 + $0x1c] sm:$0xf]
        %v746 = vld [vmem:[%s737 + $0x20] sm:$0xf]
        %v747 = vld [vmem:[%s737 + $0x24] sm:$0xf]
        %v748 = vld [vmem:[%s737 + $0x28] sm:$0xf]
        %v749 = vld [vmem:[%s737 + $0x2c] sm:$0xf]
        %v750 = vld [vmem:[%s737 + $0x30] sm:$0xf]
        %v751 = vld [vmem:[%s737 + $0x34] sm:$0xf]
        %v752 = vld [vmem:[%s737 + $0x38] sm:$0xf]
        %v753 = vld [vmem:[%s737 + $0x3c] sm:$0xf]
        %v754 = vld [vmem:[%s737 + $0x40] sm:$0xf]
        %v755 = vld [vmem:[%s737 + $0x44] sm:$0xf]
        %v756 = vld [vmem:[%s737 + $0x48] sm:$0xf]
        %v757 = vld [vmem:[%s737 + $0x4c] sm:$0xf]
        %v758 = vld [vmem:[%s737 + $0x50] sm:$0xf]
        %v759 = vld [vmem:[%s737 + $0x54] sm:$0xf]
        %v760 = vld [vmem:[%s737 + $0x58] sm:$0xf]
        %v761 = vld [vmem:[%s737 + $0x5c] sm:$0xf]
        %v762 = vld [vmem:[%s737 + $0x60] sm:$0xf]
        %v763 = vld [vmem:[%s737 + $0x64] sm:$0xf]
        %v764 = vld [vmem:[%s737 + $0x68] sm:$0xf]
        %v765 = vld [vmem:[%s737 + $0x6c] sm:$0xf]
        %v766 = vld [vmem:[%s737 + $0x70] sm:$0xf]
        %v767 = vld [vmem:[%s737 + $0x74] sm:$0xf]
        %v768 = vld [vmem:[%s737 + $0x78] sm:$0xf]
        %v769 = vld [vmem:[%s737 + $0x7c] sm:$0xf]
        %v771 = vunpack.c.l.b16 %v736
        %v772 = vunpack.c.h.b16 %v736
        %v773 = vpack.c.b16 %v771, %v591
        %v774 = vpack.c.b16 %v772, %v592
        %v776 = vshrl.u32 %v773, 16
        %v778 = vrot.slane %v776, 1
        %v779 = vshll.u32 %v773, 16
        %v781 = vrot.slane %v779, 2
        %v782 = vor.u32 %v778, %v781
        %v784 = vshrl.u32 %v774, 16
        %v786 = vrot.slane %v784, 1
        %v787 = vshll.u32 %v774, 16
        %v789 = vrot.slane %v787, 2
        %v790 = vor.u32 %v786, %v789
        %v825 = vunpack.c.l.b16 %v738
        %v826 = vunpack.c.l.b16 %v739
        %v827 = vunpack.c.l.b16 %v740
        %v828 = vunpack.c.l.b16 %v741
        %v829 = vunpack.c.l.b16 %v742
        %v830 = vunpack.c.l.b16 %v743
        %v831 = vunpack.c.l.b16 %v744
        %v832 = vunpack.c.l.b16 %v745
        %v833 = vunpack.c.l.b16 %v746
        %v834 = vunpack.c.l.b16 %v747
        %v835 = vunpack.c.l.b16 %v748
        %v836 = vunpack.c.l.b16 %v749
        %v837 = vunpack.c.l.b16 %v750
        %v838 = vunpack.c.l.b16 %v751
        %v839 = vunpack.c.l.b16 %v752
        %v840 = vunpack.c.l.b16 %v753
        %v841 = vunpack.c.l.b16 %v754
        %v842 = vunpack.c.l.b16 %v755
        %v843 = vunpack.c.l.b16 %v756
        %v844 = vunpack.c.l.b16 %v757
        %v845 = vunpack.c.l.b16 %v758
        %v846 = vunpack.c.l.b16 %v759
        %v847 = vunpack.c.l.b16 %v760
        %v848 = vunpack.c.l.b16 %v761
        %v849 = vunpack.c.l.b16 %v762
        %v850 = vunpack.c.l.b16 %v763
        %v851 = vunpack.c.l.b16 %v764
        %v852 = vunpack.c.l.b16 %v765
        %v853 = vunpack.c.l.b16 %v766
        %v854 = vunpack.c.l.b16 %v767
        %v855 = vunpack.c.l.b16 %v768
        %v856 = vunpack.c.l.b16 %v769
        %v857 = vpack.c.b16 %v826, %v825
        %v858 = vpack.c.b16 %v828, %v827
        %v859 = vpack.c.b16 %v830, %v829
        %v860 = vpack.c.b16 %v832, %v831
        %v861 = vpack.c.b16 %v834, %v833
        %v862 = vpack.c.b16 %v836, %v835
        %v863 = vpack.c.b16 %v838, %v837
        %v864 = vpack.c.b16 %v840, %v839
        %v865 = vpack.c.b16 %v842, %v841
        %v866 = vpack.c.b16 %v844, %v843
        %v867 = vpack.c.b16 %v846, %v845
        %v868 = vpack.c.b16 %v848, %v847
        %v869 = vpack.c.b16 %v850, %v849
        %v870 = vpack.c.b16 %v852, %v851
        %v871 = vpack.c.b16 %v854, %v853
        %v872 = vpack.c.b16 %v856, %v855
        %889 = vmatprep.subr.bf16.mxu0 0
        %890 = vmatpush1.bf16.msra.mxu0 %v864
        %891 = vmatprep.subr.bf16.mxu0 0
        %892 = vmatpush1.bf16.msra.mxu0 %v863
        %893 = vmatprep.subr.bf16.mxu0 0
        %894 = vmatpush1.bf16.msra.mxu0 %v862
        %895 = vmatprep.subr.bf16.mxu0 0
        %896 = vmatpush1.bf16.msra.mxu0 %v861
        %897 = vmatprep.subr.bf16.mxu0 0
        %898 = vmatpush1.bf16.msra.mxu0 %v860
        %899 = vmatprep.subr.bf16.mxu0 0
        %900 = vmatpush1.bf16.msra.mxu0 %v859
        %901 = vmatprep.subr.bf16.mxu0 0
        %902 = vmatpush1.bf16.msra.mxu0 %v858
        %903 = vmatprep.subr.bf16.mxu0 0
        %904 = vmatpush1.bf16.msra.mxu0 %v857
        %905 = vmatprep.subr.bf16.mxu0 0
        %906 = vmatpush2.bf16.msra.mxu0 %v872
        %907 = vmatprep.subr.bf16.mxu0 0
        %908 = vmatpush2.bf16.msra.mxu0 %v871
        %909 = vmatprep.subr.bf16.mxu0 0
        %910 = vmatpush2.bf16.msra.mxu0 %v870
        %911 = vmatprep.subr.bf16.mxu0 0
        %912 = vmatpush2.bf16.msra.mxu0 %v869
        %913 = vmatprep.subr.bf16.mxu0 0
        %914 = vmatpush2.bf16.msra.mxu0 %v868
        %915 = vmatprep.subr.bf16.mxu0 0
        %916 = vmatpush2.bf16.msra.mxu0 %v867
        %917 = vmatprep.subr.bf16.mxu0 0
        %918 = vmatpush2.bf16.msra.mxu0 %v866
        %919 = vmatprep.subr.bf16.mxu0 0
        %920 = vmatpush2.bf16.msra.mxu0 %v865
        %921 = vmatprep.mubr.bf16.mxu0 %v790
        %922 = vmatmul.mubr.bf16.gmra.mxu0 %v782
        %v923 = vpop.f32.mrf.mxu0
        %v924 = vadd.f32 0.0, %v923
        %v925 = vpop.f32.mrf.mxu0
        %v926 = vpop.f32.mrf.mxu0
        %v927 = vpop.f32.mrf.mxu0
        %928 = vdwg.mxu0
        %v929 = vadd.f32 %v735, %v924
        %v930 = vld [vmem:[%s179] sm:$0xcc]
        %s931 = scalar_lea.vmem [#allocation2], 512
        %v932 = vld [vmem:[%s931] sm:$0xf]
        %v933 = vld [vmem:[%s931 + $0x4] sm:$0xf]
        %v934 = vld [vmem:[%s931 + $0x8] sm:$0xf]
        %v935 = vld [vmem:[%s931 + $0xc] sm:$0xf]
        %v936 = vld [vmem:[%s931 + $0x10] sm:$0xf]
        %v937 = vld [vmem:[%s931 + $0x14] sm:$0xf]
        %v938 = vld [vmem:[%s931 + $0x18] sm:$0xf]
        %v939 = vld [vmem:[%s931 + $0x1c] sm:$0xf]
        %v940 = vld [vmem:[%s931 + $0x20] sm:$0xf]
        %v941 = vld [vmem:[%s931 + $0x24] sm:$0xf]
        %v942 = vld [vmem:[%s931 + $0x28] sm:$0xf]
        %v943 = vld [vmem:[%s931 + $0x2c] sm:$0xf]
        %v944 = vld [vmem:[%s931 + $0x30] sm:$0xf]
        %v945 = vld [vmem:[%s931 + $0x34] sm:$0xf]
        %v946 = vld [vmem:[%s931 + $0x38] sm:$0xf]
        %v947 = vld [vmem:[%s931 + $0x3c] sm:$0xf]
        %v948 = vld [vmem:[%s931 + $0x40] sm:$0xf]
        %v949 = vld [vmem:[%s931 + $0x44] sm:$0xf]
        %v950 = vld [vmem:[%s931 + $0x48] sm:$0xf]
        %v951 = vld [vmem:[%s931 + $0x4c] sm:$0xf]
        %v952 = vld [vmem:[%s931 + $0x50] sm:$0xf]
        %v953 = vld [vmem:[%s931 + $0x54] sm:$0xf]
        %v954 = vld [vmem:[%s931 + $0x58] sm:$0xf]
        %v955 = vld [vmem:[%s931 + $0x5c] sm:$0xf]
        %v956 = vld [vmem:[%s931 + $0x60] sm:$0xf]
        %v957 = vld [vmem:[%s931 + $0x64] sm:$0xf]
        %v958 = vld [vmem:[%s931 + $0x68] sm:$0xf]
        %v959 = vld [vmem:[%s931 + $0x6c] sm:$0xf]
        %v960 = vld [vmem:[%s931 + $0x70] sm:$0xf]
        %v961 = vld [vmem:[%s931 + $0x74] sm:$0xf]
        %v962 = vld [vmem:[%s931 + $0x78] sm:$0xf]
        %v963 = vld [vmem:[%s931 + $0x7c] sm:$0xf]
        %v965 = vunpack.c.l.b16 %v930
        %v966 = vunpack.c.h.b16 %v930
        %v967 = vpack.c.b16 %v771, %v965
        %v968 = vpack.c.b16 %v772, %v966
        %v969 = vrot.slane %v967, 2
        %v970 = vrot.slane %v968, 2
        %v1005 = vunpack.c.l.b16 %v932
        %v1006 = vunpack.c.l.b16 %v933
        %v1007 = vunpack.c.l.b16 %v934
        %v1008 = vunpack.c.l.b16 %v935
        %v1009 = vunpack.c.l.b16 %v936
        %v1010 = vunpack.c.l.b16 %v937
        %v1011 = vunpack.c.l.b16 %v938
        %v1012 = vunpack.c.l.b16 %v939
        %v1013 = vunpack.c.l.b16 %v940
        %v1014 = vunpack.c.l.b16 %v941
        %v1015 = vunpack.c.l.b16 %v942
        %v1016 = vunpack.c.l.b16 %v943
        %v1017 = vunpack.c.l.b16 %v944
        %v1018 = vunpack.c.l.b16 %v945
        %v1019 = vunpack.c.l.b16 %v946
        %v1020 = vunpack.c.l.b16 %v947
        %v1021 = vunpack.c.l.b16 %v948
        %v1022 = vunpack.c.l.b16 %v949
        %v1023 = vunpack.c.l.b16 %v950
        %v1024 = vunpack.c.l.b16 %v951
        %v1025 = vunpack.c.l.b16 %v952
        %v1026 = vunpack.c.l.b16 %v953
        %v1027 = vunpack.c.l.b16 %v954
        %v1028 = vunpack.c.l.b16 %v955
        %v1029 = vunpack.c.l.b16 %v956
        %v1030 = vunpack.c.l.b16 %v957
        %v1031 = vunpack.c.l.b16 %v958
        %v1032 = vunpack.c.l.b16 %v959
        %v1033 = vunpack.c.l.b16 %v960
        %v1034 = vunpack.c.l.b16 %v961
        %v1035 = vunpack.c.l.b16 %v962
        %v1036 = vunpack.c.l.b16 %v963
        %v1037 = vpack.c.b16 %v1006, %v1005
        %v1038 = vpack.c.b16 %v1008, %v1007
        %v1039 = vpack.c.b16 %v1010, %v1009
        %v1040 = vpack.c.b16 %v1012, %v1011
        %v1041 = vpack.c.b16 %v1014, %v1013
        %v1042 = vpack.c.b16 %v1016, %v1015
        %v1043 = vpack.c.b16 %v1018, %v1017
        %v1044 = vpack.c.b16 %v1020, %v1019
        %v1045 = vpack.c.b16 %v1022, %v1021
        %v1046 = vpack.c.b16 %v1024, %v1023
        %v1047 = vpack.c.b16 %v1026, %v1025
        %v1048 = vpack.c.b16 %v1028, %v1027
        %v1049 = vpack.c.b16 %v1030, %v1029
        %v1050 = vpack.c.b16 %v1032, %v1031
        %v1051 = vpack.c.b16 %v1034, %v1033
        %v1052 = vpack.c.b16 %v1036, %v1035
        %1069 = vmatprep.subr.bf16.mxu0 0
        %1070 = vmatpush1.bf16.msra.mxu0 %v1044
        %1071 = vmatprep.subr.bf16.mxu0 0
        %1072 = vmatpush1.bf16.msra.mxu0 %v1043
        %1073 = vmatprep.subr.bf16.mxu0 0
        %1074 = vmatpush1.bf16.msra.mxu0 %v1042
        %1075 = vmatprep.subr.bf16.mxu0 0
        %1076 = vmatpush1.bf16.msra.mxu0 %v1041
        %1077 = vmatprep.subr.bf16.mxu0 0
        %1078 = vmatpush1.bf16.msra.mxu0 %v1040
        %1079 = vmatprep.subr.bf16.mxu0 0
        %1080 = vmatpush1.bf16.msra.mxu0 %v1039
        %1081 = vmatprep.subr.bf16.mxu0 0
        %1082 = vmatpush1.bf16.msra.mxu0 %v1038
        %1083 = vmatprep.subr.bf16.mxu0 0
        %1084 = vmatpush1.bf16.msra.mxu0 %v1037
        %1085 = vmatprep.subr.bf16.mxu0 0
        %1086 = vmatpush2.bf16.msra.mxu0 %v1052
        %1087 = vmatprep.subr.bf16.mxu0 0
        %1088 = vmatpush2.bf16.msra.mxu0 %v1051
        %1089 = vmatprep.subr.bf16.mxu0 0
        %1090 = vmatpush2.bf16.msra.mxu0 %v1050
        %1091 = vmatprep.subr.bf16.mxu0 0
        %1092 = vmatpush2.bf16.msra.mxu0 %v1049
        %1093 = vmatprep.subr.bf16.mxu0 0
        %1094 = vmatpush2.bf16.msra.mxu0 %v1048
        %1095 = vmatprep.subr.bf16.mxu0 0
        %1096 = vmatpush2.bf16.msra.mxu0 %v1047
        %1097 = vmatprep.subr.bf16.mxu0 0
        %1098 = vmatpush2.bf16.msra.mxu0 %v1046
        %1099 = vmatprep.subr.bf16.mxu0 0
        %1100 = vmatpush2.bf16.msra.mxu0 %v1045
        %1101 = vmatprep.mubr.bf16.mxu0 %v970
        %1102 = vmatmul.mubr.bf16.gmra.mxu0 %v969
        %v1103 = vpop.f32.mrf.mxu0
        %v1104 = vadd.f32 0.0, %v1103
        %v1105 = vpop.f32.mrf.mxu0
        %v1106 = vpop.f32.mrf.mxu0
        %v1107 = vpop.f32.mrf.mxu0
        %1108 = vdwg.mxu0
        %v1109 = vadd.f32 %v929, %v1104
        %v1110 = vld [vmem:[%s179 + $0x8] sm:$0x77]
        %s1111 = scalar_lea.vmem [#allocation2], 640
        %v1112 = vld [vmem:[%s1111] sm:$0xf]
        %v1113 = vld [vmem:[%s1111 + $0x4] sm:$0xf]
        %v1114 = vld [vmem:[%s1111 + $0x8] sm:$0xf]
        %v1115 = vld [vmem:[%s1111 + $0xc] sm:$0xf]
        %v1116 = vld [vmem:[%s1111 + $0x10] sm:$0xf]
        %v1117 = vld [vmem:[%s1111 + $0x14] sm:$0xf]
        %v1118 = vld [vmem:[%s1111 + $0x18] sm:$0xf]
        %v1119 = vld [vmem:[%s1111 + $0x1c] sm:$0xf]
        %v1120 = vld [vmem:[%s1111 + $0x20] sm:$0xf]
        %v1121 = vld [vmem:[%s1111 + $0x24] sm:$0xf]
        %v1122 = vld [vmem:[%s1111 + $0x28] sm:$0xf]
        %v1123 = vld [vmem:[%s1111 + $0x2c] sm:$0xf]
        %v1124 = vld [vmem:[%s1111 + $0x30] sm:$0xf]
        %v1125 = vld [vmem:[%s1111 + $0x34] sm:$0xf]
        %v1126 = vld [vmem:[%s1111 + $0x38] sm:$0xf]
        %v1127 = vld [vmem:[%s1111 + $0x3c] sm:$0xf]
        %v1128 = vld [vmem:[%s1111 + $0x40] sm:$0xf]
        %v1129 = vld [vmem:[%s1111 + $0x44] sm:$0xf]
        %v1130 = vld [vmem:[%s1111 + $0x48] sm:$0xf]
        %v1131 = vld [vmem:[%s1111 + $0x4c] sm:$0xf]
        %v1132 = vld [vmem:[%s1111 + $0x50] sm:$0xf]
        %v1133 = vld [vmem:[%s1111 + $0x54] sm:$0xf]
        %v1134 = vld [vmem:[%s1111 + $0x58] sm:$0xf]
        %v1135 = vld [vmem:[%s1111 + $0x5c] sm:$0xf]
        %v1136 = vld [vmem:[%s1111 + $0x60] sm:$0xf]
        %v1137 = vld [vmem:[%s1111 + $0x64] sm:$0xf]
        %v1138 = vld [vmem:[%s1111 + $0x68] sm:$0xf]
        %v1139 = vld [vmem:[%s1111 + $0x6c] sm:$0xf]
        %v1140 = vld [vmem:[%s1111 + $0x70] sm:$0xf]
        %v1141 = vld [vmem:[%s1111 + $0x74] sm:$0xf]
        %v1142 = vld [vmem:[%s1111 + $0x78] sm:$0xf]
        %v1143 = vld [vmem:[%s1111 + $0x7c] sm:$0xf]
        %v1145 = vunpack.c.l.b16 %v1110
        %v1146 = vunpack.c.h.b16 %v1110
        %v1147 = vpack.c.b16 %v1145, %v965
        %v1148 = vpack.c.b16 %v1146, %v966
        %v1150 = vshrl.u32 %v1147, 16
        %v1152 = vrot.slane %v1150, 2
        %v1153 = vshll.u32 %v1147, 16
        %v1155 = vrot.slane %v1153, 3
        %v1156 = vor.u32 %v1152, %v1155
        %v1158 = vshrl.u32 %v1148, 16
        %v1160 = vrot.slane %v1158, 2
        %v1161 = vshll.u32 %v1148, 16
        %v1163 = vrot.slane %v1161, 3
        %v1164 = vor.u32 %v1160, %v1163
        %v1199 = vunpack.c.l.b16 %v1112
        %v1200 = vunpack.c.l.b16 %v1113
        %v1201 = vunpack.c.l.b16 %v1114
        %v1202 = vunpack.c.l.b16 %v1115
        %v1203 = vunpack.c.l.b16 %v1116
        %v1204 = vunpack.c.l.b16 %v1117
        %v1205 = vunpack.c.l.b16 %v1118
        %v1206 = vunpack.c.l.b16 %v1119
        %v1207 = vunpack.c.l.b16 %v1120
        %v1208 = vunpack.c.l.b16 %v1121
        %v1209 = vunpack.c.l.b16 %v1122
        %v1210 = vunpack.c.l.b16 %v1123
        %v1211 = vunpack.c.l.b16 %v1124
        %v1212 = vunpack.c.l.b16 %v1125
        %v1213 = vunpack.c.l.b16 %v1126
        %v1214 = vunpack.c.l.b16 %v1127
        %v1215 = vunpack.c.l.b16 %v1128
        %v1216 = vunpack.c.l.b16 %v1129
        %v1217 = vunpack.c.l.b16 %v1130
        %v1218 = vunpack.c.l.b16 %v1131
        %v1219 = vunpack.c.l.b16 %v1132
        %v1220 = vunpack.c.l.b16 %v1133
        %v1221 = vunpack.c.l.b16 %v1134
        %v1222 = vunpack.c.l.b16 %v1135
        %v1223 = vunpack.c.l.b16 %v1136
        %v1224 = vunpack.c.l.b16 %v1137
        %v1225 = vunpack.c.l.b16 %v1138
        %v1226 = vunpack.c.l.b16 %v1139
        %v1227 = vunpack.c.l.b16 %v1140
        %v1228 = vunpack.c.l.b16 %v1141
        %v1229 = vunpack.c.l.b16 %v1142
        %v1230 = vunpack.c.l.b16 %v1143
        %v1231 = vpack.c.b16 %v1200, %v1199
        %v1232 = vpack.c.b16 %v1202, %v1201
        %v1233 = vpack.c.b16 %v1204, %v1203
        %v1234 = vpack.c.b16 %v1206, %v1205
        %v1235 = vpack.c.b16 %v1208, %v1207
        %v1236 = vpack.c.b16 %v1210, %v1209
        %v1237 = vpack.c.b16 %v1212, %v1211
        %v1238 = vpack.c.b16 %v1214, %v1213
        %v1239 = vpack.c.b16 %v1216, %v1215
        %v1240 = vpack.c.b16 %v1218, %v1217
        %v1241 = vpack.c.b16 %v1220, %v1219
        %v1242 = vpack.c.b16 %v1222, %v1221
        %v1243 = vpack.c.b16 %v1224, %v1223
        %v1244 = vpack.c.b16 %v1226, %v1225
        %v1245 = vpack.c.b16 %v1228, %v1227
        %v1246 = vpack.c.b16 %v1230, %v1229
        %1263 = vmatprep.subr.bf16.mxu0 0
        %1264 = vmatpush1.bf16.msra.mxu0 %v1238
        %1265 = vmatprep.subr.bf16.mxu0 0
        %1266 = vmatpush1.bf16.msra.mxu0 %v1237
        %1267 = vmatprep.subr.bf16.mxu0 0
        %1268 = vmatpush1.bf16.msra.mxu0 %v1236
        %1269 = vmatprep.subr.bf16.mxu0 0
        %1270 = vmatpush1.bf16.msra.mxu0 %v1235
        %1271 = vmatprep.subr.bf16.mxu0 0
        %1272 = vmatpush1.bf16.msra.mxu0 %v1234
        %1273 = vmatprep.subr.bf16.mxu0 0
        %1274 = vmatpush1.bf16.msra.mxu0 %v1233
        %1275 = vmatprep.subr.bf16.mxu0 0
        %1276 = vmatpush1.bf16.msra.mxu0 %v1232
        %1277 = vmatprep.subr.bf16.mxu0 0
        %1278 = vmatpush1.bf16.msra.mxu0 %v1231
        %1279 = vmatprep.subr.bf16.mxu0 0
        %1280 = vmatpush2.bf16.msra.mxu0 %v1246
        %1281 = vmatprep.subr.bf16.mxu0 0
        %1282 = vmatpush2.bf16.msra.mxu0 %v1245
        %1283 = vmatprep.subr.bf16.mxu0 0
        %1284 = vmatpush2.bf16.msra.mxu0 %v1244
        %1285 = vmatprep.subr.bf16.mxu0 0
        %1286 = vmatpush2.bf16.msra.mxu0 %v1243
        %1287 = vmatprep.subr.bf16.mxu0 0
        %1288 = vmatpush2.bf16.msra.mxu0 %v1242
        %1289 = vmatprep.subr.bf16.mxu0 0
        %1290 = vmatpush2.bf16.msra.mxu0 %v1241
        %1291 = vmatprep.subr.bf16.mxu0 0
        %1292 = vmatpush2.bf16.msra.mxu0 %v1240
        %1293 = vmatprep.subr.bf16.mxu0 0
        %1294 = vmatpush2.bf16.msra.mxu0 %v1239
        %1295 = vmatprep.mubr.bf16.mxu0 %v1164
        %1296 = vmatmul.mubr.bf16.gmra.mxu0 %v1156
        %v1297 = vpop.f32.mrf.mxu0
        %v1298 = vadd.f32 0.0, %v1297
        %v1299 = vpop.f32.mrf.mxu0
        %v1300 = vpop.f32.mrf.mxu0
        %v1301 = vpop.f32.mrf.mxu0
        %1302 = vdwg.mxu0
        %v1303 = vadd.f32 %v1109, %v1298
        %v1304 = vld [vmem:[%s179] sm:$0x88]
        %s1305 = scalar_lea.vmem [#allocation2], 768
        %v1306 = vld [vmem:[%s1305] sm:$0xf]
        %v1307 = vld [vmem:[%s1305 + $0x4] sm:$0xf]
        %v1308 = vld [vmem:[%s1305 + $0x8] sm:$0xf]
        %v1309 = vld [vmem:[%s1305 + $0xc] sm:$0xf]
        %v1310 = vld [vmem:[%s1305 + $0x10] sm:$0xf]
        %v1311 = vld [vmem:[%s1305 + $0x14] sm:$0xf]
        %v1312 = vld [vmem:[%s1305 + $0x18] sm:$0xf]
        %v1313 = vld [vmem:[%s1305 + $0x1c] sm:$0xf]
        %v1314 = vld [vmem:[%s1305 + $0x20] sm:$0xf]
        %v1315 = vld [vmem:[%s1305 + $0x24] sm:$0xf]
        %v1316 = vld [vmem:[%s1305 + $0x28] sm:$0xf]
        %v1317 = vld [vmem:[%s1305 + $0x2c] sm:$0xf]
        %v1318 = vld [vmem:[%s1305 + $0x30] sm:$0xf]
        %v1319 = vld [vmem:[%s1305 + $0x34] sm:$0xf]
        %v1320 = vld [vmem:[%s1305 + $0x38] sm:$0xf]
        %v1321 = vld [vmem:[%s1305 + $0x3c] sm:$0xf]
        %v1322 = vld [vmem:[%s1305 + $0x40] sm:$0xf]
        %v1323 = vld [vmem:[%s1305 + $0x44] sm:$0xf]
        %v1324 = vld [vmem:[%s1305 + $0x48] sm:$0xf]
        %v1325 = vld [vmem:[%s1305 + $0x4c] sm:$0xf]
        %v1326 = vld [vmem:[%s1305 + $0x50] sm:$0xf]
        %v1327 = vld [vmem:[%s1305 + $0x54] sm:$0xf]
        %v1328 = vld [vmem:[%s1305 + $0x58] sm:$0xf]
        %v1329 = vld [vmem:[%s1305 + $0x5c] sm:$0xf]
        %v1330 = vld [vmem:[%s1305 + $0x60] sm:$0xf]
        %v1331 = vld [vmem:[%s1305 + $0x64] sm:$0xf]
        %v1332 = vld [vmem:[%s1305 + $0x68] sm:$0xf]
        %v1333 = vld [vmem:[%s1305 + $0x6c] sm:$0xf]
        %v1334 = vld [vmem:[%s1305 + $0x70] sm:$0xf]
        %v1335 = vld [vmem:[%s1305 + $0x74] sm:$0xf]
        %v1336 = vld [vmem:[%s1305 + $0x78] sm:$0xf]
        %v1337 = vld [vmem:[%s1305 + $0x7c] sm:$0xf]
        %v1339 = vunpack.c.l.b16 %v1304
        %v1340 = vunpack.c.h.b16 %v1304
        %v1341 = vpack.c.b16 %v1145, %v1339
        %v1342 = vpack.c.b16 %v1146, %v1340
        %v1343 = vrot.slane %v1341, 3
        %v1344 = vrot.slane %v1342, 3
        %v1379 = vunpack.c.l.b16 %v1306
        %v1380 = vunpack.c.l.b16 %v1307
        %v1381 = vunpack.c.l.b16 %v1308
        %v1382 = vunpack.c.l.b16 %v1309
        %v1383 = vunpack.c.l.b16 %v1310
        %v1384 = vunpack.c.l.b16 %v1311
        %v1385 = vunpack.c.l.b16 %v1312
        %v1386 = vunpack.c.l.b16 %v1313
        %v1387 = vunpack.c.l.b16 %v1314
        %v1388 = vunpack.c.l.b16 %v1315
        %v1389 = vunpack.c.l.b16 %v1316
        %v1390 = vunpack.c.l.b16 %v1317
        %v1391 = vunpack.c.l.b16 %v1318
        %v1392 = vunpack.c.l.b16 %v1319
        %v1393 = vunpack.c.l.b16 %v1320
        %v1394 = vunpack.c.l.b16 %v1321
        %v1395 = vunpack.c.l.b16 %v1322
        %v1396 = vunpack.c.l.b16 %v1323
        %v1397 = vunpack.c.l.b16 %v1324
        %v1398 = vunpack.c.l.b16 %v1325
        %v1399 = vunpack.c.l.b16 %v1326
        %v1400 = vunpack.c.l.b16 %v1327
        %v1401 = vunpack.c.l.b16 %v1328
        %v1402 = vunpack.c.l.b16 %v1329
        %v1403 = vunpack.c.l.b16 %v1330
        %v1404 = vunpack.c.l.b16 %v1331
        %v1405 = vunpack.c.l.b16 %v1332
        %v1406 = vunpack.c.l.b16 %v1333
        %v1407 = vunpack.c.l.b16 %v1334
        %v1408 = vunpack.c.l.b16 %v1335
        %v1409 = vunpack.c.l.b16 %v1336
        %v1410 = vunpack.c.l.b16 %v1337
        %v1411 = vpack.c.b16 %v1380, %v1379
        %v1412 = vpack.c.b16 %v1382, %v1381
        %v1413 = vpack.c.b16 %v1384, %v1383
        %v1414 = vpack.c.b16 %v1386, %v1385
        %v1415 = vpack.c.b16 %v1388, %v1387
        %v1416 = vpack.c.b16 %v1390, %v1389
        %v1417 = vpack.c.b16 %v1392, %v1391
        %v1418 = vpack.c.b16 %v1394, %v1393
        %v1419 = vpack.c.b16 %v1396, %v1395
        %v1420 = vpack.c.b16 %v1398, %v1397
        %v1421 = vpack.c.b16 %v1400, %v1399
        %v1422 = vpack.c.b16 %v1402, %v1401
        %v1423 = vpack.c.b16 %v1404, %v1403
        %v1424 = vpack.c.b16 %v1406, %v1405
        %v1425 = vpack.c.b16 %v1408, %v1407
        %v1426 = vpack.c.b16 %v1410, %v1409
        %1443 = vmatprep.subr.bf16.mxu0 0
        %1444 = vmatpush1.bf16.msra.mxu0 %v1418
        %1445 = vmatprep.subr.bf16.mxu0 0
        %1446 = vmatpush1.bf16.msra.mxu0 %v1417
        %1447 = vmatprep.subr.bf16.mxu0 0
        %1448 = vmatpush1.bf16.msra.mxu0 %v1416
        %1449 = vmatprep.subr.bf16.mxu0 0
        %1450 = vmatpush1.bf16.msra.mxu0 %v1415
        %1451 = vmatprep.subr.bf16.mxu0 0
        %1452 = vmatpush1.bf16.msra.mxu0 %v1414
        %1453 = vmatprep.subr.bf16.mxu0 0
        %1454 = vmatpush1.bf16.msra.mxu0 %v1413
        %1455 = vmatprep.subr.bf16.mxu0 0
        %1456 = vmatpush1.bf16.msra.mxu0 %v1412
        %1457 = vmatprep.subr.bf16.mxu0 0
        %1458 = vmatpush1.bf16.msra.mxu0 %v1411
        %1459 = vmatprep.subr.bf16.mxu0 0
        %1460 = vmatpush2.bf16.msra.mxu0 %v1426
        %1461 = vmatprep.subr.bf16.mxu0 0
        %1462 = vmatpush2.bf16.msra.mxu0 %v1425
        %1463 = vmatprep.subr.bf16.mxu0 0
        %1464 = vmatpush2.bf16.msra.mxu0 %v1424
        %1465 = vmatprep.subr.bf16.mxu0 0
        %1466 = vmatpush2.bf16.msra.mxu0 %v1423
        %1467 = vmatprep.subr.bf16.mxu0 0
        %1468 = vmatpush2.bf16.msra.mxu0 %v1422
        %1469 = vmatprep.subr.bf16.mxu0 0
        %1470 = vmatpush2.bf16.msra.mxu0 %v1421
        %1471 = vmatprep.subr.bf16.mxu0 0
        %1472 = vmatpush2.bf16.msra.mxu0 %v1420
        %1473 = vmatprep.subr.bf16.mxu0 0
        %1474 = vmatpush2.bf16.msra.mxu0 %v1419
        %1475 = vmatprep.mubr.bf16.mxu0 %v1344
        %1476 = vmatmul.mubr.bf16.gmra.mxu0 %v1343
        %v1477 = vpop.f32.mrf.mxu0
        %v1478 = vadd.f32 0.0, %v1477
        %v1479 = vpop.f32.mrf.mxu0
        %v1480 = vpop.f32.mrf.mxu0
        %v1481 = vpop.f32.mrf.mxu0
        %1482 = vdwg.mxu0
        %v1483 = vadd.f32 %v1303, %v1478
        %v1484 = vld [vmem:[%s179 + $0x8] sm:$0xff]
        %s1485 = scalar_lea.vmem [#allocation2], 896
        %v1486 = vld [vmem:[%s1485] sm:$0xf]
        %v1487 = vld [vmem:[%s1485 + $0x4] sm:$0xf]
        %v1488 = vld [vmem:[%s1485 + $0x8] sm:$0xf]
        %v1489 = vld [vmem:[%s1485 + $0xc] sm:$0xf]
        %v1490 = vld [vmem:[%s1485 + $0x10] sm:$0xf]
        %v1491 = vld [vmem:[%s1485 + $0x14] sm:$0xf]
        %v1492 = vld [vmem:[%s1485 + $0x18] sm:$0xf]
        %v1493 = vld [vmem:[%s1485 + $0x1c] sm:$0xf]
        %v1494 = vld [vmem:[%s1485 + $0x20] sm:$0xf]
        %v1495 = vld [vmem:[%s1485 + $0x24] sm:$0xf]
        %v1496 = vld [vmem:[%s1485 + $0x28] sm:$0xf]
        %v1497 = vld [vmem:[%s1485 + $0x2c] sm:$0xf]
        %v1498 = vld [vmem:[%s1485 + $0x30] sm:$0xf]
        %v1499 = vld [vmem:[%s1485 + $0x34] sm:$0xf]
        %v1500 = vld [vmem:[%s1485 + $0x38] sm:$0xf]
        %v1501 = vld [vmem:[%s1485 + $0x3c] sm:$0xf]
        %v1502 = vld [vmem:[%s1485 + $0x40] sm:$0xf]
        %v1503 = vld [vmem:[%s1485 + $0x44] sm:$0xf]
        %v1504 = vld [vmem:[%s1485 + $0x48] sm:$0xf]
        %v1505 = vld [vmem:[%s1485 + $0x4c] sm:$0xf]
        %v1506 = vld [vmem:[%s1485 + $0x50] sm:$0xf]
        %v1507 = vld [vmem:[%s1485 + $0x54] sm:$0xf]
        %v1508 = vld [vmem:[%s1485 + $0x58] sm:$0xf]
        %v1509 = vld [vmem:[%s1485 + $0x5c] sm:$0xf]
        %v1510 = vld [vmem:[%s1485 + $0x60] sm:$0xf]
        %v1511 = vld [vmem:[%s1485 + $0x64] sm:$0xf]
        %v1512 = vld [vmem:[%s1485 + $0x68] sm:$0xf]
        %v1513 = vld [vmem:[%s1485 + $0x6c] sm:$0xf]
        %v1514 = vld [vmem:[%s1485 + $0x70] sm:$0xf]
        %v1515 = vld [vmem:[%s1485 + $0x74] sm:$0xf]
        %v1516 = vld [vmem:[%s1485 + $0x78] sm:$0xf]
        %v1517 = vld [vmem:[%s1485 + $0x7c] sm:$0xf]
        %v1519 = vunpack.c.l.b16 %v1484
        %v1520 = vunpack.c.h.b16 %v1484
        %v1521 = vpack.c.b16 %v1519, %v1339
        %v1522 = vpack.c.b16 %v1520, %v1340
        %v1524 = vshrl.u32 %v1521, 16
        %v1526 = vrot.slane %v1524, 3
        %v1527 = vshll.u32 %v1521, 16
        %v1529 = vrot.slane %v1527, 4
        %v1530 = vor.u32 %v1526, %v1529
        %v1532 = vshrl.u32 %v1522, 16
        %v1534 = vrot.slane %v1532, 3
        %v1535 = vshll.u32 %v1522, 16
        %v1537 = vrot.slane %v1535, 4
        %v1538 = vor.u32 %v1534, %v1537
        %v1573 = vunpack.c.l.b16 %v1486
        %v1574 = vunpack.c.l.b16 %v1487
        %v1575 = vunpack.c.l.b16 %v1488
        %v1576 = vunpack.c.l.b16 %v1489
        %v1577 = vunpack.c.l.b16 %v1490
        %v1578 = vunpack.c.l.b16 %v1491
        %v1579 = vunpack.c.l.b16 %v1492
        %v1580 = vunpack.c.l.b16 %v1493
        %v1581 = vunpack.c.l.b16 %v1494
        %v1582 = vunpack.c.l.b16 %v1495
        %v1583 = vunpack.c.l.b16 %v1496
        %v1584 = vunpack.c.l.b16 %v1497
        %v1585 = vunpack.c.l.b16 %v1498
        %v1586 = vunpack.c.l.b16 %v1499
        %v1587 = vunpack.c.l.b16 %v1500
        %v1588 = vunpack.c.l.b16 %v1501
        %v1589 = vunpack.c.l.b16 %v1502
        %v1590 = vunpack.c.l.b16 %v1503
        %v1591 = vunpack.c.l.b16 %v1504
        %v1592 = vunpack.c.l.b16 %v1505
        %v1593 = vunpack.c.l.b16 %v1506
        %v1594 = vunpack.c.l.b16 %v1507
        %v1595 = vunpack.c.l.b16 %v1508
        %v1596 = vunpack.c.l.b16 %v1509
        %v1597 = vunpack.c.l.b16 %v1510
        %v1598 = vunpack.c.l.b16 %v1511
        %v1599 = vunpack.c.l.b16 %v1512
        %v1600 = vunpack.c.l.b16 %v1513
        %v1601 = vunpack.c.l.b16 %v1514
        %v1602 = vunpack.c.l.b16 %v1515
        %v1603 = vunpack.c.l.b16 %v1516
        %v1604 = vunpack.c.l.b16 %v1517
        %v1605 = vpack.c.b16 %v1574, %v1573
        %v1606 = vpack.c.b16 %v1576, %v1575
        %v1607 = vpack.c.b16 %v1578, %v1577
        %v1608 = vpack.c.b16 %v1580, %v1579
        %v1609 = vpack.c.b16 %v1582, %v1581
        %v1610 = vpack.c.b16 %v1584, %v1583
        %v1611 = vpack.c.b16 %v1586, %v1585
        %v1612 = vpack.c.b16 %v1588, %v1587
        %v1613 = vpack.c.b16 %v1590, %v1589
        %v1614 = vpack.c.b16 %v1592, %v1591
        %v1615 = vpack.c.b16 %v1594, %v1593
        %v1616 = vpack.c.b16 %v1596, %v1595
        %v1617 = vpack.c.b16 %v1598, %v1597
        %v1618 = vpack.c.b16 %v1600, %v1599
        %v1619 = vpack.c.b16 %v1602, %v1601
        %v1620 = vpack.c.b16 %v1604, %v1603
        %1637 = vmatprep.subr.bf16.mxu0 0
        %1638 = vmatpush1.bf16.msra.mxu0 %v1612
        %1639 = vmatprep.subr.bf16.mxu0 0
        %1640 = vmatpush1.bf16.msra.mxu0 %v1611
        %1641 = vmatprep.subr.bf16.mxu0 0
        %1642 = vmatpush1.bf16.msra.mxu0 %v1610
        %1643 = vmatprep.subr.bf16.mxu0 0
        %1644 = vmatpush1.bf16.msra.mxu0 %v1609
        %1645 = vmatprep.subr.bf16.mxu0 0
        %1646 = vmatpush1.bf16.msra.mxu0 %v1608
        %1647 = vmatprep.subr.bf16.mxu0 0
        %1648 = vmatpush1.bf16.msra.mxu0 %v1607
        %1649 = vmatprep.subr.bf16.mxu0 0
        %1650 = vmatpush1.bf16.msra.mxu0 %v1606
        %1651 = vmatprep.subr.bf16.mxu0 0
        %1652 = vmatpush1.bf16.msra.mxu0 %v1605
        %1653 = vmatprep.subr.bf16.mxu0 0
        %1654 = vmatpush2.bf16.msra.mxu0 %v1620
        %1655 = vmatprep.subr.bf16.mxu0 0
        %1656 = vmatpush2.bf16.msra.mxu0 %v1619
        %1657 = vmatprep.subr.bf16.mxu0 0
        %1658 = vmatpush2.bf16.msra.mxu0 %v1618
        %1659 = vmatprep.subr.bf16.mxu0 0
        %1660 = vmatpush2.bf16.msra.mxu0 %v1617
        %1661 = vmatprep.subr.bf16.mxu0 0
        %1662 = vmatpush2.bf16.msra.mxu0 %v1616
        %1663 = vmatprep.subr.bf16.mxu0 0
        %1664 = vmatpush2.bf16.msra.mxu0 %v1615
        %1665 = vmatprep.subr.bf16.mxu0 0
        %1666 = vmatpush2.bf16.msra.mxu0 %v1614
        %1667 = vmatprep.subr.bf16.mxu0 0
        %1668 = vmatpush2.bf16.msra.mxu0 %v1613
        %1669 = vmatprep.mubr.bf16.mxu0 %v1538
        %1670 = vmatmul.mubr.bf16.gmra.mxu0 %v1530
        %v1671 = vpop.f32.mrf.mxu0
        %v1672 = vadd.f32 0.0, %v1671
        %v1673 = vpop.f32.mrf.mxu0
        %v1674 = vpop.f32.mrf.mxu0
        %v1675 = vpop.f32.mrf.mxu0
        %1676 = vdwg.mxu0
        %v1677 = vadd.f32 %v1483, %v1672
        %s1678 = scalar_lea.vmem [#allocation2], 1024
        %v1679 = vld [vmem:[%s1678] sm:$0xf]
        %v1680 = vld [vmem:[%s1678 + $0x4] sm:$0xf]
        %v1681 = vld [vmem:[%s1678 + $0x8] sm:$0xf]
        %v1682 = vld [vmem:[%s1678 + $0xc] sm:$0xf]
        %v1683 = vld [vmem:[%s1678 + $0x10] sm:$0xf]
        %v1684 = vld [vmem:[%s1678 + $0x14] sm:$0xf]
        %v1685 = vld [vmem:[%s1678 + $0x18] sm:$0xf]
        %v1686 = vld [vmem:[%s1678 + $0x1c] sm:$0xf]
        %v1687 = vld [vmem:[%s1678 + $0x20] sm:$0xf]
        %v1688 = vld [vmem:[%s1678 + $0x24] sm:$0xf]
        %v1689 = vld [vmem:[%s1678 + $0x28] sm:$0xf]
        %v1690 = vld [vmem:[%s1678 + $0x2c] sm:$0xf]
        %v1691 = vld [vmem:[%s1678 + $0x30] sm:$0xf]
        %v1692 = vld [vmem:[%s1678 + $0x34] sm:$0xf]
        %v1693 = vld [vmem:[%s1678 + $0x38] sm:$0xf]
        %v1694 = vld [vmem:[%s1678 + $0x3c] sm:$0xf]
        %v1695 = vld [vmem:[%s1678 + $0x40] sm:$0xf]
        %v1696 = vld [vmem:[%s1678 + $0x44] sm:$0xf]
        %v1697 = vld [vmem:[%s1678 + $0x48] sm:$0xf]
        %v1698 = vld [vmem:[%s1678 + $0x4c] sm:$0xf]
        %v1699 = vld [vmem:[%s1678 + $0x50] sm:$0xf]
        %v1700 = vld [vmem:[%s1678 + $0x54] sm:$0xf]
        %v1701 = vld [vmem:[%s1678 + $0x58] sm:$0xf]
        %v1702 = vld [vmem:[%s1678 + $0x5c] sm:$0xf]
        %v1703 = vld [vmem:[%s1678 + $0x60] sm:$0xf]
        %v1704 = vld [vmem:[%s1678 + $0x64] sm:$0xf]
        %v1705 = vld [vmem:[%s1678 + $0x68] sm:$0xf]
        %v1706 = vld [vmem:[%s1678 + $0x6c] sm:$0xf]
        %v1707 = vld [vmem:[%s1678 + $0x70] sm:$0xf]
        %v1708 = vld [vmem:[%s1678 + $0x74] sm:$0xf]
        %v1709 = vld [vmem:[%s1678 + $0x78] sm:$0xf]
        %v1710 = vld [vmem:[%s1678 + $0x7c] sm:$0xf]
        %v1711 = vpack.c.b16 %v1519, %v1519
        %v1712 = vpack.c.b16 %v1520, %v1520
        %v1747 = vunpack.c.l.b16 %v1679
        %v1748 = vunpack.c.l.b16 %v1680
        %v1749 = vunpack.c.l.b16 %v1681
        %v1750 = vunpack.c.l.b16 %v1682
        %v1751 = vunpack.c.l.b16 %v1683
        %v1752 = vunpack.c.l.b16 %v1684
        %v1753 = vunpack.c.l.b16 %v1685
        %v1754 = vunpack.c.l.b16 %v1686
        %v1755 = vunpack.c.l.b16 %v1687
        %v1756 = vunpack.c.l.b16 %v1688
        %v1757 = vunpack.c.l.b16 %v1689
        %v1758 = vunpack.c.l.b16 %v1690
        %v1759 = vunpack.c.l.b16 %v1691
        %v1760 = vunpack.c.l.b16 %v1692
        %v1761 = vunpack.c.l.b16 %v1693
        %v1762 = vunpack.c.l.b16 %v1694
        %v1763 = vunpack.c.l.b16 %v1695
        %v1764 = vunpack.c.l.b16 %v1696
        %v1765 = vunpack.c.l.b16 %v1697
        %v1766 = vunpack.c.l.b16 %v1698
        %v1767 = vunpack.c.l.b16 %v1699
        %v1768 = vunpack.c.l.b16 %v1700
        %v1769 = vunpack.c.l.b16 %v1701
        %v1770 = vunpack.c.l.b16 %v1702
        %v1771 = vunpack.c.l.b16 %v1703
        %v1772 = vunpack.c.l.b16 %v1704
        %v1773 = vunpack.c.l.b16 %v1705
        %v1774 = vunpack.c.l.b16 %v1706
        %v1775 = vunpack.c.l.b16 %v1707
        %v1776 = vunpack.c.l.b16 %v1708
        %v1777 = vunpack.c.l.b16 %v1709
        %v1778 = vunpack.c.l.b16 %v1710
        %v1779 = vpack.c.b16 %v1748, %v1747
        %v1780 = vpack.c.b16 %v1750, %v1749
        %v1781 = vpack.c.b16 %v1752, %v1751
        %v1782 = vpack.c.b16 %v1754, %v1753
        %v1783 = vpack.c.b16 %v1756, %v1755
        %v1784 = vpack.c.b16 %v1758, %v1757
        %v1785 = vpack.c.b16 %v1760, %v1759
        %v1786 = vpack.c.b16 %v1762, %v1761
        %v1787 = vpack.c.b16 %v1764, %v1763
        %v1788 = vpack.c.b16 %v1766, %v1765
        %v1789 = vpack.c.b16 %v1768, %v1767
        %v1790 = vpack.c.b16 %v1770, %v1769
        %v1791 = vpack.c.b16 %v1772, %v1771
        %v1792 = vpack.c.b16 %v1774, %v1773
        %v1793 = vpack.c.b16 %v1776, %v1775
        %v1794 = vpack.c.b16 %v1778, %v1777
        %1811 = vmatprep.subr.bf16.mxu0 0
        %1812 = vmatpush1.bf16.msra.mxu0 %v1786
        %1813 = vmatprep.subr.bf16.mxu0 0
        %1814 = vmatpush1.bf16.msra.mxu0 %v1785
        %1815 = vmatprep.subr.bf16.mxu0 0
        %1816 = vmatpush1.bf16.msra.mxu0 %v1784
        %1817 = vmatprep.subr.bf16.mxu0 0
        %1818 = vmatpush1.bf16.msra.mxu0 %v1783
        %1819 = vmatprep.subr.bf16.mxu0 0
        %1820 = vmatpush1.bf16.msra.mxu0 %v1782
        %1821 = vmatprep.subr.bf16.mxu0 0
        %1822 = vmatpush1.bf16.msra.mxu0 %v1781
        %1823 = vmatprep.subr.bf16.mxu0 0
        %1824 = vmatpush1.bf16.msra.mxu0 %v1780
        %1825 = vmatprep.subr.bf16.mxu0 0
        %1826 = vmatpush1.bf16.msra.mxu0 %v1779
        %1827 = vmatprep.subr.bf16.mxu0 0
        %1828 = vmatpush2.bf16.msra.mxu0 %v1794
        %1829 = vmatprep.subr.bf16.mxu0 0
        %1830 = vmatpush2.bf16.msra.mxu0 %v1793
        %1831 = vmatprep.subr.bf16.mxu0 0
        %1832 = vmatpush2.bf16.msra.mxu0 %v1792
        %1833 = vmatprep.subr.bf16.mxu0 0
        %1834 = vmatpush2.bf16.msra.mxu0 %v1791
        %1835 = vmatprep.subr.bf16.mxu0 0
        %1836 = vmatpush2.bf16.msra.mxu0 %v1790
        %1837 = vmatprep.subr.bf16.mxu0 0
        %1838 = vmatpush2.bf16.msra.mxu0 %v1789
        %1839 = vmatprep.subr.bf16.mxu0 0
        %1840 = vmatpush2.bf16.msra.mxu0 %v1788
        %1841 = vmatprep.subr.bf16.mxu0 0
        %1842 = vmatpush2.bf16.msra.mxu0 %v1787
        %1843 = vmatprep.mubr.bf16.mxu0 %v1712
        %1844 = vmatmul.mubr.bf16.gmra.mxu0 %v1711
        %v1845 = vpop.f32.mrf.mxu0
        %v1846 = vadd.f32 0.0, %v1845
        %v1847 = vpop.f32.mrf.mxu0
        %v1848 = vpop.f32.mrf.mxu0
        %v1849 = vpop.f32.mrf.mxu0
        %1850 = vdwg.mxu0
        %v1851 = vadd.f32 %v1677, %v1846
        %v1852 = vld [vmem:[%s2] sm:$0x1]
        %v1854 = vlaneseq
        %v1855 = vshrl.u32 %v1854, 7
        %v1856 = vsub.s32 0, %v1855
        %v1857 = vrot.slane %v1852, %v1856
        %v1859 = vadd.f32 %v1851, %v1857
        %v1860 = vmax.f32 %v1859, 0.0
        %v1861 = vpack.c.bf16 %v1860, %v1860
        %vm1862 = vcmask 60416
        %1863 = vst.msk [vmem:[%s183] sm:$0xf] %vm1862, %v1861
        %p1864 = scmp.lt.s32.totalorder %s15, 1
        %s1865 = scalar_select %p1864, %s15, 1
        %s1866 = smul.addr %s1865, 4
        %s1867 = scalar_lea.vmem %s3, %s1866
        // Predicated region
        $region37: #{_lambda_.9} parent=31 // pred_check
          %p1868 = pneg %p101
        $region38: #{_lambda_.9} parent=31 // pred_check_branch
          %1870 = sbr.rel (%p1868) target = $region40
        $region39: #{_lambda_.9} parent=31 // pred_region
          _
        $region40: #{_lambda_.9} parent=31 // pred_fallthru
          _
      $region32: #{_lambda_.9} parent=5 // pred_fallthru
        _
      %p1871 = scmp.le.s32.totalorder 2, %s10
      // Predicated region
      $region41: #{_lambda_.9} parent=5 // pred_check
        %p1872 = pneg %p1871
      $region42: #{_lambda_.9} parent=5 // pred_check_branch
        %1874 = sbr.rel (%p1872) target = $region44
      $region43: #{_lambda_.9} parent=5 // pred_region
        %s1875 = ssub.s32 %s10, 2
        // Predicated region
        $region45: #{_lambda_.9} parent=43 // pred_check
          %p1876 = pneg %p107
        $region46: #{_lambda_.9} parent=43 // pred_check_branch
          %1878 = sbr.rel (%p1876) target = $region48
        $region47: #{_lambda_.9} parent=43 // pred_region
          %p1879 = scmp.lt.s32.totalorder %s16, 1
          %s1880 = scalar_select %p1879, %s16, 1
          %s1881 = smul.addr %s1880, 4
          %s1882 = scalar_lea.vmem %s3, %s1881
        $region48: #{_lambda_.9} parent=43 // pred_fallthru
          _
      $region44: #{_lambda_.9} parent=5 // pred_fallthru
        _
    $region6: #{_lambda_.9} parent=1 // loop_footer
      %s14 = sadd.s32 1, %s10
    $region7: #{_lambda_.9} parent=1 // loop_footer_branch
      %9 = sbr.rel target = $region3
    $region8: #{_lambda_.9} parent=1 // loop_exit
      _
    %1883 = vsyncpa [#allocation3], 1
    %s1884 = scalar_lea.sflag [#allocation3], 1
    %1885 = vsyncpa %s1884, 1

// kernel: _lambda_.17
$region0: #{_lambda_.17}
  #allocation0 [shape = 'u32[]', space=smem, size = 0x4, offset = 0x4, fixed_abs, tag = 'smem constant byte address 0x4 - core index']
  #allocation1 [shape = 'u32[144,128]{1,0:T(1,128)}', space=vmem, size = 0x12000, scoped, tag = 'internal scratch']
  %s0 = inlined_call_operand.vmem [shape: bf16[16,32], index: 0, kind: input, shape index: {}]
  %s1 = inlined_call_operand.vmem [shape: bf16[32,128], index: 1, kind: input, shape index: {}]
  %s2 = inlined_call_operand.vmem [shape: f32[1,128], index: 2, kind: input, shape index: {}]
  %s3 = inlined_call_operand.vmem [shape: f32[16,128], index: 3, kind: output, shape index: {}]
  %s4 = sld [smem:[#allocation0]]
  $region22: #{_lambda_.17} parent=0
    _
  %s6 = ssub.s32 1, %s4
  %s7 = scalar_select 0, %s6, %s4
  // Predicated region
  $region2: #{_lambda_.17} parent=0 // pred_check
    _
  $region3: #{_lambda_.17} parent=0 // pred_check_branch
    %9 = sbr.rel (0) target = $region5
  $region4: #{_lambda_.17} parent=0 // pred_region
    _
  $region5: #{_lambda_.17} parent=0 // pred_fallthru
    _
  // Predicated region
  $region6: #{_lambda_.17} parent=0 // pred_check
    _
  $region7: #{_lambda_.17} parent=0 // pred_check_branch
    %11 = sbr.rel (0) target = $region9
  $region8: #{_lambda_.17} parent=0 // pred_region
    _
  $region9: #{_lambda_.17} parent=0 // pred_fallthru
    _
  // Predicated region
  $region10: #{_lambda_.17} parent=0 // pred_check
    _
  $region11: #{_lambda_.17} parent=0 // pred_check_branch
    %13 = sbr.rel (0) target = $region13
  $region12: #{_lambda_.17} parent=0 // pred_region
    _
  $region13: #{_lambda_.17} parent=0 // pred_fallthru
    _
  %v15 = vld [vmem:[%s0] sm:$0xf]
  %v16 = vld [vmem:[%s0 + $0x4] sm:$0xf]
  %v17 = vld [vmem:[%s1] sm:$0xf]
  %v18 = vld [vmem:[%s1 + $0x4] sm:$0xf]
  %v19 = vld [vmem:[%s1 + $0x8] sm:$0xf]
  %v20 = vld [vmem:[%s1 + $0xc] sm:$0xf]
  %v21 = vld [vmem:[%s2] sm:$0x1]
  %v23 = vlaneseq
  %v24 = vshrl.u32 %v23, 7
  %v25 = vsub.s32 0, %v24
  %v26 = vrot.slane %v21, %v25
  %v30 = vunpack.c.l.b16 %v15
  %v31 = vunpack.c.l.b16 %v16
  %v32 = vpack.c.b16 %v31, %v30
  %v37 = vunpack.c.l.b16 %v17
  %v38 = vunpack.c.l.b16 %v18
  %v39 = vunpack.c.l.b16 %v19
  %v40 = vunpack.c.l.b16 %v20
  %v41 = vpack.c.b16 %v38, %v37
  %v42 = vpack.c.b16 %v40, %v39
  %vm45 = vcmask 261120
  %v47 = vsel %vm45, %v32, 0
  %49 = vmatprep.subr.bf16.mxu0 0
  %50 = vmatpush1.bf16.msra.mxu0 0
  %51 = vmatprep.subr.bf16.mxu0 0
  %52 = vmatpush1.bf16.msra.mxu0 0
  %53 = vmatprep.subr.bf16.mxu0 0
  %54 = vmatpush1.bf16.msra.mxu0 0
  %55 = vmatprep.subr.bf16.mxu0 0
  %56 = vmatpush1.bf16.msra.mxu0 0
  %57 = vmatprep.subr.bf16.mxu0 0
  %58 = vmatpush1.bf16.msra.mxu0 0
  %59 = vmatprep.subr.bf16.mxu0 0
  %60 = vmatpush1.bf16.msra.mxu0 0
  %61 = vmatprep.subr.bf16.mxu0 0
  %62 = vmatpush1.bf16.msra.mxu0 %v42
  %63 = vmatprep.subr.bf16.mxu0 0
  %64 = vmatpush1.bf16.msra.mxu0 %v41
  %65 = vmatprep.subr.bf16.mxu0 0
  %66 = vmatpush2.bf16.msra.mxu0 0
  %67 = vmatprep.subr.bf16.mxu0 0
  %68 = vmatpush2.bf16.msra.mxu0 0
  %69 = vmatprep.subr.bf16.mxu0 0
  %70 = vmatpush2.bf16.msra.mxu0 0
  %71 = vmatprep.subr.bf16.mxu0 0
  %72 = vmatpush2.bf16.msra.mxu0 0
  %73 = vmatprep.subr.bf16.mxu0 0
  %74 = vmatpush2.bf16.msra.mxu0 0
  %75 = vmatprep.subr.bf16.mxu0 0
  %76 = vmatpush2.bf16.msra.mxu0 0
  %77 = vmatprep.subr.bf16.mxu0 0
  %78 = vmatpush2.bf16.msra.mxu0 0
  %79 = vmatprep.subr.bf16.mxu0 0
  %80 = vmatpush2.bf16.msra.mxu0 0
  %81 = vmatprep.mubr.bf16.mxu0 0
  %82 = vmatmul.mubr.bf16.gmra.mxu0 %v47
  %v83 = vpop.f32.mrf.mxu0
  %v84 = vadd.f32 %v26, %v83
  %v85 = vpop.f32.mrf.mxu0
  %v86 = vpop.f32.mrf.mxu0
  %v87 = vadd.f32 %v26, %v86
  %v88 = vpop.f32.mrf.mxu0
  %89 = vdwg.mxu0
  %90 = vmax.xlane.f32.xlu0 %v84
  %v91 = vpop.xlane.xlu0 %90
  %92 = vmax.xlane.f32.xlu0 %v87
  %v93 = vpop.xlane.xlu0 %92
  %v94 = vsub.f32 %v84, %v91
  %v95 = vsub.f32 %v87, %v93
  %v96 = vmul.f32 %v94, 1.442695
  %v97 = vpow.pop %v96
  %v98 = vmul.f32 %v95, 1.442695
  %v99 = vpow.pop %v98
  %100 = vadd.xlane.f32.xlu0 %v97
  %v101 = vpop.xlane.xlu0 %100
  %102 = vadd.xlane.f32.xlu0 %v99
  %v103 = vpop.xlane.xlu0 %102
  %v104 = vrcp.pop %v101
  %v105 = vrcp.pop %v103
  %v106 = vmul.f32 %v97, %v104
  %v107 = vmul.f32 %v99, %v105
  %108 = vst [vmem:[%s3] sm:$0xff] %v106
  %109 = vst [vmem:[%s3 + $0x8] sm:$0xff] %v107
  // Predicated region
  $region14: #{_lambda_.17} parent=0 // pred_check
    _
  $region15: #{_lambda_.17} parent=0 // pred_check_branch
    %111 = sbr.rel (0) target = $region17
  $region16: #{_lambda_.17} parent=0 // pred_region
    _
  $region17: #{_lambda_.17} parent=0 // pred_fallthru
    _
  // Predicated region
  $region18: #{_lambda_.17} parent=0 // pred_check
    _
  $region19: #{_lambda_.17} parent=0 // pred_check_branch
    %113 = sbr.rel (0) target = $region21
  $region20: #{_lambda_.17} parent=0 // pred_region
    _
  $region21: #{_lambda_.17} parent=0 // pred_fallthru
    _

// kernel: _lambda_.13
$region0: #{_lambda_.13}
  #allocation0 [shape = 'u32[]', space=smem, size = 0x4, offset = 0x4, fixed_abs, tag = 'smem constant byte address 0x4 - core index']
  #allocation1 [shape = 'u32[144,128]{1,0:T(1,128)}', space=vmem, size = 0x12000, scoped, tag = 'internal scratch']
  #allocation2 [shape = 'f32[2,16]{1,0:T(2,128)}', space=vmem, size = 0x400, scoped, tag = 'scratch operand']
  #allocation3 [shape = 'f32[2,16]{1,0:T(2,128)}', space=vmem, size = 0x400, scoped, tag = 'scratch operand']
  %s0 = inlined_call_operand.vmem [shape: bf16[16,48], index: 0, kind: input, shape index: {}]
  %s1 = inlined_call_operand.vmem [shape: bf16[16,48], index: 1, kind: input, shape index: {}]
  %s2 = inlined_call_operand.vmem [shape: bf16[16,48], index: 2, kind: input, shape index: {}]
  %s3 = inlined_call_operand.vmem [shape: bf16[16,48], index: 3, kind: input, shape index: {}]
  %s4 = inlined_call_operand.vmem [shape: f32[1,48], index: 4, kind: input, shape index: {}]
  %s5 = inlined_call_operand.vmem [shape: f32[1,48], index: 5, kind: input, shape index: {}]
  %s6 = inlined_call_operand.vmem [shape: bf16[16,16], index: 6, kind: output, shape index: {0}]
  %s7 = inlined_call_operand.vmem [shape: bf16[16,16], index: 7, kind: output, shape index: {1}]
  %8 = xla_tuple %s6, %s7
  %s9 = sld [smem:[#allocation0]]
  $region46: #{_lambda_.13} parent=0
    _
  %s11 = ssub.s32 1, %s9
  %s12 = scalar_select 0, %s11, %s9
  // Predicated region
  $region2: #{_lambda_.13} parent=0 // pred_check
    _
  $region3: #{_lambda_.13} parent=0 // pred_check_branch
    %14 = sbr.rel (0) target = $region5
  $region4: #{_lambda_.13} parent=0 // pred_region
    _
  $region5: #{_lambda_.13} parent=0 // pred_fallthru
    _
  // Predicated region
  $region6: #{_lambda_.13} parent=0 // pred_check
    _
  $region7: #{_lambda_.13} parent=0 // pred_check_branch
    %16 = sbr.rel (0) target = $region9
  $region8: #{_lambda_.13} parent=0 // pred_region
    %s17 = ssub.s32 0, 0
    %s18 = smul.u32 2, %s17
    %p19 = scmp.lt.s32.totalorder %s18, 1
    %s20 = scalar_select %p19, %s18, 1
    %s21 = smul.addr %s20, 4
    %s22 = scalar_lea.vmem %s1, %s21
    %s23 = ssub.s32 0, 0
    %s24 = smul.u32 2, %s23
  $region9: #{_lambda_.13} parent=0 // pred_fallthru
    _
  // Predicated region
  $region10: #{_lambda_.13} parent=0 // pred_check
    _
  $region11: #{_lambda_.13} parent=0 // pred_check_branch
    %26 = sbr.rel (0) target = $region13
  $region12: #{_lambda_.13} parent=0 // pred_region
    _
  $region13: #{_lambda_.13} parent=0 // pred_fallthru
    _
  // Predicated region
  $region14: #{_lambda_.13} parent=0 // pred_check
    _
  $region15: #{_lambda_.13} parent=0 // pred_check_branch
    %28 = sbr.rel (0) target = $region17
  $region16: #{_lambda_.13} parent=0 // pred_region
    _
  $region17: #{_lambda_.13} parent=0 // pred_fallthru
    _
  // Predicated region
  $region18: #{_lambda_.13} parent=0 // pred_check
    _
  $region19: #{_lambda_.13} parent=0 // pred_check_branch
    %30 = sbr.rel (0) target = $region21
  $region20: #{_lambda_.13} parent=0 // pred_region
    _
  $region21: #{_lambda_.13} parent=0 // pred_fallthru
    _
  // Predicated region
  $region22: #{_lambda_.13} parent=0 // pred_check
    _
  $region23: #{_lambda_.13} parent=0 // pred_check_branch
    %32 = sbr.rel (0) target = $region25
  $region24: #{_lambda_.13} parent=0 // pred_region
    _
  $region25: #{_lambda_.13} parent=0 // pred_fallthru
    _
  %s33 = ssub.s32 0, 0
  %s34 = smul.u32 2, %s33
  %p35 = scmp.lt.s32.totalorder %s34, 1
  %s36 = scalar_select %p35, %s34, 1
  %s37 = smul.addr %s36, 4
  %s38 = scalar_lea.vmem %s1, %s37
  %s39 = ssub.s32 0, 0
  %s40 = smul.u32 2, %s39
  %p41 = scmp.lt.s32.totalorder %s40, 1
  %s42 = scalar_select %p41, %s40, 1
  %s43 = smul.addr %s42, 4
  %s44 = scalar_lea.vmem %s7, %s43
  %s45 = ssub.s32 0, 0
  %s46 = smul.u32 2, %s45
  %p47 = scmp.lt.s32.totalorder %s46, 1
  %s48 = scalar_select %p47, %s46, 1
  %s49 = smul.addr %s48, 4
  %s50 = scalar_lea.vmem %s1, %s49
  %s51 = ssub.s32 0, 0
  %s52 = smul.u32 2, %s51
  %s53 = ssub.s32 0, 0
  %s54 = smul.u32 2, %s53
  %p55 = scmp.lt.s32.totalorder %s54, 1
  %s56 = scalar_select %p55, %s54, 1
  %s57 = smul.addr %s56, 4
  %s58 = scalar_lea.vmem %s7, %s57
  %s59 = ssub.s32 0, 0
  %s60 = smul.u32 2, %s59
  %p62 = scmp.eq.s32.totalorder 0, 0
  // Predicated region
  $region26: #{_lambda_.13} parent=0 // pred_check
    %p63 = pneg %p62
  $region27: #{_lambda_.13} parent=0 // pred_check_branch
    %65 = sbr.rel (%p63) target = $region29
  $region28: #{_lambda_.13} parent=0 // pred_region
    %vm66 = vcmask 123904
    %67 = vst.msk [vmem:[#allocation2] sm:$0x3] %vm66, 0.0
    %68 = vst.msk [vmem:[#allocation3] sm:$0x3] %vm66, 0.0
  $region29: #{_lambda_.13} parent=0 // pred_fallthru
    _
  %v69 = vld [vmem:[%s2] sm:$0xf]
  %v70 = vld [vmem:[%s2 + $0x4] sm:$0xf]
  %v71 = vld [vmem:[%s3] sm:$0xf]
  %v72 = vld [vmem:[%s3 + $0x4] sm:$0xf]
  %v73 = vld [vmem:[%s4] sm:$0x1]
  %v74 = vld [vmem:[%s5] sm:$0x1]
  %v75 = vld [vmem:[#allocation2] sm:$0x3]
  %v76 = vld [vmem:[#allocation3] sm:$0x3]
  %v77 = vld [vmem:[%s0] sm:$0xf]
  %v78 = vld [vmem:[%s0 + $0x4] sm:$0xf]
  %v79 = vld [vmem:[%s50] sm:$0xf]
  %v80 = vld [vmem:[%s50 + $0x4] sm:$0xf]
  %v81 = vpack.c.bf16 %v75, %v75
  %v83 = vlaneseq
  %v84 = vshrl.u32 %v83, 7
  %v85 = vsub.s32 0, %v84
  %v86 = vrot.slane %v73, %v85
  %v90 = vunpack.c.l.b16 %v69
  %v91 = vunpack.c.l.b16 %v70
  %v92 = vpack.c.b16 %v91, %v90
  %vm94 = vcmask 130048
  %v96 = vsel %vm94, %v81, 0
  %98 = vmatprep.subr.bf16.mxu0 0
  %99 = vmatpush1.bf16.msra.mxu0 0
  %100 = vmatprep.subr.bf16.mxu0 0
  %101 = vmatpush1.bf16.msra.mxu0 0
  %102 = vmatprep.subr.bf16.mxu0 0
  %103 = vmatpush1.bf16.msra.mxu0 0
  %104 = vmatprep.subr.bf16.mxu0 0
  %105 = vmatpush1.bf16.msra.mxu0 0
  %106 = vmatprep.subr.bf16.mxu0 0
  %107 = vmatpush1.bf16.msra.mxu0 0
  %108 = vmatprep.subr.bf16.mxu0 0
  %109 = vmatpush1.bf16.msra.mxu0 0
  %110 = vmatprep.subr.bf16.mxu0 0
  %111 = vmatpush1.bf16.msra.mxu0 0
  %112 = vmatprep.subr.bf16.mxu0 0
  %113 = vmatpush1.bf16.msra.mxu0 %v92
  %114 = vmatprep.subr.bf16.mxu0 0
  %115 = vmatpush2.bf16.msra.mxu0 0
  %116 = vmatprep.subr.bf16.mxu0 0
  %117 = vmatpush2.bf16.msra.mxu0 0
  %118 = vmatprep.subr.bf16.mxu0 0
  %119 = vmatpush2.bf16.msra.mxu0 0
  %120 = vmatprep.subr.bf16.mxu0 0
  %121 = vmatpush2.bf16.msra.mxu0 0
  %122 = vmatprep.subr.bf16.mxu0 0
  %123 = vmatpush2.bf16.msra.mxu0 0
  %124 = vmatprep.subr.bf16.mxu0 0
  %125 = vmatpush2.bf16.msra.mxu0 0
  %126 = vmatprep.subr.bf16.mxu0 0
  %127 = vmatpush2.bf16.msra.mxu0 0
  %128 = vmatprep.subr.bf16.mxu0 0
  %129 = vmatpush2.bf16.msra.mxu0 0
  %130 = vmatprep.mubr.bf16.mxu0 0
  %131 = vmatmul.mubr.bf16.gmra.mxu0 %v96
  %v132 = vpop.f32.mrf.mxu0
  %v133 = vadd.f32 %v86, %v132
  %v134 = vpop.f32.mrf.mxu0
  %v135 = vpop.f32.mrf.mxu0
  %v136 = vpop.f32.mrf.mxu0
  %137 = vdwg.mxu0
  %v138 = vunpack.c.l.bf16 %v77
  %v139 = vadd.f32 %v138, %v133
  %v140 = vxor.u32 %v139, 2147483648
  %v141 = vmul.f32 %v140, 1.442695
  %v142 = vpow.pop %v141
  %v143 = vadd.f32 %v142, 1.0
  %v144 = vrcp.pop %v143
  %v145 = vmul.f32 1.0, %v144
  %147 = vrot.lane.b32.xlu0 %v133, 96
  %v148 = vpop.permute.xlu0 %147
  %v150 = vmul.f32 %v145, %v148
  %152 = vrot.lane.b32.xlu0 %v150, 32
  %v153 = vpop.permute.xlu0 %152
  %v155 = vadd.f32 %v138, %v153
  %v156 = vtanh.pop %v155
  %v157 = vsub.f32 1.0, %v145
  %159 = vrot.lane.b32.xlu0 %v156, 112
  %v160 = vpop.permute.xlu0 %159
  %v162 = vmul.f32 %v157, %v160
  %164 = vrot.lane.b32.xlu0 %v75, 16
  %v165 = vpop.permute.xlu0 %164
  %v167 = vmul.f32 %v145, %v165
  %v168 = vadd.f32 %v162, %v167
  %v169 = vpack.c.bf16 %v168, %v168
  %171 = vrot.lane.b32.xlu0 %v169, 112
  %v172 = vpop.permute.xlu0 %171
  %v174 = vsel %vm94, %v172, 0
  %176 = vmatprep.subr.bf16.mxu0 0
  %177 = vmatpush1.bf16.msra.mxu0 0
  %178 = vmatprep.subr.bf16.mxu0 0
  %179 = vmatpush1.bf16.msra.mxu0 0
  %180 = vmatprep.subr.bf16.mxu0 0
  %181 = vmatpush1.bf16.msra.mxu0 0
  %182 = vmatprep.subr.bf16.mxu0 0
  %183 = vmatpush1.bf16.msra.mxu0 0
  %184 = vmatprep.subr.bf16.mxu0 0
  %185 = vmatpush1.bf16.msra.mxu0 0
  %186 = vmatprep.subr.bf16.mxu0 0
  %187 = vmatpush1.bf16.msra.mxu0 0
  %188 = vmatprep.subr.bf16.mxu0 0
  %189 = vmatpush1.bf16.msra.mxu0 0
  %190 = vmatprep.subr.bf16.mxu0 0
  %191 = vmatpush1.bf16.msra.mxu0 %v92
  %192 = vmatprep.subr.bf16.mxu0 0
  %193 = vmatpush2.bf16.msra.mxu0 0
  %194 = vmatprep.subr.bf16.mxu0 0
  %195 = vmatpush2.bf16.msra.mxu0 0
  %196 = vmatprep.subr.bf16.mxu0 0
  %197 = vmatpush2.bf16.msra.mxu0 0
  %198 = vmatprep.subr.bf16.mxu0 0
  %199 = vmatpush2.bf16.msra.mxu0 0
  %200 = vmatprep.subr.bf16.mxu0 0
  %201 = vmatpush2.bf16.msra.mxu0 0
  %202 = vmatprep.subr.bf16.mxu0 0
  %203 = vmatpush2.bf16.msra.mxu0 0
  %204 = vmatprep.subr.bf16.mxu0 0
  %205 = vmatpush2.bf16.msra.mxu0 0
  %206 = vmatprep.subr.bf16.mxu0 0
  %207 = vmatpush2.bf16.msra.mxu0 0
  %208 = vmatprep.mubr.bf16.mxu0 0
  %209 = vmatmul.mubr.bf16.gmra.mxu0 %v174
  %v210 = vpop.f32.mrf.mxu0
  %v211 = vadd.f32 %v86, %v210
  %v212 = vpop.f32.mrf.mxu0
  %v213 = vpop.f32.mrf.mxu0
  %v214 = vpop.f32.mrf.mxu0
  %215 = vdwg.mxu0
  %v217 = vrot.slane %v211, 6
  %v219 = vadd.f32 %v138, %v217
  %v220 = vxor.u32 %v219, 2147483648
  %v221 = vmul.f32 %v220, 1.442695
  %v222 = vpow.pop %v221
  %v223 = vadd.f32 %v222, 1.0
  %v224 = vrcp.pop %v223
  %v225 = vmul.f32 1.0, %v224
  %226 = vrot.lane.b32.xlu0 %v217, 96
  %v227 = vpop.permute.xlu0 %226
  %v229 = vmul.f32 %v225, %v227
  %231 = vrot.lane.b32.xlu0 %v229, 32
  %v232 = vpop.permute.xlu0 %231
  %v234 = vadd.f32 %v138, %v232
  %v235 = vtanh.pop %v234
  %v236 = vsub.f32 1.0, %v225
  %238 = vrot.lane.b32.xlu0 %v235, 112
  %v239 = vpop.permute.xlu0 %238
  %v241 = vmul.f32 %v236, %v239
  %v243 = vrot.slane %v168, 6
  %v245 = vmul.f32 %v225, %v243
  %v246 = vadd.f32 %v241, %v245
  %v247 = vpack.c.bf16 %v246, %v246
  %v249 = vrot.slane %v247, 1
  %250 = vrot.lane.b32.xlu0 %v249, 112
  %v251 = vpop.permute.xlu0 %250
  %v253 = vsel %vm94, %v251, 0
  %255 = vmatprep.subr.bf16.mxu0 0
  %256 = vmatpush1.bf16.msra.mxu0 0
  %257 = vmatprep.subr.bf16.mxu0 0
  %258 = vmatpush1.bf16.msra.mxu0 0
  %259 = vmatprep.subr.bf16.mxu0 0
  %260 = vmatpush1.bf16.msra.mxu0 0
  %261 = vmatprep.subr.bf16.mxu0 0
  %262 = vmatpush1.bf16.msra.mxu0 0
  %263 = vmatprep.subr.bf16.mxu0 0
  %264 = vmatpush1.bf16.msra.mxu0 0
  %265 = vmatprep.subr.bf16.mxu0 0
  %266 = vmatpush1.bf16.msra.mxu0 0
  %267 = vmatprep.subr.bf16.mxu0 0
  %268 = vmatpush1.bf16.msra.mxu0 0
  %269 = vmatprep.subr.bf16.mxu0 0
  %270 = vmatpush1.bf16.msra.mxu0 %v92
  %271 = vmatprep.subr.bf16.mxu0 0
  %272 = vmatpush2.bf16.msra.mxu0 0
  %273 = vmatprep.subr.bf16.mxu0 0
  %274 = vmatpush2.bf16.msra.mxu0 0
  %275 = vmatprep.subr.bf16.mxu0 0
  %276 = vmatpush2.bf16.msra.mxu0 0
  %277 = vmatprep.subr.bf16.mxu0 0
  %278 = vmatpush2.bf16.msra.mxu0 0
  %279 = vmatprep.subr.bf16.mxu0 0
  %280 = vmatpush2.bf16.msra.mxu0 0
  %281 = vmatprep.subr.bf16.mxu0 0
  %282 = vmatpush2.bf16.msra.mxu0 0
  %283 = vmatprep.subr.bf16.mxu0 0
  %284 = vmatpush2.bf16.msra.mxu0 0
  %285 = vmatprep.subr.bf16.mxu0 0
  %286 = vmatpush2.bf16.msra.mxu0 0
  %287 = vmatprep.mubr.bf16.mxu0 0
  %288 = vmatmul.mubr.bf16.gmra.mxu0 %v253
  %v289 = vpop.f32.mrf.mxu0
  %v290 = vadd.f32 %v86, %v289
  %v291 = vpop.f32.mrf.mxu0
  %v292 = vpop.f32.mrf.mxu0
  %v293 = vpop.f32.mrf.mxu0
  %294 = vdwg.mxu0
  %v296 = vrot.slane %v290, 4
  %v298 = vadd.f32 %v138, %v296
  %v299 = vxor.u32 %v298, 2147483648
  %v300 = vmul.f32 %v299, 1.442695
  %v301 = vpow.pop %v300
  %v302 = vadd.f32 %v301, 1.0
  %v303 = vrcp.pop %v302
  %v304 = vmul.f32 1.0, %v303
  %305 = vrot.lane.b32.xlu0 %v296, 96
  %v306 = vpop.permute.xlu0 %305
  %v308 = vmul.f32 %v304, %v306
  %310 = vrot.lane.b32.xlu0 %v308, 32
  %v311 = vpop.permute.xlu0 %310
  %v313 = vadd.f32 %v138, %v311
  %v314 = vtanh.pop %v313
  %v315 = vsub.f32 1.0, %v304
  %317 = vrot.lane.b32.xlu0 %v314, 112
  %v318 = vpop.permute.xlu0 %317
  %v320 = vmul.f32 %v315, %v318
  %v322 = vrot.slane %v246, 6
  %v324 = vmul.f32 %v304, %v322
  %v325 = vadd.f32 %v320, %v324
  %v326 = vpack.c.bf16 %v325, %v325
  %v328 = vrot.slane %v326, 2
  %329 = vrot.lane.b32.xlu0 %v328, 112
  %v330 = vpop.permute.xlu0 %329
  %v332 = vsel %vm94, %v330, 0
  %334 = vmatprep.subr.bf16.mxu0 0
  %335 = vmatpush1.bf16.msra.mxu0 0
  %336 = vmatprep.subr.bf16.mxu0 0
  %337 = vmatpush1.bf16.msra.mxu0 0
  %338 = vmatprep.subr.bf16.mxu0 0
  %339 = vmatpush1.bf16.msra.mxu0 0
  %340 = vmatprep.subr.bf16.mxu0 0
  %341 = vmatpush1.bf16.msra.mxu0 0
  %342 = vmatprep.subr.bf16.mxu0 0
  %343 = vmatpush1.bf16.msra.mxu0 0
  %344 = vmatprep.subr.bf16.mxu0 0
  %345 = vmatpush1.bf16.msra.mxu0 0
  %346 = vmatprep.subr.bf16.mxu0 0
  %347 = vmatpush1.bf16.msra.mxu0 0
  %348 = vmatprep.subr.bf16.mxu0 0
  %349 = vmatpush1.bf16.msra.mxu0 %v92
  %350 = vmatprep.subr.bf16.mxu0 0
  %351 = vmatpush2.bf16.msra.mxu0 0
  %352 = vmatprep.subr.bf16.mxu0 0
  %353 = vmatpush2.bf16.msra.mxu0 0
  %354 = vmatprep.subr.bf16.mxu0 0
  %355 = vmatpush2.bf16.msra.mxu0 0
  %356 = vmatprep.subr.bf16.mxu0 0
  %357 = vmatpush2.bf16.msra.mxu0 0
  %358 = vmatprep.subr.bf16.mxu0 0
  %359 = vmatpush2.bf16.msra.mxu0 0
  %360 = vmatprep.subr.bf16.mxu0 0
  %361 = vmatpush2.bf16.msra.mxu0 0
  %362 = vmatprep.subr.bf16.mxu0 0
  %363 = vmatpush2.bf16.msra.mxu0 0
  %364 = vmatprep.subr.bf16.mxu0 0
  %365 = vmatpush2.bf16.msra.mxu0 0
  %366 = vmatprep.mubr.bf16.mxu0 0
  %367 = vmatmul.mubr.bf16.gmra.mxu0 %v332
  %v368 = vpop.f32.mrf.mxu0
  %v369 = vadd.f32 %v86, %v368
  %v370 = vpop.f32.mrf.mxu0
  %v371 = vpop.f32.mrf.mxu0
  %v372 = vpop.f32.mrf.mxu0
  %373 = vdwg.mxu0
  %v375 = vrot.slane %v369, 2
  %v377 = vadd.f32 %v138, %v375
  %v378 = vxor.u32 %v377, 2147483648
  %v379 = vmul.f32 %v378, 1.442695
  %v380 = vpow.pop %v379
  %v381 = vadd.f32 %v380, 1.0
  %v382 = vrcp.pop %v381
  %v383 = vmul.f32 1.0, %v382
  %384 = vrot.lane.b32.xlu0 %v375, 96
  %v385 = vpop.permute.xlu0 %384
  %v387 = vmul.f32 %v383, %v385
  %389 = vrot.lane.b32.xlu0 %v387, 32
  %v390 = vpop.permute.xlu0 %389
  %v392 = vadd.f32 %v138, %v390
  %v393 = vtanh.pop %v392
  %v394 = vsub.f32 1.0, %v383
  %396 = vrot.lane.b32.xlu0 %v393, 112
  %v397 = vpop.permute.xlu0 %396
  %v399 = vmul.f32 %v394, %v397
  %v401 = vrot.slane %v325, 6
  %v403 = vmul.f32 %v383, %v401
  %v404 = vadd.f32 %v399, %v403
  %v405 = vpack.c.bf16 %v404, %v404
  %v407 = vrot.slane %v405, 3
  %408 = vrot.lane.b32.xlu0 %v407, 112
  %v409 = vpop.permute.xlu0 %408
  %v411 = vsel %vm94, %v409, 0
  %413 = vmatprep.subr.bf16.mxu0 0
  %414 = vmatpush1.bf16.msra.mxu0 0
  %415 = vmatprep.subr.bf16.mxu0 0
  %416 = vmatpush1.bf16.msra.mxu0 0
  %417 = vmatprep.subr.bf16.mxu0 0
  %418 = vmatpush1.bf16.msra.mxu0 0
  %419 = vmatprep.subr.bf16.mxu0 0
  %420 = vmatpush1.bf16.msra.mxu0 0
  %421 = vmatprep.subr.bf16.mxu0 0
  %422 = vmatpush1.bf16.msra.mxu0 0
  %423 = vmatprep.subr.bf16.mxu0 0
  %424 = vmatpush1.bf16.msra.mxu0 0
  %425 = vmatprep.subr.bf16.mxu0 0
  %426 = vmatpush1.bf16.msra.mxu0 0
  %427 = vmatprep.subr.bf16.mxu0 0
  %428 = vmatpush1.bf16.msra.mxu0 %v92
  %429 = vmatprep.subr.bf16.mxu0 0
  %430 = vmatpush2.bf16.msra.mxu0 0
  %431 = vmatprep.subr.bf16.mxu0 0
  %432 = vmatpush2.bf16.msra.mxu0 0
  %433 = vmatprep.subr.bf16.mxu0 0
  %434 = vmatpush2.bf16.msra.mxu0 0
  %435 = vmatprep.subr.bf16.mxu0 0
  %436 = vmatpush2.bf16.msra.mxu0 0
  %437 = vmatprep.subr.bf16.mxu0 0
  %438 = vmatpush2.bf16.msra.mxu0 0
  %439 = vmatprep.subr.bf16.mxu0 0
  %440 = vmatpush2.bf16.msra.mxu0 0
  %441 = vmatprep.subr.bf16.mxu0 0
  %442 = vmatpush2.bf16.msra.mxu0 0
  %443 = vmatprep.subr.bf16.mxu0 0
  %444 = vmatpush2.bf16.msra.mxu0 0
  %445 = vmatprep.mubr.bf16.mxu0 0
  %446 = vmatmul.mubr.bf16.gmra.mxu0 %v411
  %v447 = vpop.f32.mrf.mxu0
  %v448 = vadd.f32 %v86, %v447
  %v449 = vpop.f32.mrf.mxu0
  %v450 = vpop.f32.mrf.mxu0
  %v451 = vpop.f32.mrf.mxu0
  %452 = vdwg.mxu0
  %v453 = vunpack.c.l.bf16 %v78
  %v454 = vadd.f32 %v453, %v448
  %v455 = vxor.u32 %v454, 2147483648
  %v456 = vmul.f32 %v455, 1.442695
  %v457 = vpow.pop %v456
  %v458 = vadd.f32 %v457, 1.0
  %v459 = vrcp.pop %v458
  %v460 = vmul.f32 1.0, %v459
  %462 = vrot.lane.b32.xlu0 %v448, 96
  %v463 = vpop.permute.xlu0 %462
  %v465 = vmul.f32 %v460, %v463
  %467 = vrot.lane.b32.xlu0 %v465, 32
  %v468 = vpop.permute.xlu0 %467
  %v470 = vadd.f32 %v453, %v468
  %v471 = vtanh.pop %v470
  %v472 = vsub.f32 1.0, %v460
  %474 = vrot.lane.b32.xlu0 %v471, 112
  %v475 = vpop.permute.xlu0 %474
  %v477 = vmul.f32 %v472, %v475
  %v479 = vrot.slane %v404, 6
  %v481 = vmul.f32 %v460, %v479
  %v482 = vadd.f32 %v477, %v481
  %v483 = vpack.c.bf16 %v482, %v482
  %485 = vrot.lane.b32.xlu0 %v483, 112
  %v486 = vpop.permute.xlu0 %485
  %v488 = vsel %vm94, %v486, 0
  %490 = vmatprep.subr.bf16.mxu0 0
  %491 = vmatpush1.bf16.msra.mxu0 0
  %492 = vmatprep.subr.bf16.mxu0 0
  %493 = vmatpush1.bf16.msra.mxu0 0
  %494 = vmatprep.subr.bf16.mxu0 0
  %495 = vmatpush1.bf16.msra.mxu0 0
  %496 = vmatprep.subr.bf16.mxu0 0
  %497 = vmatpush1.bf16.msra.mxu0 0
  %498 = vmatprep.subr.bf16.mxu0 0
  %499 = vmatpush1.bf16.msra.mxu0 0
  %500 = vmatprep.subr.bf16.mxu0 0
  %501 = vmatpush1.bf16.msra.mxu0 0
  %502 = vmatprep.subr.bf16.mxu0 0
  %503 = vmatpush1.bf16.msra.mxu0 0
  %504 = vmatprep.subr.bf16.mxu0 0
  %505 = vmatpush1.bf16.msra.mxu0 %v92
  %506 = vmatprep.subr.bf16.mxu0 0
  %507 = vmatpush2.bf16.msra.mxu0 0
  %508 = vmatprep.subr.bf16.mxu0 0
  %509 = vmatpush2.bf16.msra.mxu0 0
  %510 = vmatprep.subr.bf16.mxu0 0
  %511 = vmatpush2.bf16.msra.mxu0 0
  %512 = vmatprep.subr.bf16.mxu0 0
  %513 = vmatpush2.bf16.msra.mxu0 0
  %514 = vmatprep.subr.bf16.mxu0 0
  %515 = vmatpush2.bf16.msra.mxu0 0
  %516 = vmatprep.subr.bf16.mxu0 0
  %517 = vmatpush2.bf16.msra.mxu0 0
  %518 = vmatprep.subr.bf16.mxu0 0
  %519 = vmatpush2.bf16.msra.mxu0 0
  %520 = vmatprep.subr.bf16.mxu0 0
  %521 = vmatpush2.bf16.msra.mxu0 0
  %522 = vmatprep.mubr.bf16.mxu0 0
  %523 = vmatmul.mubr.bf16.gmra.mxu0 %v488
  %v524 = vpop.f32.mrf.mxu0
  %v525 = vadd.f32 %v86, %v524
  %v526 = vpop.f32.mrf.mxu0
  %v527 = vpop.f32.mrf.mxu0
  %v528 = vpop.f32.mrf.mxu0
  %529 = vdwg.mxu0
  %v531 = vrot.slane %v525, 6
  %v533 = vadd.f32 %v453, %v531
  %v534 = vxor.u32 %v533, 2147483648
  %v535 = vmul.f32 %v534, 1.442695
  %v536 = vpow.pop %v535
  %v537 = vadd.f32 %v536, 1.0
  %v538 = vrcp.pop %v537
  %v539 = vmul.f32 1.0, %v538
  %540 = vrot.lane.b32.xlu0 %v531, 96
  %v541 = vpop.permute.xlu0 %540
  %v543 = vmul.f32 %v539, %v541
  %545 = vrot.lane.b32.xlu0 %v543, 32
  %v546 = vpop.permute.xlu0 %545
  %v548 = vadd.f32 %v453, %v546
  %v549 = vtanh.pop %v548
  %v550 = vsub.f32 1.0, %v539
  %552 = vrot.lane.b32.xlu0 %v549, 112
  %v553 = vpop.permute.xlu0 %552
  %v555 = vmul.f32 %v550, %v553
  %v557 = vrot.slane %v482, 6
  %v559 = vmul.f32 %v539, %v557
  %v560 = vadd.f32 %v555, %v559
  %v561 = vpack.c.bf16 %v560, %v560
  %v563 = vrot.slane %v561, 1
  %564 = vrot.lane.b32.xlu0 %v563, 112
  %v565 = vpop.permute.xlu0 %564
  %v567 = vsel %vm94, %v565, 0
  %569 = vmatprep.subr.bf16.mxu0 0
  %570 = vmatpush1.bf16.msra.mxu0 0
  %571 = vmatprep.subr.bf16.mxu0 0
  %572 = vmatpush1.bf16.msra.mxu0 0
  %573 = vmatprep.subr.bf16.mxu0 0
  %574 = vmatpush1.bf16.msra.mxu0 0
  %575 = vmatprep.subr.bf16.mxu0 0
  %576 = vmatpush1.bf16.msra.mxu0 0
  %577 = vmatprep.subr.bf16.mxu0 0
  %578 = vmatpush1.bf16.msra.mxu0 0
  %579 = vmatprep.subr.bf16.mxu0 0
  %580 = vmatpush1.bf16.msra.mxu0 0
  %581 = vmatprep.subr.bf16.mxu0 0
  %582 = vmatpush1.bf16.msra.mxu0 0
  %583 = vmatprep.subr.bf16.mxu0 0
  %584 = vmatpush1.bf16.msra.mxu0 %v92
  %585 = vmatprep.subr.bf16.mxu0 0
  %586 = vmatpush2.bf16.msra.mxu0 0
  %587 = vmatprep.subr.bf16.mxu0 0
  %588 = vmatpush2.bf16.msra.mxu0 0
  %589 = vmatprep.subr.bf16.mxu0 0
  %590 = vmatpush2.bf16.msra.mxu0 0
  %591 = vmatprep.subr.bf16.mxu0 0
  %592 = vmatpush2.bf16.msra.mxu0 0
  %593 = vmatprep.subr.bf16.mxu0 0
  %594 = vmatpush2.bf16.msra.mxu0 0
  %595 = vmatprep.subr.bf16.mxu0 0
  %596 = vmatpush2.bf16.msra.mxu0 0
  %597 = vmatprep.subr.bf16.mxu0 0
  %598 = vmatpush2.bf16.msra.mxu0 0
  %599 = vmatprep.subr.bf16.mxu0 0
  %600 = vmatpush2.bf16.msra.mxu0 0
  %601 = vmatprep.mubr.bf16.mxu0 0
  %602 = vmatmul.mubr.bf16.gmra.mxu0 %v567
  %v603 = vpop.f32.mrf.mxu0
  %v604 = vadd.f32 %v86, %v603
  %v605 = vpop.f32.mrf.mxu0
  %v606 = vpop.f32.mrf.mxu0
  %v607 = vpop.f32.mrf.mxu0
  %608 = vdwg.mxu0
  %v610 = vrot.slane %v604, 4
  %v612 = vadd.f32 %v453, %v610
  %v613 = vxor.u32 %v612, 2147483648
  %v614 = vmul.f32 %v613, 1.442695
  %v615 = vpow.pop %v614
  %v616 = vadd.f32 %v615, 1.0
  %v617 = vrcp.pop %v616
  %v618 = vmul.f32 1.0, %v617
  %619 = vrot.lane.b32.xlu0 %v610, 96
  %v620 = vpop.permute.xlu0 %619
  %v622 = vmul.f32 %v618, %v620
  %624 = vrot.lane.b32.xlu0 %v622, 32
  %v625 = vpop.permute.xlu0 %624
  %v627 = vadd.f32 %v453, %v625
  %v628 = vtanh.pop %v627
  %v629 = vsub.f32 1.0, %v618
  %631 = vrot.lane.b32.xlu0 %v628, 112
  %v632 = vpop.permute.xlu0 %631
  %v634 = vmul.f32 %v629, %v632
  %v636 = vrot.slane %v560, 6
  %v638 = vmul.f32 %v618, %v636
  %v639 = vadd.f32 %v634, %v638
  %v640 = vpack.c.bf16 %v639, %v639
  %v642 = vrot.slane %v640, 2
  %643 = vrot.lane.b32.xlu0 %v642, 112
  %v644 = vpop.permute.xlu0 %643
  %v646 = vsel %vm94, %v644, 0
  %648 = vmatprep.subr.bf16.mxu0 0
  %649 = vmatpush1.bf16.msra.mxu0 0
  %650 = vmatprep.subr.bf16.mxu0 0
  %651 = vmatpush1.bf16.msra.mxu0 0
  %652 = vmatprep.subr.bf16.mxu0 0
  %653 = vmatpush1.bf16.msra.mxu0 0
  %654 = vmatprep.subr.bf16.mxu0 0
  %655 = vmatpush1.bf16.msra.mxu0 0
  %656 = vmatprep.subr.bf16.mxu0 0
  %657 = vmatpush1.bf16.msra.mxu0 0
  %658 = vmatprep.subr.bf16.mxu0 0
  %659 = vmatpush1.bf16.msra.mxu0 0
  %660 = vmatprep.subr.bf16.mxu0 0
  %661 = vmatpush1.bf16.msra.mxu0 0
  %662 = vmatprep.subr.bf16.mxu0 0
  %663 = vmatpush1.bf16.msra.mxu0 %v92
  %664 = vmatprep.subr.bf16.mxu0 0
  %665 = vmatpush2.bf16.msra.mxu0 0
  %666 = vmatprep.subr.bf16.mxu0 0
  %667 = vmatpush2.bf16.msra.mxu0 0
  %668 = vmatprep.subr.bf16.mxu0 0
  %669 = vmatpush2.bf16.msra.mxu0 0
  %670 = vmatprep.subr.bf16.mxu0 0
  %671 = vmatpush2.bf16.msra.mxu0 0
  %672 = vmatprep.subr.bf16.mxu0 0
  %673 = vmatpush2.bf16.msra.mxu0 0
  %674 = vmatprep.subr.bf16.mxu0 0
  %675 = vmatpush2.bf16.msra.mxu0 0
  %676 = vmatprep.subr.bf16.mxu0 0
  %677 = vmatpush2.bf16.msra.mxu0 0
  %678 = vmatprep.subr.bf16.mxu0 0
  %679 = vmatpush2.bf16.msra.mxu0 0
  %680 = vmatprep.mubr.bf16.mxu0 0
  %681 = vmatmul.mubr.bf16.gmra.mxu0 %v646
  %v682 = vpop.f32.mrf.mxu0
  %v683 = vadd.f32 %v86, %v682
  %v684 = vpop.f32.mrf.mxu0
  %v685 = vpop.f32.mrf.mxu0
  %v686 = vpop.f32.mrf.mxu0
  %687 = vdwg.mxu0
  %v689 = vrot.slane %v683, 2
  %v691 = vadd.f32 %v453, %v689
  %v692 = vxor.u32 %v691, 2147483648
  %v693 = vmul.f32 %v692, 1.442695
  %v694 = vpow.pop %v693
  %v695 = vadd.f32 %v694, 1.0
  %v696 = vrcp.pop %v695
  %v697 = vmul.f32 1.0, %v696
  %698 = vrot.lane.b32.xlu0 %v689, 96
  %v699 = vpop.permute.xlu0 %698
  %v701 = vmul.f32 %v697, %v699
  %703 = vrot.lane.b32.xlu0 %v701, 32
  %v704 = vpop.permute.xlu0 %703
  %v706 = vadd.f32 %v453, %v704
  %v707 = vtanh.pop %v706
  %v708 = vsub.f32 1.0, %v697
  %710 = vrot.lane.b32.xlu0 %v707, 112
  %v711 = vpop.permute.xlu0 %710
  %v713 = vmul.f32 %v708, %v711
  %v715 = vrot.slane %v639, 6
  %v717 = vmul.f32 %v697, %v715
  %v718 = vadd.f32 %v713, %v717
  %v719 = vpack.c.bf16 %v76, %v76
  %v721 = vlaneseq
  %v722 = vshrl.u32 %v721, 7
  %v723 = vsub.s32 0, %v722
  %v724 = vrot.slane %v74, %v723
  %v728 = vunpack.c.l.b16 %v71
  %v729 = vunpack.c.l.b16 %v72
  %v730 = vpack.c.b16 %v729, %v728
  %v733 = vsel %vm94, %v719, 0
  %735 = vmatprep.subr.bf16.mxu0 0
  %736 = vmatpush1.bf16.msra.mxu0 0
  %737 = vmatprep.subr.bf16.mxu0 0
  %738 = vmatpush1.bf16.msra.mxu0 0
  %739 = vmatprep.subr.bf16.mxu0 0
  %740 = vmatpush1.bf16.msra.mxu0 0
  %741 = vmatprep.subr.bf16.mxu0 0
  %742 = vmatpush1.bf16.msra.mxu0 0
  %743 = vmatprep.subr.bf16.mxu0 0
  %744 = vmatpush1.bf16.msra.mxu0 0
  %745 = vmatprep.subr.bf16.mxu0 0
  %746 = vmatpush1.bf16.msra.mxu0 0
  %747 = vmatprep.subr.bf16.mxu0 0
  %748 = vmatpush1.bf16.msra.mxu0 0
  %749 = vmatprep.subr.bf16.mxu0 0
  %750 = vmatpush1.bf16.msra.mxu0 %v730
  %751 = vmatprep.subr.bf16.mxu0 0
  %752 = vmatpush2.bf16.msra.mxu0 0
  %753 = vmatprep.subr.bf16.mxu0 0
  %754 = vmatpush2.bf16.msra.mxu0 0
  %755 = vmatprep.subr.bf16.mxu0 0
  %756 = vmatpush2.bf16.msra.mxu0 0
  %757 = vmatprep.subr.bf16.mxu0 0
  %758 = vmatpush2.bf16.msra.mxu0 0
  %759 = vmatprep.subr.bf16.mxu0 0
  %760 = vmatpush2.bf16.msra.mxu0 0
  %761 = vmatprep.subr.bf16.mxu0 0
  %762 = vmatpush2.bf16.msra.mxu0 0
  %763 = vmatprep.subr.bf16.mxu0 0
  %764 = vmatpush2.bf16.msra.mxu0 0
  %765 = vmatprep.subr.bf16.mxu0 0
  %766 = vmatpush2.bf16.msra.mxu0 0
  %767 = vmatprep.mubr.bf16.mxu0 0
  %768 = vmatmul.mubr.bf16.gmra.mxu0 %v733
  %v769 = vpop.f32.mrf.mxu0
  %v770 = vadd.f32 %v724, %v769
  %v771 = vpop.f32.mrf.mxu0
  %v772 = vpop.f32.mrf.mxu0
  %v773 = vpop.f32.mrf.mxu0
  %774 = vdwg.mxu0
  %v775 = vunpack.c.l.bf16 %v80
  %v777 = vrot.slane %v770, 2
  %v779 = vadd.f32 %v775, %v777
  %v780 = vxor.u32 %v779, 2147483648
  %v781 = vmul.f32 %v780, 1.442695
  %v782 = vpow.pop %v781
  %v783 = vadd.f32 %v782, 1.0
  %v784 = vrcp.pop %v783
  %v785 = vmul.f32 1.0, %v784
  %786 = vrot.lane.b32.xlu0 %v777, 96
  %v787 = vpop.permute.xlu0 %786
  %v789 = vmul.f32 %v785, %v787
  %791 = vrot.lane.b32.xlu0 %v789, 32
  %v792 = vpop.permute.xlu0 %791
  %v794 = vadd.f32 %v775, %v792
  %v795 = vtanh.pop %v794
  %v796 = vsub.f32 1.0, %v785
  %798 = vrot.lane.b32.xlu0 %v795, 112
  %v799 = vpop.permute.xlu0 %798
  %v801 = vmul.f32 %v796, %v799
  %v803 = vrot.slane %v76, 2
  %804 = vrot.lane.b32.xlu0 %v803, 16
  %v805 = vpop.permute.xlu0 %804
  %v807 = vmul.f32 %v785, %v805
  %v808 = vadd.f32 %v801, %v807
  %v809 = vpack.c.bf16 %v808, %v808
  %v811 = vrot.slane %v809, 3
  %812 = vrot.lane.b32.xlu0 %v811, 112
  %v813 = vpop.permute.xlu0 %812
  %v815 = vsel %vm94, %v813, 0
  %817 = vmatprep.subr.bf16.mxu0 0
  %818 = vmatpush1.bf16.msra.mxu0 0
  %819 = vmatprep.subr.bf16.mxu0 0
  %820 = vmatpush1.bf16.msra.mxu0 0
  %821 = vmatprep.subr.bf16.mxu0 0
  %822 = vmatpush1.bf16.msra.mxu0 0
  %823 = vmatprep.subr.bf16.mxu0 0
  %824 = vmatpush1.bf16.msra.mxu0 0
  %825 = vmatprep.subr.bf16.mxu0 0
  %826 = vmatpush1.bf16.msra.mxu0 0
  %827 = vmatprep.subr.bf16.mxu0 0
  %828 = vmatpush1.bf16.msra.mxu0 0
  %829 = vmatprep.subr.bf16.mxu0 0
  %830 = vmatpush1.bf16.msra.mxu0 0
  %831 = vmatprep.subr.bf16.mxu0 0
  %832 = vmatpush1.bf16.msra.mxu0 %v730
  %833 = vmatprep.subr.bf16.mxu0 0
  %834 = vmatpush2.bf16.msra.mxu0 0
  %835 = vmatprep.subr.bf16.mxu0 0
  %836 = vmatpush2.bf16.msra.mxu0 0
  %837 = vmatprep.subr.bf16.mxu0 0
  %838 = vmatpush2.bf16.msra.mxu0 0
  %839 = vmatprep.subr.bf16.mxu0 0
  %840 = vmatpush2.bf16.msra.mxu0 0
  %841 = vmatprep.subr.bf16.mxu0 0
  %842 = vmatpush2.bf16.msra.mxu0 0
  %843 = vmatprep.subr.bf16.mxu0 0
  %844 = vmatpush2.bf16.msra.mxu0 0
  %845 = vmatprep.subr.bf16.mxu0 0
  %846 = vmatpush2.bf16.msra.mxu0 0
  %847 = vmatprep.subr.bf16.mxu0 0
  %848 = vmatpush2.bf16.msra.mxu0 0
  %849 = vmatprep.mubr.bf16.mxu0 0
  %850 = vmatmul.mubr.bf16.gmra.mxu0 %v815
  %v851 = vpop.f32.mrf.mxu0
  %v852 = vadd.f32 %v724, %v851
  %v853 = vpop.f32.mrf.mxu0
  %v854 = vpop.f32.mrf.mxu0
  %v855 = vpop.f32.mrf.mxu0
  %856 = vdwg.mxu0
  %v858 = vrot.slane %v852, 4
  %v860 = vadd.f32 %v775, %v858
  %v861 = vxor.u32 %v860, 2147483648
  %v862 = vmul.f32 %v861, 1.442695
  %v863 = vpow.pop %v862
  %v864 = vadd.f32 %v863, 1.0
  %v865 = vrcp.pop %v864
  %v866 = vmul.f32 1.0, %v865
  %867 = vrot.lane.b32.xlu0 %v858, 96
  %v868 = vpop.permute.xlu0 %867
  %v870 = vmul.f32 %v866, %v868
  %872 = vrot.lane.b32.xlu0 %v870, 32
  %v873 = vpop.permute.xlu0 %872
  %v875 = vadd.f32 %v775, %v873
  %v876 = vtanh.pop %v875
  %v877 = vsub.f32 1.0, %v866
  %879 = vrot.lane.b32.xlu0 %v876, 112
  %v880 = vpop.permute.xlu0 %879
  %v882 = vmul.f32 %v877, %v880
  %v884 = vrot.slane %v808, 2
  %v886 = vmul.f32 %v866, %v884
  %v887 = vadd.f32 %v882, %v886
  %v888 = vpack.c.bf16 %v887, %v887
  %v890 = vrot.slane %v888, 2
  %891 = vrot.lane.b32.xlu0 %v890, 112
  %v892 = vpop.permute.xlu0 %891
  %v894 = vsel %vm94, %v892, 0
  %896 = vmatprep.subr.bf16.mxu0 0
  %897 = vmatpush1.bf16.msra.mxu0 0
  %898 = vmatprep.subr.bf16.mxu0 0
  %899 = vmatpush1.bf16.msra.mxu0 0
  %900 = vmatprep.subr.bf16.mxu0 0
  %901 = vmatpush1.bf16.msra.mxu0 0
  %902 = vmatprep.subr.bf16.mxu0 0
  %903 = vmatpush1.bf16.msra.mxu0 0
  %904 = vmatprep.subr.bf16.mxu0 0
  %905 = vmatpush1.bf16.msra.mxu0 0
  %906 = vmatprep.subr.bf16.mxu0 0
  %907 = vmatpush1.bf16.msra.mxu0 0
  %908 = vmatprep.subr.bf16.mxu0 0
  %909 = vmatpush1.bf16.msra.mxu0 0
  %910 = vmatprep.subr.bf16.mxu0 0
  %911 = vmatpush1.bf16.msra.mxu0 %v730
  %912 = vmatprep.subr.bf16.mxu0 0
  %913 = vmatpush2.bf16.msra.mxu0 0
  %914 = vmatprep.subr.bf16.mxu0 0
  %915 = vmatpush2.bf16.msra.mxu0 0
  %916 = vmatprep.subr.bf16.mxu0 0
  %917 = vmatpush2.bf16.msra.mxu0 0
  %918 = vmatprep.subr.bf16.mxu0 0
  %919 = vmatpush2.bf16.msra.mxu0 0
  %920 = vmatprep.subr.bf16.mxu0 0
  %921 = vmatpush2.bf16.msra.mxu0 0
  %922 = vmatprep.subr.bf16.mxu0 0
  %923 = vmatpush2.bf16.msra.mxu0 0
  %924 = vmatprep.subr.bf16.mxu0 0
  %925 = vmatpush2.bf16.msra.mxu0 0
  %926 = vmatprep.subr.bf16.mxu0 0
  %927 = vmatpush2.bf16.msra.mxu0 0
  %928 = vmatprep.mubr.bf16.mxu0 0
  %929 = vmatmul.mubr.bf16.gmra.mxu0 %v894
  %v930 = vpop.f32.mrf.mxu0
  %v931 = vadd.f32 %v724, %v930
  %v932 = vpop.f32.mrf.mxu0
  %v933 = vpop.f32.mrf.mxu0
  %v934 = vpop.f32.mrf.mxu0
  %935 = vdwg.mxu0
  %v937 = vrot.slane %v931, 6
  %v939 = vadd.f32 %v775, %v937
  %v940 = vxor.u32 %v939, 2147483648
  %v941 = vmul.f32 %v940, 1.442695
  %v942 = vpow.pop %v941
  %v943 = vadd.f32 %v942, 1.0
  %v944 = vrcp.pop %v943
  %v945 = vmul.f32 1.0, %v944
  %946 = vrot.lane.b32.xlu0 %v937, 96
  %v947 = vpop.permute.xlu0 %946
  %v949 = vmul.f32 %v945, %v947
  %951 = vrot.lane.b32.xlu0 %v949, 32
  %v952 = vpop.permute.xlu0 %951
  %v954 = vadd.f32 %v775, %v952
  %v955 = vtanh.pop %v954
  %v956 = vsub.f32 1.0, %v945
  %958 = vrot.lane.b32.xlu0 %v955, 112
  %v959 = vpop.permute.xlu0 %958
  %v961 = vmul.f32 %v956, %v959
  %v963 = vrot.slane %v887, 2
  %v965 = vmul.f32 %v945, %v963
  %v966 = vadd.f32 %v961, %v965
  %v967 = vpack.c.bf16 %v966, %v966
  %v969 = vrot.slane %v967, 1
  %970 = vrot.lane.b32.xlu0 %v969, 112
  %v971 = vpop.permute.xlu0 %970
  %v973 = vsel %vm94, %v971, 0
  %975 = vmatprep.subr.bf16.mxu0 0
  %976 = vmatpush1.bf16.msra.mxu0 0
  %977 = vmatprep.subr.bf16.mxu0 0
  %978 = vmatpush1.bf16.msra.mxu0 0
  %979 = vmatprep.subr.bf16.mxu0 0
  %980 = vmatpush1.bf16.msra.mxu0 0
  %981 = vmatprep.subr.bf16.mxu0 0
  %982 = vmatpush1.bf16.msra.mxu0 0
  %983 = vmatprep.subr.bf16.mxu0 0
  %984 = vmatpush1.bf16.msra.mxu0 0
  %985 = vmatprep.subr.bf16.mxu0 0
  %986 = vmatpush1.bf16.msra.mxu0 0
  %987 = vmatprep.subr.bf16.mxu0 0
  %988 = vmatpush1.bf16.msra.mxu0 0
  %989 = vmatprep.subr.bf16.mxu0 0
  %990 = vmatpush1.bf16.msra.mxu0 %v730
  %991 = vmatprep.subr.bf16.mxu0 0
  %992 = vmatpush2.bf16.msra.mxu0 0
  %993 = vmatprep.subr.bf16.mxu0 0
  %994 = vmatpush2.bf16.msra.mxu0 0
  %995 = vmatprep.subr.bf16.mxu0 0
  %996 = vmatpush2.bf16.msra.mxu0 0
  %997 = vmatprep.subr.bf16.mxu0 0
  %998 = vmatpush2.bf16.msra.mxu0 0
  %999 = vmatprep.subr.bf16.mxu0 0
  %1000 = vmatpush2.bf16.msra.mxu0 0
  %1001 = vmatprep.subr.bf16.mxu0 0
  %1002 = vmatpush2.bf16.msra.mxu0 0
  %1003 = vmatprep.subr.bf16.mxu0 0
  %1004 = vmatpush2.bf16.msra.mxu0 0
  %1005 = vmatprep.subr.bf16.mxu0 0
  %1006 = vmatpush2.bf16.msra.mxu0 0
  %1007 = vmatprep.mubr.bf16.mxu0 0
  %1008 = vmatmul.mubr.bf16.gmra.mxu0 %v973
  %v1009 = vpop.f32.mrf.mxu0
  %v1010 = vadd.f32 %v724, %v1009
  %v1011 = vpop.f32.mrf.mxu0
  %v1012 = vpop.f32.mrf.mxu0
  %v1013 = vpop.f32.mrf.mxu0
  %1014 = vdwg.mxu0
  %v1015 = vadd.f32 %v775, %v1010
  %v1016 = vxor.u32 %v1015, 2147483648
  %v1017 = vmul.f32 %v1016, 1.442695
  %v1018 = vpow.pop %v1017
  %v1019 = vadd.f32 %v1018, 1.0
  %v1020 = vrcp.pop %v1019
  %v1021 = vmul.f32 1.0, %v1020
  %1023 = vrot.lane.b32.xlu0 %v1010, 96
  %v1024 = vpop.permute.xlu0 %1023
  %v1026 = vmul.f32 %v1021, %v1024
  %1028 = vrot.lane.b32.xlu0 %v1026, 32
  %v1029 = vpop.permute.xlu0 %1028
  %v1031 = vadd.f32 %v775, %v1029
  %v1032 = vtanh.pop %v1031
  %v1033 = vsub.f32 1.0, %v1021
  %1035 = vrot.lane.b32.xlu0 %v1032, 112
  %v1036 = vpop.permute.xlu0 %1035
  %v1038 = vmul.f32 %v1033, %v1036
  %v1040 = vrot.slane %v966, 2
  %v1042 = vmul.f32 %v1021, %v1040
  %v1043 = vadd.f32 %v1038, %v1042
  %v1044 = vpack.c.bf16 %v1043, %v1043
  %1046 = vrot.lane.b32.xlu0 %v1044, 112
  %v1047 = vpop.permute.xlu0 %1046
  %v1049 = vsel %vm94, %v1047, 0
  %1051 = vmatprep.subr.bf16.mxu0 0
  %1052 = vmatpush1.bf16.msra.mxu0 0
  %1053 = vmatprep.subr.bf16.mxu0 0
  %1054 = vmatpush1.bf16.msra.mxu0 0
  %1055 = vmatprep.subr.bf16.mxu0 0
  %1056 = vmatpush1.bf16.msra.mxu0 0
  %1057 = vmatprep.subr.bf16.mxu0 0
  %1058 = vmatpush1.bf16.msra.mxu0 0
  %1059 = vmatprep.subr.bf16.mxu0 0
  %1060 = vmatpush1.bf16.msra.mxu0 0
  %1061 = vmatprep.subr.bf16.mxu0 0
  %1062 = vmatpush1.bf16.msra.mxu0 0
  %1063 = vmatprep.subr.bf16.mxu0 0
  %1064 = vmatpush1.bf16.msra.mxu0 0
  %1065 = vmatprep.subr.bf16.mxu0 0
  %1066 = vmatpush1.bf16.msra.mxu0 %v730
  %1067 = vmatprep.subr.bf16.mxu0 0
  %1068 = vmatpush2.bf16.msra.mxu0 0
  %1069 = vmatprep.subr.bf16.mxu0 0
  %1070 = vmatpush2.bf16.msra.mxu0 0
  %1071 = vmatprep.subr.bf16.mxu0 0
  %1072 = vmatpush2.bf16.msra.mxu0 0
  %1073 = vmatprep.subr.bf16.mxu0 0
  %1074 = vmatpush2.bf16.msra.mxu0 0
  %1075 = vmatprep.subr.bf16.mxu0 0
  %1076 = vmatpush2.bf16.msra.mxu0 0
  %1077 = vmatprep.subr.bf16.mxu0 0
  %1078 = vmatpush2.bf16.msra.mxu0 0
  %1079 = vmatprep.subr.bf16.mxu0 0
  %1080 = vmatpush2.bf16.msra.mxu0 0
  %1081 = vmatprep.subr.bf16.mxu0 0
  %1082 = vmatpush2.bf16.msra.mxu0 0
  %1083 = vmatprep.mubr.bf16.mxu0 0
  %1084 = vmatmul.mubr.bf16.gmra.mxu0 %v1049
  %v1085 = vpop.f32.mrf.mxu0
  %v1086 = vadd.f32 %v724, %v1085
  %v1087 = vpop.f32.mrf.mxu0
  %v1088 = vpop.f32.mrf.mxu0
  %v1089 = vpop.f32.mrf.mxu0
  %1090 = vdwg.mxu0
  %v1091 = vunpack.c.l.bf16 %v79
  %v1093 = vrot.slane %v1086, 2
  %v1095 = vadd.f32 %v1091, %v1093
  %v1096 = vxor.u32 %v1095, 2147483648
  %v1097 = vmul.f32 %v1096, 1.442695
  %v1098 = vpow.pop %v1097
  %v1099 = vadd.f32 %v1098, 1.0
  %v1100 = vrcp.pop %v1099
  %v1101 = vmul.f32 1.0, %v1100
  %1102 = vrot.lane.b32.xlu0 %v1093, 96
  %v1103 = vpop.permute.xlu0 %1102
  %v1105 = vmul.f32 %v1101, %v1103
  %1107 = vrot.lane.b32.xlu0 %v1105, 32
  %v1108 = vpop.permute.xlu0 %1107
  %v1110 = vadd.f32 %v1091, %v1108
  %v1111 = vtanh.pop %v1110
  %v1112 = vsub.f32 1.0, %v1101
  %1114 = vrot.lane.b32.xlu0 %v1111, 112
  %v1115 = vpop.permute.xlu0 %1114
  %v1117 = vmul.f32 %v1112, %v1115
  %v1119 = vrot.slane %v1043, 2
  %v1121 = vmul.f32 %v1101, %v1119
  %v1122 = vadd.f32 %v1117, %v1121
  %v1123 = vpack.c.bf16 %v1122, %v1122
  %v1125 = vrot.slane %v1123, 3
  %1126 = vrot.lane.b32.xlu0 %v1125, 112
  %v1127 = vpop.permute.xlu0 %1126
  %v1129 = vsel %vm94, %v1127, 0
  %1131 = vmatprep.subr.bf16.mxu0 0
  %1132 = vmatpush1.bf16.msra.mxu0 0
  %1133 = vmatprep.subr.bf16.mxu0 0
  %1134 = vmatpush1.bf16.msra.mxu0 0
  %1135 = vmatprep.subr.bf16.mxu0 0
  %1136 = vmatpush1.bf16.msra.mxu0 0
  %1137 = vmatprep.subr.bf16.mxu0 0
  %1138 = vmatpush1.bf16.msra.mxu0 0
  %1139 = vmatprep.subr.bf16.mxu0 0
  %1140 = vmatpush1.bf16.msra.mxu0 0
  %1141 = vmatprep.subr.bf16.mxu0 0
  %1142 = vmatpush1.bf16.msra.mxu0 0
  %1143 = vmatprep.subr.bf16.mxu0 0
  %1144 = vmatpush1.bf16.msra.mxu0 0
  %1145 = vmatprep.subr.bf16.mxu0 0
  %1146 = vmatpush1.bf16.msra.mxu0 %v730
  %1147 = vmatprep.subr.bf16.mxu0 0
  %1148 = vmatpush2.bf16.msra.mxu0 0
  %1149 = vmatprep.subr.bf16.mxu0 0
  %1150 = vmatpush2.bf16.msra.mxu0 0
  %1151 = vmatprep.subr.bf16.mxu0 0
  %1152 = vmatpush2.bf16.msra.mxu0 0
  %1153 = vmatprep.subr.bf16.mxu0 0
  %1154 = vmatpush2.bf16.msra.mxu0 0
  %1155 = vmatprep.subr.bf16.mxu0 0
  %1156 = vmatpush2.bf16.msra.mxu0 0
  %1157 = vmatprep.subr.bf16.mxu0 0
  %1158 = vmatpush2.bf16.msra.mxu0 0
  %1159 = vmatprep.subr.bf16.mxu0 0
  %1160 = vmatpush2.bf16.msra.mxu0 0
  %1161 = vmatprep.subr.bf16.mxu0 0
  %1162 = vmatpush2.bf16.msra.mxu0 0
  %1163 = vmatprep.mubr.bf16.mxu0 0
  %1164 = vmatmul.mubr.bf16.gmra.mxu0 %v1129
  %v1165 = vpop.f32.mrf.mxu0
  %v1166 = vadd.f32 %v724, %v1165
  %v1167 = vpop.f32.mrf.mxu0
  %v1168 = vpop.f32.mrf.mxu0
  %v1169 = vpop.f32.mrf.mxu0
  %1170 = vdwg.mxu0
  %v1172 = vrot.slane %v1166, 4
  %v1174 = vadd.f32 %v1091, %v1172
  %v1175 = vxor.u32 %v1174, 2147483648
  %v1176 = vmul.f32 %v1175, 1.442695
  %v1177 = vpow.pop %v1176
  %v1178 = vadd.f32 %v1177, 1.0
  %v1179 = vrcp.pop %v1178
  %v1180 = vmul.f32 1.0, %v1179
  %1181 = vrot.lane.b32.xlu0 %v1172, 96
  %v1182 = vpop.permute.xlu0 %1181
  %v1184 = vmul.f32 %v1180, %v1182
  %1186 = vrot.lane.b32.xlu0 %v1184, 32
  %v1187 = vpop.permute.xlu0 %1186
  %v1189 = vadd.f32 %v1091, %v1187
  %v1190 = vtanh.pop %v1189
  %v1191 = vsub.f32 1.0, %v1180
  %1193 = vrot.lane.b32.xlu0 %v1190, 112
  %v1194 = vpop.permute.xlu0 %1193
  %v1196 = vmul.f32 %v1191, %v1194
  %v1198 = vrot.slane %v1122, 2
  %v1200 = vmul.f32 %v1180, %v1198
  %v1201 = vadd.f32 %v1196, %v1200
  %v1202 = vpack.c.bf16 %v1201, %v1201
  %v1204 = vrot.slane %v1202, 2
  %1205 = vrot.lane.b32.xlu0 %v1204, 112
  %v1206 = vpop.permute.xlu0 %1205
  %v1208 = vsel %vm94, %v1206, 0
  %1210 = vmatprep.subr.bf16.mxu0 0
  %1211 = vmatpush1.bf16.msra.mxu0 0
  %1212 = vmatprep.subr.bf16.mxu0 0
  %1213 = vmatpush1.bf16.msra.mxu0 0
  %1214 = vmatprep.subr.bf16.mxu0 0
  %1215 = vmatpush1.bf16.msra.mxu0 0
  %1216 = vmatprep.subr.bf16.mxu0 0
  %1217 = vmatpush1.bf16.msra.mxu0 0
  %1218 = vmatprep.subr.bf16.mxu0 0
  %1219 = vmatpush1.bf16.msra.mxu0 0
  %1220 = vmatprep.subr.bf16.mxu0 0
  %1221 = vmatpush1.bf16.msra.mxu0 0
  %1222 = vmatprep.subr.bf16.mxu0 0
  %1223 = vmatpush1.bf16.msra.mxu0 0
  %1224 = vmatprep.subr.bf16.mxu0 0
  %1225 = vmatpush1.bf16.msra.mxu0 %v730
  %1226 = vmatprep.subr.bf16.mxu0 0
  %1227 = vmatpush2.bf16.msra.mxu0 0
  %1228 = vmatprep.subr.bf16.mxu0 0
  %1229 = vmatpush2.bf16.msra.mxu0 0
  %1230 = vmatprep.subr.bf16.mxu0 0
  %1231 = vmatpush2.bf16.msra.mxu0 0
  %1232 = vmatprep.subr.bf16.mxu0 0
  %1233 = vmatpush2.bf16.msra.mxu0 0
  %1234 = vmatprep.subr.bf16.mxu0 0
  %1235 = vmatpush2.bf16.msra.mxu0 0
  %1236 = vmatprep.subr.bf16.mxu0 0
  %1237 = vmatpush2.bf16.msra.mxu0 0
  %1238 = vmatprep.subr.bf16.mxu0 0
  %1239 = vmatpush2.bf16.msra.mxu0 0
  %1240 = vmatprep.subr.bf16.mxu0 0
  %1241 = vmatpush2.bf16.msra.mxu0 0
  %1242 = vmatprep.mubr.bf16.mxu0 0
  %1243 = vmatmul.mubr.bf16.gmra.mxu0 %v1208
  %v1244 = vpop.f32.mrf.mxu0
  %v1245 = vadd.f32 %v724, %v1244
  %v1246 = vpop.f32.mrf.mxu0
  %v1247 = vpop.f32.mrf.mxu0
  %v1248 = vpop.f32.mrf.mxu0
  %1249 = vdwg.mxu0
  %v1251 = vrot.slane %v1245, 6
  %v1253 = vadd.f32 %v1091, %v1251
  %v1254 = vxor.u32 %v1253, 2147483648
  %v1255 = vmul.f32 %v1254, 1.442695
  %v1256 = vpow.pop %v1255
  %v1257 = vadd.f32 %v1256, 1.0
  %v1258 = vrcp.pop %v1257
  %v1259 = vmul.f32 1.0, %v1258
  %1260 = vrot.lane.b32.xlu0 %v1251, 96
  %v1261 = vpop.permute.xlu0 %1260
  %v1263 = vmul.f32 %v1259, %v1261
  %1265 = vrot.lane.b32.xlu0 %v1263, 32
  %v1266 = vpop.permute.xlu0 %1265
  %v1268 = vadd.f32 %v1091, %v1266
  %v1269 = vtanh.pop %v1268
  %v1270 = vsub.f32 1.0, %v1259
  %1272 = vrot.lane.b32.xlu0 %v1269, 112
  %v1273 = vpop.permute.xlu0 %1272
  %v1275 = vmul.f32 %v1270, %v1273
  %v1277 = vrot.slane %v1201, 2
  %v1279 = vmul.f32 %v1259, %v1277
  %v1280 = vadd.f32 %v1275, %v1279
  %v1281 = vpack.c.bf16 %v1280, %v1280
  %v1283 = vrot.slane %v1281, 1
  %1284 = vrot.lane.b32.xlu0 %v1283, 112
  %v1285 = vpop.permute.xlu0 %1284
  %v1287 = vsel %vm94, %v1285, 0
  %1289 = vmatprep.subr.bf16.mxu0 0
  %1290 = vmatpush1.bf16.msra.mxu0 0
  %1291 = vmatprep.subr.bf16.mxu0 0
  %1292 = vmatpush1.bf16.msra.mxu0 0
  %1293 = vmatprep.subr.bf16.mxu0 0
  %1294 = vmatpush1.bf16.msra.mxu0 0
  %1295 = vmatprep.subr.bf16.mxu0 0
  %1296 = vmatpush1.bf16.msra.mxu0 0
  %1297 = vmatprep.subr.bf16.mxu0 0
  %1298 = vmatpush1.bf16.msra.mxu0 0
  %1299 = vmatprep.subr.bf16.mxu0 0
  %1300 = vmatpush1.bf16.msra.mxu0 0
  %1301 = vmatprep.subr.bf16.mxu0 0
  %1302 = vmatpush1.bf16.msra.mxu0 0
  %1303 = vmatprep.subr.bf16.mxu0 0
  %1304 = vmatpush1.bf16.msra.mxu0 %v730
  %1305 = vmatprep.subr.bf16.mxu0 0
  %1306 = vmatpush2.bf16.msra.mxu0 0
  %1307 = vmatprep.subr.bf16.mxu0 0
  %1308 = vmatpush2.bf16.msra.mxu0 0
  %1309 = vmatprep.subr.bf16.mxu0 0
  %1310 = vmatpush2.bf16.msra.mxu0 0
  %1311 = vmatprep.subr.bf16.mxu0 0
  %1312 = vmatpush2.bf16.msra.mxu0 0
  %1313 = vmatprep.subr.bf16.mxu0 0
  %1314 = vmatpush2.bf16.msra.mxu0 0
  %1315 = vmatprep.subr.bf16.mxu0 0
  %1316 = vmatpush2.bf16.msra.mxu0 0
  %1317 = vmatprep.subr.bf16.mxu0 0
  %1318 = vmatpush2.bf16.msra.mxu0 0
  %1319 = vmatprep.subr.bf16.mxu0 0
  %1320 = vmatpush2.bf16.msra.mxu0 0
  %1321 = vmatprep.mubr.bf16.mxu0 0
  %1322 = vmatmul.mubr.bf16.gmra.mxu0 %v1287
  %v1323 = vpop.f32.mrf.mxu0
  %v1324 = vadd.f32 %v724, %v1323
  %v1325 = vpop.f32.mrf.mxu0
  %v1326 = vpop.f32.mrf.mxu0
  %v1327 = vpop.f32.mrf.mxu0
  %1328 = vdwg.mxu0
  %v1329 = vadd.f32 %v1091, %v1324
  %v1330 = vxor.u32 %v1329, 2147483648
  %v1331 = vmul.f32 %v1330, 1.442695
  %v1332 = vpow.pop %v1331
  %v1333 = vadd.f32 %v1332, 1.0
  %v1334 = vrcp.pop %v1333
  %v1335 = vmul.f32 1.0, %v1334
  %1337 = vrot.lane.b32.xlu0 %v1324, 96
  %v1338 = vpop.permute.xlu0 %1337
  %v1340 = vmul.f32 %v1335, %v1338
  %1342 = vrot.lane.b32.xlu0 %v1340, 32
  %v1343 = vpop.permute.xlu0 %1342
  %v1345 = vadd.f32 %v1091, %v1343
  %v1346 = vtanh.pop %v1345
  %v1347 = vsub.f32 1.0, %v1335
  %1349 = vrot.lane.b32.xlu0 %v1346, 112
  %v1350 = vpop.permute.xlu0 %1349
  %v1352 = vmul.f32 %v1347, %v1350
  %v1354 = vrot.slane %v1280, 2
  %v1356 = vmul.f32 %v1335, %v1354
  %v1357 = vadd.f32 %v1352, %v1356
  %vm1358 = vcmask 1041408
  %v1359 = vsel %vm1358, %v168, %v246
  %vm1360 = vcmask 1043456
  %v1361 = vsel %vm1360, %v1359, %v325
  %vm1362 = vcmask 1045504
  %v1363 = vsel %vm1362, %v1361, %v404
  %v1364 = vsel %vm1358, %v482, %v560
  %v1365 = vsel %vm1360, %v1364, %v639
  %v1366 = vsel %vm1362, %v1365, %v718
  %v1367 = vpack.c.bf16 %v1366, %v1363
  %v1369 = vunpack.c.l.b16 %v1367
  %v1370 = vunpack.c.h.b16 %v1367
  %v1371 = vpack.c.b16 %v1369, %v1369
  %v1372 = vpack.c.b16 %v1370, %v1370
  %1373 = vrot.lane.b32.xlu0 %v1371, 112
  %v1374 = vpop.permute.xlu0 %1373
  %1375 = vrot.lane.b32.xlu0 %v1372, 112
  %v1376 = vpop.permute.xlu0 %1375
  %vm1379 = vcmask 125952
  %1380 = vst.msk [vmem:[%s6] sm:$0xf] %vm1379, %v1374
  %1381 = vst.msk [vmem:[%s6 + $0x4] sm:$0xf] %vm1379, %v1376
  %v1382 = vsel %vm1358, %v1357, %v1280
  %v1383 = vsel %vm1360, %v1382, %v1201
  %v1384 = vsel %vm1362, %v1383, %v1122
  %v1385 = vsel %vm1358, %v1043, %v966
  %v1386 = vsel %vm1360, %v1385, %v887
  %v1387 = vsel %vm1362, %v1386, %v808
  %v1388 = vpack.c.bf16 %v1387, %v1384
  %v1390 = vunpack.c.l.b16 %v1388
  %v1391 = vunpack.c.h.b16 %v1388
  %v1392 = vpack.c.b16 %v1390, %v1390
  %v1393 = vpack.c.b16 %v1391, %v1391
  %1394 = vrot.lane.b32.xlu0 %v1392, 112
  %v1395 = vpop.permute.xlu0 %1394
  %1396 = vrot.lane.b32.xlu0 %v1393, 112
  %v1397 = vpop.permute.xlu0 %1396
  %1400 = vst.msk [vmem:[%s58] sm:$0xf] %vm1379, %v1395
  %1401 = vst.msk [vmem:[%s58 + $0x4] sm:$0xf] %vm1379, %v1397
  %1403 = vrot.lane.b32.xlu0 %v718, 112
  %v1404 = vpop.permute.xlu0 %1403
  %vm1406 = vcmask 130054
  %1407 = vst.msk [vmem:[#allocation2 - $0x6] sm:$0xc0] %vm1406, %v1404
  %1409 = vrot.lane.b32.xlu0 %v1357, 112
  %v1410 = vpop.permute.xlu0 %1409
  %vm1412 = vcmask 123904
  %1413 = vst.msk [vmem:[#allocation3] sm:$0x3] %vm1412, %v1410
  %s1414 = ssub.s32 0, 0
  %s1415 = smul.u32 2, %s1414
  %p1416 = scmp.lt.s32.totalorder %s1415, 1
  %s1417 = scalar_select %p1416, %s1415, 1
  %s1418 = smul.addr %s1417, 4
  %s1419 = scalar_lea.vmem %s7, %s1418
  // Predicated region
  $region30: #{_lambda_.13} parent=0 // pred_check
    _
  $region31: #{_lambda_.13} parent=0 // pred_check_branch
    %1421 = sbr.rel (0) target = $region33
  $region32: #{_lambda_.13} parent=0 // pred_region
    _
  $region33: #{_lambda_.13} parent=0 // pred_fallthru
    _
  // Predicated region
  $region34: #{_lambda_.13} parent=0 // pred_check
    _
  $region35: #{_lambda_.13} parent=0 // pred_check_branch
    %1423 = sbr.rel (0) target = $region37
  $region36: #{_lambda_.13} parent=0 // pred_region
    %s1424 = ssub.s32 0, 0
    %s1425 = smul.u32 2, %s1424
  $region37: #{_lambda_.13} parent=0 // pred_fallthru
    _
  // Predicated region
  $region38: #{_lambda_.13} parent=0 // pred_check
    _
  $region39: #{_lambda_.13} parent=0 // pred_check_branch
    %1427 = sbr.rel (0) target = $region41
  $region40: #{_lambda_.13} parent=0 // pred_region
    _
  $region41: #{_lambda_.13} parent=0 // pred_fallthru
    _
  // Predicated region
  $region42: #{_lambda_.13} parent=0 // pred_check
    _
  $region43: #{_lambda_.13} parent=0 // pred_check_branch
    %1429 = sbr.rel (0) target = $region45
  $region44: #{_lambda_.13} parent=0 // pred_region
    %s1430 = ssub.s32 0, 0
    %s1431 = smul.u32 2, %s1430
    %p1432 = scmp.lt.s32.totalorder %s1431, 1
    %s1433 = scalar_select %p1432, %s1431, 1
    %s1434 = smul.addr %s1433, 4
    %s1435 = scalar_lea.vmem %s7, %s1434
  $region45: #{_lambda_.13} parent=0 // pred_fallthru
    _

</llo_original>
